<compile_context>
chip_gen: v7x
topology: tpu7x:2x2x1
jax: 0.10.0
libtpu: 0.0.40
codegen_flags: <defaults>
</compile_context>

<pallas_src>
import functools
import math

import jax
import jax.numpy as jnp
from jax.experimental import pallas as pl
from jax.experimental.pallas import tpu as pltpu

LOG2PI = math.log(2.0 * math.pi)


# ---------------------------------------------------------------------------
# In-kernel building blocks (operate on loaded arrays / weight refs)
# ---------------------------------------------------------------------------
def _dot(a, b):
    return jnp.dot(a, b, preferred_element_type=jnp.float32)


def _relu(a):
    return jnp.maximum(a, 0.0)


def _mlp3(x, w1, b1, w2, b2, w3, b3):
    """LinearMap / StochasticDecoder: Linear->ReLU->Linear->ReLU->Linear."""
    h = _relu(_dot(x, w1[...]) + b1[...])
    h = _relu(_dot(h, w2[...]) + b2[...])
    return _dot(h, w3[...]) + b3[...]


def _enc_moments(x, w1, b1, w2, b2, wmu, bmu, wlv, blv):
    """GaussianStochasticEncoder, moments only (mu, logvar)."""
    h = _relu(_dot(x, w1[...]) + b1[...])
    h = _relu(_dot(h, w2[...]) + b2[...])
    mu = _dot(h, wmu[...]) + bmu[...]
    logvar = _dot(h, wlv[...]) + blv[...]
    return mu, logvar


def _bern_ll(logits, target):
    """log_prob_bernoulli: sum_dim [x*l - softplus(l)], keepdim (stable softplus)."""
    sp = jnp.maximum(logits, 0.0) + jnp.log1p(jnp.exp(-jnp.abs(logits)))
    return jnp.sum(target * logits - sp, axis=-1, keepdims=True)


# ---------------------------------------------------------------------------
# Fused kernel: whole ELBO_2_ECON forward in one grid point, VMEM resident.
# ---------------------------------------------------------------------------
def fused_elbo_kernel(
        # data
        x_ref, y_ref, epsz_ref, epsv_ref,
        # z_given_x encoder
        zx_w1, zx_b1, zx_w2, zx_b2, zx_wmu, zx_bmu, zx_wlv, zx_blv,
        # z_given_y encoder
        zy_w1, zy_b1, zy_w2, zy_b2, zy_wmu, zy_bmu, zy_wlv, zy_blv,
        # x_encoder (LinearMap X -> 50)
        xe_w1, xe_b1, xe_w2, xe_b2, xe_w3, xe_b3,
        # y_encoder (LinearMap Y -> 50)
        ye_w1, ye_b1, ye_w2, ye_b2, ye_w3, ye_b3,
        # v_given_xyz encoder, first-layer weight pre-split into x/y/z segments
        v_w1x, v_w1y, v_w1z, v_b1, v_w2, v_b2, v_wmu, v_bmu, v_wlv, v_blv,
        # y_given_z decoder
        yz_w1, yz_b1, yz_w2, yz_b2, yz_w3, yz_b3,
        # x_given_zv decoder, first-layer weight pre-split into z/v segments
        xv_w1z, xv_w1v, xv_b1, xv_w2, xv_b2, xv_w3, xv_b3,
        # output
        out_ref,
        *, nz, nv):
    x = x_ref[...]                      # [B, X]
    y = y_ref[...]                      # [B, Y]
    B = x.shape[0]

    # --- q(z|x), l(z;y): moments only, B rows (deduplicated across samples) ---
    mu_zx, logvar_zx = _enc_moments(x, zx_w1, zx_b1, zx_w2, zx_b2,
                                    zx_wmu, zx_bmu, zx_wlv, zx_blv)
    mu_zy, logvar_zy = _enc_moments(y, zy_w1, zy_b1, zy_w2, zy_b2,
                                    zy_wmu, zy_bmu, zy_wlv, zy_blv)

    # --- product_of_diag_normals (precision-weighted combination) ------------
    prec_x = jnp.exp(-logvar_zx)
    prec_y = jnp.exp(-logvar_zy)
    var_z = 1.0 / (prec_x + prec_y)                     # [B, Z]
    mu_z = var_z * (mu_zx * prec_x + mu_zy * prec_y)    # [B, Z]
    log_var_z = jnp.log(var_z)
    std_z = jnp.sqrt(var_z)

    # --- deterministic reducers, B rows (deduplicated across all samples) ----
    x_red = _mlp3(x, xe_w1, xe_b1, xe_w2, xe_b2, xe_w3, xe_b3)   # [B, E]
    y_red = _mlp3(y, ye_w1, ye_b1, ye_w2, ye_b2, ye_w3, ye_b3)   # [B, E]

    # x/y contribution to v_given_xyz layer 1 (split matmul, no concat)
    h_xy = _dot(x_red, v_w1x[...]) + _dot(y_red, v_w1y[...]) + v_b1[...]  # [B, H]

    outer_acc = jnp.zeros((B, 1), jnp.float32)

    # --- outer loop: n_samples_z (static unroll; small sample counts) --------
    for sz in range(nz):
        eps_z = epsz_ref[sz]                            # [B, Z]
        z = mu_z + eps_z * std_z                        # [B, Z]
        # log q(z|x,y): (z-mu)^2/var == eps^2
        logq_z = -0.5 * jnp.sum(log_var_z + eps_z * eps_z + LOG2PI,
                                axis=-1, keepdims=True)         # [B, 1]
        log_prior_z = -0.5 * jnp.sum(z * z + LOG2PI,
                                     axis=-1, keepdims=True)    # [B, 1]

        # v_given_xyz trunk + heads: deterministic given z (shared across nv)
        h1 = _relu(h_xy + _dot(z, v_w1z[...]))                  # [B, H]
        h2 = _relu(_dot(h1, v_w2[...]) + v_b2[...])             # [B, H]
        mu_v = _dot(h2, v_wmu[...]) + v_bmu[...]                # [B, V]
        logvar_v = _dot(h2, v_wlv[...]) + v_blv[...]            # [B, V]
        std_v = jnp.exp(0.5 * logvar_v)

        # y decoder depends on z only (shared across nv)
        y_logits = _mlp3(z, yz_w1, yz_b1, yz_w2, yz_b2, yz_w3, yz_b3)  # [B, Y]
        ll_y = _bern_ll(y_logits, y)                            # [B, 1]

        # z contribution to x_given_zv layer 1 (split matmul, no concat)
        h_z = _dot(z, xv_w1z[...]) + xv_b1[...]                 # [B, H]

        base = ll_y + log_prior_z                               # [B, 1]

        # --- inner loop: n_samples_v, running log-sum-exp (IWAE) -------------
        m_run = None
        se_run = None
        for sv in range(nv):
            eps_v = epsv_ref[sz * nv + sv]                      # [B, V]
            v = mu_v + eps_v * std_v                            # [B, V]
            logq_v = -0.5 * jnp.sum(logvar_v + eps_v * eps_v + LOG2PI,
                                    axis=-1, keepdims=True)     # [B, 1]
            log_prior_v = -0.5 * jnp.sum(v * v + LOG2PI,
                                         axis=-1, keepdims=True)

            h1x = _relu(h_z + _dot(v, xv_w1v[...]))             # [B, H]
            h2x = _relu(_dot(h1x, xv_w2[...]) + xv_b2[...])     # [B, H]
            x_logits = _dot(h2x, xv_w3[...]) + xv_b3[...]       # [B, X]
            ll_x = _bern_ll(x_logits, x)                        # [B, 1]

            inner = ll_x + base + log_prior_v - logq_v          # [B, 1]
            if sv == 0:
                m_run = inner
                se_run = jnp.ones_like(inner)
            else:
                m_new = jnp.maximum(m_run, inner)
                se_run = se_run * jnp.exp(m_run - m_new) + jnp.exp(inner - m_new)
                m_run = m_new

        inner_lme = m_run + jnp.log(se_run) - math.log(float(nv))  # [B, 1]
        outer_acc = outer_acc + (inner_lme - logq_z)

    # outer 'elbo': mean over n_samples_z.  Single tiny [B, 1] store.
    out_ref[...] = outer_acc * (1.0 / float(nz))


# ---------------------------------------------------------------------------
# JAX-side wrapper (one pallas_call, everything VMEM-resident)
# ---------------------------------------------------------------------------
def _genc_args(p):
    return (p["w1"], p["b1"], p["w2"], p["b2"], p["wmu"], p["bmu"], p["wlv"], p["blv"])


def _mlp_args(p):
    return (p["w1"], p["b1"], p["w2"], p["b2"], p["w3"], p["b3"])


def elbo_2_econ_forward(params, x, y, eps_z, eps_v,
                        n_samples_z=1, n_samples_v=1,
                        inner_method="iwae", outer_method="elbo"):
    """eps_z: [n_samples_z, B, Z]; eps_v: [n_samples_z, n_samples_v, B, V]."""
    assert inner_method == "iwae" and outer_method == "elbo"
    B = x.shape[0]
    E = params["x_encoder"]["w3"].shape[1]
    Z = params["z_given_x"]["wmu"].shape[1]
    V = params["v_given_xyz"]["wmu"].shape[1]

    # Pre-split the concat-input first-layer weights (zero in-kernel cost).
    pv = params["v_given_xyz"]
    v_w1x, v_w1y, v_w1z = pv["w1"][:E], pv["w1"][E:2 * E], pv["w1"][2 * E:]
    pxv = params["x_given_zv"]
    xv_w1z, xv_w1v = pxv["w1"][:Z], pxv["w1"][Z:]

    eps_v_flat = eps_v.reshape(n_samples_z * n_samples_v, B, V)

    args = (
        x, y, eps_z, eps_v_flat,
        *_genc_args(params["z_given_x"]),
        *_genc_args(params["z_given_y"]),
        *_mlp_args(params["x_encoder"]),
        *_mlp_args(params["y_encoder"]),
        v_w1x, v_w1y, v_w1z, pv["b1"], pv["w2"], pv["b2"],
        pv["wmu"], pv["bmu"], pv["wlv"], pv["blv"],
        *_mlp_args(params["y_given_z"]),
        xv_w1z, xv_w1v, pxv["b1"], pxv["w2"], pxv["b2"], pxv["w3"], pxv["b3"],
    )

    kernel = functools.partial(fused_elbo_kernel, nz=n_samples_z, nv=n_samples_v)
    vmem = pl.BlockSpec(memory_space=pltpu.MemorySpace.VMEM)
    out = pl.pallas_call(
        kernel,
        out_shape=jax.ShapeDtypeStruct((B, 1), jnp.float32),
        in_specs=[vmem] * len(args),
        out_specs=vmem,
    )(*args)
    return out[:, 0]                                           # [B]


# ---------------------------------------------------------------------------
# Deterministic parameter init (shapes from ELBO_2_ECON.__init__; H=200, E=50)
# ---------------------------------------------------------------------------
def _init_linear(key, fan_in, fan_out):
    w = jax.random.normal(key, (fan_in, fan_out), jnp.float32) * (1.0 / math.sqrt(fan_in))
    b = jnp.zeros((1, fan_out), jnp.float32)
    return w, b


def init_params(key, X, Y, Z, V, H=200, E=50):
    keys = iter(jax.random.split(key, 64))

    def lin(fi, fo):
        return _init_linear(next(keys), fi, fo)

    def mlp(fi, fo):
        w1, b1 = lin(fi, H); w2, b2 = lin(H, H); w3, b3 = lin(H, fo)
        return dict(w1=w1, b1=b1, w2=w2, b2=b2, w3=w3, b3=b3)

    def genc(fi, fo):
        w1, b1 = lin(fi, H); w2, b2 = lin(H, H)
        wmu, bmu = lin(H, fo); wlv, blv = lin(H, fo)
        return dict(w1=w1, b1=b1, w2=w2, b2=b2, wmu=wmu, bmu=bmu, wlv=wlv, blv=blv)

    return dict(
        x_encoder=mlp(X, E),
        y_encoder=mlp(Y, E),
        z_given_x=genc(X, Z),
        z_given_y=genc(Y, Z),
        v_given_xyz=genc(E + E + Z, V),
        y_given_z=mlp(Z, Y),
        x_given_zv=mlp(Z + V, X),
    )


# ---------------------------------------------------------------------------
if __name__ == "__main__":
    X_DIM, Y_DIM, Z_DIM, V_DIM = 16, 12, 8, 6
    B, N_Z, N_V = 4, 2, 2

    root = jax.random.PRNGKey(0)
    k_par, k_x, k_y, k_ez, k_ev = jax.random.split(root, 5)

    params = init_params(k_par, X_DIM, Y_DIM, Z_DIM, V_DIM)

    x = jax.random.uniform(k_x, (B, X_DIM), jnp.float32)        # "image" in [0,1]
    y = jax.random.uniform(k_y, (B, Y_DIM), jnp.float32)
    eps_z = jax.random.normal(k_ez, (N_Z, B, Z_DIM), jnp.float32)
    eps_v = jax.random.normal(k_ev, (N_Z, N_V, B, V_DIM), jnp.float32)

    out = elbo_2_econ_forward(params, x, y, eps_z, eps_v,
                              n_samples_z=N_Z, n_samples_v=N_V,
                              inner_method="iwae", outer_method="elbo")
    out = jax.block_until_ready(out)
    assert out.shape == (B,) and out.dtype == jnp.float32
    print("KERNEL_OK")
</pallas_src>

<mosaic_0001>
module attributes {stable_mosaic.version = 11 : i64} {
  func.func @fused_elbo_kernel(%arg0: memref<4x16xf32, #tpu.memory_space<vmem>>, %arg1: memref<4x12xf32, #tpu.memory_space<vmem>>, %arg2: memref<2x4x8xf32, #tpu.memory_space<vmem>>, %arg3: memref<4x4x6xf32, #tpu.memory_space<vmem>>, %arg4: memref<16x200xf32, #tpu.memory_space<vmem>>, %arg5: memref<1x200xf32, #tpu.memory_space<vmem>>, %arg6: memref<200x200xf32, #tpu.memory_space<vmem>>, %arg7: memref<1x200xf32, #tpu.memory_space<vmem>>, %arg8: memref<200x8xf32, #tpu.memory_space<vmem>>, %arg9: memref<1x8xf32, #tpu.memory_space<vmem>>, %arg10: memref<200x8xf32, #tpu.memory_space<vmem>>, %arg11: memref<1x8xf32, #tpu.memory_space<vmem>>, %arg12: memref<12x200xf32, #tpu.memory_space<vmem>>, %arg13: memref<1x200xf32, #tpu.memory_space<vmem>>, %arg14: memref<200x200xf32, #tpu.memory_space<vmem>>, %arg15: memref<1x200xf32, #tpu.memory_space<vmem>>, %arg16: memref<200x8xf32, #tpu.memory_space<vmem>>, %arg17: memref<1x8xf32, #tpu.memory_space<vmem>>, %arg18: memref<200x8xf32, #tpu.memory_space<vmem>>, %arg19: memref<1x8xf32, #tpu.memory_space<vmem>>, %arg20: memref<16x200xf32, #tpu.memory_space<vmem>>, %arg21: memref<1x200xf32, #tpu.memory_space<vmem>>, %arg22: memref<200x200xf32, #tpu.memory_space<vmem>>, %arg23: memref<1x200xf32, #tpu.memory_space<vmem>>, %arg24: memref<200x50xf32, #tpu.memory_space<vmem>>, %arg25: memref<1x50xf32, #tpu.memory_space<vmem>>, %arg26: memref<12x200xf32, #tpu.memory_space<vmem>>, %arg27: memref<1x200xf32, #tpu.memory_space<vmem>>, %arg28: memref<200x200xf32, #tpu.memory_space<vmem>>, %arg29: memref<1x200xf32, #tpu.memory_space<vmem>>, %arg30: memref<200x50xf32, #tpu.memory_space<vmem>>, %arg31: memref<1x50xf32, #tpu.memory_space<vmem>>, %arg32: memref<50x200xf32, #tpu.memory_space<vmem>>, %arg33: memref<50x200xf32, #tpu.memory_space<vmem>>, %arg34: memref<8x200xf32, #tpu.memory_space<vmem>>, %arg35: memref<1x200xf32, #tpu.memory_space<vmem>>, %arg36: memref<200x200xf32, #tpu.memory_space<vmem>>, %arg37: memref<1x200xf32, #tpu.memory_space<vmem>>, %arg38: memref<200x6xf32, #tpu.memory_space<vmem>>, %arg39: memref<1x6xf32, #tpu.memory_space<vmem>>, %arg40: memref<200x6xf32, #tpu.memory_space<vmem>>, %arg41: memref<1x6xf32, #tpu.memory_space<vmem>>, %arg42: memref<8x200xf32, #tpu.memory_space<vmem>>, %arg43: memref<1x200xf32, #tpu.memory_space<vmem>>, %arg44: memref<200x200xf32, #tpu.memory_space<vmem>>, %arg45: memref<1x200xf32, #tpu.memory_space<vmem>>, %arg46: memref<200x12xf32, #tpu.memory_space<vmem>>, %arg47: memref<1x12xf32, #tpu.memory_space<vmem>>, %arg48: memref<8x200xf32, #tpu.memory_space<vmem>>, %arg49: memref<6x200xf32, #tpu.memory_space<vmem>>, %arg50: memref<1x200xf32, #tpu.memory_space<vmem>>, %arg51: memref<200x200xf32, #tpu.memory_space<vmem>>, %arg52: memref<1x200xf32, #tpu.memory_space<vmem>>, %arg53: memref<200x16xf32, #tpu.memory_space<vmem>>, %arg54: memref<1x16xf32, #tpu.memory_space<vmem>>, %arg55: memref<4x1xf32, #tpu.memory_space<vmem>>) attributes {dimension_semantics = [], scalar_prefetch = 0 : i64, scratch_operands = 0 : i64, tpu.core_type = #tpu.core_type<tc>} {
    %c0 = arith.constant 0 : index
    %c0_0 = arith.constant 0 : index
    %0 = vector.load %arg0[%c0, %c0_0] : memref<4x16xf32, #tpu.memory_space<vmem>>, vector<4x16xf32>
    %c0_1 = arith.constant 0 : index
    %c0_2 = arith.constant 0 : index
    %1 = vector.load %arg1[%c0_1, %c0_2] : memref<4x12xf32, #tpu.memory_space<vmem>>, vector<4x12xf32>
    %c0_3 = arith.constant 0 : index
    %c0_4 = arith.constant 0 : index
    %2 = vector.load %arg4[%c0_3, %c0_4] : memref<16x200xf32, #tpu.memory_space<vmem>>, vector<16x200xf32>
    %cst = arith.constant dense<0.000000e+00> : vector<4x200xf32>
    %3 = tpu.matmul %0, %2, %cst {dimension_numbers = #tpu.dot_dimension_numbers<[1], [0], [0], [1], [0, 0, 1, 1], [], []>} : vector<4x16xf32>, vector<16x200xf32>, vector<4x200xf32> -> vector<4x200xf32>
    %c0_5 = arith.constant 0 : index
    %c0_6 = arith.constant 0 : index
    %4 = vector.load %arg5[%c0_5, %c0_6] : memref<1x200xf32, #tpu.memory_space<vmem>>, vector<1x200xf32>
    %5 = vector.broadcast %4 : vector<1x200xf32> to vector<4x200xf32>
    %6 = arith.addf %3, %5 : vector<4x200xf32>
    %cst_7 = arith.constant 0.000000e+00 : f32
    %7 = vector.broadcast %cst_7 : f32 to vector<4x200xf32>
    %8 = arith.maximumf %6, %7 : vector<4x200xf32>
    %c0_8 = arith.constant 0 : index
    %c0_9 = arith.constant 0 : index
    %9 = vector.load %arg6[%c0_8, %c0_9] : memref<200x200xf32, #tpu.memory_space<vmem>>, vector<200x200xf32>
    %cst_10 = arith.constant dense<0.000000e+00> : vector<4x200xf32>
    %10 = tpu.matmul %8, %9, %cst_10 {dimension_numbers = #tpu.dot_dimension_numbers<[1], [0], [0], [1], [0, 0, 1, 1], [], []>} : vector<4x200xf32>, vector<200x200xf32>, vector<4x200xf32> -> vector<4x200xf32>
    %c0_11 = arith.constant 0 : index
    %c0_12 = arith.constant 0 : index
    %11 = vector.load %arg7[%c0_11, %c0_12] : memref<1x200xf32, #tpu.memory_space<vmem>>, vector<1x200xf32>
    %12 = vector.broadcast %11 : vector<1x200xf32> to vector<4x200xf32>
    %13 = arith.addf %10, %12 : vector<4x200xf32>
    %cst_13 = arith.constant 0.000000e+00 : f32
    %14 = vector.broadcast %cst_13 : f32 to vector<4x200xf32>
    %15 = arith.maximumf %13, %14 : vector<4x200xf32>
    %c0_14 = arith.constant 0 : index
    %c0_15 = arith.constant 0 : index
    %16 = vector.load %arg8[%c0_14, %c0_15] : memref<200x8xf32, #tpu.memory_space<vmem>>, vector<200x8xf32>
    %cst_16 = arith.constant dense<0.000000e+00> : vector<4x8xf32>
    %17 = tpu.matmul %15, %16, %cst_16 {dimension_numbers = #tpu.dot_dimension_numbers<[1], [0], [0], [1], [0, 0, 1, 1], [], []>} : vector<4x200xf32>, vector<200x8xf32>, vector<4x8xf32> -> vector<4x8xf32>
    %c0_17 = arith.constant 0 : index
    %c0_18 = arith.constant 0 : index
    %18 = vector.load %arg9[%c0_17, %c0_18] : memref<1x8xf32, #tpu.memory_space<vmem>>, vector<1x8xf32>
    %19 = vector.broadcast %18 : vector<1x8xf32> to vector<4x8xf32>
    %20 = arith.addf %17, %19 : vector<4x8xf32>
    %c0_19 = arith.constant 0 : index
    %c0_20 = arith.constant 0 : index
    %21 = vector.load %arg10[%c0_19, %c0_20] : memref<200x8xf32, #tpu.memory_space<vmem>>, vector<200x8xf32>
    %cst_21 = arith.constant dense<0.000000e+00> : vector<4x8xf32>
    %22 = tpu.matmul %15, %21, %cst_21 {dimension_numbers = #tpu.dot_dimension_numbers<[1], [0], [0], [1], [0, 0, 1, 1], [], []>} : vector<4x200xf32>, vector<200x8xf32>, vector<4x8xf32> -> vector<4x8xf32>
    %c0_22 = arith.constant 0 : index
    %c0_23 = arith.constant 0 : index
    %23 = vector.load %arg11[%c0_22, %c0_23] : memref<1x8xf32, #tpu.memory_space<vmem>>, vector<1x8xf32>
    %24 = vector.broadcast %23 : vector<1x8xf32> to vector<4x8xf32>
    %25 = arith.addf %22, %24 : vector<4x8xf32>
    %c0_24 = arith.constant 0 : index
    %c0_25 = arith.constant 0 : index
    %26 = vector.load %arg12[%c0_24, %c0_25] : memref<12x200xf32, #tpu.memory_space<vmem>>, vector<12x200xf32>
    %cst_26 = arith.constant dense<0.000000e+00> : vector<4x200xf32>
    %27 = tpu.matmul %1, %26, %cst_26 {dimension_numbers = #tpu.dot_dimension_numbers<[1], [0], [0], [1], [0, 0, 1, 1], [], []>} : vector<4x12xf32>, vector<12x200xf32>, vector<4x200xf32> -> vector<4x200xf32>
    %c0_27 = arith.constant 0 : index
    %c0_28 = arith.constant 0 : index
    %28 = vector.load %arg13[%c0_27, %c0_28] : memref<1x200xf32, #tpu.memory_space<vmem>>, vector<1x200xf32>
    %29 = vector.broadcast %28 : vector<1x200xf32> to vector<4x200xf32>
    %30 = arith.addf %27, %29 : vector<4x200xf32>
    %cst_29 = arith.constant 0.000000e+00 : f32
    %31 = vector.broadcast %cst_29 : f32 to vector<4x200xf32>
    %32 = arith.maximumf %30, %31 : vector<4x200xf32>
    %c0_30 = arith.constant 0 : index
    %c0_31 = arith.constant 0 : index
    %33 = vector.load %arg14[%c0_30, %c0_31] : memref<200x200xf32, #tpu.memory_space<vmem>>, vector<200x200xf32>
    %cst_32 = arith.constant dense<0.000000e+00> : vector<4x200xf32>
    %34 = tpu.matmul %32, %33, %cst_32 {dimension_numbers = #tpu.dot_dimension_numbers<[1], [0], [0], [1], [0, 0, 1, 1], [], []>} : vector<4x200xf32>, vector<200x200xf32>, vector<4x200xf32> -> vector<4x200xf32>
    %c0_33 = arith.constant 0 : index
    %c0_34 = arith.constant 0 : index
    %35 = vector.load %arg15[%c0_33, %c0_34] : memref<1x200xf32, #tpu.memory_space<vmem>>, vector<1x200xf32>
    %36 = vector.broadcast %35 : vector<1x200xf32> to vector<4x200xf32>
    %37 = arith.addf %34, %36 : vector<4x200xf32>
    %cst_35 = arith.constant 0.000000e+00 : f32
    %38 = vector.broadcast %cst_35 : f32 to vector<4x200xf32>
    %39 = arith.maximumf %37, %38 : vector<4x200xf32>
    %c0_36 = arith.constant 0 : index
    %c0_37 = arith.constant 0 : index
    %40 = vector.load %arg16[%c0_36, %c0_37] : memref<200x8xf32, #tpu.memory_space<vmem>>, vector<200x8xf32>
    %cst_38 = arith.constant dense<0.000000e+00> : vector<4x8xf32>
    %41 = tpu.matmul %39, %40, %cst_38 {dimension_numbers = #tpu.dot_dimension_numbers<[1], [0], [0], [1], [0, 0, 1, 1], [], []>} : vector<4x200xf32>, vector<200x8xf32>, vector<4x8xf32> -> vector<4x8xf32>
    %c0_39 = arith.constant 0 : index
    %c0_40 = arith.constant 0 : index
    %42 = vector.load %arg17[%c0_39, %c0_40] : memref<1x8xf32, #tpu.memory_space<vmem>>, vector<1x8xf32>
    %43 = vector.broadcast %42 : vector<1x8xf32> to vector<4x8xf32>
    %44 = arith.addf %41, %43 : vector<4x8xf32>
    %c0_41 = arith.constant 0 : index
    %c0_42 = arith.constant 0 : index
    %45 = vector.load %arg18[%c0_41, %c0_42] : memref<200x8xf32, #tpu.memory_space<vmem>>, vector<200x8xf32>
    %cst_43 = arith.constant dense<0.000000e+00> : vector<4x8xf32>
    %46 = tpu.matmul %39, %45, %cst_43 {dimension_numbers = #tpu.dot_dimension_numbers<[1], [0], [0], [1], [0, 0, 1, 1], [], []>} : vector<4x200xf32>, vector<200x8xf32>, vector<4x8xf32> -> vector<4x8xf32>
    %c0_44 = arith.constant 0 : index
    %c0_45 = arith.constant 0 : index
    %47 = vector.load %arg19[%c0_44, %c0_45] : memref<1x8xf32, #tpu.memory_space<vmem>>, vector<1x8xf32>
    %48 = vector.broadcast %47 : vector<1x8xf32> to vector<4x8xf32>
    %49 = arith.addf %46, %48 : vector<4x8xf32>
    %cst_46 = arith.constant 0.000000e+00 : f32
    %50 = vector.broadcast %cst_46 : f32 to vector<4x8xf32>
    %51 = arith.subf %50, %25 : vector<4x8xf32>
    %52 = math.exp %51 : vector<4x8xf32>
    %cst_47 = arith.constant 0.000000e+00 : f32
    %53 = vector.broadcast %cst_47 : f32 to vector<4x8xf32>
    %54 = arith.subf %53, %49 : vector<4x8xf32>
    %55 = math.exp %54 : vector<4x8xf32>
    %56 = arith.addf %52, %55 : vector<4x8xf32>
    %cst_48 = arith.constant 1.000000e+00 : f32
    %57 = vector.broadcast %cst_48 : f32 to vector<4x8xf32>
    %58 = arith.divf %57, %56 : vector<4x8xf32>
    %59 = arith.mulf %20, %52 : vector<4x8xf32>
    %60 = arith.mulf %44, %55 : vector<4x8xf32>
    %61 = arith.addf %59, %60 : vector<4x8xf32>
    %62 = arith.mulf %58, %61 : vector<4x8xf32>
    %63 = math.log %58 : vector<4x8xf32>
    %64 = math.sqrt %58 : vector<4x8xf32>
    %c0_49 = arith.constant 0 : index
    %c0_50 = arith.constant 0 : index
    %65 = vector.load %arg20[%c0_49, %c0_50] : memref<16x200xf32, #tpu.memory_space<vmem>>, vector<16x200xf32>
    %cst_51 = arith.constant dense<0.000000e+00> : vector<4x200xf32>
    %66 = tpu.matmul %0, %65, %cst_51 {dimension_numbers = #tpu.dot_dimension_numbers<[1], [0], [0], [1], [0, 0, 1, 1], [], []>} : vector<4x16xf32>, vector<16x200xf32>, vector<4x200xf32> -> vector<4x200xf32>
    %c0_52 = arith.constant 0 : index
    %c0_53 = arith.constant 0 : index
    %67 = vector.load %arg21[%c0_52, %c0_53] : memref<1x200xf32, #tpu.memory_space<vmem>>, vector<1x200xf32>
    %68 = vector.broadcast %67 : vector<1x200xf32> to vector<4x200xf32>
    %69 = arith.addf %66, %68 : vector<4x200xf32>
    %cst_54 = arith.constant 0.000000e+00 : f32
    %70 = vector.broadcast %cst_54 : f32 to vector<4x200xf32>
    %71 = arith.maximumf %69, %70 : vector<4x200xf32>
    %c0_55 = arith.constant 0 : index
    %c0_56 = arith.constant 0 : index
    %72 = vector.load %arg22[%c0_55, %c0_56] : memref<200x200xf32, #tpu.memory_space<vmem>>, vector<200x200xf32>
    %cst_57 = arith.constant dense<0.000000e+00> : vector<4x200xf32>
    %73 = tpu.matmul %71, %72, %cst_57 {dimension_numbers = #tpu.dot_dimension_numbers<[1], [0], [0], [1], [0, 0, 1, 1], [], []>} : vector<4x200xf32>, vector<200x200xf32>, vector<4x200xf32> -> vector<4x200xf32>
    %c0_58 = arith.constant 0 : index
    %c0_59 = arith.constant 0 : index
    %74 = vector.load %arg23[%c0_58, %c0_59] : memref<1x200xf32, #tpu.memory_space<vmem>>, vector<1x200xf32>
    %75 = vector.broadcast %74 : vector<1x200xf32> to vector<4x200xf32>
    %76 = arith.addf %73, %75 : vector<4x200xf32>
    %cst_60 = arith.constant 0.000000e+00 : f32
    %77 = vector.broadcast %cst_60 : f32 to vector<4x200xf32>
    %78 = arith.maximumf %76, %77 : vector<4x200xf32>
    %c0_61 = arith.constant 0 : index
    %c0_62 = arith.constant 0 : index
    %79 = vector.load %arg24[%c0_61, %c0_62] : memref<200x50xf32, #tpu.memory_space<vmem>>, vector<200x50xf32>
    %cst_63 = arith.constant dense<0.000000e+00> : vector<4x50xf32>
    %80 = tpu.matmul %78, %79, %cst_63 {dimension_numbers = #tpu.dot_dimension_numbers<[1], [0], [0], [1], [0, 0, 1, 1], [], []>} : vector<4x200xf32>, vector<200x50xf32>, vector<4x50xf32> -> vector<4x50xf32>
    %c0_64 = arith.constant 0 : index
    %c0_65 = arith.constant 0 : index
    %81 = vector.load %arg25[%c0_64, %c0_65] : memref<1x50xf32, #tpu.memory_space<vmem>>, vector<1x50xf32>
    %82 = vector.broadcast %81 : vector<1x50xf32> to vector<4x50xf32>
    %83 = arith.addf %80, %82 : vector<4x50xf32>
    %c0_66 = arith.constant 0 : index
    %c0_67 = arith.constant 0 : index
    %84 = vector.load %arg26[%c0_66, %c0_67] : memref<12x200xf32, #tpu.memory_space<vmem>>, vector<12x200xf32>
    %cst_68 = arith.constant dense<0.000000e+00> : vector<4x200xf32>
    %85 = tpu.matmul %1, %84, %cst_68 {dimension_numbers = #tpu.dot_dimension_numbers<[1], [0], [0], [1], [0, 0, 1, 1], [], []>} : vector<4x12xf32>, vector<12x200xf32>, vector<4x200xf32> -> vector<4x200xf32>
    %c0_69 = arith.constant 0 : index
    %c0_70 = arith.constant 0 : index
    %86 = vector.load %arg27[%c0_69, %c0_70] : memref<1x200xf32, #tpu.memory_space<vmem>>, vector<1x200xf32>
    %87 = vector.broadcast %86 : vector<1x200xf32> to vector<4x200xf32>
    %88 = arith.addf %85, %87 : vector<4x200xf32>
    %cst_71 = arith.constant 0.000000e+00 : f32
    %89 = vector.broadcast %cst_71 : f32 to vector<4x200xf32>
    %90 = arith.maximumf %88, %89 : vector<4x200xf32>
    %c0_72 = arith.constant 0 : index
    %c0_73 = arith.constant 0 : index
    %91 = vector.load %arg28[%c0_72, %c0_73] : memref<200x200xf32, #tpu.memory_space<vmem>>, vector<200x200xf32>
    %cst_74 = arith.constant dense<0.000000e+00> : vector<4x200xf32>
    %92 = tpu.matmul %90, %91, %cst_74 {dimension_numbers = #tpu.dot_dimension_numbers<[1], [0], [0], [1], [0, 0, 1, 1], [], []>} : vector<4x200xf32>, vector<200x200xf32>, vector<4x200xf32> -> vector<4x200xf32>
    %c0_75 = arith.constant 0 : index
    %c0_76 = arith.constant 0 : index
    %93 = vector.load %arg29[%c0_75, %c0_76] : memref<1x200xf32, #tpu.memory_space<vmem>>, vector<1x200xf32>
    %94 = vector.broadcast %93 : vector<1x200xf32> to vector<4x200xf32>
    %95 = arith.addf %92, %94 : vector<4x200xf32>
    %cst_77 = arith.constant 0.000000e+00 : f32
    %96 = vector.broadcast %cst_77 : f32 to vector<4x200xf32>
    %97 = arith.maximumf %95, %96 : vector<4x200xf32>
    %c0_78 = arith.constant 0 : index
    %c0_79 = arith.constant 0 : index
    %98 = vector.load %arg30[%c0_78, %c0_79] : memref<200x50xf32, #tpu.memory_space<vmem>>, vector<200x50xf32>
    %cst_80 = arith.constant dense<0.000000e+00> : vector<4x50xf32>
    %99 = tpu.matmul %97, %98, %cst_80 {dimension_numbers = #tpu.dot_dimension_numbers<[1], [0], [0], [1], [0, 0, 1, 1], [], []>} : vector<4x200xf32>, vector<200x50xf32>, vector<4x50xf32> -> vector<4x50xf32>
    %c0_81 = arith.constant 0 : index
    %c0_82 = arith.constant 0 : index
    %100 = vector.load %arg31[%c0_81, %c0_82] : memref<1x50xf32, #tpu.memory_space<vmem>>, vector<1x50xf32>
    %101 = vector.broadcast %100 : vector<1x50xf32> to vector<4x50xf32>
    %102 = arith.addf %99, %101 : vector<4x50xf32>
    %c0_83 = arith.constant 0 : index
    %c0_84 = arith.constant 0 : index
    %103 = vector.load %arg32[%c0_83, %c0_84] : memref<50x200xf32, #tpu.memory_space<vmem>>, vector<50x200xf32>
    %cst_85 = arith.constant dense<0.000000e+00> : vector<4x200xf32>
    %104 = tpu.matmul %83, %103, %cst_85 {dimension_numbers = #tpu.dot_dimension_numbers<[1], [0], [0], [1], [0, 0, 1, 1], [], []>} : vector<4x50xf32>, vector<50x200xf32>, vector<4x200xf32> -> vector<4x200xf32>
    %c0_86 = arith.constant 0 : index
    %c0_87 = arith.constant 0 : index
    %105 = vector.load %arg33[%c0_86, %c0_87] : memref<50x200xf32, #tpu.memory_space<vmem>>, vector<50x200xf32>
    %cst_88 = arith.constant dense<0.000000e+00> : vector<4x200xf32>
    %106 = tpu.matmul %102, %105, %cst_88 {dimension_numbers = #tpu.dot_dimension_numbers<[1], [0], [0], [1], [0, 0, 1, 1], [], []>} : vector<4x50xf32>, vector<50x200xf32>, vector<4x200xf32> -> vector<4x200xf32>
    %107 = arith.addf %104, %106 : vector<4x200xf32>
    %c0_89 = arith.constant 0 : index
    %c0_90 = arith.constant 0 : index
    %108 = vector.load %arg35[%c0_89, %c0_90] : memref<1x200xf32, #tpu.memory_space<vmem>>, vector<1x200xf32>
    %109 = vector.broadcast %108 : vector<1x200xf32> to vector<4x200xf32>
    %110 = arith.addf %107, %109 : vector<4x200xf32>
    %cst_91 = arith.constant 0.000000e+00 : f32
    %111 = vector.broadcast %cst_91 : f32 to vector<4x1xf32>
    %c0_92 = arith.constant 0 : index
    %c0_93 = arith.constant 0 : index
    %c0_94 = arith.constant 0 : index
    %112 = vector.load %arg2[%c0_92, %c0_93, %c0_94] : memref<2x4x8xf32, #tpu.memory_space<vmem>>, vector<1x4x8xf32>
    %113 = vector.shape_cast %112 : vector<1x4x8xf32> to vector<4x8xf32>
    %114 = arith.mulf %113, %64 : vector<4x8xf32>
    %115 = arith.addf %62, %114 : vector<4x8xf32>
    %116 = arith.mulf %113, %113 : vector<4x8xf32>
    %117 = arith.addf %63, %116 : vector<4x8xf32>
    %cst_95 = arith.constant 1.83787704 : f32
    %118 = vector.broadcast %cst_95 : f32 to vector<4x8xf32>
    %119 = arith.addf %117, %118 : vector<4x8xf32>
    %cst_96 = arith.constant dense<0.000000e+00> : vector<4xf32>
    %120 = vector.multi_reduction <add>, %119, %cst_96 [1] : vector<4x8xf32> to vector<4xf32>
    %121 = vector.shape_cast %120 : vector<4xf32> to vector<4x1xf32>
    %cst_97 = arith.constant -5.000000e-01 : f32
    %122 = vector.broadcast %cst_97 : f32 to vector<4x1xf32>
    %123 = arith.mulf %122, %121 : vector<4x1xf32>
    %124 = arith.mulf %115, %115 : vector<4x8xf32>
    %cst_98 = arith.constant 1.83787704 : f32
    %125 = vector.broadcast %cst_98 : f32 to vector<4x8xf32>
    %126 = arith.addf %124, %125 : vector<4x8xf32>
    %cst_99 = arith.constant dense<0.000000e+00> : vector<4xf32>
    %127 = vector.multi_reduction <add>, %126, %cst_99 [1] : vector<4x8xf32> to vector<4xf32>
    %128 = vector.shape_cast %127 : vector<4xf32> to vector<4x1xf32>
    %cst_100 = arith.constant -5.000000e-01 : f32
    %129 = vector.broadcast %cst_100 : f32 to vector<4x1xf32>
    %130 = arith.mulf %129, %128 : vector<4x1xf32>
    %c0_101 = arith.constant 0 : index
    %c0_102 = arith.constant 0 : index
    %131 = vector.load %arg34[%c0_101, %c0_102] : memref<8x200xf32, #tpu.memory_space<vmem>>, vector<8x200xf32>
    %cst_103 = arith.constant dense<0.000000e+00> : vector<4x200xf32>
    %132 = tpu.matmul %115, %131, %cst_103 {dimension_numbers = #tpu.dot_dimension_numbers<[1], [0], [0], [1], [0, 0, 1, 1], [], []>} : vector<4x8xf32>, vector<8x200xf32>, vector<4x200xf32> -> vector<4x200xf32>
    %133 = arith.addf %110, %132 : vector<4x200xf32>
    %cst_104 = arith.constant 0.000000e+00 : f32
    %134 = vector.broadcast %cst_104 : f32 to vector<4x200xf32>
    %135 = arith.maximumf %133, %134 : vector<4x200xf32>
    %c0_105 = arith.constant 0 : index
    %c0_106 = arith.constant 0 : index
    %136 = vector.load %arg36[%c0_105, %c0_106] : memref<200x200xf32, #tpu.memory_space<vmem>>, vector<200x200xf32>
    %cst_107 = arith.constant dense<0.000000e+00> : vector<4x200xf32>
    %137 = tpu.matmul %135, %136, %cst_107 {dimension_numbers = #tpu.dot_dimension_numbers<[1], [0], [0], [1], [0, 0, 1, 1], [], []>} : vector<4x200xf32>, vector<200x200xf32>, vector<4x200xf32> -> vector<4x200xf32>
    %c0_108 = arith.constant 0 : index
    %c0_109 = arith.constant 0 : index
    %138 = vector.load %arg37[%c0_108, %c0_109] : memref<1x200xf32, #tpu.memory_space<vmem>>, vector<1x200xf32>
    %139 = vector.broadcast %138 : vector<1x200xf32> to vector<4x200xf32>
    %140 = arith.addf %137, %139 : vector<4x200xf32>
    %cst_110 = arith.constant 0.000000e+00 : f32
    %141 = vector.broadcast %cst_110 : f32 to vector<4x200xf32>
    %142 = arith.maximumf %140, %141 : vector<4x200xf32>
    %c0_111 = arith.constant 0 : index
    %c0_112 = arith.constant 0 : index
    %143 = vector.load %arg38[%c0_111, %c0_112] : memref<200x6xf32, #tpu.memory_space<vmem>>, vector<200x6xf32>
    %cst_113 = arith.constant dense<0.000000e+00> : vector<4x6xf32>
    %144 = tpu.matmul %142, %143, %cst_113 {dimension_numbers = #tpu.dot_dimension_numbers<[1], [0], [0], [1], [0, 0, 1, 1], [], []>} : vector<4x200xf32>, vector<200x6xf32>, vector<4x6xf32> -> vector<4x6xf32>
    %c0_114 = arith.constant 0 : index
    %c0_115 = arith.constant 0 : index
    %145 = vector.load %arg39[%c0_114, %c0_115] : memref<1x6xf32, #tpu.memory_space<vmem>>, vector<1x6xf32>
    %146 = vector.broadcast %145 : vector<1x6xf32> to vector<4x6xf32>
    %147 = arith.addf %144, %146 : vector<4x6xf32>
    %c0_116 = arith.constant 0 : index
    %c0_117 = arith.constant 0 : index
    %148 = vector.load %arg40[%c0_116, %c0_117] : memref<200x6xf32, #tpu.memory_space<vmem>>, vector<200x6xf32>
    %cst_118 = arith.constant dense<0.000000e+00> : vector<4x6xf32>
    %149 = tpu.matmul %142, %148, %cst_118 {dimension_numbers = #tpu.dot_dimension_numbers<[1], [0], [0], [1], [0, 0, 1, 1], [], []>} : vector<4x200xf32>, vector<200x6xf32>, vector<4x6xf32> -> vector<4x6xf32>
    %c0_119 = arith.constant 0 : index
    %c0_120 = arith.constant 0 : index
    %150 = vector.load %arg41[%c0_119, %c0_120] : memref<1x6xf32, #tpu.memory_space<vmem>>, vector<1x6xf32>
    %151 = vector.broadcast %150 : vector<1x6xf32> to vector<4x6xf32>
    %152 = arith.addf %149, %151 : vector<4x6xf32>
    %cst_121 = arith.constant 5.000000e-01 : f32
    %153 = vector.broadcast %cst_121 : f32 to vector<4x6xf32>
    %154 = arith.mulf %153, %152 : vector<4x6xf32>
    %155 = math.exp %154 : vector<4x6xf32>
    %c0_122 = arith.constant 0 : index
    %c0_123 = arith.constant 0 : index
    %156 = vector.load %arg42[%c0_122, %c0_123] : memref<8x200xf32, #tpu.memory_space<vmem>>, vector<8x200xf32>
    %cst_124 = arith.constant dense<0.000000e+00> : vector<4x200xf32>
    %157 = tpu.matmul %115, %156, %cst_124 {dimension_numbers = #tpu.dot_dimension_numbers<[1], [0], [0], [1], [0, 0, 1, 1], [], []>} : vector<4x8xf32>, vector<8x200xf32>, vector<4x200xf32> -> vector<4x200xf32>
    %c0_125 = arith.constant 0 : index
    %c0_126 = arith.constant 0 : index
    %158 = vector.load %arg43[%c0_125, %c0_126] : memref<1x200xf32, #tpu.memory_space<vmem>>, vector<1x200xf32>
    %159 = vector.broadcast %158 : vector<1x200xf32> to vector<4x200xf32>
    %160 = arith.addf %157, %159 : vector<4x200xf32>
    %cst_127 = arith.constant 0.000000e+00 : f32
    %161 = vector.broadcast %cst_127 : f32 to vector<4x200xf32>
    %162 = arith.maximumf %160, %161 : vector<4x200xf32>
    %c0_128 = arith.constant 0 : index
    %c0_129 = arith.constant 0 : index
    %163 = vector.load %arg44[%c0_128, %c0_129] : memref<200x200xf32, #tpu.memory_space<vmem>>, vector<200x200xf32>
    %cst_130 = arith.constant dense<0.000000e+00> : vector<4x200xf32>
    %164 = tpu.matmul %162, %163, %cst_130 {dimension_numbers = #tpu.dot_dimension_numbers<[1], [0], [0], [1], [0, 0, 1, 1], [], []>} : vector<4x200xf32>, vector<200x200xf32>, vector<4x200xf32> -> vector<4x200xf32>
    %c0_131 = arith.constant 0 : index
    %c0_132 = arith.constant 0 : index
    %165 = vector.load %arg45[%c0_131, %c0_132] : memref<1x200xf32, #tpu.memory_space<vmem>>, vector<1x200xf32>
    %166 = vector.broadcast %165 : vector<1x200xf32> to vector<4x200xf32>
    %167 = arith.addf %164, %166 : vector<4x200xf32>
    %cst_133 = arith.constant 0.000000e+00 : f32
    %168 = vector.broadcast %cst_133 : f32 to vector<4x200xf32>
    %169 = arith.maximumf %167, %168 : vector<4x200xf32>
    %c0_134 = arith.constant 0 : index
    %c0_135 = arith.constant 0 : index
    %170 = vector.load %arg46[%c0_134, %c0_135] : memref<200x12xf32, #tpu.memory_space<vmem>>, vector<200x12xf32>
    %cst_136 = arith.constant dense<0.000000e+00> : vector<4x12xf32>
    %171 = tpu.matmul %169, %170, %cst_136 {dimension_numbers = #tpu.dot_dimension_numbers<[1], [0], [0], [1], [0, 0, 1, 1], [], []>} : vector<4x200xf32>, vector<200x12xf32>, vector<4x12xf32> -> vector<4x12xf32>
    %c0_137 = arith.constant 0 : index
    %c0_138 = arith.constant 0 : index
    %172 = vector.load %arg47[%c0_137, %c0_138] : memref<1x12xf32, #tpu.memory_space<vmem>>, vector<1x12xf32>
    %173 = vector.broadcast %172 : vector<1x12xf32> to vector<4x12xf32>
    %174 = arith.addf %171, %173 : vector<4x12xf32>
    %cst_139 = arith.constant 0.000000e+00 : f32
    %175 = vector.broadcast %cst_139 : f32 to vector<4x12xf32>
    %176 = arith.maximumf %174, %175 : vector<4x12xf32>
    %177 = math.absf %174 : vector<4x12xf32>
    %cst_140 = arith.constant 0.000000e+00 : f32
    %178 = vector.broadcast %cst_140 : f32 to vector<4x12xf32>
    %179 = arith.subf %178, %177 : vector<4x12xf32>
    %180 = math.exp %179 : vector<4x12xf32>
    %181 = math.log1p %180 : vector<4x12xf32>
    %182 = arith.addf %176, %181 : vector<4x12xf32>
    %183 = arith.mulf %1, %174 : vector<4x12xf32>
    %184 = arith.subf %183, %182 : vector<4x12xf32>
    %cst_141 = arith.constant dense<0.000000e+00> : vector<4xf32>
    %185 = vector.multi_reduction <add>, %184, %cst_141 [1] : vector<4x12xf32> to vector<4xf32>
    %186 = vector.shape_cast %185 : vector<4xf32> to vector<4x1xf32>
    %c0_142 = arith.constant 0 : index
    %c0_143 = arith.constant 0 : index
    %187 = vector.load %arg48[%c0_142, %c0_143] : memref<8x200xf32, #tpu.memory_space<vmem>>, vector<8x200xf32>
    %cst_144 = arith.constant dense<0.000000e+00> : vector<4x200xf32>
    %188 = tpu.matmul %115, %187, %cst_144 {dimension_numbers = #tpu.dot_dimension_numbers<[1], [0], [0], [1], [0, 0, 1, 1], [], []>} : vector<4x8xf32>, vector<8x200xf32>, vector<4x200xf32> -> vector<4x200xf32>
    %c0_145 = arith.constant 0 : index
    %c0_146 = arith.constant 0 : index
    %189 = vector.load %arg50[%c0_145, %c0_146] : memref<1x200xf32, #tpu.memory_space<vmem>>, vector<1x200xf32>
    %190 = vector.broadcast %189 : vector<1x200xf32> to vector<4x200xf32>
    %191 = arith.addf %188, %190 : vector<4x200xf32>
    %192 = arith.addf %186, %130 : vector<4x1xf32>
    %c0_147 = arith.constant 0 : index
    %c0_148 = arith.constant 0 : index
    %c0_149 = arith.constant 0 : index
    %193 = vector.load %arg3[%c0_147, %c0_148, %c0_149] : memref<4x4x6xf32, #tpu.memory_space<vmem>>, vector<1x4x6xf32>
    %194 = vector.shape_cast %193 : vector<1x4x6xf32> to vector<4x6xf32>
    %195 = arith.mulf %194, %155 : vector<4x6xf32>
    %196 = arith.addf %147, %195 : vector<4x6xf32>
    %197 = arith.mulf %194, %194 : vector<4x6xf32>
    %198 = arith.addf %152, %197 : vector<4x6xf32>
    %cst_150 = arith.constant 1.83787704 : f32
    %199 = vector.broadcast %cst_150 : f32 to vector<4x6xf32>
    %200 = arith.addf %198, %199 : vector<4x6xf32>
    %cst_151 = arith.constant dense<0.000000e+00> : vector<4xf32>
    %201 = vector.multi_reduction <add>, %200, %cst_151 [1] : vector<4x6xf32> to vector<4xf32>
    %202 = vector.shape_cast %201 : vector<4xf32> to vector<4x1xf32>
    %cst_152 = arith.constant -5.000000e-01 : f32
    %203 = vector.broadcast %cst_152 : f32 to vector<4x1xf32>
    %204 = arith.mulf %203, %202 : vector<4x1xf32>
    %205 = arith.mulf %196, %196 : vector<4x6xf32>
    %cst_153 = arith.constant 1.83787704 : f32
    %206 = vector.broadcast %cst_153 : f32 to vector<4x6xf32>
    %207 = arith.addf %205, %206 : vector<4x6xf32>
    %cst_154 = arith.constant dense<0.000000e+00> : vector<4xf32>
    %208 = vector.multi_reduction <add>, %207, %cst_154 [1] : vector<4x6xf32> to vector<4xf32>
    %209 = vector.shape_cast %208 : vector<4xf32> to vector<4x1xf32>
    %cst_155 = arith.constant -5.000000e-01 : f32
    %210 = vector.broadcast %cst_155 : f32 to vector<4x1xf32>
    %211 = arith.mulf %210, %209 : vector<4x1xf32>
    %c0_156 = arith.constant 0 : index
    %c0_157 = arith.constant 0 : index
    %212 = vector.load %arg49[%c0_156, %c0_157] : memref<6x200xf32, #tpu.memory_space<vmem>>, vector<6x200xf32>
    %cst_158 = arith.constant dense<0.000000e+00> : vector<4x200xf32>
    %213 = tpu.matmul %196, %212, %cst_158 {dimension_numbers = #tpu.dot_dimension_numbers<[1], [0], [0], [1], [0, 0, 1, 1], [], []>} : vector<4x6xf32>, vector<6x200xf32>, vector<4x200xf32> -> vector<4x200xf32>
    %214 = arith.addf %191, %213 : vector<4x200xf32>
    %cst_159 = arith.constant 0.000000e+00 : f32
    %215 = vector.broadcast %cst_159 : f32 to vector<4x200xf32>
    %216 = arith.maximumf %214, %215 : vector<4x200xf32>
    %c0_160 = arith.constant 0 : index
    %c0_161 = arith.constant 0 : index
    %217 = vector.load %arg51[%c0_160, %c0_161] : memref<200x200xf32, #tpu.memory_space<vmem>>, vector<200x200xf32>
    %cst_162 = arith.constant dense<0.000000e+00> : vector<4x200xf32>
    %218 = tpu.matmul %216, %217, %cst_162 {dimension_numbers = #tpu.dot_dimension_numbers<[1], [0], [0], [1], [0, 0, 1, 1], [], []>} : vector<4x200xf32>, vector<200x200xf32>, vector<4x200xf32> -> vector<4x200xf32>
    %c0_163 = arith.constant 0 : index
    %c0_164 = arith.constant 0 : index
    %219 = vector.load %arg52[%c0_163, %c0_164] : memref<1x200xf32, #tpu.memory_space<vmem>>, vector<1x200xf32>
    %220 = vector.broadcast %219 : vector<1x200xf32> to vector<4x200xf32>
    %221 = arith.addf %218, %220 : vector<4x200xf32>
    %cst_165 = arith.constant 0.000000e+00 : f32
    %222 = vector.broadcast %cst_165 : f32 to vector<4x200xf32>
    %223 = arith.maximumf %221, %222 : vector<4x200xf32>
    %c0_166 = arith.constant 0 : index
    %c0_167 = arith.constant 0 : index
    %224 = vector.load %arg53[%c0_166, %c0_167] : memref<200x16xf32, #tpu.memory_space<vmem>>, vector<200x16xf32>
    %cst_168 = arith.constant dense<0.000000e+00> : vector<4x16xf32>
    %225 = tpu.matmul %223, %224, %cst_168 {dimension_numbers = #tpu.dot_dimension_numbers<[1], [0], [0], [1], [0, 0, 1, 1], [], []>} : vector<4x200xf32>, vector<200x16xf32>, vector<4x16xf32> -> vector<4x16xf32>
    %c0_169 = arith.constant 0 : index
    %c0_170 = arith.constant 0 : index
    %226 = vector.load %arg54[%c0_169, %c0_170] : memref<1x16xf32, #tpu.memory_space<vmem>>, vector<1x16xf32>
    %227 = vector.broadcast %226 : vector<1x16xf32> to vector<4x16xf32>
    %228 = arith.addf %225, %227 : vector<4x16xf32>
    %cst_171 = arith.constant 0.000000e+00 : f32
    %229 = vector.broadcast %cst_171 : f32 to vector<4x16xf32>
    %230 = arith.maximumf %228, %229 : vector<4x16xf32>
    %231 = math.absf %228 : vector<4x16xf32>
    %cst_172 = arith.constant 0.000000e+00 : f32
    %232 = vector.broadcast %cst_172 : f32 to vector<4x16xf32>
    %233 = arith.subf %232, %231 : vector<4x16xf32>
    %234 = math.exp %233 : vector<4x16xf32>
    %235 = math.log1p %234 : vector<4x16xf32>
    %236 = arith.addf %230, %235 : vector<4x16xf32>
    %237 = arith.mulf %0, %228 : vector<4x16xf32>
    %238 = arith.subf %237, %236 : vector<4x16xf32>
    %cst_173 = arith.constant dense<0.000000e+00> : vector<4xf32>
    %239 = vector.multi_reduction <add>, %238, %cst_173 [1] : vector<4x16xf32> to vector<4xf32>
    %240 = vector.shape_cast %239 : vector<4xf32> to vector<4x1xf32>
    %241 = arith.addf %240, %192 : vector<4x1xf32>
    %242 = arith.addf %241, %211 : vector<4x1xf32>
    %243 = arith.subf %242, %204 : vector<4x1xf32>
    %cst_174 = arith.constant 1.000000e+00 : f32
    %244 = vector.broadcast %cst_174 : f32 to vector<4x1xf32>
    %c1 = arith.constant 1 : index
    %c0_175 = arith.constant 0 : index
    %c0_176 = arith.constant 0 : index
    %245 = vector.load %arg3[%c1, %c0_175, %c0_176] : memref<4x4x6xf32, #tpu.memory_space<vmem>>, vector<1x4x6xf32>
    %246 = vector.shape_cast %245 : vector<1x4x6xf32> to vector<4x6xf32>
    %247 = arith.mulf %246, %155 : vector<4x6xf32>
    %248 = arith.addf %147, %247 : vector<4x6xf32>
    %249 = arith.mulf %246, %246 : vector<4x6xf32>
    %250 = arith.addf %152, %249 : vector<4x6xf32>
    %cst_177 = arith.constant 1.83787704 : f32
    %251 = vector.broadcast %cst_177 : f32 to vector<4x6xf32>
    %252 = arith.addf %250, %251 : vector<4x6xf32>
    %cst_178 = arith.constant dense<0.000000e+00> : vector<4xf32>
    %253 = vector.multi_reduction <add>, %252, %cst_178 [1] : vector<4x6xf32> to vector<4xf32>
    %254 = vector.shape_cast %253 : vector<4xf32> to vector<4x1xf32>
    %cst_179 = arith.constant -5.000000e-01 : f32
    %255 = vector.broadcast %cst_179 : f32 to vector<4x1xf32>
    %256 = arith.mulf %255, %254 : vector<4x1xf32>
    %257 = arith.mulf %248, %248 : vector<4x6xf32>
    %cst_180 = arith.constant 1.83787704 : f32
    %258 = vector.broadcast %cst_180 : f32 to vector<4x6xf32>
    %259 = arith.addf %257, %258 : vector<4x6xf32>
    %cst_181 = arith.constant dense<0.000000e+00> : vector<4xf32>
    %260 = vector.multi_reduction <add>, %259, %cst_181 [1] : vector<4x6xf32> to vector<4xf32>
    %261 = vector.shape_cast %260 : vector<4xf32> to vector<4x1xf32>
    %cst_182 = arith.constant -5.000000e-01 : f32
    %262 = vector.broadcast %cst_182 : f32 to vector<4x1xf32>
    %263 = arith.mulf %262, %261 : vector<4x1xf32>
    %c0_183 = arith.constant 0 : index
    %c0_184 = arith.constant 0 : index
    %264 = vector.load %arg49[%c0_183, %c0_184] : memref<6x200xf32, #tpu.memory_space<vmem>>, vector<6x200xf32>
    %cst_185 = arith.constant dense<0.000000e+00> : vector<4x200xf32>
    %265 = tpu.matmul %248, %264, %cst_185 {dimension_numbers = #tpu.dot_dimension_numbers<[1], [0], [0], [1], [0, 0, 1, 1], [], []>} : vector<4x6xf32>, vector<6x200xf32>, vector<4x200xf32> -> vector<4x200xf32>
    %266 = arith.addf %191, %265 : vector<4x200xf32>
    %cst_186 = arith.constant 0.000000e+00 : f32
    %267 = vector.broadcast %cst_186 : f32 to vector<4x200xf32>
    %268 = arith.maximumf %266, %267 : vector<4x200xf32>
    %c0_187 = arith.constant 0 : index
    %c0_188 = arith.constant 0 : index
    %269 = vector.load %arg51[%c0_187, %c0_188] : memref<200x200xf32, #tpu.memory_space<vmem>>, vector<200x200xf32>
    %cst_189 = arith.constant dense<0.000000e+00> : vector<4x200xf32>
    %270 = tpu.matmul %268, %269, %cst_189 {dimension_numbers = #tpu.dot_dimension_numbers<[1], [0], [0], [1], [0, 0, 1, 1], [], []>} : vector<4x200xf32>, vector<200x200xf32>, vector<4x200xf32> -> vector<4x200xf32>
    %c0_190 = arith.constant 0 : index
    %c0_191 = arith.constant 0 : index
    %271 = vector.load %arg52[%c0_190, %c0_191] : memref<1x200xf32, #tpu.memory_space<vmem>>, vector<1x200xf32>
    %272 = vector.broadcast %271 : vector<1x200xf32> to vector<4x200xf32>
    %273 = arith.addf %270, %272 : vector<4x200xf32>
    %cst_192 = arith.constant 0.000000e+00 : f32
    %274 = vector.broadcast %cst_192 : f32 to vector<4x200xf32>
    %275 = arith.maximumf %273, %274 : vector<4x200xf32>
    %c0_193 = arith.constant 0 : index
    %c0_194 = arith.constant 0 : index
    %276 = vector.load %arg53[%c0_193, %c0_194] : memref<200x16xf32, #tpu.memory_space<vmem>>, vector<200x16xf32>
    %cst_195 = arith.constant dense<0.000000e+00> : vector<4x16xf32>
    %277 = tpu.matmul %275, %276, %cst_195 {dimension_numbers = #tpu.dot_dimension_numbers<[1], [0], [0], [1], [0, 0, 1, 1], [], []>} : vector<4x200xf32>, vector<200x16xf32>, vector<4x16xf32> -> vector<4x16xf32>
    %c0_196 = arith.constant 0 : index
    %c0_197 = arith.constant 0 : index
    %278 = vector.load %arg54[%c0_196, %c0_197] : memref<1x16xf32, #tpu.memory_space<vmem>>, vector<1x16xf32>
    %279 = vector.broadcast %278 : vector<1x16xf32> to vector<4x16xf32>
    %280 = arith.addf %277, %279 : vector<4x16xf32>
    %cst_198 = arith.constant 0.000000e+00 : f32
    %281 = vector.broadcast %cst_198 : f32 to vector<4x16xf32>
    %282 = arith.maximumf %280, %281 : vector<4x16xf32>
    %283 = math.absf %280 : vector<4x16xf32>
    %cst_199 = arith.constant 0.000000e+00 : f32
    %284 = vector.broadcast %cst_199 : f32 to vector<4x16xf32>
    %285 = arith.subf %284, %283 : vector<4x16xf32>
    %286 = math.exp %285 : vector<4x16xf32>
    %287 = math.log1p %286 : vector<4x16xf32>
    %288 = arith.addf %282, %287 : vector<4x16xf32>
    %289 = arith.mulf %0, %280 : vector<4x16xf32>
    %290 = arith.subf %289, %288 : vector<4x16xf32>
    %cst_200 = arith.constant dense<0.000000e+00> : vector<4xf32>
    %291 = vector.multi_reduction <add>, %290, %cst_200 [1] : vector<4x16xf32> to vector<4xf32>
    %292 = vector.shape_cast %291 : vector<4xf32> to vector<4x1xf32>
    %293 = arith.addf %292, %192 : vector<4x1xf32>
    %294 = arith.addf %293, %263 : vector<4x1xf32>
    %295 = arith.subf %294, %256 : vector<4x1xf32>
    %296 = arith.maximumf %243, %295 : vector<4x1xf32>
    %297 = arith.subf %243, %296 : vector<4x1xf32>
    %298 = math.exp %297 : vector<4x1xf32>
    %299 = arith.mulf %244, %298 : vector<4x1xf32>
    %300 = arith.subf %295, %296 : vector<4x1xf32>
    %301 = math.exp %300 : vector<4x1xf32>
    %302 = arith.addf %299, %301 : vector<4x1xf32>
    %303 = math.log %302 : vector<4x1xf32>
    %304 = arith.addf %296, %303 : vector<4x1xf32>
    %cst_201 = arith.constant 0.693147182 : f32
    %305 = vector.broadcast %cst_201 : f32 to vector<4x1xf32>
    %306 = arith.subf %304, %305 : vector<4x1xf32>
    %307 = arith.subf %306, %123 : vector<4x1xf32>
    %308 = arith.addf %111, %307 : vector<4x1xf32>
    %c1_202 = arith.constant 1 : index
    %c0_203 = arith.constant 0 : index
    %c0_204 = arith.constant 0 : index
    %309 = vector.load %arg2[%c1_202, %c0_203, %c0_204] : memref<2x4x8xf32, #tpu.memory_space<vmem>>, vector<1x4x8xf32>
    %310 = vector.shape_cast %309 : vector<1x4x8xf32> to vector<4x8xf32>
    %311 = arith.mulf %310, %64 : vector<4x8xf32>
    %312 = arith.addf %62, %311 : vector<4x8xf32>
    %313 = arith.mulf %310, %310 : vector<4x8xf32>
    %314 = arith.addf %63, %313 : vector<4x8xf32>
    %cst_205 = arith.constant 1.83787704 : f32
    %315 = vector.broadcast %cst_205 : f32 to vector<4x8xf32>
    %316 = arith.addf %314, %315 : vector<4x8xf32>
    %cst_206 = arith.constant dense<0.000000e+00> : vector<4xf32>
    %317 = vector.multi_reduction <add>, %316, %cst_206 [1] : vector<4x8xf32> to vector<4xf32>
    %318 = vector.shape_cast %317 : vector<4xf32> to vector<4x1xf32>
    %cst_207 = arith.constant -5.000000e-01 : f32
    %319 = vector.broadcast %cst_207 : f32 to vector<4x1xf32>
    %320 = arith.mulf %319, %318 : vector<4x1xf32>
    %321 = arith.mulf %312, %312 : vector<4x8xf32>
    %cst_208 = arith.constant 1.83787704 : f32
    %322 = vector.broadcast %cst_208 : f32 to vector<4x8xf32>
    %323 = arith.addf %321, %322 : vector<4x8xf32>
    %cst_209 = arith.constant dense<0.000000e+00> : vector<4xf32>
    %324 = vector.multi_reduction <add>, %323, %cst_209 [1] : vector<4x8xf32> to vector<4xf32>
    %325 = vector.shape_cast %324 : vector<4xf32> to vector<4x1xf32>
    %cst_210 = arith.constant -5.000000e-01 : f32
    %326 = vector.broadcast %cst_210 : f32 to vector<4x1xf32>
    %327 = arith.mulf %326, %325 : vector<4x1xf32>
    %c0_211 = arith.constant 0 : index
    %c0_212 = arith.constant 0 : index
    %328 = vector.load %arg34[%c0_211, %c0_212] : memref<8x200xf32, #tpu.memory_space<vmem>>, vector<8x200xf32>
    %cst_213 = arith.constant dense<0.000000e+00> : vector<4x200xf32>
    %329 = tpu.matmul %312, %328, %cst_213 {dimension_numbers = #tpu.dot_dimension_numbers<[1], [0], [0], [1], [0, 0, 1, 1], [], []>} : vector<4x8xf32>, vector<8x200xf32>, vector<4x200xf32> -> vector<4x200xf32>
    %330 = arith.addf %110, %329 : vector<4x200xf32>
    %cst_214 = arith.constant 0.000000e+00 : f32
    %331 = vector.broadcast %cst_214 : f32 to vector<4x200xf32>
    %332 = arith.maximumf %330, %331 : vector<4x200xf32>
    %c0_215 = arith.constant 0 : index
    %c0_216 = arith.constant 0 : index
    %333 = vector.load %arg36[%c0_215, %c0_216] : memref<200x200xf32, #tpu.memory_space<vmem>>, vector<200x200xf32>
    %cst_217 = arith.constant dense<0.000000e+00> : vector<4x200xf32>
    %334 = tpu.matmul %332, %333, %cst_217 {dimension_numbers = #tpu.dot_dimension_numbers<[1], [0], [0], [1], [0, 0, 1, 1], [], []>} : vector<4x200xf32>, vector<200x200xf32>, vector<4x200xf32> -> vector<4x200xf32>
    %c0_218 = arith.constant 0 : index
    %c0_219 = arith.constant 0 : index
    %335 = vector.load %arg37[%c0_218, %c0_219] : memref<1x200xf32, #tpu.memory_space<vmem>>, vector<1x200xf32>
    %336 = vector.broadcast %335 : vector<1x200xf32> to vector<4x200xf32>
    %337 = arith.addf %334, %336 : vector<4x200xf32>
    %cst_220 = arith.constant 0.000000e+00 : f32
    %338 = vector.broadcast %cst_220 : f32 to vector<4x200xf32>
    %339 = arith.maximumf %337, %338 : vector<4x200xf32>
    %c0_221 = arith.constant 0 : index
    %c0_222 = arith.constant 0 : index
    %340 = vector.load %arg38[%c0_221, %c0_222] : memref<200x6xf32, #tpu.memory_space<vmem>>, vector<200x6xf32>
    %cst_223 = arith.constant dense<0.000000e+00> : vector<4x6xf32>
    %341 = tpu.matmul %339, %340, %cst_223 {dimension_numbers = #tpu.dot_dimension_numbers<[1], [0], [0], [1], [0, 0, 1, 1], [], []>} : vector<4x200xf32>, vector<200x6xf32>, vector<4x6xf32> -> vector<4x6xf32>
    %c0_224 = arith.constant 0 : index
    %c0_225 = arith.constant 0 : index
    %342 = vector.load %arg39[%c0_224, %c0_225] : memref<1x6xf32, #tpu.memory_space<vmem>>, vector<1x6xf32>
    %343 = vector.broadcast %342 : vector<1x6xf32> to vector<4x6xf32>
    %344 = arith.addf %341, %343 : vector<4x6xf32>
    %c0_226 = arith.constant 0 : index
    %c0_227 = arith.constant 0 : index
    %345 = vector.load %arg40[%c0_226, %c0_227] : memref<200x6xf32, #tpu.memory_space<vmem>>, vector<200x6xf32>
    %cst_228 = arith.constant dense<0.000000e+00> : vector<4x6xf32>
    %346 = tpu.matmul %339, %345, %cst_228 {dimension_numbers = #tpu.dot_dimension_numbers<[1], [0], [0], [1], [0, 0, 1, 1], [], []>} : vector<4x200xf32>, vector<200x6xf32>, vector<4x6xf32> -> vector<4x6xf32>
    %c0_229 = arith.constant 0 : index
    %c0_230 = arith.constant 0 : index
    %347 = vector.load %arg41[%c0_229, %c0_230] : memref<1x6xf32, #tpu.memory_space<vmem>>, vector<1x6xf32>
    %348 = vector.broadcast %347 : vector<1x6xf32> to vector<4x6xf32>
    %349 = arith.addf %346, %348 : vector<4x6xf32>
    %cst_231 = arith.constant 5.000000e-01 : f32
    %350 = vector.broadcast %cst_231 : f32 to vector<4x6xf32>
    %351 = arith.mulf %350, %349 : vector<4x6xf32>
    %352 = math.exp %351 : vector<4x6xf32>
    %c0_232 = arith.constant 0 : index
    %c0_233 = arith.constant 0 : index
    %353 = vector.load %arg42[%c0_232, %c0_233] : memref<8x200xf32, #tpu.memory_space<vmem>>, vector<8x200xf32>
    %cst_234 = arith.constant dense<0.000000e+00> : vector<4x200xf32>
    %354 = tpu.matmul %312, %353, %cst_234 {dimension_numbers = #tpu.dot_dimension_numbers<[1], [0], [0], [1], [0, 0, 1, 1], [], []>} : vector<4x8xf32>, vector<8x200xf32>, vector<4x200xf32> -> vector<4x200xf32>
    %c0_235 = arith.constant 0 : index
    %c0_236 = arith.constant 0 : index
    %355 = vector.load %arg43[%c0_235, %c0_236] : memref<1x200xf32, #tpu.memory_space<vmem>>, vector<1x200xf32>
    %356 = vector.broadcast %355 : vector<1x200xf32> to vector<4x200xf32>
    %357 = arith.addf %354, %356 : vector<4x200xf32>
    %cst_237 = arith.constant 0.000000e+00 : f32
    %358 = vector.broadcast %cst_237 : f32 to vector<4x200xf32>
    %359 = arith.maximumf %357, %358 : vector<4x200xf32>
    %c0_238 = arith.constant 0 : index
    %c0_239 = arith.constant 0 : index
    %360 = vector.load %arg44[%c0_238, %c0_239] : memref<200x200xf32, #tpu.memory_space<vmem>>, vector<200x200xf32>
    %cst_240 = arith.constant dense<0.000000e+00> : vector<4x200xf32>
    %361 = tpu.matmul %359, %360, %cst_240 {dimension_numbers = #tpu.dot_dimension_numbers<[1], [0], [0], [1], [0, 0, 1, 1], [], []>} : vector<4x200xf32>, vector<200x200xf32>, vector<4x200xf32> -> vector<4x200xf32>
    %c0_241 = arith.constant 0 : index
    %c0_242 = arith.constant 0 : index
    %362 = vector.load %arg45[%c0_241, %c0_242] : memref<1x200xf32, #tpu.memory_space<vmem>>, vector<1x200xf32>
    %363 = vector.broadcast %362 : vector<1x200xf32> to vector<4x200xf32>
    %364 = arith.addf %361, %363 : vector<4x200xf32>
    %cst_243 = arith.constant 0.000000e+00 : f32
    %365 = vector.broadcast %cst_243 : f32 to vector<4x200xf32>
    %366 = arith.maximumf %364, %365 : vector<4x200xf32>
    %c0_244 = arith.constant 0 : index
    %c0_245 = arith.constant 0 : index
    %367 = vector.load %arg46[%c0_244, %c0_245] : memref<200x12xf32, #tpu.memory_space<vmem>>, vector<200x12xf32>
    %cst_246 = arith.constant dense<0.000000e+00> : vector<4x12xf32>
    %368 = tpu.matmul %366, %367, %cst_246 {dimension_numbers = #tpu.dot_dimension_numbers<[1], [0], [0], [1], [0, 0, 1, 1], [], []>} : vector<4x200xf32>, vector<200x12xf32>, vector<4x12xf32> -> vector<4x12xf32>
    %c0_247 = arith.constant 0 : index
    %c0_248 = arith.constant 0 : index
    %369 = vector.load %arg47[%c0_247, %c0_248] : memref<1x12xf32, #tpu.memory_space<vmem>>, vector<1x12xf32>
    %370 = vector.broadcast %369 : vector<1x12xf32> to vector<4x12xf32>
    %371 = arith.addf %368, %370 : vector<4x12xf32>
    %cst_249 = arith.constant 0.000000e+00 : f32
    %372 = vector.broadcast %cst_249 : f32 to vector<4x12xf32>
    %373 = arith.maximumf %371, %372 : vector<4x12xf32>
    %374 = math.absf %371 : vector<4x12xf32>
    %cst_250 = arith.constant 0.000000e+00 : f32
    %375 = vector.broadcast %cst_250 : f32 to vector<4x12xf32>
    %376 = arith.subf %375, %374 : vector<4x12xf32>
    %377 = math.exp %376 : vector<4x12xf32>
    %378 = math.log1p %377 : vector<4x12xf32>
    %379 = arith.addf %373, %378 : vector<4x12xf32>
    %380 = arith.mulf %1, %371 : vector<4x12xf32>
    %381 = arith.subf %380, %379 : vector<4x12xf32>
    %cst_251 = arith.constant dense<0.000000e+00> : vector<4xf32>
    %382 = vector.multi_reduction <add>, %381, %cst_251 [1] : vector<4x12xf32> to vector<4xf32>
    %383 = vector.shape_cast %382 : vector<4xf32> to vector<4x1xf32>
    %c0_252 = arith.constant 0 : index
    %c0_253 = arith.constant 0 : index
    %384 = vector.load %arg48[%c0_252, %c0_253] : memref<8x200xf32, #tpu.memory_space<vmem>>, vector<8x200xf32>
    %cst_254 = arith.constant dense<0.000000e+00> : vector<4x200xf32>
    %385 = tpu.matmul %312, %384, %cst_254 {dimension_numbers = #tpu.dot_dimension_numbers<[1], [0], [0], [1], [0, 0, 1, 1], [], []>} : vector<4x8xf32>, vector<8x200xf32>, vector<4x200xf32> -> vector<4x200xf32>
    %c0_255 = arith.constant 0 : index
    %c0_256 = arith.constant 0 : index
    %386 = vector.load %arg50[%c0_255, %c0_256] : memref<1x200xf32, #tpu.memory_space<vmem>>, vector<1x200xf32>
    %387 = vector.broadcast %386 : vector<1x200xf32> to vector<4x200xf32>
    %388 = arith.addf %385, %387 : vector<4x200xf32>
    %389 = arith.addf %383, %327 : vector<4x1xf32>
    %c2 = arith.constant 2 : index
    %c0_257 = arith.constant 0 : index
    %c0_258 = arith.constant 0 : index
    %390 = vector.load %arg3[%c2, %c0_257, %c0_258] : memref<4x4x6xf32, #tpu.memory_space<vmem>>, vector<1x4x6xf32>
    %391 = vector.shape_cast %390 : vector<1x4x6xf32> to vector<4x6xf32>
    %392 = arith.mulf %391, %352 : vector<4x6xf32>
    %393 = arith.addf %344, %392 : vector<4x6xf32>
    %394 = arith.mulf %391, %391 : vector<4x6xf32>
    %395 = arith.addf %349, %394 : vector<4x6xf32>
    %cst_259 = arith.constant 1.83787704 : f32
    %396 = vector.broadcast %cst_259 : f32 to vector<4x6xf32>
    %397 = arith.addf %395, %396 : vector<4x6xf32>
    %cst_260 = arith.constant dense<0.000000e+00> : vector<4xf32>
    %398 = vector.multi_reduction <add>, %397, %cst_260 [1] : vector<4x6xf32> to vector<4xf32>
    %399 = vector.shape_cast %398 : vector<4xf32> to vector<4x1xf32>
    %cst_261 = arith.constant -5.000000e-01 : f32
    %400 = vector.broadcast %cst_261 : f32 to vector<4x1xf32>
    %401 = arith.mulf %400, %399 : vector<4x1xf32>
    %402 = arith.mulf %393, %393 : vector<4x6xf32>
    %cst_262 = arith.constant 1.83787704 : f32
    %403 = vector.broadcast %cst_262 : f32 to vector<4x6xf32>
    %404 = arith.addf %402, %403 : vector<4x6xf32>
    %cst_263 = arith.constant dense<0.000000e+00> : vector<4xf32>
    %405 = vector.multi_reduction <add>, %404, %cst_263 [1] : vector<4x6xf32> to vector<4xf32>
    %406 = vector.shape_cast %405 : vector<4xf32> to vector<4x1xf32>
    %cst_264 = arith.constant -5.000000e-01 : f32
    %407 = vector.broadcast %cst_264 : f32 to vector<4x1xf32>
    %408 = arith.mulf %407, %406 : vector<4x1xf32>
    %c0_265 = arith.constant 0 : index
    %c0_266 = arith.constant 0 : index
    %409 = vector.load %arg49[%c0_265, %c0_266] : memref<6x200xf32, #tpu.memory_space<vmem>>, vector<6x200xf32>
    %cst_267 = arith.constant dense<0.000000e+00> : vector<4x200xf32>
    %410 = tpu.matmul %393, %409, %cst_267 {dimension_numbers = #tpu.dot_dimension_numbers<[1], [0], [0], [1], [0, 0, 1, 1], [], []>} : vector<4x6xf32>, vector<6x200xf32>, vector<4x200xf32> -> vector<4x200xf32>
    %411 = arith.addf %388, %410 : vector<4x200xf32>
    %cst_268 = arith.constant 0.000000e+00 : f32
    %412 = vector.broadcast %cst_268 : f32 to vector<4x200xf32>
    %413 = arith.maximumf %411, %412 : vector<4x200xf32>
    %c0_269 = arith.constant 0 : index
    %c0_270 = arith.constant 0 : index
    %414 = vector.load %arg51[%c0_269, %c0_270] : memref<200x200xf32, #tpu.memory_space<vmem>>, vector<200x200xf32>
    %cst_271 = arith.constant dense<0.000000e+00> : vector<4x200xf32>
    %415 = tpu.matmul %413, %414, %cst_271 {dimension_numbers = #tpu.dot_dimension_numbers<[1], [0], [0], [1], [0, 0, 1, 1], [], []>} : vector<4x200xf32>, vector<200x200xf32>, vector<4x200xf32> -> vector<4x200xf32>
    %c0_272 = arith.constant 0 : index
    %c0_273 = arith.constant 0 : index
    %416 = vector.load %arg52[%c0_272, %c0_273] : memref<1x200xf32, #tpu.memory_space<vmem>>, vector<1x200xf32>
    %417 = vector.broadcast %416 : vector<1x200xf32> to vector<4x200xf32>
    %418 = arith.addf %415, %417 : vector<4x200xf32>
    %cst_274 = arith.constant 0.000000e+00 : f32
    %419 = vector.broadcast %cst_274 : f32 to vector<4x200xf32>
    %420 = arith.maximumf %418, %419 : vector<4x200xf32>
    %c0_275 = arith.constant 0 : index
    %c0_276 = arith.constant 0 : index
    %421 = vector.load %arg53[%c0_275, %c0_276] : memref<200x16xf32, #tpu.memory_space<vmem>>, vector<200x16xf32>
    %cst_277 = arith.constant dense<0.000000e+00> : vector<4x16xf32>
    %422 = tpu.matmul %420, %421, %cst_277 {dimension_numbers = #tpu.dot_dimension_numbers<[1], [0], [0], [1], [0, 0, 1, 1], [], []>} : vector<4x200xf32>, vector<200x16xf32>, vector<4x16xf32> -> vector<4x16xf32>
    %c0_278 = arith.constant 0 : index
    %c0_279 = arith.constant 0 : index
    %423 = vector.load %arg54[%c0_278, %c0_279] : memref<1x16xf32, #tpu.memory_space<vmem>>, vector<1x16xf32>
    %424 = vector.broadcast %423 : vector<1x16xf32> to vector<4x16xf32>
    %425 = arith.addf %422, %424 : vector<4x16xf32>
    %cst_280 = arith.constant 0.000000e+00 : f32
    %426 = vector.broadcast %cst_280 : f32 to vector<4x16xf32>
    %427 = arith.maximumf %425, %426 : vector<4x16xf32>
    %428 = math.absf %425 : vector<4x16xf32>
    %cst_281 = arith.constant 0.000000e+00 : f32
    %429 = vector.broadcast %cst_281 : f32 to vector<4x16xf32>
    %430 = arith.subf %429, %428 : vector<4x16xf32>
    %431 = math.exp %430 : vector<4x16xf32>
    %432 = math.log1p %431 : vector<4x16xf32>
    %433 = arith.addf %427, %432 : vector<4x16xf32>
    %434 = arith.mulf %0, %425 : vector<4x16xf32>
    %435 = arith.subf %434, %433 : vector<4x16xf32>
    %cst_282 = arith.constant dense<0.000000e+00> : vector<4xf32>
    %436 = vector.multi_reduction <add>, %435, %cst_282 [1] : vector<4x16xf32> to vector<4xf32>
    %437 = vector.shape_cast %436 : vector<4xf32> to vector<4x1xf32>
    %438 = arith.addf %437, %389 : vector<4x1xf32>
    %439 = arith.addf %438, %408 : vector<4x1xf32>
    %440 = arith.subf %439, %401 : vector<4x1xf32>
    %cst_283 = arith.constant 1.000000e+00 : f32
    %441 = vector.broadcast %cst_283 : f32 to vector<4x1xf32>
    %c3 = arith.constant 3 : index
    %c0_284 = arith.constant 0 : index
    %c0_285 = arith.constant 0 : index
    %442 = vector.load %arg3[%c3, %c0_284, %c0_285] : memref<4x4x6xf32, #tpu.memory_space<vmem>>, vector<1x4x6xf32>
    %443 = vector.shape_cast %442 : vector<1x4x6xf32> to vector<4x6xf32>
    %444 = arith.mulf %443, %352 : vector<4x6xf32>
    %445 = arith.addf %344, %444 : vector<4x6xf32>
    %446 = arith.mulf %443, %443 : vector<4x6xf32>
    %447 = arith.addf %349, %446 : vector<4x6xf32>
    %cst_286 = arith.constant 1.83787704 : f32
    %448 = vector.broadcast %cst_286 : f32 to vector<4x6xf32>
    %449 = arith.addf %447, %448 : vector<4x6xf32>
    %cst_287 = arith.constant dense<0.000000e+00> : vector<4xf32>
    %450 = vector.multi_reduction <add>, %449, %cst_287 [1] : vector<4x6xf32> to vector<4xf32>
    %451 = vector.shape_cast %450 : vector<4xf32> to vector<4x1xf32>
    %cst_288 = arith.constant -5.000000e-01 : f32
    %452 = vector.broadcast %cst_288 : f32 to vector<4x1xf32>
    %453 = arith.mulf %452, %451 : vector<4x1xf32>
    %454 = arith.mulf %445, %445 : vector<4x6xf32>
    %cst_289 = arith.constant 1.83787704 : f32
    %455 = vector.broadcast %cst_289 : f32 to vector<4x6xf32>
    %456 = arith.addf %454, %455 : vector<4x6xf32>
    %cst_290 = arith.constant dense<0.000000e+00> : vector<4xf32>
    %457 = vector.multi_reduction <add>, %456, %cst_290 [1] : vector<4x6xf32> to vector<4xf32>
    %458 = vector.shape_cast %457 : vector<4xf32> to vector<4x1xf32>
    %cst_291 = arith.constant -5.000000e-01 : f32
    %459 = vector.broadcast %cst_291 : f32 to vector<4x1xf32>
    %460 = arith.mulf %459, %458 : vector<4x1xf32>
    %c0_292 = arith.constant 0 : index
    %c0_293 = arith.constant 0 : index
    %461 = vector.load %arg49[%c0_292, %c0_293] : memref<6x200xf32, #tpu.memory_space<vmem>>, vector<6x200xf32>
    %cst_294 = arith.constant dense<0.000000e+00> : vector<4x200xf32>
    %462 = tpu.matmul %445, %461, %cst_294 {dimension_numbers = #tpu.dot_dimension_numbers<[1], [0], [0], [1], [0, 0, 1, 1], [], []>} : vector<4x6xf32>, vector<6x200xf32>, vector<4x200xf32> -> vector<4x200xf32>
    %463 = arith.addf %388, %462 : vector<4x200xf32>
    %cst_295 = arith.constant 0.000000e+00 : f32
    %464 = vector.broadcast %cst_295 : f32 to vector<4x200xf32>
    %465 = arith.maximumf %463, %464 : vector<4x200xf32>
    %c0_296 = arith.constant 0 : index
    %c0_297 = arith.constant 0 : index
    %466 = vector.load %arg51[%c0_296, %c0_297] : memref<200x200xf32, #tpu.memory_space<vmem>>, vector<200x200xf32>
    %cst_298 = arith.constant dense<0.000000e+00> : vector<4x200xf32>
    %467 = tpu.matmul %465, %466, %cst_298 {dimension_numbers = #tpu.dot_dimension_numbers<[1], [0], [0], [1], [0, 0, 1, 1], [], []>} : vector<4x200xf32>, vector<200x200xf32>, vector<4x200xf32> -> vector<4x200xf32>
    %c0_299 = arith.constant 0 : index
    %c0_300 = arith.constant 0 : index
    %468 = vector.load %arg52[%c0_299, %c0_300] : memref<1x200xf32, #tpu.memory_space<vmem>>, vector<1x200xf32>
    %469 = vector.broadcast %468 : vector<1x200xf32> to vector<4x200xf32>
    %470 = arith.addf %467, %469 : vector<4x200xf32>
    %cst_301 = arith.constant 0.000000e+00 : f32
    %471 = vector.broadcast %cst_301 : f32 to vector<4x200xf32>
    %472 = arith.maximumf %470, %471 : vector<4x200xf32>
    %c0_302 = arith.constant 0 : index
    %c0_303 = arith.constant 0 : index
    %473 = vector.load %arg53[%c0_302, %c0_303] : memref<200x16xf32, #tpu.memory_space<vmem>>, vector<200x16xf32>
    %cst_304 = arith.constant dense<0.000000e+00> : vector<4x16xf32>
    %474 = tpu.matmul %472, %473, %cst_304 {dimension_numbers = #tpu.dot_dimension_numbers<[1], [0], [0], [1], [0, 0, 1, 1], [], []>} : vector<4x200xf32>, vector<200x16xf32>, vector<4x16xf32> -> vector<4x16xf32>
    %c0_305 = arith.constant 0 : index
    %c0_306 = arith.constant 0 : index
    %475 = vector.load %arg54[%c0_305, %c0_306] : memref<1x16xf32, #tpu.memory_space<vmem>>, vector<1x16xf32>
    %476 = vector.broadcast %475 : vector<1x16xf32> to vector<4x16xf32>
    %477 = arith.addf %474, %476 : vector<4x16xf32>
    %cst_307 = arith.constant 0.000000e+00 : f32
    %478 = vector.broadcast %cst_307 : f32 to vector<4x16xf32>
    %479 = arith.maximumf %477, %478 : vector<4x16xf32>
    %480 = math.absf %477 : vector<4x16xf32>
    %cst_308 = arith.constant 0.000000e+00 : f32
    %481 = vector.broadcast %cst_308 : f32 to vector<4x16xf32>
    %482 = arith.subf %481, %480 : vector<4x16xf32>
    %483 = math.exp %482 : vector<4x16xf32>
    %484 = math.log1p %483 : vector<4x16xf32>
    %485 = arith.addf %479, %484 : vector<4x16xf32>
    %486 = arith.mulf %0, %477 : vector<4x16xf32>
    %487 = arith.subf %486, %485 : vector<4x16xf32>
    %cst_309 = arith.constant dense<0.000000e+00> : vector<4xf32>
    %488 = vector.multi_reduction <add>, %487, %cst_309 [1] : vector<4x16xf32> to vector<4xf32>
    %489 = vector.shape_cast %488 : vector<4xf32> to vector<4x1xf32>
    %490 = arith.addf %489, %389 : vector<4x1xf32>
    %491 = arith.addf %490, %460 : vector<4x1xf32>
    %492 = arith.subf %491, %453 : vector<4x1xf32>
    %493 = arith.maximumf %440, %492 : vector<4x1xf32>
    %494 = arith.subf %440, %493 : vector<4x1xf32>
    %495 = math.exp %494 : vector<4x1xf32>
    %496 = arith.mulf %441, %495 : vector<4x1xf32>
    %497 = arith.subf %492, %493 : vector<4x1xf32>
    %498 = math.exp %497 : vector<4x1xf32>
    %499 = arith.addf %496, %498 : vector<4x1xf32>
    %500 = math.log %499 : vector<4x1xf32>
    %501 = arith.addf %493, %500 : vector<4x1xf32>
    %cst_310 = arith.constant 0.693147182 : f32
    %502 = vector.broadcast %cst_310 : f32 to vector<4x1xf32>
    %503 = arith.subf %501, %502 : vector<4x1xf32>
    %504 = arith.subf %503, %320 : vector<4x1xf32>
    %505 = arith.addf %308, %504 : vector<4x1xf32>
    %cst_311 = arith.constant 5.000000e-01 : f32
    %506 = vector.broadcast %cst_311 : f32 to vector<4x1xf32>
    %507 = arith.mulf %505, %506 : vector<4x1xf32>
    %c0_312 = arith.constant 0 : index
    %c0_313 = arith.constant 0 : index
    %508 = vector.load %arg55[%c0_312, %c0_313] : memref<4x1xf32, #tpu.memory_space<vmem>>, vector<4x1xf32>
    tpu.vector_store %arg55[%c0_312, %c0_313], %507 {strides = array<i32>} : memref<4x1xf32, #tpu.memory_space<vmem>>, vector<4x1xf32>,
    return
  }
}

</mosaic_0001>

<llo_original>
// kernel: tpu_custom_call.1
$region0: #{tpu_custom_call.1}
  #allocation0 [shape = 'u32[]', space=smem, size = 0x4, offset = 0x4, fixed_abs, tag = 'smem constant byte address 0x4 - core index']
  #allocation1 [shape = 'u32[144,128]{1,0:T(1,128)}', space=vmem, size = 0x12000, scoped, tag = 'internal scratch']
  %s0 = inlined_call_operand.smem [shape: u32[56], index: -1, kind: input, shape index: {}]
  %s1 = sld [smem:[%s0]]
  %s2 = scalar_lea.smem %s0, 1
  %s3 = sld [smem:[%s2]]
  %s4 = scalar_lea.smem %s0, 2
  %s5 = sld [smem:[%s4]]
  %s6 = scalar_lea.smem %s0, 3
  %s7 = sld [smem:[%s6]]
  %s8 = scalar_lea.smem %s0, 4
  %s9 = sld [smem:[%s8]]
  %s10 = scalar_lea.smem %s0, 5
  %s11 = sld [smem:[%s10]]
  %s12 = scalar_lea.smem %s0, 6
  %s13 = sld [smem:[%s12]]
  %s14 = scalar_lea.smem %s0, 7
  %s15 = sld [smem:[%s14]]
  %s16 = scalar_lea.smem %s0, 8
  %s17 = sld [smem:[%s16]]
  %s18 = scalar_lea.smem %s0, 9
  %s19 = sld [smem:[%s18]]
  %s20 = scalar_lea.smem %s0, 10
  %s21 = sld [smem:[%s20]]
  %s22 = scalar_lea.smem %s0, 11
  %s23 = sld [smem:[%s22]]
  %s24 = scalar_lea.smem %s0, 12
  %s25 = sld [smem:[%s24]]
  %s26 = scalar_lea.smem %s0, 13
  %s27 = sld [smem:[%s26]]
  %s28 = scalar_lea.smem %s0, 14
  %s29 = sld [smem:[%s28]]
  %s30 = scalar_lea.smem %s0, 15
  %s31 = sld [smem:[%s30]]
  %s32 = scalar_lea.smem %s0, 16
  %s33 = sld [smem:[%s32]]
  %s34 = scalar_lea.smem %s0, 17
  %s35 = sld [smem:[%s34]]
  %s36 = scalar_lea.smem %s0, 18
  %s37 = sld [smem:[%s36]]
  %s38 = scalar_lea.smem %s0, 19
  %s39 = sld [smem:[%s38]]
  %s40 = scalar_lea.smem %s0, 20
  %s41 = sld [smem:[%s40]]
  %s42 = scalar_lea.smem %s0, 21
  %s43 = sld [smem:[%s42]]
  %s44 = scalar_lea.smem %s0, 22
  %s45 = sld [smem:[%s44]]
  %s46 = scalar_lea.smem %s0, 23
  %s47 = sld [smem:[%s46]]
  %s48 = scalar_lea.smem %s0, 24
  %s49 = sld [smem:[%s48]]
  %s50 = scalar_lea.smem %s0, 25
  %s51 = sld [smem:[%s50]]
  %s52 = scalar_lea.smem %s0, 26
  %s53 = sld [smem:[%s52]]
  %s54 = scalar_lea.smem %s0, 27
  %s55 = sld [smem:[%s54]]
  %s56 = scalar_lea.smem %s0, 28
  %s57 = sld [smem:[%s56]]
  %s58 = scalar_lea.smem %s0, 29
  %s59 = sld [smem:[%s58]]
  %s60 = scalar_lea.smem %s0, 30
  %s61 = sld [smem:[%s60]]
  %s62 = scalar_lea.smem %s0, 31
  %s63 = sld [smem:[%s62]]
  %s64 = scalar_lea.smem %s0, 32
  %s65 = sld [smem:[%s64]]
  %s66 = scalar_lea.smem %s0, 33
  %s67 = sld [smem:[%s66]]
  %s68 = scalar_lea.smem %s0, 34
  %s69 = sld [smem:[%s68]]
  %s70 = scalar_lea.smem %s0, 35
  %s71 = sld [smem:[%s70]]
  %s72 = scalar_lea.smem %s0, 36
  %s73 = sld [smem:[%s72]]
  %s74 = scalar_lea.smem %s0, 37
  %s75 = sld [smem:[%s74]]
  %s76 = scalar_lea.smem %s0, 38
  %s77 = sld [smem:[%s76]]
  %s78 = scalar_lea.smem %s0, 39
  %s79 = sld [smem:[%s78]]
  %s80 = scalar_lea.smem %s0, 40
  %s81 = sld [smem:[%s80]]
  %s82 = scalar_lea.smem %s0, 41
  %s83 = sld [smem:[%s82]]
  %s84 = scalar_lea.smem %s0, 42
  %s85 = sld [smem:[%s84]]
  %s86 = scalar_lea.smem %s0, 43
  %s87 = sld [smem:[%s86]]
  %s88 = scalar_lea.smem %s0, 44
  %s89 = sld [smem:[%s88]]
  %s90 = scalar_lea.smem %s0, 45
  %s91 = sld [smem:[%s90]]
  %s92 = scalar_lea.smem %s0, 46
  %s93 = sld [smem:[%s92]]
  %s94 = scalar_lea.smem %s0, 47
  %s95 = sld [smem:[%s94]]
  %s96 = scalar_lea.smem %s0, 48
  %s97 = sld [smem:[%s96]]
  %s98 = scalar_lea.smem %s0, 49
  %s99 = sld [smem:[%s98]]
  %s100 = scalar_lea.smem %s0, 50
  %s101 = sld [smem:[%s100]]
  %s102 = scalar_lea.smem %s0, 51
  %s103 = sld [smem:[%s102]]
  %s104 = scalar_lea.smem %s0, 52
  %s105 = sld [smem:[%s104]]
  %s106 = scalar_lea.smem %s0, 53
  %s107 = sld [smem:[%s106]]
  %s108 = scalar_lea.smem %s0, 54
  %s109 = sld [smem:[%s108]]
  %s110 = scalar_lea.smem %s0, 55
  %s111 = sld [smem:[%s110]]
  %s112 = sld [smem:[#allocation0]]
  $region342: #{tpu_custom_call.1} parent=0
    _
  %s114 = ssub.s32 1, %s112
  %s115 = scalar_select 0, %s114, %s112
  $region1: #{tpu_custom_call.1} parent=0
    #allocation2 [shape = 'u8[2048]{0}', space=vmem, size = 0x800, scoped, tag = 'input window, operand 1, single buffered']
    #allocation3 [shape = 's32[1]{0}', space=sflag, size = 0x4, scoped, tag = 'scoped memory for tpu_custom_call.1']
    #allocation4 [shape = 'u8[4096]{0}', space=vmem, size = 0x1000, scoped, tag = 'input window, operand 2, single buffered']
    #allocation5 [shape = 's32[1]{0}', space=sflag, size = 0x4, scoped, tag = 'scoped memory for tpu_custom_call.1']
    #allocation6 [shape = 'u8[8192]{0}', space=vmem, size = 0x2000, scoped, tag = 'input window, operand 3, single buffered']
    #allocation7 [shape = 'u8[16384]{0}', space=vmem, size = 0x4000, scoped, tag = 'input window, operand 4, single buffered']
    #allocation8 [shape = 's32[1]{0}', space=sflag, size = 0x4, scoped, tag = 'scoped memory for tpu_custom_call.1']
    #allocation9 [shape = 'u8[1024]{0}', space=vmem, size = 0x400, scoped, tag = 'input window, operand 5, single buffered']
    #allocation10 [shape = 'u8[1024]{0}', space=vmem, size = 0x400, scoped, tag = 'input window, operand 7, single buffered']
    #allocation11 [shape = 's32[1]{0}', space=sflag, size = 0x4, scoped, tag = 'scoped memory for tpu_custom_call.1']
    #allocation12 [shape = 'u8[512]{0}', space=vmem, size = 0x400, scoped, tag = 'input window, operand 9, single buffered']
    #allocation13 [shape = 'u8[512]{0}', space=vmem, size = 0x400, scoped, tag = 'input window, operand 11, single buffered']
    #allocation14 [shape = 's32[1]{0}', space=sflag, size = 0x4, scoped, tag = 'scoped memory for tpu_custom_call.1']
    #allocation15 [shape = 'u8[16384]{0}', space=vmem, size = 0x4000, scoped, tag = 'input window, operand 12, single buffered']
    #allocation16 [shape = 'u8[1024]{0}', space=vmem, size = 0x400, scoped, tag = 'input window, operand 13, single buffered']
    #allocation17 [shape = 's32[1]{0}', space=sflag, size = 0x4, scoped, tag = 'scoped memory for tpu_custom_call.1']
    #allocation18 [shape = 'u8[1024]{0}', space=vmem, size = 0x400, scoped, tag = 'input window, operand 15, single buffered']
    #allocation19 [shape = 'u8[512]{0}', space=vmem, size = 0x400, scoped, tag = 'input window, operand 17, single buffered']
    #allocation20 [shape = 's32[1]{0}', space=sflag, size = 0x4, scoped, tag = 'scoped memory for tpu_custom_call.1']
    #allocation21 [shape = 'u8[512]{0}', space=vmem, size = 0x400, scoped, tag = 'input window, operand 19, single buffered']
    #allocation22 [shape = 'u8[1024]{0}', space=vmem, size = 0x400, scoped, tag = 'input window, operand 21, single buffered']
    #allocation23 [shape = 's32[1]{0}', space=sflag, size = 0x4, scoped, tag = 'scoped memory for tpu_custom_call.1']
    #allocation24 [shape = 'u8[1024]{0}', space=vmem, size = 0x400, scoped, tag = 'input window, operand 23, single buffered']
    #allocation25 [shape = 'u8[512]{0}', space=vmem, size = 0x400, scoped, tag = 'input window, operand 25, single buffered']
    #allocation26 [shape = 's32[1]{0}', space=sflag, size = 0x4, scoped, tag = 'scoped memory for tpu_custom_call.1']
    #allocation27 [shape = 'u8[16384]{0}', space=vmem, size = 0x4000, scoped, tag = 'input window, operand 26, single buffered']
    #allocation28 [shape = 'u8[1024]{0}', space=vmem, size = 0x400, scoped, tag = 'input window, operand 27, single buffered']
    #allocation29 [shape = 's32[1]{0}', space=sflag, size = 0x4, scoped, tag = 'scoped memory for tpu_custom_call.1']
    #allocation30 [shape = 'u8[1024]{0}', space=vmem, size = 0x400, scoped, tag = 'input window, operand 29, single buffered']
    #allocation31 [shape = 'u8[512]{0}', space=vmem, size = 0x400, scoped, tag = 'input window, operand 31, single buffered']
    #allocation32 [shape = 's32[1]{0}', space=sflag, size = 0x4, scoped, tag = 'scoped memory for tpu_custom_call.1']
    #allocation33 [shape = 'u8[57344]{0}', space=vmem, size = 0xe000, scoped, tag = 'input window, operand 32, single buffered']
    #allocation34 [shape = 'u8[57344]{0}', space=vmem, size = 0xe000, scoped, tag = 'input window, operand 33, single buffered']
    #allocation35 [shape = 's32[1]{0}', space=sflag, size = 0x4, scoped, tag = 'scoped memory for tpu_custom_call.1']
    #allocation36 [shape = 'u8[1024]{0}', space=vmem, size = 0x400, scoped, tag = 'input window, operand 35, single buffered']
    #allocation37 [shape = 'u8[1024]{0}', space=vmem, size = 0x400, scoped, tag = 'input window, operand 37, single buffered']
    #allocation38 [shape = 's32[1]{0}', space=sflag, size = 0x4, scoped, tag = 'scoped memory for tpu_custom_call.1']
    #allocation39 [shape = 'u8[512]{0}', space=vmem, size = 0x400, scoped, tag = 'input window, operand 39, single buffered']
    #allocation40 [shape = 'u8[512]{0}', space=vmem, size = 0x400, scoped, tag = 'input window, operand 41, single buffered']
    #allocation41 [shape = 's32[1]{0}', space=sflag, size = 0x4, scoped, tag = 'scoped memory for tpu_custom_call.1']
    #allocation42 [shape = 'u8[8192]{0}', space=vmem, size = 0x2000, scoped, tag = 'input window, operand 48, single buffered']
    #allocation43 [shape = 'u8[204800]{0}', space=vmem, size = 0x32000, scoped, tag = 'input window, operand 51, single buffered']
    #allocation44 [shape = 's32[1]{0}', space=sflag, size = 0x4, scoped, tag = 'scoped memory for tpu_custom_call.1']
    %116 = vsyncpa [#allocation3], 0
    %117 = vsyncpa [#allocation5], 0
    %118 = vsyncpa [#allocation8], 0
    %119 = vsyncpa [#allocation11], 0
    %120 = vsyncpa [#allocation14], 0
    %121 = vsyncpa [#allocation17], 0
    %122 = vsyncpa [#allocation20], 0
    %123 = vsyncpa [#allocation23], 0
    %124 = vsyncpa [#allocation26], 0
    %125 = vsyncpa [#allocation29], 0
    %126 = vsyncpa [#allocation32], 0
    %127 = vsyncpa [#allocation35], 0
    %128 = vsyncpa [#allocation38], 0
    %129 = vsyncpa [#allocation41], 0
    %130 = vsyncpa [#allocation44], 0
    // Predicated region
    $region2: #{tpu_custom_call.1} parent=1 // pred_check
      _
    $region3: #{tpu_custom_call.1} parent=1 // pred_check_branch
      %132 = sbr.rel (0) target = $region5
    $region4: #{tpu_custom_call.1} parent=1 // pred_region
      _
    $region5: #{tpu_custom_call.1} parent=1 // pred_fallthru
      _
    // Predicated region
    $region6: #{tpu_custom_call.1} parent=1 // pred_check
      _
    $region7: #{tpu_custom_call.1} parent=1 // pred_check_branch
      %134 = sbr.rel (0) target = $region9
    $region8: #{tpu_custom_call.1} parent=1 // pred_region
      %s136 = ssub.s32 64, 64
      %137 = vsyncadd [#allocation3], %s136
      %s139 = sshll.u32 [#allocation2], 4
      %s140 = int_to_ptr.vmem [resolvable:$true] %s139
      %142 = dma.hbm_to_vmem [thread:$0]  %s3, 64, %s140, [#allocation3]
    $region9: #{tpu_custom_call.1} parent=1 // pred_fallthru
      _
    // Predicated region
    $region10: #{tpu_custom_call.1} parent=1 // pred_check
      _
    $region11: #{tpu_custom_call.1} parent=1 // pred_check_branch
      %144 = sbr.rel (0) target = $region13
    $region12: #{tpu_custom_call.1} parent=1 // pred_region
      %s146 = ssub.s32 128, 128
      %147 = vsyncadd [#allocation5], %s146
      %s148 = sshll.u32 [#allocation4], 4
      %s149 = int_to_ptr.vmem [resolvable:$true] %s148
      %154 = dma.hbm_to_vmem [thread:$0]  %s5, 128, %s149, [#allocation5], 64, 64, 4
    $region13: #{tpu_custom_call.1} parent=1 // pred_fallthru
      _
    // Predicated region
    $region14: #{tpu_custom_call.1} parent=1 // pred_check
      _
    $region15: #{tpu_custom_call.1} parent=1 // pred_check_branch
      %156 = sbr.rel (0) target = $region17
    $region16: #{tpu_custom_call.1} parent=1 // pred_region
      %s158 = ssub.s32 256, 256
      %159 = vsyncadd [#allocation5], %s158
      %s160 = sshll.u32 [#allocation6], 4
      %s161 = int_to_ptr.vmem [resolvable:$true] %s160
      %166 = dma.hbm_to_vmem [thread:$0]  %s7, 256, %s161, [#allocation5], 64, 64, 4
    $region17: #{tpu_custom_call.1} parent=1 // pred_fallthru
      _
    // Predicated region
    $region18: #{tpu_custom_call.1} parent=1 // pred_check
      _
    $region19: #{tpu_custom_call.1} parent=1 // pred_check_branch
      %168 = sbr.rel (0) target = $region21
    $region20: #{tpu_custom_call.1} parent=1 // pred_region
      %s170 = ssub.s32 512, 512
      %171 = vsyncadd [#allocation8], %s170
      %s172 = sshll.u32 [#allocation7], 4
      %s173 = int_to_ptr.vmem [resolvable:$true] %s172
      %178 = dma.hbm_to_vmem [thread:$0]  %s9, 512, %s173, [#allocation8], 256, 256, 16
    $region21: #{tpu_custom_call.1} parent=1 // pred_fallthru
      _
    // Predicated region
    $region22: #{tpu_custom_call.1} parent=1 // pred_check
      _
    $region23: #{tpu_custom_call.1} parent=1 // pred_check_branch
      %180 = sbr.rel (0) target = $region25
    $region24: #{tpu_custom_call.1} parent=1 // pred_region
      %s182 = ssub.s32 32, 32
      %183 = vsyncadd [#allocation8], %s182
      %s185 = sshll.u32 [#allocation9], 4
      %s186 = int_to_ptr.vmem [resolvable:$true] %s185
      %188 = dma.hbm_to_vmem [thread:$0]  %s11, 32, %s186, [#allocation8]
    $region25: #{tpu_custom_call.1} parent=1 // pred_fallthru
      _
    // Predicated region
    $region26: #{tpu_custom_call.1} parent=1 // pred_check
      _
    $region27: #{tpu_custom_call.1} parent=1 // pred_check_branch
      %190 = sbr.rel (0) target = $region29
    $region28: #{tpu_custom_call.1} parent=1 // pred_region
      _
    $region29: #{tpu_custom_call.1} parent=1 // pred_fallthru
      _
    // Predicated region
    $region30: #{tpu_custom_call.1} parent=1 // pred_check
      _
    $region31: #{tpu_custom_call.1} parent=1 // pred_check_branch
      %192 = sbr.rel (0) target = $region33
    $region32: #{tpu_custom_call.1} parent=1 // pred_region
      %s194 = ssub.s32 32, 32
      %195 = vsyncadd [#allocation11], %s194
      %s197 = sshll.u32 [#allocation10], 4
      %s198 = int_to_ptr.vmem [resolvable:$true] %s197
      %200 = dma.hbm_to_vmem [thread:$0]  %s15, 32, %s198, [#allocation11]
    $region33: #{tpu_custom_call.1} parent=1 // pred_fallthru
      _
    // Predicated region
    $region34: #{tpu_custom_call.1} parent=1 // pred_check
      _
    $region35: #{tpu_custom_call.1} parent=1 // pred_check_branch
      %202 = sbr.rel (0) target = $region37
    $region36: #{tpu_custom_call.1} parent=1 // pred_region
      _
    $region37: #{tpu_custom_call.1} parent=1 // pred_fallthru
      _
    // Predicated region
    $region38: #{tpu_custom_call.1} parent=1 // pred_check
      _
    $region39: #{tpu_custom_call.1} parent=1 // pred_check_branch
      %204 = sbr.rel (0) target = $region41
    $region40: #{tpu_custom_call.1} parent=1 // pred_region
      %s206 = ssub.s32 16, 16
      %207 = vsyncadd [#allocation11], %s206
      %s209 = sshll.u32 [#allocation12], 4
      %s210 = int_to_ptr.vmem [resolvable:$true] %s209
      %212 = dma.hbm_to_vmem [thread:$0]  %s19, 16, %s210, [#allocation11]
    $region41: #{tpu_custom_call.1} parent=1 // pred_fallthru
      _
    // Predicated region
    $region42: #{tpu_custom_call.1} parent=1 // pred_check
      _
    $region43: #{tpu_custom_call.1} parent=1 // pred_check_branch
      %214 = sbr.rel (0) target = $region45
    $region44: #{tpu_custom_call.1} parent=1 // pred_region
      _
    $region45: #{tpu_custom_call.1} parent=1 // pred_fallthru
      _
    // Predicated region
    $region46: #{tpu_custom_call.1} parent=1 // pred_check
      _
    $region47: #{tpu_custom_call.1} parent=1 // pred_check_branch
      %216 = sbr.rel (0) target = $region49
    $region48: #{tpu_custom_call.1} parent=1 // pred_region
      %s218 = ssub.s32 16, 16
      %219 = vsyncadd [#allocation14], %s218
      %s221 = sshll.u32 [#allocation13], 4
      %s222 = int_to_ptr.vmem [resolvable:$true] %s221
      %224 = dma.hbm_to_vmem [thread:$0]  %s23, 16, %s222, [#allocation14]
    $region49: #{tpu_custom_call.1} parent=1 // pred_fallthru
      _
    // Predicated region
    $region50: #{tpu_custom_call.1} parent=1 // pred_check
      _
    $region51: #{tpu_custom_call.1} parent=1 // pred_check_branch
      %226 = sbr.rel (0) target = $region53
    $region52: #{tpu_custom_call.1} parent=1 // pred_region
      %s228 = ssub.s32 512, 512
      %229 = vsyncadd [#allocation14], %s228
      %s230 = sshll.u32 [#allocation15], 4
      %s231 = int_to_ptr.vmem [resolvable:$true] %s230
      %236 = dma.hbm_to_vmem [thread:$0]  %s25, 512, %s231, [#allocation14], 256, 256, 16
    $region53: #{tpu_custom_call.1} parent=1 // pred_fallthru
      _
    // Predicated region
    $region54: #{tpu_custom_call.1} parent=1 // pred_check
      _
    $region55: #{tpu_custom_call.1} parent=1 // pred_check_branch
      %238 = sbr.rel (0) target = $region57
    $region56: #{tpu_custom_call.1} parent=1 // pred_region
      %s240 = ssub.s32 32, 32
      %241 = vsyncadd [#allocation17], %s240
      %s243 = sshll.u32 [#allocation16], 4
      %s244 = int_to_ptr.vmem [resolvable:$true] %s243
      %246 = dma.hbm_to_vmem [thread:$0]  %s27, 32, %s244, [#allocation17]
    $region57: #{tpu_custom_call.1} parent=1 // pred_fallthru
      _
    // Predicated region
    $region58: #{tpu_custom_call.1} parent=1 // pred_check
      _
    $region59: #{tpu_custom_call.1} parent=1 // pred_check_branch
      %248 = sbr.rel (0) target = $region61
    $region60: #{tpu_custom_call.1} parent=1 // pred_region
      _
    $region61: #{tpu_custom_call.1} parent=1 // pred_fallthru
      _
    // Predicated region
    $region62: #{tpu_custom_call.1} parent=1 // pred_check
      _
    $region63: #{tpu_custom_call.1} parent=1 // pred_check_branch
      %250 = sbr.rel (0) target = $region65
    $region64: #{tpu_custom_call.1} parent=1 // pred_region
      %s252 = ssub.s32 32, 32
      %253 = vsyncadd [#allocation17], %s252
      %s255 = sshll.u32 [#allocation18], 4
      %s256 = int_to_ptr.vmem [resolvable:$true] %s255
      %258 = dma.hbm_to_vmem [thread:$0]  %s31, 32, %s256, [#allocation17]
    $region65: #{tpu_custom_call.1} parent=1 // pred_fallthru
      _
    // Predicated region
    $region66: #{tpu_custom_call.1} parent=1 // pred_check
      _
    $region67: #{tpu_custom_call.1} parent=1 // pred_check_branch
      %260 = sbr.rel (0) target = $region69
    $region68: #{tpu_custom_call.1} parent=1 // pred_region
      _
    $region69: #{tpu_custom_call.1} parent=1 // pred_fallthru
      _
    // Predicated region
    $region70: #{tpu_custom_call.1} parent=1 // pred_check
      _
    $region71: #{tpu_custom_call.1} parent=1 // pred_check_branch
      %262 = sbr.rel (0) target = $region73
    $region72: #{tpu_custom_call.1} parent=1 // pred_region
      %s264 = ssub.s32 16, 16
      %265 = vsyncadd [#allocation20], %s264
      %s267 = sshll.u32 [#allocation19], 4
      %s268 = int_to_ptr.vmem [resolvable:$true] %s267
      %270 = dma.hbm_to_vmem [thread:$0]  %s35, 16, %s268, [#allocation20]
    $region73: #{tpu_custom_call.1} parent=1 // pred_fallthru
      _
    // Predicated region
    $region74: #{tpu_custom_call.1} parent=1 // pred_check
      _
    $region75: #{tpu_custom_call.1} parent=1 // pred_check_branch
      %272 = sbr.rel (0) target = $region77
    $region76: #{tpu_custom_call.1} parent=1 // pred_region
      _
    $region77: #{tpu_custom_call.1} parent=1 // pred_fallthru
      _
    // Predicated region
    $region78: #{tpu_custom_call.1} parent=1 // pred_check
      _
    $region79: #{tpu_custom_call.1} parent=1 // pred_check_branch
      %274 = sbr.rel (0) target = $region81
    $region80: #{tpu_custom_call.1} parent=1 // pred_region
      %s276 = ssub.s32 16, 16
      %277 = vsyncadd [#allocation20], %s276
      %s279 = sshll.u32 [#allocation21], 4
      %s280 = int_to_ptr.vmem [resolvable:$true] %s279
      %282 = dma.hbm_to_vmem [thread:$0]  %s39, 16, %s280, [#allocation20]
    $region81: #{tpu_custom_call.1} parent=1 // pred_fallthru
      _
    // Predicated region
    $region82: #{tpu_custom_call.1} parent=1 // pred_check
      _
    $region83: #{tpu_custom_call.1} parent=1 // pred_check_branch
      %284 = sbr.rel (0) target = $region85
    $region84: #{tpu_custom_call.1} parent=1 // pred_region
      _
    $region85: #{tpu_custom_call.1} parent=1 // pred_fallthru
      _
    // Predicated region
    $region86: #{tpu_custom_call.1} parent=1 // pred_check
      _
    $region87: #{tpu_custom_call.1} parent=1 // pred_check_branch
      %286 = sbr.rel (0) target = $region89
    $region88: #{tpu_custom_call.1} parent=1 // pred_region
      %s288 = ssub.s32 32, 32
      %289 = vsyncadd [#allocation23], %s288
      %s291 = sshll.u32 [#allocation22], 4
      %s292 = int_to_ptr.vmem [resolvable:$true] %s291
      %294 = dma.hbm_to_vmem [thread:$0]  %s43, 32, %s292, [#allocation23]
    $region89: #{tpu_custom_call.1} parent=1 // pred_fallthru
      _
    // Predicated region
    $region90: #{tpu_custom_call.1} parent=1 // pred_check
      _
    $region91: #{tpu_custom_call.1} parent=1 // pred_check_branch
      %296 = sbr.rel (0) target = $region93
    $region92: #{tpu_custom_call.1} parent=1 // pred_region
      _
    $region93: #{tpu_custom_call.1} parent=1 // pred_fallthru
      _
    // Predicated region
    $region94: #{tpu_custom_call.1} parent=1 // pred_check
      _
    $region95: #{tpu_custom_call.1} parent=1 // pred_check_branch
      %298 = sbr.rel (0) target = $region97
    $region96: #{tpu_custom_call.1} parent=1 // pred_region
      %s300 = ssub.s32 32, 32
      %301 = vsyncadd [#allocation23], %s300
      %s303 = sshll.u32 [#allocation24], 4
      %s304 = int_to_ptr.vmem [resolvable:$true] %s303
      %306 = dma.hbm_to_vmem [thread:$0]  %s47, 32, %s304, [#allocation23]
    $region97: #{tpu_custom_call.1} parent=1 // pred_fallthru
      _
    // Predicated region
    $region98: #{tpu_custom_call.1} parent=1 // pred_check
      _
    $region99: #{tpu_custom_call.1} parent=1 // pred_check_branch
      %308 = sbr.rel (0) target = $region101
    $region100: #{tpu_custom_call.1} parent=1 // pred_region
      _
    $region101: #{tpu_custom_call.1} parent=1 // pred_fallthru
      _
    // Predicated region
    $region102: #{tpu_custom_call.1} parent=1 // pred_check
      _
    $region103: #{tpu_custom_call.1} parent=1 // pred_check_branch
      %310 = sbr.rel (0) target = $region105
    $region104: #{tpu_custom_call.1} parent=1 // pred_region
      %s312 = ssub.s32 16, 16
      %313 = vsyncadd [#allocation26], %s312
      %s315 = sshll.u32 [#allocation25], 4
      %s316 = int_to_ptr.vmem [resolvable:$true] %s315
      %318 = dma.hbm_to_vmem [thread:$0]  %s51, 16, %s316, [#allocation26]
    $region105: #{tpu_custom_call.1} parent=1 // pred_fallthru
      _
    // Predicated region
    $region106: #{tpu_custom_call.1} parent=1 // pred_check
      _
    $region107: #{tpu_custom_call.1} parent=1 // pred_check_branch
      %320 = sbr.rel (0) target = $region109
    $region108: #{tpu_custom_call.1} parent=1 // pred_region
      %s322 = ssub.s32 512, 512
      %323 = vsyncadd [#allocation26], %s322
      %s324 = sshll.u32 [#allocation27], 4
      %s325 = int_to_ptr.vmem [resolvable:$true] %s324
      %330 = dma.hbm_to_vmem [thread:$0]  %s53, 512, %s325, [#allocation26], 256, 256, 16
    $region109: #{tpu_custom_call.1} parent=1 // pred_fallthru
      _
    // Predicated region
    $region110: #{tpu_custom_call.1} parent=1 // pred_check
      _
    $region111: #{tpu_custom_call.1} parent=1 // pred_check_branch
      %332 = sbr.rel (0) target = $region113
    $region112: #{tpu_custom_call.1} parent=1 // pred_region
      %s334 = ssub.s32 32, 32
      %335 = vsyncadd [#allocation29], %s334
      %s337 = sshll.u32 [#allocation28], 4
      %s338 = int_to_ptr.vmem [resolvable:$true] %s337
      %340 = dma.hbm_to_vmem [thread:$0]  %s55, 32, %s338, [#allocation29]
    $region113: #{tpu_custom_call.1} parent=1 // pred_fallthru
      _
    // Predicated region
    $region114: #{tpu_custom_call.1} parent=1 // pred_check
      _
    $region115: #{tpu_custom_call.1} parent=1 // pred_check_branch
      %342 = sbr.rel (0) target = $region117
    $region116: #{tpu_custom_call.1} parent=1 // pred_region
      _
    $region117: #{tpu_custom_call.1} parent=1 // pred_fallthru
      _
    // Predicated region
    $region118: #{tpu_custom_call.1} parent=1 // pred_check
      _
    $region119: #{tpu_custom_call.1} parent=1 // pred_check_branch
      %344 = sbr.rel (0) target = $region121
    $region120: #{tpu_custom_call.1} parent=1 // pred_region
      %s346 = ssub.s32 32, 32
      %347 = vsyncadd [#allocation29], %s346
      %s349 = sshll.u32 [#allocation30], 4
      %s350 = int_to_ptr.vmem [resolvable:$true] %s349
      %352 = dma.hbm_to_vmem [thread:$0]  %s59, 32, %s350, [#allocation29]
    $region121: #{tpu_custom_call.1} parent=1 // pred_fallthru
      _
    // Predicated region
    $region122: #{tpu_custom_call.1} parent=1 // pred_check
      _
    $region123: #{tpu_custom_call.1} parent=1 // pred_check_branch
      %354 = sbr.rel (0) target = $region125
    $region124: #{tpu_custom_call.1} parent=1 // pred_region
      _
    $region125: #{tpu_custom_call.1} parent=1 // pred_fallthru
      _
    // Predicated region
    $region126: #{tpu_custom_call.1} parent=1 // pred_check
      _
    $region127: #{tpu_custom_call.1} parent=1 // pred_check_branch
      %356 = sbr.rel (0) target = $region129
    $region128: #{tpu_custom_call.1} parent=1 // pred_region
      %s358 = ssub.s32 16, 16
      %359 = vsyncadd [#allocation32], %s358
      %s361 = sshll.u32 [#allocation31], 4
      %s362 = int_to_ptr.vmem [resolvable:$true] %s361
      %364 = dma.hbm_to_vmem [thread:$0]  %s63, 16, %s362, [#allocation32]
    $region129: #{tpu_custom_call.1} parent=1 // pred_fallthru
      _
    // Predicated region
    $region130: #{tpu_custom_call.1} parent=1 // pred_check
      _
    $region131: #{tpu_custom_call.1} parent=1 // pred_check_branch
      %366 = sbr.rel (0) target = $region133
    $region132: #{tpu_custom_call.1} parent=1 // pred_region
      %s368 = ssub.s32 1792, 1792
      %369 = vsyncadd [#allocation32], %s368
      %s370 = sshll.u32 [#allocation33], 4
      %s371 = int_to_ptr.vmem [resolvable:$true] %s370
      %376 = dma.hbm_to_vmem [thread:$0]  %s65, 1792, %s371, [#allocation32], 256, 256, 16
    $region133: #{tpu_custom_call.1} parent=1 // pred_fallthru
      _
    // Predicated region
    $region134: #{tpu_custom_call.1} parent=1 // pred_check
      _
    $region135: #{tpu_custom_call.1} parent=1 // pred_check_branch
      %378 = sbr.rel (0) target = $region137
    $region136: #{tpu_custom_call.1} parent=1 // pred_region
      %s380 = ssub.s32 1792, 1792
      %381 = vsyncadd [#allocation35], %s380
      %s382 = sshll.u32 [#allocation34], 4
      %s383 = int_to_ptr.vmem [resolvable:$true] %s382
      %388 = dma.hbm_to_vmem [thread:$0]  %s67, 1792, %s383, [#allocation35], 256, 256, 16
    $region137: #{tpu_custom_call.1} parent=1 // pred_fallthru
      _
    // Predicated region
    $region138: #{tpu_custom_call.1} parent=1 // pred_check
      _
    $region139: #{tpu_custom_call.1} parent=1 // pred_check_branch
      %390 = sbr.rel (0) target = $region141
    $region140: #{tpu_custom_call.1} parent=1 // pred_region
      _
    $region141: #{tpu_custom_call.1} parent=1 // pred_fallthru
      _
    // Predicated region
    $region142: #{tpu_custom_call.1} parent=1 // pred_check
      _
    $region143: #{tpu_custom_call.1} parent=1 // pred_check_branch
      %392 = sbr.rel (0) target = $region145
    $region144: #{tpu_custom_call.1} parent=1 // pred_region
      %s394 = ssub.s32 32, 32
      %395 = vsyncadd [#allocation35], %s394
      %s397 = sshll.u32 [#allocation36], 4
      %s398 = int_to_ptr.vmem [resolvable:$true] %s397
      %400 = dma.hbm_to_vmem [thread:$0]  %s71, 32, %s398, [#allocation35]
    $region145: #{tpu_custom_call.1} parent=1 // pred_fallthru
      _
    // Predicated region
    $region146: #{tpu_custom_call.1} parent=1 // pred_check
      _
    $region147: #{tpu_custom_call.1} parent=1 // pred_check_branch
      %402 = sbr.rel (0) target = $region149
    $region148: #{tpu_custom_call.1} parent=1 // pred_region
      _
    $region149: #{tpu_custom_call.1} parent=1 // pred_fallthru
      _
    // Predicated region
    $region150: #{tpu_custom_call.1} parent=1 // pred_check
      _
    $region151: #{tpu_custom_call.1} parent=1 // pred_check_branch
      %404 = sbr.rel (0) target = $region153
    $region152: #{tpu_custom_call.1} parent=1 // pred_region
      %s406 = ssub.s32 32, 32
      %407 = vsyncadd [#allocation38], %s406
      %s409 = sshll.u32 [#allocation37], 4
      %s410 = int_to_ptr.vmem [resolvable:$true] %s409
      %412 = dma.hbm_to_vmem [thread:$0]  %s75, 32, %s410, [#allocation38]
    $region153: #{tpu_custom_call.1} parent=1 // pred_fallthru
      _
    // Predicated region
    $region154: #{tpu_custom_call.1} parent=1 // pred_check
      _
    $region155: #{tpu_custom_call.1} parent=1 // pred_check_branch
      %414 = sbr.rel (0) target = $region157
    $region156: #{tpu_custom_call.1} parent=1 // pred_region
      _
    $region157: #{tpu_custom_call.1} parent=1 // pred_fallthru
      _
    // Predicated region
    $region158: #{tpu_custom_call.1} parent=1 // pred_check
      _
    $region159: #{tpu_custom_call.1} parent=1 // pred_check_branch
      %416 = sbr.rel (0) target = $region161
    $region160: #{tpu_custom_call.1} parent=1 // pred_region
      %s418 = ssub.s32 16, 16
      %419 = vsyncadd [#allocation38], %s418
      %s421 = sshll.u32 [#allocation39], 4
      %s422 = int_to_ptr.vmem [resolvable:$true] %s421
      %424 = dma.hbm_to_vmem [thread:$0]  %s79, 16, %s422, [#allocation38]
    $region161: #{tpu_custom_call.1} parent=1 // pred_fallthru
      _
    // Predicated region
    $region162: #{tpu_custom_call.1} parent=1 // pred_check
      _
    $region163: #{tpu_custom_call.1} parent=1 // pred_check_branch
      %426 = sbr.rel (0) target = $region165
    $region164: #{tpu_custom_call.1} parent=1 // pred_region
      _
    $region165: #{tpu_custom_call.1} parent=1 // pred_fallthru
      _
    // Predicated region
    $region166: #{tpu_custom_call.1} parent=1 // pred_check
      _
    $region167: #{tpu_custom_call.1} parent=1 // pred_check_branch
      %428 = sbr.rel (0) target = $region169
    $region168: #{tpu_custom_call.1} parent=1 // pred_region
      %s430 = ssub.s32 16, 16
      %431 = vsyncadd [#allocation41], %s430
      %s433 = sshll.u32 [#allocation40], 4
      %s434 = int_to_ptr.vmem [resolvable:$true] %s433
      %436 = dma.hbm_to_vmem [thread:$0]  %s83, 16, %s434, [#allocation41]
    $region169: #{tpu_custom_call.1} parent=1 // pred_fallthru
      _
    // Predicated region
    $region170: #{tpu_custom_call.1} parent=1 // pred_check
      _
    $region171: #{tpu_custom_call.1} parent=1 // pred_check_branch
      %438 = sbr.rel (0) target = $region173
    $region172: #{tpu_custom_call.1} parent=1 // pred_region
      _
    $region173: #{tpu_custom_call.1} parent=1 // pred_fallthru
      _
    // Predicated region
    $region174: #{tpu_custom_call.1} parent=1 // pred_check
      _
    $region175: #{tpu_custom_call.1} parent=1 // pred_check_branch
      %440 = sbr.rel (0) target = $region177
    $region176: #{tpu_custom_call.1} parent=1 // pred_region
      _
    $region177: #{tpu_custom_call.1} parent=1 // pred_fallthru
      _
    // Predicated region
    $region178: #{tpu_custom_call.1} parent=1 // pred_check
      _
    $region179: #{tpu_custom_call.1} parent=1 // pred_check_branch
      %442 = sbr.rel (0) target = $region181
    $region180: #{tpu_custom_call.1} parent=1 // pred_region
      _
    $region181: #{tpu_custom_call.1} parent=1 // pred_fallthru
      _
    // Predicated region
    $region182: #{tpu_custom_call.1} parent=1 // pred_check
      _
    $region183: #{tpu_custom_call.1} parent=1 // pred_check_branch
      %444 = sbr.rel (0) target = $region185
    $region184: #{tpu_custom_call.1} parent=1 // pred_region
      _
    $region185: #{tpu_custom_call.1} parent=1 // pred_fallthru
      _
    // Predicated region
    $region186: #{tpu_custom_call.1} parent=1 // pred_check
      _
    $region187: #{tpu_custom_call.1} parent=1 // pred_check_branch
      %446 = sbr.rel (0) target = $region189
    $region188: #{tpu_custom_call.1} parent=1 // pred_region
      _
    $region189: #{tpu_custom_call.1} parent=1 // pred_fallthru
      _
    // Predicated region
    $region190: #{tpu_custom_call.1} parent=1 // pred_check
      _
    $region191: #{tpu_custom_call.1} parent=1 // pred_check_branch
      %448 = sbr.rel (0) target = $region193
    $region192: #{tpu_custom_call.1} parent=1 // pred_region
      _
    $region193: #{tpu_custom_call.1} parent=1 // pred_fallthru
      _
    // Predicated region
    $region194: #{tpu_custom_call.1} parent=1 // pred_check
      _
    $region195: #{tpu_custom_call.1} parent=1 // pred_check_branch
      %450 = sbr.rel (0) target = $region197
    $region196: #{tpu_custom_call.1} parent=1 // pred_region
      %s452 = ssub.s32 256, 256
      %453 = vsyncadd [#allocation41], %s452
      %s455 = sshll.u32 [#allocation42], 4
      %s456 = int_to_ptr.vmem [resolvable:$true] %s455
      %458 = dma.hbm_to_vmem [thread:$0]  %s97, 256, %s456, [#allocation41]
    $region197: #{tpu_custom_call.1} parent=1 // pred_fallthru
      _
    // Predicated region
    $region198: #{tpu_custom_call.1} parent=1 // pred_check
      _
    $region199: #{tpu_custom_call.1} parent=1 // pred_check_branch
      %460 = sbr.rel (0) target = $region201
    $region200: #{tpu_custom_call.1} parent=1 // pred_region
      _
    $region201: #{tpu_custom_call.1} parent=1 // pred_fallthru
      _
    // Predicated region
    $region202: #{tpu_custom_call.1} parent=1 // pred_check
      _
    $region203: #{tpu_custom_call.1} parent=1 // pred_check_branch
      %462 = sbr.rel (0) target = $region205
    $region204: #{tpu_custom_call.1} parent=1 // pred_region
      _
    $region205: #{tpu_custom_call.1} parent=1 // pred_fallthru
      _
    // Predicated region
    $region206: #{tpu_custom_call.1} parent=1 // pred_check
      _
    $region207: #{tpu_custom_call.1} parent=1 // pred_check_branch
      %464 = sbr.rel (0) target = $region209
    $region208: #{tpu_custom_call.1} parent=1 // pred_region
      %s466 = ssub.s32 6400, 6400
      %467 = vsyncadd [#allocation44], %s466
      %s468 = sshll.u32 [#allocation43], 4
      %s469 = int_to_ptr.vmem [resolvable:$true] %s468
      %474 = dma.hbm_to_vmem [thread:$0]  %s103, 6400, %s469, [#allocation44], 256, 256, 16
    $region209: #{tpu_custom_call.1} parent=1 // pred_fallthru
      _
    // Predicated region
    $region210: #{tpu_custom_call.1} parent=1 // pred_check
      _
    $region211: #{tpu_custom_call.1} parent=1 // pred_check_branch
      %476 = sbr.rel (0) target = $region213
    $region212: #{tpu_custom_call.1} parent=1 // pred_region
      _
    $region213: #{tpu_custom_call.1} parent=1 // pred_fallthru
      _
    // Predicated region
    $region214: #{tpu_custom_call.1} parent=1 // pred_check
      _
    $region215: #{tpu_custom_call.1} parent=1 // pred_check_branch
      %478 = sbr.rel (0) target = $region217
    $region216: #{tpu_custom_call.1} parent=1 // pred_region
      _
    $region217: #{tpu_custom_call.1} parent=1 // pred_fallthru
      _
    // Predicated region
    $region218: #{tpu_custom_call.1} parent=1 // pred_check
      _
    $region219: #{tpu_custom_call.1} parent=1 // pred_check_branch
      %480 = sbr.rel (0) target = $region221
    $region220: #{tpu_custom_call.1} parent=1 // pred_region
      _
    $region221: #{tpu_custom_call.1} parent=1 // pred_fallthru
      _
    // Predicated region
    $region222: #{tpu_custom_call.1} parent=1 // pred_check
      _
    $region223: #{tpu_custom_call.1} parent=1 // pred_check_branch
      %482 = sbr.rel (0) target = $region225
    $region224: #{tpu_custom_call.1} parent=1 // pred_region
      %483 = dma.done [#allocation3], 64
    $region225: #{tpu_custom_call.1} parent=1 // pred_fallthru
      _
    // Predicated region
    $region226: #{tpu_custom_call.1} parent=1 // pred_check
      _
    $region227: #{tpu_custom_call.1} parent=1 // pred_check_branch
      %485 = sbr.rel (0) target = $region229
    $region228: #{tpu_custom_call.1} parent=1 // pred_region
      %486 = dma.done [#allocation5], 128
    $region229: #{tpu_custom_call.1} parent=1 // pred_fallthru
      _
    // Predicated region
    $region230: #{tpu_custom_call.1} parent=1 // pred_check
      _
    $region231: #{tpu_custom_call.1} parent=1 // pred_check_branch
      %488 = sbr.rel (0) target = $region233
    $region232: #{tpu_custom_call.1} parent=1 // pred_region
      %489 = dma.done [#allocation5], 256
    $region233: #{tpu_custom_call.1} parent=1 // pred_fallthru
      _
    // Predicated region
    $region234: #{tpu_custom_call.1} parent=1 // pred_check
      _
    $region235: #{tpu_custom_call.1} parent=1 // pred_check_branch
      %491 = sbr.rel (0) target = $region237
    $region236: #{tpu_custom_call.1} parent=1 // pred_region
      %492 = dma.done [#allocation8], 512
    $region237: #{tpu_custom_call.1} parent=1 // pred_fallthru
      _
    // Predicated region
    $region238: #{tpu_custom_call.1} parent=1 // pred_check
      _
    $region239: #{tpu_custom_call.1} parent=1 // pred_check_branch
      %494 = sbr.rel (0) target = $region241
    $region240: #{tpu_custom_call.1} parent=1 // pred_region
      %495 = dma.done [#allocation8], 32
    $region241: #{tpu_custom_call.1} parent=1 // pred_fallthru
      _
    // Predicated region
    $region242: #{tpu_custom_call.1} parent=1 // pred_check
      _
    $region243: #{tpu_custom_call.1} parent=1 // pred_check_branch
      %497 = sbr.rel (0) target = $region245
    $region244: #{tpu_custom_call.1} parent=1 // pred_region
      %498 = dma.done [#allocation11], 32
    $region245: #{tpu_custom_call.1} parent=1 // pred_fallthru
      _
    // Predicated region
    $region246: #{tpu_custom_call.1} parent=1 // pred_check
      _
    $region247: #{tpu_custom_call.1} parent=1 // pred_check_branch
      %500 = sbr.rel (0) target = $region249
    $region248: #{tpu_custom_call.1} parent=1 // pred_region
      %501 = dma.done [#allocation11], 16
    $region249: #{tpu_custom_call.1} parent=1 // pred_fallthru
      _
    // Predicated region
    $region250: #{tpu_custom_call.1} parent=1 // pred_check
      _
    $region251: #{tpu_custom_call.1} parent=1 // pred_check_branch
      %503 = sbr.rel (0) target = $region253
    $region252: #{tpu_custom_call.1} parent=1 // pred_region
      %504 = dma.done [#allocation14], 16
    $region253: #{tpu_custom_call.1} parent=1 // pred_fallthru
      _
    // Predicated region
    $region254: #{tpu_custom_call.1} parent=1 // pred_check
      _
    $region255: #{tpu_custom_call.1} parent=1 // pred_check_branch
      %506 = sbr.rel (0) target = $region257
    $region256: #{tpu_custom_call.1} parent=1 // pred_region
      %507 = dma.done [#allocation14], 512
    $region257: #{tpu_custom_call.1} parent=1 // pred_fallthru
      _
    // Predicated region
    $region258: #{tpu_custom_call.1} parent=1 // pred_check
      _
    $region259: #{tpu_custom_call.1} parent=1 // pred_check_branch
      %509 = sbr.rel (0) target = $region261
    $region260: #{tpu_custom_call.1} parent=1 // pred_region
      %510 = dma.done [#allocation17], 32
    $region261: #{tpu_custom_call.1} parent=1 // pred_fallthru
      _
    // Predicated region
    $region262: #{tpu_custom_call.1} parent=1 // pred_check
      _
    $region263: #{tpu_custom_call.1} parent=1 // pred_check_branch
      %512 = sbr.rel (0) target = $region265
    $region264: #{tpu_custom_call.1} parent=1 // pred_region
      %513 = dma.done [#allocation17], 32
    $region265: #{tpu_custom_call.1} parent=1 // pred_fallthru
      _
    // Predicated region
    $region266: #{tpu_custom_call.1} parent=1 // pred_check
      _
    $region267: #{tpu_custom_call.1} parent=1 // pred_check_branch
      %515 = sbr.rel (0) target = $region269
    $region268: #{tpu_custom_call.1} parent=1 // pred_region
      %516 = dma.done [#allocation20], 16
    $region269: #{tpu_custom_call.1} parent=1 // pred_fallthru
      _
    // Predicated region
    $region270: #{tpu_custom_call.1} parent=1 // pred_check
      _
    $region271: #{tpu_custom_call.1} parent=1 // pred_check_branch
      %518 = sbr.rel (0) target = $region273
    $region272: #{tpu_custom_call.1} parent=1 // pred_region
      %519 = dma.done [#allocation20], 16
    $region273: #{tpu_custom_call.1} parent=1 // pred_fallthru
      _
    // Predicated region
    $region274: #{tpu_custom_call.1} parent=1 // pred_check
      _
    $region275: #{tpu_custom_call.1} parent=1 // pred_check_branch
      %521 = sbr.rel (0) target = $region277
    $region276: #{tpu_custom_call.1} parent=1 // pred_region
      %522 = dma.done [#allocation23], 32
    $region277: #{tpu_custom_call.1} parent=1 // pred_fallthru
      _
    // Predicated region
    $region278: #{tpu_custom_call.1} parent=1 // pred_check
      _
    $region279: #{tpu_custom_call.1} parent=1 // pred_check_branch
      %524 = sbr.rel (0) target = $region281
    $region280: #{tpu_custom_call.1} parent=1 // pred_region
      %525 = dma.done [#allocation23], 32
    $region281: #{tpu_custom_call.1} parent=1 // pred_fallthru
      _
    // Predicated region
    $region282: #{tpu_custom_call.1} parent=1 // pred_check
      _
    $region283: #{tpu_custom_call.1} parent=1 // pred_check_branch
      %527 = sbr.rel (0) target = $region285
    $region284: #{tpu_custom_call.1} parent=1 // pred_region
      %528 = dma.done [#allocation26], 16
    $region285: #{tpu_custom_call.1} parent=1 // pred_fallthru
      _
    // Predicated region
    $region286: #{tpu_custom_call.1} parent=1 // pred_check
      _
    $region287: #{tpu_custom_call.1} parent=1 // pred_check_branch
      %530 = sbr.rel (0) target = $region289
    $region288: #{tpu_custom_call.1} parent=1 // pred_region
      %531 = dma.done [#allocation26], 512
    $region289: #{tpu_custom_call.1} parent=1 // pred_fallthru
      _
    // Predicated region
    $region290: #{tpu_custom_call.1} parent=1 // pred_check
      _
    $region291: #{tpu_custom_call.1} parent=1 // pred_check_branch
      %533 = sbr.rel (0) target = $region293
    $region292: #{tpu_custom_call.1} parent=1 // pred_region
      %534 = dma.done [#allocation29], 32
    $region293: #{tpu_custom_call.1} parent=1 // pred_fallthru
      _
    // Predicated region
    $region294: #{tpu_custom_call.1} parent=1 // pred_check
      _
    $region295: #{tpu_custom_call.1} parent=1 // pred_check_branch
      %536 = sbr.rel (0) target = $region297
    $region296: #{tpu_custom_call.1} parent=1 // pred_region
      %537 = dma.done [#allocation29], 32
    $region297: #{tpu_custom_call.1} parent=1 // pred_fallthru
      _
    // Predicated region
    $region298: #{tpu_custom_call.1} parent=1 // pred_check
      _
    $region299: #{tpu_custom_call.1} parent=1 // pred_check_branch
      %539 = sbr.rel (0) target = $region301
    $region300: #{tpu_custom_call.1} parent=1 // pred_region
      %540 = dma.done [#allocation32], 16
    $region301: #{tpu_custom_call.1} parent=1 // pred_fallthru
      _
    // Predicated region
    $region302: #{tpu_custom_call.1} parent=1 // pred_check
      _
    $region303: #{tpu_custom_call.1} parent=1 // pred_check_branch
      %542 = sbr.rel (0) target = $region305
    $region304: #{tpu_custom_call.1} parent=1 // pred_region
      %543 = dma.done [#allocation32], 1792
    $region305: #{tpu_custom_call.1} parent=1 // pred_fallthru
      _
    // Predicated region
    $region306: #{tpu_custom_call.1} parent=1 // pred_check
      _
    $region307: #{tpu_custom_call.1} parent=1 // pred_check_branch
      %545 = sbr.rel (0) target = $region309
    $region308: #{tpu_custom_call.1} parent=1 // pred_region
      %546 = dma.done [#allocation35], 1792
    $region309: #{tpu_custom_call.1} parent=1 // pred_fallthru
      _
    // Predicated region
    $region310: #{tpu_custom_call.1} parent=1 // pred_check
      _
    $region311: #{tpu_custom_call.1} parent=1 // pred_check_branch
      %548 = sbr.rel (0) target = $region313
    $region312: #{tpu_custom_call.1} parent=1 // pred_region
      %549 = dma.done [#allocation35], 32
    $region313: #{tpu_custom_call.1} parent=1 // pred_fallthru
      _
    // Predicated region
    $region314: #{tpu_custom_call.1} parent=1 // pred_check
      _
    $region315: #{tpu_custom_call.1} parent=1 // pred_check_branch
      %551 = sbr.rel (0) target = $region317
    $region316: #{tpu_custom_call.1} parent=1 // pred_region
      %552 = dma.done [#allocation38], 32
    $region317: #{tpu_custom_call.1} parent=1 // pred_fallthru
      _
    // Predicated region
    $region318: #{tpu_custom_call.1} parent=1 // pred_check
      _
    $region319: #{tpu_custom_call.1} parent=1 // pred_check_branch
      %554 = sbr.rel (0) target = $region321
    $region320: #{tpu_custom_call.1} parent=1 // pred_region
      %555 = dma.done [#allocation38], 16
    $region321: #{tpu_custom_call.1} parent=1 // pred_fallthru
      _
    // Predicated region
    $region322: #{tpu_custom_call.1} parent=1 // pred_check
      _
    $region323: #{tpu_custom_call.1} parent=1 // pred_check_branch
      %557 = sbr.rel (0) target = $region325
    $region324: #{tpu_custom_call.1} parent=1 // pred_region
      %558 = dma.done [#allocation41], 16
    $region325: #{tpu_custom_call.1} parent=1 // pred_fallthru
      _
    // Predicated region
    $region326: #{tpu_custom_call.1} parent=1 // pred_check
      _
    $region327: #{tpu_custom_call.1} parent=1 // pred_check_branch
      %560 = sbr.rel (0) target = $region329
    $region328: #{tpu_custom_call.1} parent=1 // pred_region
      %561 = dma.done [#allocation41], 256
    $region329: #{tpu_custom_call.1} parent=1 // pred_fallthru
      _
    // Predicated region
    $region330: #{tpu_custom_call.1} parent=1 // pred_check
      _
    $region331: #{tpu_custom_call.1} parent=1 // pred_check_branch
      %563 = sbr.rel (0) target = $region333
    $region332: #{tpu_custom_call.1} parent=1 // pred_region
      %564 = dma.done [#allocation44], 6400
    $region333: #{tpu_custom_call.1} parent=1 // pred_fallthru
      _
    %v565 = vld [vmem:[%s1] sm:$0xf]
    %v566 = vld [vmem:[#allocation2] sm:$0xf]
    %v567 = vld [vmem:[#allocation7] sm:$0xff]
    %v568 = vld [vmem:[#allocation7 + $0x8] sm:$0xff]
    %v569 = vld [vmem:[#allocation7 + $0x10] sm:$0xff]
    %v570 = vld [vmem:[#allocation7 + $0x18] sm:$0xff]
    %v571 = vld [vmem:[#allocation9] sm:$0x3]
    %v573 = vlaneseq
    %v574 = vshrl.u32 %v573, 7
    %v575 = vsub.s32 0, %v574
    %v576 = vrot.slane %v571, %v575
    %v577 = vlaneseq
    %v578 = vshrl.u32 %v577, 7
    %v579 = vsub.s32 1, %v578
    %v580 = vrot.slane %v571, %v579
    %vm583 = vcmask 130048
    %v585 = vsel %vm583, %v565, 0
    %587 = vmatprep.subr.mxu0 %v568
    %588 = vmatpush1.msra.mxu0 %v567
    %589 = vmatprep.subr.mxu0 %v570
    %590 = vmatpush1.msra.mxu0 %v569
    %591 = vmatprep.subr.mxu0 0.0
    %592 = vmatpush1.msra.mxu0 0.0
    %593 = vmatprep.subr.mxu0 0.0
    %594 = vmatpush1.msra.mxu0 0.0
    %595 = vmatprep.subr.mxu0 0.0
    %596 = vmatpush1.msra.mxu0 0.0
    %597 = vmatprep.subr.mxu0 0.0
    %598 = vmatpush1.msra.mxu0 0.0
    %599 = vmatprep.subr.mxu0 0.0
    %600 = vmatpush1.msra.mxu0 0.0
    %601 = vmatprep.subr.mxu0 0.0
    %602 = vmatpush1.msra.mxu0 0.0
    %603 = vmatprep.subr.mxu0 0.0
    %604 = vmatpush1.msra.mxu0 0.0
    %605 = vmatprep.subr.mxu0 0.0
    %606 = vmatpush1.msra.mxu0 0.0
    %607 = vmatprep.subr.mxu0 0.0
    %608 = vmatpush1.msra.mxu0 0.0
    %609 = vmatprep.subr.mxu0 0.0
    %610 = vmatpush1.msra.mxu0 0.0
    %611 = vmatprep.subr.mxu0 0.0
    %612 = vmatpush1.msra.mxu0 0.0
    %613 = vmatprep.subr.mxu0 0.0
    %614 = vmatpush1.msra.mxu0 0.0
    %615 = vmatprep.subr.mxu0 0.0
    %616 = vmatpush1.msra.mxu0 0.0
    %617 = vmatprep.subr.mxu0 0.0
    %618 = vmatpush1.msra.mxu0 0.0
    %619 = vmatprep.subr.mxu0 0.0
    %620 = vmatpush1.msra.mxu0 0.0
    %621 = vmatprep.subr.mxu0 0.0
    %622 = vmatpush1.msra.mxu0 0.0
    %623 = vmatprep.subr.mxu0 0.0
    %624 = vmatpush1.msra.mxu0 0.0
    %625 = vmatprep.subr.mxu0 0.0
    %626 = vmatpush1.msra.mxu0 0.0
    %627 = vmatprep.subr.mxu0 0.0
    %628 = vmatpush1.msra.mxu0 0.0
    %629 = vmatprep.subr.mxu0 0.0
    %630 = vmatpush1.msra.mxu0 0.0
    %631 = vmatprep.subr.mxu0 0.0
    %632 = vmatpush1.msra.mxu0 0.0
    %633 = vmatprep.subr.mxu0 0.0
    %634 = vmatpush1.msra.mxu0 0.0
    %635 = vmatprep.subr.mxu0 0.0
    %636 = vmatpush1.msra.mxu0 0.0
    %637 = vmatprep.subr.mxu0 0.0
    %638 = vmatpush1.msra.mxu0 0.0
    %639 = vmatprep.subr.mxu0 0.0
    %640 = vmatpush1.msra.mxu0 0.0
    %641 = vmatprep.subr.mxu0 0.0
    %642 = vmatpush1.msra.mxu0 0.0
    %643 = vmatprep.subr.mxu0 0.0
    %644 = vmatpush1.msra.mxu0 0.0
    %645 = vmatprep.subr.mxu0 0.0
    %646 = vmatpush1.msra.mxu0 0.0
    %647 = vmatprep.subr.mxu0 0.0
    %648 = vmatpush1.msra.mxu0 0.0
    %649 = vmatprep.subr.mxu0 0.0
    %650 = vmatpush1.msra.mxu0 0.0
    %651 = vmatprep.mubr.f32.mxu0 0.0
    %652 = vmatmul.mubr.f32.gmra.mrb[0].mxu0 %v585
    %v653 = vpop.f32.mrb[0].mxu0
    %v654 = vadd.f32 %v576, %v653
    %v655 = vpop.f32.mrb[0].mxu0
    %v656 = vadd.f32 %v580, %v655
    %657 = vdwg.mxu0
    %v658 = vmax.f32 %v654, 0.0
    %v659 = vmax.f32 %v656, 0.0
    %v660 = vld [vmem:[%s13] sm:$0xff]
    %v661 = vld [vmem:[%s13 + $0x8] sm:$0xff]
    %v662 = vld [vmem:[%s13 + $0x10] sm:$0xff]
    %v663 = vld [vmem:[%s13 + $0x18] sm:$0xff]
    %v664 = vld [vmem:[%s13 + $0x20] sm:$0xff]
    %v665 = vld [vmem:[%s13 + $0x28] sm:$0xff]
    %v666 = vld [vmem:[%s13 + $0x30] sm:$0xff]
    %v667 = vld [vmem:[%s13 + $0x38] sm:$0xff]
    %v668 = vld [vmem:[%s13 + $0x40] sm:$0xff]
    %v669 = vld [vmem:[%s13 + $0x48] sm:$0xff]
    %v670 = vld [vmem:[%s13 + $0x50] sm:$0xff]
    %v671 = vld [vmem:[%s13 + $0x58] sm:$0xff]
    %v672 = vld [vmem:[%s13 + $0x60] sm:$0xff]
    %v673 = vld [vmem:[%s13 + $0x68] sm:$0xff]
    %v674 = vld [vmem:[%s13 + $0x70] sm:$0xff]
    %v675 = vld [vmem:[%s13 + $0x78] sm:$0xff]
    %v676 = vld [vmem:[%s13 + $0x80] sm:$0xff]
    %v677 = vld [vmem:[%s13 + $0x88] sm:$0xff]
    %v678 = vld [vmem:[%s13 + $0x90] sm:$0xff]
    %v679 = vld [vmem:[%s13 + $0x98] sm:$0xff]
    %v680 = vld [vmem:[%s13 + $0xa0] sm:$0xff]
    %v681 = vld [vmem:[%s13 + $0xa8] sm:$0xff]
    %v682 = vld [vmem:[%s13 + $0xb0] sm:$0xff]
    %v683 = vld [vmem:[%s13 + $0xb8] sm:$0xff]
    %v684 = vld [vmem:[%s13 + $0xc0] sm:$0xff]
    %v685 = vld [vmem:[%s13 + $0xc8] sm:$0xff]
    %v686 = vld [vmem:[%s13 + $0xd0] sm:$0xff]
    %v687 = vld [vmem:[%s13 + $0xd8] sm:$0xff]
    %v688 = vld [vmem:[%s13 + $0xe0] sm:$0xff]
    %v689 = vld [vmem:[%s13 + $0xe8] sm:$0xff]
    %v690 = vld [vmem:[%s13 + $0xf0] sm:$0xff]
    %v691 = vld [vmem:[%s13 + $0xf8] sm:$0xff]
    %v692 = vld [vmem:[%s13 + $0x100] sm:$0xff]
    %v693 = vld [vmem:[%s13 + $0x108] sm:$0xff]
    %v694 = vld [vmem:[%s13 + $0x110] sm:$0xff]
    %v695 = vld [vmem:[%s13 + $0x118] sm:$0xff]
    %v696 = vld [vmem:[%s13 + $0x120] sm:$0xff]
    %v697 = vld [vmem:[%s13 + $0x128] sm:$0xff]
    %v698 = vld [vmem:[%s13 + $0x130] sm:$0xff]
    %v699 = vld [vmem:[%s13 + $0x138] sm:$0xff]
    %v700 = vld [vmem:[%s13 + $0x140] sm:$0xff]
    %v701 = vld [vmem:[%s13 + $0x148] sm:$0xff]
    %v702 = vld [vmem:[%s13 + $0x150] sm:$0xff]
    %v703 = vld [vmem:[%s13 + $0x158] sm:$0xff]
    %v704 = vld [vmem:[%s13 + $0x160] sm:$0xff]
    %v705 = vld [vmem:[%s13 + $0x168] sm:$0xff]
    %v706 = vld [vmem:[%s13 + $0x170] sm:$0xff]
    %v707 = vld [vmem:[%s13 + $0x178] sm:$0xff]
    %v708 = vld [vmem:[%s13 + $0x180] sm:$0xff]
    %v709 = vld [vmem:[%s13 + $0x188] sm:$0xff]
    %v710 = vld [vmem:[#allocation10] sm:$0x3]
    %v712 = vlaneseq
    %v713 = vshrl.u32 %v712, 7
    %v714 = vsub.s32 0, %v713
    %v715 = vrot.slane %v710, %v714
    %v716 = vlaneseq
    %v717 = vshrl.u32 %v716, 7
    %v718 = vsub.s32 1, %v717
    %v719 = vrot.slane %v710, %v718
    %vm722 = vcmask 588800
    %v724 = vsel %vm722, %v659, 0
    %726 = vmatprep.subr.mxu0 %v661
    %727 = vmatpush1.msra.mxu0 %v660
    %728 = vmatprep.subr.mxu0 %v663
    %729 = vmatpush1.msra.mxu0 %v662
    %730 = vmatprep.subr.mxu0 %v665
    %731 = vmatpush1.msra.mxu0 %v664
    %732 = vmatprep.subr.mxu0 %v667
    %733 = vmatpush1.msra.mxu0 %v666
    %734 = vmatprep.subr.mxu0 %v669
    %735 = vmatpush1.msra.mxu0 %v668
    %736 = vmatprep.subr.mxu0 %v671
    %737 = vmatpush1.msra.mxu0 %v670
    %738 = vmatprep.subr.mxu0 %v673
    %739 = vmatpush1.msra.mxu0 %v672
    %740 = vmatprep.subr.mxu0 %v675
    %741 = vmatpush1.msra.mxu0 %v674
    %742 = vmatprep.subr.mxu0 %v677
    %743 = vmatpush1.msra.mxu0 %v676
    %744 = vmatprep.subr.mxu0 %v679
    %745 = vmatpush1.msra.mxu0 %v678
    %746 = vmatprep.subr.mxu0 %v681
    %747 = vmatpush1.msra.mxu0 %v680
    %748 = vmatprep.subr.mxu0 %v683
    %749 = vmatpush1.msra.mxu0 %v682
    %750 = vmatprep.subr.mxu0 %v685
    %751 = vmatpush1.msra.mxu0 %v684
    %752 = vmatprep.subr.mxu0 %v687
    %753 = vmatpush1.msra.mxu0 %v686
    %754 = vmatprep.subr.mxu0 %v689
    %755 = vmatpush1.msra.mxu0 %v688
    %756 = vmatprep.subr.mxu0 %v691
    %757 = vmatpush1.msra.mxu0 %v690
    %758 = vmatprep.subr.mxu0 %v693
    %759 = vmatpush1.msra.mxu0 %v692
    %760 = vmatprep.subr.mxu0 %v695
    %761 = vmatpush1.msra.mxu0 %v694
    %762 = vmatprep.subr.mxu0 %v697
    %763 = vmatpush1.msra.mxu0 %v696
    %764 = vmatprep.subr.mxu0 %v699
    %765 = vmatpush1.msra.mxu0 %v698
    %766 = vmatprep.subr.mxu0 %v701
    %767 = vmatpush1.msra.mxu0 %v700
    %768 = vmatprep.subr.mxu0 %v703
    %769 = vmatpush1.msra.mxu0 %v702
    %770 = vmatprep.subr.mxu0 %v705
    %771 = vmatpush1.msra.mxu0 %v704
    %772 = vmatprep.subr.mxu0 %v707
    %773 = vmatpush1.msra.mxu0 %v706
    %774 = vmatprep.subr.mxu0 %v709
    %775 = vmatpush1.msra.mxu0 %v708
    %776 = vmatprep.subr.mxu0 0.0
    %777 = vmatpush1.msra.mxu0 0.0
    %778 = vmatprep.subr.mxu0 0.0
    %779 = vmatpush1.msra.mxu0 0.0
    %780 = vmatprep.subr.mxu0 0.0
    %781 = vmatpush1.msra.mxu0 0.0
    %782 = vmatprep.subr.mxu0 0.0
    %783 = vmatpush1.msra.mxu0 0.0
    %784 = vmatprep.subr.mxu0 0.0
    %785 = vmatpush1.msra.mxu0 0.0
    %786 = vmatprep.subr.mxu0 0.0
    %787 = vmatpush1.msra.mxu0 0.0
    %788 = vmatprep.subr.mxu0 0.0
    %789 = vmatpush1.msra.mxu0 0.0
    %790 = vmatprep.mubr.f32.mxu0 %v724
    %791 = vmatmul.mubr.f32.gmra.mrb[0].mxu0 %v658
    %v792 = vpop.f32.mrb[0].mxu0
    %v793 = vadd.f32 %v715, %v792
    %v794 = vpop.f32.mrb[0].mxu0
    %v795 = vadd.f32 %v719, %v794
    %796 = vdwg.mxu0
    %v797 = vmax.f32 %v793, 0.0
    %v798 = vmax.f32 %v795, 0.0
    %v799 = vld [vmem:[%s17] sm:$0xff]
    %v800 = vld [vmem:[%s17 + $0x8] sm:$0xff]
    %v801 = vld [vmem:[%s17 + $0x10] sm:$0xff]
    %v802 = vld [vmem:[%s17 + $0x18] sm:$0xff]
    %v803 = vld [vmem:[%s17 + $0x20] sm:$0xff]
    %v804 = vld [vmem:[%s17 + $0x28] sm:$0xff]
    %v805 = vld [vmem:[%s17 + $0x30] sm:$0xff]
    %v806 = vld [vmem:[%s17 + $0x38] sm:$0xff]
    %v807 = vld [vmem:[%s17 + $0x40] sm:$0xff]
    %v808 = vld [vmem:[%s17 + $0x48] sm:$0xff]
    %v809 = vld [vmem:[%s17 + $0x50] sm:$0xff]
    %v810 = vld [vmem:[%s17 + $0x58] sm:$0xff]
    %v811 = vld [vmem:[%s17 + $0x60] sm:$0xff]
    %v812 = vld [vmem:[%s17 + $0x68] sm:$0xff]
    %v813 = vld [vmem:[%s17 + $0x70] sm:$0xff]
    %v814 = vld [vmem:[%s17 + $0x78] sm:$0xff]
    %v815 = vld [vmem:[%s17 + $0x80] sm:$0xff]
    %v816 = vld [vmem:[%s17 + $0x88] sm:$0xff]
    %v817 = vld [vmem:[%s17 + $0x90] sm:$0xff]
    %v818 = vld [vmem:[%s17 + $0x98] sm:$0xff]
    %v819 = vld [vmem:[%s17 + $0xa0] sm:$0xff]
    %v820 = vld [vmem:[%s17 + $0xa8] sm:$0xff]
    %v821 = vld [vmem:[%s17 + $0xb0] sm:$0xff]
    %v822 = vld [vmem:[%s17 + $0xb8] sm:$0xff]
    %v823 = vld [vmem:[%s17 + $0xc0] sm:$0xff]
    %v824 = vld [vmem:[#allocation12] sm:$0x1]
    %v826 = vlaneseq
    %v827 = vshrl.u32 %v826, 7
    %v828 = vsub.s32 0, %v827
    %v829 = vrot.slane %v824, %v828
    %v832 = vsel %vm722, %v798, 0
    %834 = vmatprep.subr.mxu0 0.0
    %835 = vmatpush1.msra.mxu0 %v799
    %836 = vmatprep.subr.mxu0 0.0
    %837 = vmatpush1.msra.mxu0 %v800
    %838 = vmatprep.subr.mxu0 0.0
    %839 = vmatpush1.msra.mxu0 %v801
    %840 = vmatprep.subr.mxu0 0.0
    %841 = vmatpush1.msra.mxu0 %v802
    %842 = vmatprep.subr.mxu0 0.0
    %843 = vmatpush1.msra.mxu0 %v803
    %844 = vmatprep.subr.mxu0 0.0
    %845 = vmatpush1.msra.mxu0 %v804
    %846 = vmatprep.subr.mxu0 0.0
    %847 = vmatpush1.msra.mxu0 %v805
    %848 = vmatprep.subr.mxu0 0.0
    %849 = vmatpush1.msra.mxu0 %v806
    %850 = vmatprep.subr.mxu0 0.0
    %851 = vmatpush1.msra.mxu0 %v807
    %852 = vmatprep.subr.mxu0 0.0
    %853 = vmatpush1.msra.mxu0 %v808
    %854 = vmatprep.subr.mxu0 0.0
    %855 = vmatpush1.msra.mxu0 %v809
    %856 = vmatprep.subr.mxu0 0.0
    %857 = vmatpush1.msra.mxu0 %v810
    %858 = vmatprep.subr.mxu0 0.0
    %859 = vmatpush1.msra.mxu0 %v811
    %860 = vmatprep.subr.mxu0 0.0
    %861 = vmatpush1.msra.mxu0 %v812
    %862 = vmatprep.subr.mxu0 0.0
    %863 = vmatpush1.msra.mxu0 %v813
    %864 = vmatprep.subr.mxu0 0.0
    %865 = vmatpush1.msra.mxu0 %v814
    %866 = vmatprep.subr.mxu0 0.0
    %867 = vmatpush1.msra.mxu0 %v815
    %868 = vmatprep.subr.mxu0 0.0
    %869 = vmatpush1.msra.mxu0 %v816
    %870 = vmatprep.subr.mxu0 0.0
    %871 = vmatpush1.msra.mxu0 %v817
    %872 = vmatprep.subr.mxu0 0.0
    %873 = vmatpush1.msra.mxu0 %v818
    %874 = vmatprep.subr.mxu0 0.0
    %875 = vmatpush1.msra.mxu0 %v819
    %876 = vmatprep.subr.mxu0 0.0
    %877 = vmatpush1.msra.mxu0 %v820
    %878 = vmatprep.subr.mxu0 0.0
    %879 = vmatpush1.msra.mxu0 %v821
    %880 = vmatprep.subr.mxu0 0.0
    %881 = vmatpush1.msra.mxu0 %v822
    %882 = vmatprep.subr.mxu0 0.0
    %883 = vmatpush1.msra.mxu0 %v823
    %884 = vmatprep.subr.mxu0 0.0
    %885 = vmatpush1.msra.mxu0 0.0
    %886 = vmatprep.subr.mxu0 0.0
    %887 = vmatpush1.msra.mxu0 0.0
    %888 = vmatprep.subr.mxu0 0.0
    %889 = vmatpush1.msra.mxu0 0.0
    %890 = vmatprep.subr.mxu0 0.0
    %891 = vmatpush1.msra.mxu0 0.0
    %892 = vmatprep.subr.mxu0 0.0
    %893 = vmatpush1.msra.mxu0 0.0
    %894 = vmatprep.subr.mxu0 0.0
    %895 = vmatpush1.msra.mxu0 0.0
    %896 = vmatprep.subr.mxu0 0.0
    %897 = vmatpush1.msra.mxu0 0.0
    %898 = vmatprep.mubr.f32.mxu0 %v832
    %899 = vmatmul.mubr.f32.gmra.mrb[0].mxu0 %v797
    %v900 = vpop.f32.mrb[0].mxu0
    %v901 = vadd.f32 %v829, %v900
    %v902 = vpop.f32.mrb[0].mxu0
    %903 = vdwg.mxu0
    %v904 = vld [vmem:[%s21] sm:$0xff]
    %v905 = vld [vmem:[%s21 + $0x8] sm:$0xff]
    %v906 = vld [vmem:[%s21 + $0x10] sm:$0xff]
    %v907 = vld [vmem:[%s21 + $0x18] sm:$0xff]
    %v908 = vld [vmem:[%s21 + $0x20] sm:$0xff]
    %v909 = vld [vmem:[%s21 + $0x28] sm:$0xff]
    %v910 = vld [vmem:[%s21 + $0x30] sm:$0xff]
    %v911 = vld [vmem:[%s21 + $0x38] sm:$0xff]
    %v912 = vld [vmem:[%s21 + $0x40] sm:$0xff]
    %v913 = vld [vmem:[%s21 + $0x48] sm:$0xff]
    %v914 = vld [vmem:[%s21 + $0x50] sm:$0xff]
    %v915 = vld [vmem:[%s21 + $0x58] sm:$0xff]
    %v916 = vld [vmem:[%s21 + $0x60] sm:$0xff]
    %v917 = vld [vmem:[%s21 + $0x68] sm:$0xff]
    %v918 = vld [vmem:[%s21 + $0x70] sm:$0xff]
    %v919 = vld [vmem:[%s21 + $0x78] sm:$0xff]
    %v920 = vld [vmem:[%s21 + $0x80] sm:$0xff]
    %v921 = vld [vmem:[%s21 + $0x88] sm:$0xff]
    %v922 = vld [vmem:[%s21 + $0x90] sm:$0xff]
    %v923 = vld [vmem:[%s21 + $0x98] sm:$0xff]
    %v924 = vld [vmem:[%s21 + $0xa0] sm:$0xff]
    %v925 = vld [vmem:[%s21 + $0xa8] sm:$0xff]
    %v926 = vld [vmem:[%s21 + $0xb0] sm:$0xff]
    %v927 = vld [vmem:[%s21 + $0xb8] sm:$0xff]
    %v928 = vld [vmem:[%s21 + $0xc0] sm:$0xff]
    %v929 = vld [vmem:[#allocation13] sm:$0x1]
    %v931 = vlaneseq
    %v932 = vshrl.u32 %v931, 7
    %v933 = vsub.s32 0, %v932
    %v934 = vrot.slane %v929, %v933
    %936 = vmatprep.subr.mxu0 0.0
    %937 = vmatpush1.msra.mxu0 %v904
    %938 = vmatprep.subr.mxu0 0.0
    %939 = vmatpush1.msra.mxu0 %v905
    %940 = vmatprep.subr.mxu0 0.0
    %941 = vmatpush1.msra.mxu0 %v906
    %942 = vmatprep.subr.mxu0 0.0
    %943 = vmatpush1.msra.mxu0 %v907
    %944 = vmatprep.subr.mxu0 0.0
    %945 = vmatpush1.msra.mxu0 %v908
    %946 = vmatprep.subr.mxu0 0.0
    %947 = vmatpush1.msra.mxu0 %v909
    %948 = vmatprep.subr.mxu0 0.0
    %949 = vmatpush1.msra.mxu0 %v910
    %950 = vmatprep.subr.mxu0 0.0
    %951 = vmatpush1.msra.mxu0 %v911
    %952 = vmatprep.subr.mxu0 0.0
    %953 = vmatpush1.msra.mxu0 %v912
    %954 = vmatprep.subr.mxu0 0.0
    %955 = vmatpush1.msra.mxu0 %v913
    %956 = vmatprep.subr.mxu0 0.0
    %957 = vmatpush1.msra.mxu0 %v914
    %958 = vmatprep.subr.mxu0 0.0
    %959 = vmatpush1.msra.mxu0 %v915
    %960 = vmatprep.subr.mxu0 0.0
    %961 = vmatpush1.msra.mxu0 %v916
    %962 = vmatprep.subr.mxu0 0.0
    %963 = vmatpush1.msra.mxu0 %v917
    %964 = vmatprep.subr.mxu0 0.0
    %965 = vmatpush1.msra.mxu0 %v918
    %966 = vmatprep.subr.mxu0 0.0
    %967 = vmatpush1.msra.mxu0 %v919
    %968 = vmatprep.subr.mxu0 0.0
    %969 = vmatpush1.msra.mxu0 %v920
    %970 = vmatprep.subr.mxu0 0.0
    %971 = vmatpush1.msra.mxu0 %v921
    %972 = vmatprep.subr.mxu0 0.0
    %973 = vmatpush1.msra.mxu0 %v922
    %974 = vmatprep.subr.mxu0 0.0
    %975 = vmatpush1.msra.mxu0 %v923
    %976 = vmatprep.subr.mxu0 0.0
    %977 = vmatpush1.msra.mxu0 %v924
    %978 = vmatprep.subr.mxu0 0.0
    %979 = vmatpush1.msra.mxu0 %v925
    %980 = vmatprep.subr.mxu0 0.0
    %981 = vmatpush1.msra.mxu0 %v926
    %982 = vmatprep.subr.mxu0 0.0
    %983 = vmatpush1.msra.mxu0 %v927
    %984 = vmatprep.subr.mxu0 0.0
    %985 = vmatpush1.msra.mxu0 %v928
    %986 = vmatprep.subr.mxu0 0.0
    %987 = vmatpush1.msra.mxu0 0.0
    %988 = vmatprep.subr.mxu0 0.0
    %989 = vmatpush1.msra.mxu0 0.0
    %990 = vmatprep.subr.mxu0 0.0
    %991 = vmatpush1.msra.mxu0 0.0
    %992 = vmatprep.subr.mxu0 0.0
    %993 = vmatpush1.msra.mxu0 0.0
    %994 = vmatprep.subr.mxu0 0.0
    %995 = vmatpush1.msra.mxu0 0.0
    %996 = vmatprep.subr.mxu0 0.0
    %997 = vmatpush1.msra.mxu0 0.0
    %998 = vmatprep.subr.mxu0 0.0
    %999 = vmatpush1.msra.mxu0 0.0
    %1000 = vmatprep.mubr.f32.mxu0 %v832
    %1001 = vmatmul.mubr.f32.gmra.mrb[0].mxu0 %v797
    %v1002 = vpop.f32.mrb[0].mxu0
    %v1003 = vadd.f32 %v934, %v1002
    %v1004 = vpop.f32.mrb[0].mxu0
    %1005 = vdwg.mxu0
    %v1006 = vld [vmem:[#allocation15] sm:$0xff]
    %v1007 = vld [vmem:[#allocation15 + $0x8] sm:$0xff]
    %v1008 = vld [vmem:[#allocation15 + $0x10] sm:$0xf]
    %v1009 = vld [vmem:[#allocation15 + $0x18] sm:$0xf]
    %v1010 = vld [vmem:[#allocation16] sm:$0x3]
    %v1012 = vlaneseq
    %v1013 = vshrl.u32 %v1012, 7
    %v1014 = vsub.s32 0, %v1013
    %v1015 = vrot.slane %v1010, %v1014
    %v1016 = vlaneseq
    %v1017 = vshrl.u32 %v1016, 7
    %v1018 = vsub.s32 1, %v1017
    %v1019 = vrot.slane %v1010, %v1018
    %vm1022 = vcmask 97280
    %v1024 = vsel %vm1022, %v566, 0
    %vm1026 = vcmask 1043456
    %v1028 = vsel %vm1026, %v1008, 0
    %v1031 = vsel %vm1026, %v1009, 0
    %1033 = vmatprep.subr.mxu0 %v1007
    %1034 = vmatpush1.msra.mxu0 %v1006
    %1035 = vmatprep.subr.mxu0 %v1031
    %1036 = vmatpush1.msra.mxu0 %v1028
    %1037 = vmatprep.subr.mxu0 0.0
    %1038 = vmatpush1.msra.mxu0 0.0
    %1039 = vmatprep.subr.mxu0 0.0
    %1040 = vmatpush1.msra.mxu0 0.0
    %1041 = vmatprep.subr.mxu0 0.0
    %1042 = vmatpush1.msra.mxu0 0.0
    %1043 = vmatprep.subr.mxu0 0.0
    %1044 = vmatpush1.msra.mxu0 0.0
    %1045 = vmatprep.subr.mxu0 0.0
    %1046 = vmatpush1.msra.mxu0 0.0
    %1047 = vmatprep.subr.mxu0 0.0
    %1048 = vmatpush1.msra.mxu0 0.0
    %1049 = vmatprep.subr.mxu0 0.0
    %1050 = vmatpush1.msra.mxu0 0.0
    %1051 = vmatprep.subr.mxu0 0.0
    %1052 = vmatpush1.msra.mxu0 0.0
    %1053 = vmatprep.subr.mxu0 0.0
    %1054 = vmatpush1.msra.mxu0 0.0
    %1055 = vmatprep.subr.mxu0 0.0
    %1056 = vmatpush1.msra.mxu0 0.0
    %1057 = vmatprep.subr.mxu0 0.0
    %1058 = vmatpush1.msra.mxu0 0.0
    %1059 = vmatprep.subr.mxu0 0.0
    %1060 = vmatpush1.msra.mxu0 0.0
    %1061 = vmatprep.subr.mxu0 0.0
    %1062 = vmatpush1.msra.mxu0 0.0
    %1063 = vmatprep.subr.mxu0 0.0
    %1064 = vmatpush1.msra.mxu0 0.0
    %1065 = vmatprep.subr.mxu0 0.0
    %1066 = vmatpush1.msra.mxu0 0.0
    %1067 = vmatprep.subr.mxu0 0.0
    %1068 = vmatpush1.msra.mxu0 0.0
    %1069 = vmatprep.subr.mxu0 0.0
    %1070 = vmatpush1.msra.mxu0 0.0
    %1071 = vmatprep.subr.mxu0 0.0
    %1072 = vmatpush1.msra.mxu0 0.0
    %1073 = vmatprep.subr.mxu0 0.0
    %1074 = vmatpush1.msra.mxu0 0.0
    %1075 = vmatprep.subr.mxu0 0.0
    %1076 = vmatpush1.msra.mxu0 0.0
    %1077 = vmatprep.subr.mxu0 0.0
    %1078 = vmatpush1.msra.mxu0 0.0
    %1079 = vmatprep.subr.mxu0 0.0
    %1080 = vmatpush1.msra.mxu0 0.0
    %1081 = vmatprep.subr.mxu0 0.0
    %1082 = vmatpush1.msra.mxu0 0.0
    %1083 = vmatprep.subr.mxu0 0.0
    %1084 = vmatpush1.msra.mxu0 0.0
    %1085 = vmatprep.subr.mxu0 0.0
    %1086 = vmatpush1.msra.mxu0 0.0
    %1087 = vmatprep.subr.mxu0 0.0
    %1088 = vmatpush1.msra.mxu0 0.0
    %1089 = vmatprep.subr.mxu0 0.0
    %1090 = vmatpush1.msra.mxu0 0.0
    %1091 = vmatprep.subr.mxu0 0.0
    %1092 = vmatpush1.msra.mxu0 0.0
    %1093 = vmatprep.subr.mxu0 0.0
    %1094 = vmatpush1.msra.mxu0 0.0
    %1095 = vmatprep.subr.mxu0 0.0
    %1096 = vmatpush1.msra.mxu0 0.0
    %1097 = vmatprep.mubr.f32.mxu0 0.0
    %1098 = vmatmul.mubr.f32.gmra.mrb[0].mxu0 %v1024
    %v1099 = vpop.f32.mrb[0].mxu0
    %v1100 = vadd.f32 %v1015, %v1099
    %v1101 = vpop.f32.mrb[0].mxu0
    %v1102 = vadd.f32 %v1019, %v1101
    %1103 = vdwg.mxu0
    %v1104 = vmax.f32 %v1100, 0.0
    %v1105 = vmax.f32 %v1102, 0.0
    %v1106 = vld [vmem:[%s29] sm:$0xff]
    %v1107 = vld [vmem:[%s29 + $0x8] sm:$0xff]
    %v1108 = vld [vmem:[%s29 + $0x10] sm:$0xff]
    %v1109 = vld [vmem:[%s29 + $0x18] sm:$0xff]
    %v1110 = vld [vmem:[%s29 + $0x20] sm:$0xff]
    %v1111 = vld [vmem:[%s29 + $0x28] sm:$0xff]
    %v1112 = vld [vmem:[%s29 + $0x30] sm:$0xff]
    %v1113 = vld [vmem:[%s29 + $0x38] sm:$0xff]
    %v1114 = vld [vmem:[%s29 + $0x40] sm:$0xff]
    %v1115 = vld [vmem:[%s29 + $0x48] sm:$0xff]
    %v1116 = vld [vmem:[%s29 + $0x50] sm:$0xff]
    %v1117 = vld [vmem:[%s29 + $0x58] sm:$0xff]
    %v1118 = vld [vmem:[%s29 + $0x60] sm:$0xff]
    %v1119 = vld [vmem:[%s29 + $0x68] sm:$0xff]
    %v1120 = vld [vmem:[%s29 + $0x70] sm:$0xff]
    %v1121 = vld [vmem:[%s29 + $0x78] sm:$0xff]
    %v1122 = vld [vmem:[%s29 + $0x80] sm:$0xff]
    %v1123 = vld [vmem:[%s29 + $0x88] sm:$0xff]
    %v1124 = vld [vmem:[%s29 + $0x90] sm:$0xff]
    %v1125 = vld [vmem:[%s29 + $0x98] sm:$0xff]
    %v1126 = vld [vmem:[%s29 + $0xa0] sm:$0xff]
    %v1127 = vld [vmem:[%s29 + $0xa8] sm:$0xff]
    %v1128 = vld [vmem:[%s29 + $0xb0] sm:$0xff]
    %v1129 = vld [vmem:[%s29 + $0xb8] sm:$0xff]
    %v1130 = vld [vmem:[%s29 + $0xc0] sm:$0xff]
    %v1131 = vld [vmem:[%s29 + $0xc8] sm:$0xff]
    %v1132 = vld [vmem:[%s29 + $0xd0] sm:$0xff]
    %v1133 = vld [vmem:[%s29 + $0xd8] sm:$0xff]
    %v1134 = vld [vmem:[%s29 + $0xe0] sm:$0xff]
    %v1135 = vld [vmem:[%s29 + $0xe8] sm:$0xff]
    %v1136 = vld [vmem:[%s29 + $0xf0] sm:$0xff]
    %v1137 = vld [vmem:[%s29 + $0xf8] sm:$0xff]
    %v1138 = vld [vmem:[%s29 + $0x100] sm:$0xff]
    %v1139 = vld [vmem:[%s29 + $0x108] sm:$0xff]
    %v1140 = vld [vmem:[%s29 + $0x110] sm:$0xff]
    %v1141 = vld [vmem:[%s29 + $0x118] sm:$0xff]
    %v1142 = vld [vmem:[%s29 + $0x120] sm:$0xff]
    %v1143 = vld [vmem:[%s29 + $0x128] sm:$0xff]
    %v1144 = vld [vmem:[%s29 + $0x130] sm:$0xff]
    %v1145 = vld [vmem:[%s29 + $0x138] sm:$0xff]
    %v1146 = vld [vmem:[%s29 + $0x140] sm:$0xff]
    %v1147 = vld [vmem:[%s29 + $0x148] sm:$0xff]
    %v1148 = vld [vmem:[%s29 + $0x150] sm:$0xff]
    %v1149 = vld [vmem:[%s29 + $0x158] sm:$0xff]
    %v1150 = vld [vmem:[%s29 + $0x160] sm:$0xff]
    %v1151 = vld [vmem:[%s29 + $0x168] sm:$0xff]
    %v1152 = vld [vmem:[%s29 + $0x170] sm:$0xff]
    %v1153 = vld [vmem:[%s29 + $0x178] sm:$0xff]
    %v1154 = vld [vmem:[%s29 + $0x180] sm:$0xff]
    %v1155 = vld [vmem:[%s29 + $0x188] sm:$0xff]
    %v1156 = vld [vmem:[#allocation18] sm:$0x3]
    %v1158 = vlaneseq
    %v1159 = vshrl.u32 %v1158, 7
    %v1160 = vsub.s32 0, %v1159
    %v1161 = vrot.slane %v1156, %v1160
    %v1162 = vlaneseq
    %v1163 = vshrl.u32 %v1162, 7
    %v1164 = vsub.s32 1, %v1163
    %v1165 = vrot.slane %v1156, %v1164
    %v1169 = vsel %vm722, %v1105, 0
    %1171 = vmatprep.subr.mxu0 %v1107
    %1172 = vmatpush1.msra.mxu0 %v1106
    %1173 = vmatprep.subr.mxu0 %v1109
    %1174 = vmatpush1.msra.mxu0 %v1108
    %1175 = vmatprep.subr.mxu0 %v1111
    %1176 = vmatpush1.msra.mxu0 %v1110
    %1177 = vmatprep.subr.mxu0 %v1113
    %1178 = vmatpush1.msra.mxu0 %v1112
    %1179 = vmatprep.subr.mxu0 %v1115
    %1180 = vmatpush1.msra.mxu0 %v1114
    %1181 = vmatprep.subr.mxu0 %v1117
    %1182 = vmatpush1.msra.mxu0 %v1116
    %1183 = vmatprep.subr.mxu0 %v1119
    %1184 = vmatpush1.msra.mxu0 %v1118
    %1185 = vmatprep.subr.mxu0 %v1121
    %1186 = vmatpush1.msra.mxu0 %v1120
    %1187 = vmatprep.subr.mxu0 %v1123
    %1188 = vmatpush1.msra.mxu0 %v1122
    %1189 = vmatprep.subr.mxu0 %v1125
    %1190 = vmatpush1.msra.mxu0 %v1124
    %1191 = vmatprep.subr.mxu0 %v1127
    %1192 = vmatpush1.msra.mxu0 %v1126
    %1193 = vmatprep.subr.mxu0 %v1129
    %1194 = vmatpush1.msra.mxu0 %v1128
    %1195 = vmatprep.subr.mxu0 %v1131
    %1196 = vmatpush1.msra.mxu0 %v1130
    %1197 = vmatprep.subr.mxu0 %v1133
    %1198 = vmatpush1.msra.mxu0 %v1132
    %1199 = vmatprep.subr.mxu0 %v1135
    %1200 = vmatpush1.msra.mxu0 %v1134
    %1201 = vmatprep.subr.mxu0 %v1137
    %1202 = vmatpush1.msra.mxu0 %v1136
    %1203 = vmatprep.subr.mxu0 %v1139
    %1204 = vmatpush1.msra.mxu0 %v1138
    %1205 = vmatprep.subr.mxu0 %v1141
    %1206 = vmatpush1.msra.mxu0 %v1140
    %1207 = vmatprep.subr.mxu0 %v1143
    %1208 = vmatpush1.msra.mxu0 %v1142
    %1209 = vmatprep.subr.mxu0 %v1145
    %1210 = vmatpush1.msra.mxu0 %v1144
    %1211 = vmatprep.subr.mxu0 %v1147
    %1212 = vmatpush1.msra.mxu0 %v1146
    %1213 = vmatprep.subr.mxu0 %v1149
    %1214 = vmatpush1.msra.mxu0 %v1148
    %1215 = vmatprep.subr.mxu0 %v1151
    %1216 = vmatpush1.msra.mxu0 %v1150
    %1217 = vmatprep.subr.mxu0 %v1153
    %1218 = vmatpush1.msra.mxu0 %v1152
    %1219 = vmatprep.subr.mxu0 %v1155
    %1220 = vmatpush1.msra.mxu0 %v1154
    %1221 = vmatprep.subr.mxu0 0.0
    %1222 = vmatpush1.msra.mxu0 0.0
    %1223 = vmatprep.subr.mxu0 0.0
    %1224 = vmatpush1.msra.mxu0 0.0
    %1225 = vmatprep.subr.mxu0 0.0
    %1226 = vmatpush1.msra.mxu0 0.0
    %1227 = vmatprep.subr.mxu0 0.0
    %1228 = vmatpush1.msra.mxu0 0.0
    %1229 = vmatprep.subr.mxu0 0.0
    %1230 = vmatpush1.msra.mxu0 0.0
    %1231 = vmatprep.subr.mxu0 0.0
    %1232 = vmatpush1.msra.mxu0 0.0
    %1233 = vmatprep.subr.mxu0 0.0
    %1234 = vmatpush1.msra.mxu0 0.0
    %1235 = vmatprep.mubr.f32.mxu0 %v1169
    %1236 = vmatmul.mubr.f32.gmra.mrb[0].mxu0 %v1104
    %v1237 = vpop.f32.mrb[0].mxu0
    %v1238 = vadd.f32 %v1161, %v1237
    %v1239 = vpop.f32.mrb[0].mxu0
    %v1240 = vadd.f32 %v1165, %v1239
    %1241 = vdwg.mxu0
    %v1242 = vmax.f32 %v1238, 0.0
    %v1243 = vmax.f32 %v1240, 0.0
    %v1244 = vld [vmem:[%s33] sm:$0xff]
    %v1245 = vld [vmem:[%s33 + $0x8] sm:$0xff]
    %v1246 = vld [vmem:[%s33 + $0x10] sm:$0xff]
    %v1247 = vld [vmem:[%s33 + $0x18] sm:$0xff]
    %v1248 = vld [vmem:[%s33 + $0x20] sm:$0xff]
    %v1249 = vld [vmem:[%s33 + $0x28] sm:$0xff]
    %v1250 = vld [vmem:[%s33 + $0x30] sm:$0xff]
    %v1251 = vld [vmem:[%s33 + $0x38] sm:$0xff]
    %v1252 = vld [vmem:[%s33 + $0x40] sm:$0xff]
    %v1253 = vld [vmem:[%s33 + $0x48] sm:$0xff]
    %v1254 = vld [vmem:[%s33 + $0x50] sm:$0xff]
    %v1255 = vld [vmem:[%s33 + $0x58] sm:$0xff]
    %v1256 = vld [vmem:[%s33 + $0x60] sm:$0xff]
    %v1257 = vld [vmem:[%s33 + $0x68] sm:$0xff]
    %v1258 = vld [vmem:[%s33 + $0x70] sm:$0xff]
    %v1259 = vld [vmem:[%s33 + $0x78] sm:$0xff]
    %v1260 = vld [vmem:[%s33 + $0x80] sm:$0xff]
    %v1261 = vld [vmem:[%s33 + $0x88] sm:$0xff]
    %v1262 = vld [vmem:[%s33 + $0x90] sm:$0xff]
    %v1263 = vld [vmem:[%s33 + $0x98] sm:$0xff]
    %v1264 = vld [vmem:[%s33 + $0xa0] sm:$0xff]
    %v1265 = vld [vmem:[%s33 + $0xa8] sm:$0xff]
    %v1266 = vld [vmem:[%s33 + $0xb0] sm:$0xff]
    %v1267 = vld [vmem:[%s33 + $0xb8] sm:$0xff]
    %v1268 = vld [vmem:[%s33 + $0xc0] sm:$0xff]
    %v1269 = vld [vmem:[#allocation19] sm:$0x1]
    %v1271 = vlaneseq
    %v1272 = vshrl.u32 %v1271, 7
    %v1273 = vsub.s32 0, %v1272
    %v1274 = vrot.slane %v1269, %v1273
    %v1277 = vsel %vm722, %v1243, 0
    %1279 = vmatprep.subr.mxu0 0.0
    %1280 = vmatpush1.msra.mxu0 %v1244
    %1281 = vmatprep.subr.mxu0 0.0
    %1282 = vmatpush1.msra.mxu0 %v1245
    %1283 = vmatprep.subr.mxu0 0.0
    %1284 = vmatpush1.msra.mxu0 %v1246
    %1285 = vmatprep.subr.mxu0 0.0
    %1286 = vmatpush1.msra.mxu0 %v1247
    %1287 = vmatprep.subr.mxu0 0.0
    %1288 = vmatpush1.msra.mxu0 %v1248
    %1289 = vmatprep.subr.mxu0 0.0
    %1290 = vmatpush1.msra.mxu0 %v1249
    %1291 = vmatprep.subr.mxu0 0.0
    %1292 = vmatpush1.msra.mxu0 %v1250
    %1293 = vmatprep.subr.mxu0 0.0
    %1294 = vmatpush1.msra.mxu0 %v1251
    %1295 = vmatprep.subr.mxu0 0.0
    %1296 = vmatpush1.msra.mxu0 %v1252
    %1297 = vmatprep.subr.mxu0 0.0
    %1298 = vmatpush1.msra.mxu0 %v1253
    %1299 = vmatprep.subr.mxu0 0.0
    %1300 = vmatpush1.msra.mxu0 %v1254
    %1301 = vmatprep.subr.mxu0 0.0
    %1302 = vmatpush1.msra.mxu0 %v1255
    %1303 = vmatprep.subr.mxu0 0.0
    %1304 = vmatpush1.msra.mxu0 %v1256
    %1305 = vmatprep.subr.mxu0 0.0
    %1306 = vmatpush1.msra.mxu0 %v1257
    %1307 = vmatprep.subr.mxu0 0.0
    %1308 = vmatpush1.msra.mxu0 %v1258
    %1309 = vmatprep.subr.mxu0 0.0
    %1310 = vmatpush1.msra.mxu0 %v1259
    %1311 = vmatprep.subr.mxu0 0.0
    %1312 = vmatpush1.msra.mxu0 %v1260
    %1313 = vmatprep.subr.mxu0 0.0
    %1314 = vmatpush1.msra.mxu0 %v1261
    %1315 = vmatprep.subr.mxu0 0.0
    %1316 = vmatpush1.msra.mxu0 %v1262
    %1317 = vmatprep.subr.mxu0 0.0
    %1318 = vmatpush1.msra.mxu0 %v1263
    %1319 = vmatprep.subr.mxu0 0.0
    %1320 = vmatpush1.msra.mxu0 %v1264
    %1321 = vmatprep.subr.mxu0 0.0
    %1322 = vmatpush1.msra.mxu0 %v1265
    %1323 = vmatprep.subr.mxu0 0.0
    %1324 = vmatpush1.msra.mxu0 %v1266
    %1325 = vmatprep.subr.mxu0 0.0
    %1326 = vmatpush1.msra.mxu0 %v1267
    %1327 = vmatprep.subr.mxu0 0.0
    %1328 = vmatpush1.msra.mxu0 %v1268
    %1329 = vmatprep.subr.mxu0 0.0
    %1330 = vmatpush1.msra.mxu0 0.0
    %1331 = vmatprep.subr.mxu0 0.0
    %1332 = vmatpush1.msra.mxu0 0.0
    %1333 = vmatprep.subr.mxu0 0.0
    %1334 = vmatpush1.msra.mxu0 0.0
    %1335 = vmatprep.subr.mxu0 0.0
    %1336 = vmatpush1.msra.mxu0 0.0
    %1337 = vmatprep.subr.mxu0 0.0
    %1338 = vmatpush1.msra.mxu0 0.0
    %1339 = vmatprep.subr.mxu0 0.0
    %1340 = vmatpush1.msra.mxu0 0.0
    %1341 = vmatprep.subr.mxu0 0.0
    %1342 = vmatpush1.msra.mxu0 0.0
    %1343 = vmatprep.mubr.f32.mxu0 %v1277
    %1344 = vmatmul.mubr.f32.gmra.mrb[0].mxu0 %v1242
    %v1345 = vpop.f32.mrb[0].mxu0
    %v1346 = vadd.f32 %v1274, %v1345
    %v1347 = vpop.f32.mrb[0].mxu0
    %1348 = vdwg.mxu0
    %v1349 = vld [vmem:[%s37] sm:$0xff]
    %v1350 = vld [vmem:[%s37 + $0x8] sm:$0xff]
    %v1351 = vld [vmem:[%s37 + $0x10] sm:$0xff]
    %v1352 = vld [vmem:[%s37 + $0x18] sm:$0xff]
    %v1353 = vld [vmem:[%s37 + $0x20] sm:$0xff]
    %v1354 = vld [vmem:[%s37 + $0x28] sm:$0xff]
    %v1355 = vld [vmem:[%s37 + $0x30] sm:$0xff]
    %v1356 = vld [vmem:[%s37 + $0x38] sm:$0xff]
    %v1357 = vld [vmem:[%s37 + $0x40] sm:$0xff]
    %v1358 = vld [vmem:[%s37 + $0x48] sm:$0xff]
    %v1359 = vld [vmem:[%s37 + $0x50] sm:$0xff]
    %v1360 = vld [vmem:[%s37 + $0x58] sm:$0xff]
    %v1361 = vld [vmem:[%s37 + $0x60] sm:$0xff]
    %v1362 = vld [vmem:[%s37 + $0x68] sm:$0xff]
    %v1363 = vld [vmem:[%s37 + $0x70] sm:$0xff]
    %v1364 = vld [vmem:[%s37 + $0x78] sm:$0xff]
    %v1365 = vld [vmem:[%s37 + $0x80] sm:$0xff]
    %v1366 = vld [vmem:[%s37 + $0x88] sm:$0xff]
    %v1367 = vld [vmem:[%s37 + $0x90] sm:$0xff]
    %v1368 = vld [vmem:[%s37 + $0x98] sm:$0xff]
    %v1369 = vld [vmem:[%s37 + $0xa0] sm:$0xff]
    %v1370 = vld [vmem:[%s37 + $0xa8] sm:$0xff]
    %v1371 = vld [vmem:[%s37 + $0xb0] sm:$0xff]
    %v1372 = vld [vmem:[%s37 + $0xb8] sm:$0xff]
    %v1373 = vld [vmem:[%s37 + $0xc0] sm:$0xff]
    %v1374 = vld [vmem:[#allocation21] sm:$0x1]
    %v1376 = vlaneseq
    %v1377 = vshrl.u32 %v1376, 7
    %v1378 = vsub.s32 0, %v1377
    %v1379 = vrot.slane %v1374, %v1378
    %1381 = vmatprep.subr.mxu0 0.0
    %1382 = vmatpush1.msra.mxu0 %v1349
    %1383 = vmatprep.subr.mxu0 0.0
    %1384 = vmatpush1.msra.mxu0 %v1350
    %1385 = vmatprep.subr.mxu0 0.0
    %1386 = vmatpush1.msra.mxu0 %v1351
    %1387 = vmatprep.subr.mxu0 0.0
    %1388 = vmatpush1.msra.mxu0 %v1352
    %1389 = vmatprep.subr.mxu0 0.0
    %1390 = vmatpush1.msra.mxu0 %v1353
    %1391 = vmatprep.subr.mxu0 0.0
    %1392 = vmatpush1.msra.mxu0 %v1354
    %1393 = vmatprep.subr.mxu0 0.0
    %1394 = vmatpush1.msra.mxu0 %v1355
    %1395 = vmatprep.subr.mxu0 0.0
    %1396 = vmatpush1.msra.mxu0 %v1356
    %1397 = vmatprep.subr.mxu0 0.0
    %1398 = vmatpush1.msra.mxu0 %v1357
    %1399 = vmatprep.subr.mxu0 0.0
    %1400 = vmatpush1.msra.mxu0 %v1358
    %1401 = vmatprep.subr.mxu0 0.0
    %1402 = vmatpush1.msra.mxu0 %v1359
    %1403 = vmatprep.subr.mxu0 0.0
    %1404 = vmatpush1.msra.mxu0 %v1360
    %1405 = vmatprep.subr.mxu0 0.0
    %1406 = vmatpush1.msra.mxu0 %v1361
    %1407 = vmatprep.subr.mxu0 0.0
    %1408 = vmatpush1.msra.mxu0 %v1362
    %1409 = vmatprep.subr.mxu0 0.0
    %1410 = vmatpush1.msra.mxu0 %v1363
    %1411 = vmatprep.subr.mxu0 0.0
    %1412 = vmatpush1.msra.mxu0 %v1364
    %1413 = vmatprep.subr.mxu0 0.0
    %1414 = vmatpush1.msra.mxu0 %v1365
    %1415 = vmatprep.subr.mxu0 0.0
    %1416 = vmatpush1.msra.mxu0 %v1366
    %1417 = vmatprep.subr.mxu0 0.0
    %1418 = vmatpush1.msra.mxu0 %v1367
    %1419 = vmatprep.subr.mxu0 0.0
    %1420 = vmatpush1.msra.mxu0 %v1368
    %1421 = vmatprep.subr.mxu0 0.0
    %1422 = vmatpush1.msra.mxu0 %v1369
    %1423 = vmatprep.subr.mxu0 0.0
    %1424 = vmatpush1.msra.mxu0 %v1370
    %1425 = vmatprep.subr.mxu0 0.0
    %1426 = vmatpush1.msra.mxu0 %v1371
    %1427 = vmatprep.subr.mxu0 0.0
    %1428 = vmatpush1.msra.mxu0 %v1372
    %1429 = vmatprep.subr.mxu0 0.0
    %1430 = vmatpush1.msra.mxu0 %v1373
    %1431 = vmatprep.subr.mxu0 0.0
    %1432 = vmatpush1.msra.mxu0 0.0
    %1433 = vmatprep.subr.mxu0 0.0
    %1434 = vmatpush1.msra.mxu0 0.0
    %1435 = vmatprep.subr.mxu0 0.0
    %1436 = vmatpush1.msra.mxu0 0.0
    %1437 = vmatprep.subr.mxu0 0.0
    %1438 = vmatpush1.msra.mxu0 0.0
    %1439 = vmatprep.subr.mxu0 0.0
    %1440 = vmatpush1.msra.mxu0 0.0
    %1441 = vmatprep.subr.mxu0 0.0
    %1442 = vmatpush1.msra.mxu0 0.0
    %1443 = vmatprep.subr.mxu0 0.0
    %1444 = vmatpush1.msra.mxu0 0.0
    %1445 = vmatprep.mubr.f32.mxu0 %v1277
    %1446 = vmatmul.mubr.f32.gmra.mrb[0].mxu0 %v1242
    %v1447 = vpop.f32.mrb[0].mxu0
    %v1448 = vadd.f32 %v1379, %v1447
    %v1449 = vpop.f32.mrb[0].mxu0
    %1450 = vdwg.mxu0
    %v1451 = vsub.f32 0.0, %v1003
    %v1452 = vmul.f32 %v1451, 1.442695
    %v1453 = vpow.pop %v1452
    %v1454 = vsub.f32 0.0, %v1448
    %v1455 = vmul.f32 %v1454, 1.442695
    %v1456 = vpow.pop %v1455
    %v1457 = vadd.f32 %v1453, %v1456
    %v1458 = vrcp.pop %v1457
    %v1459 = vmul.f32 1.0, %v1458
    %v1460 = vmul.f32 %v901, %v1453
    %v1461 = vmul.f32 %v1346, %v1456
    %v1462 = vadd.f32 %v1460, %v1461
    %v1463 = vmul.f32 %v1459, %v1462
    %v1464 = vlog2.pop %v1459
    %v1465 = vmul.f32 %v1464, 0.6931472
    %v1466 = vrsqrt.pop %v1459
    %v1467 = vmul.f32 %v1459, %v1466
    %vm1468 = vcmp.eq.f32.partialorder %v1459, inf
    %v1469 = vsel %vm1468, %v1459, %v1467
    %vm1470 = vcmp.eq.f32.partialorder %v1459, 0.0
    %v1471 = vand.u32 %v1459, 2147483648
    %v1472 = vsel %vm1470, %v1471, %v1469
    %v1473 = vld [vmem:[%s41] sm:$0xff]
    %v1474 = vld [vmem:[%s41 + $0x8] sm:$0xff]
    %v1475 = vld [vmem:[%s41 + $0x10] sm:$0xff]
    %v1476 = vld [vmem:[%s41 + $0x18] sm:$0xff]
    %v1477 = vld [vmem:[#allocation22] sm:$0x3]
    %v1479 = vlaneseq
    %v1480 = vshrl.u32 %v1479, 7
    %v1481 = vsub.s32 0, %v1480
    %v1482 = vrot.slane %v1477, %v1481
    %v1483 = vlaneseq
    %v1484 = vshrl.u32 %v1483, 7
    %v1485 = vsub.s32 1, %v1484
    %v1486 = vrot.slane %v1477, %v1485
    %1489 = vmatprep.subr.mxu0 %v1474
    %1490 = vmatpush1.msra.mxu0 %v1473
    %1491 = vmatprep.subr.mxu0 %v1476
    %1492 = vmatpush1.msra.mxu0 %v1475
    %1493 = vmatprep.subr.mxu0 0.0
    %1494 = vmatpush1.msra.mxu0 0.0
    %1495 = vmatprep.subr.mxu0 0.0
    %1496 = vmatpush1.msra.mxu0 0.0
    %1497 = vmatprep.subr.mxu0 0.0
    %1498 = vmatpush1.msra.mxu0 0.0
    %1499 = vmatprep.subr.mxu0 0.0
    %1500 = vmatpush1.msra.mxu0 0.0
    %1501 = vmatprep.subr.mxu0 0.0
    %1502 = vmatpush1.msra.mxu0 0.0
    %1503 = vmatprep.subr.mxu0 0.0
    %1504 = vmatpush1.msra.mxu0 0.0
    %1505 = vmatprep.subr.mxu0 0.0
    %1506 = vmatpush1.msra.mxu0 0.0
    %1507 = vmatprep.subr.mxu0 0.0
    %1508 = vmatpush1.msra.mxu0 0.0
    %1509 = vmatprep.subr.mxu0 0.0
    %1510 = vmatpush1.msra.mxu0 0.0
    %1511 = vmatprep.subr.mxu0 0.0
    %1512 = vmatpush1.msra.mxu0 0.0
    %1513 = vmatprep.subr.mxu0 0.0
    %1514 = vmatpush1.msra.mxu0 0.0
    %1515 = vmatprep.subr.mxu0 0.0
    %1516 = vmatpush1.msra.mxu0 0.0
    %1517 = vmatprep.subr.mxu0 0.0
    %1518 = vmatpush1.msra.mxu0 0.0
    %1519 = vmatprep.subr.mxu0 0.0
    %1520 = vmatpush1.msra.mxu0 0.0
    %1521 = vmatprep.subr.mxu0 0.0
    %1522 = vmatpush1.msra.mxu0 0.0
    %1523 = vmatprep.subr.mxu0 0.0
    %1524 = vmatpush1.msra.mxu0 0.0
    %1525 = vmatprep.subr.mxu0 0.0
    %1526 = vmatpush1.msra.mxu0 0.0
    %1527 = vmatprep.subr.mxu0 0.0
    %1528 = vmatpush1.msra.mxu0 0.0
    %1529 = vmatprep.subr.mxu0 0.0
    %1530 = vmatpush1.msra.mxu0 0.0
    %1531 = vmatprep.subr.mxu0 0.0
    %1532 = vmatpush1.msra.mxu0 0.0
    %1533 = vmatprep.subr.mxu0 0.0
    %1534 = vmatpush1.msra.mxu0 0.0
    %1535 = vmatprep.subr.mxu0 0.0
    %1536 = vmatpush1.msra.mxu0 0.0
    %1537 = vmatprep.subr.mxu0 0.0
    %1538 = vmatpush1.msra.mxu0 0.0
    %1539 = vmatprep.subr.mxu0 0.0
    %1540 = vmatpush1.msra.mxu0 0.0
    %1541 = vmatprep.subr.mxu0 0.0
    %1542 = vmatpush1.msra.mxu0 0.0
    %1543 = vmatprep.subr.mxu0 0.0
    %1544 = vmatpush1.msra.mxu0 0.0
    %1545 = vmatprep.subr.mxu0 0.0
    %1546 = vmatpush1.msra.mxu0 0.0
    %1547 = vmatprep.subr.mxu0 0.0
    %1548 = vmatpush1.msra.mxu0 0.0
    %1549 = vmatprep.subr.mxu0 0.0
    %1550 = vmatpush1.msra.mxu0 0.0
    %1551 = vmatprep.subr.mxu0 0.0
    %1552 = vmatpush1.msra.mxu0 0.0
    %1553 = vmatprep.mubr.f32.mxu0 0.0
    %1554 = vmatmul.mubr.f32.gmra.mrb[0].mxu0 %v585
    %v1555 = vpop.f32.mrb[0].mxu0
    %v1556 = vadd.f32 %v1482, %v1555
    %v1557 = vpop.f32.mrb[0].mxu0
    %v1558 = vadd.f32 %v1486, %v1557
    %1559 = vdwg.mxu0
    %v1560 = vmax.f32 %v1556, 0.0
    %v1561 = vmax.f32 %v1558, 0.0
    %v1562 = vld [vmem:[%s45] sm:$0xff]
    %v1563 = vld [vmem:[%s45 + $0x8] sm:$0xff]
    %v1564 = vld [vmem:[%s45 + $0x10] sm:$0xff]
    %v1565 = vld [vmem:[%s45 + $0x18] sm:$0xff]
    %v1566 = vld [vmem:[%s45 + $0x20] sm:$0xff]
    %v1567 = vld [vmem:[%s45 + $0x28] sm:$0xff]
    %v1568 = vld [vmem:[%s45 + $0x30] sm:$0xff]
    %v1569 = vld [vmem:[%s45 + $0x38] sm:$0xff]
    %v1570 = vld [vmem:[%s45 + $0x40] sm:$0xff]
    %v1571 = vld [vmem:[%s45 + $0x48] sm:$0xff]
    %v1572 = vld [vmem:[%s45 + $0x50] sm:$0xff]
    %v1573 = vld [vmem:[%s45 + $0x58] sm:$0xff]
    %v1574 = vld [vmem:[%s45 + $0x60] sm:$0xff]
    %v1575 = vld [vmem:[%s45 + $0x68] sm:$0xff]
    %v1576 = vld [vmem:[%s45 + $0x70] sm:$0xff]
    %v1577 = vld [vmem:[%s45 + $0x78] sm:$0xff]
    %v1578 = vld [vmem:[%s45 + $0x80] sm:$0xff]
    %v1579 = vld [vmem:[%s45 + $0x88] sm:$0xff]
    %v1580 = vld [vmem:[%s45 + $0x90] sm:$0xff]
    %v1581 = vld [vmem:[%s45 + $0x98] sm:$0xff]
    %v1582 = vld [vmem:[%s45 + $0xa0] sm:$0xff]
    %v1583 = vld [vmem:[%s45 + $0xa8] sm:$0xff]
    %v1584 = vld [vmem:[%s45 + $0xb0] sm:$0xff]
    %v1585 = vld [vmem:[%s45 + $0xb8] sm:$0xff]
    %v1586 = vld [vmem:[%s45 + $0xc0] sm:$0xff]
    %v1587 = vld [vmem:[%s45 + $0xc8] sm:$0xff]
    %v1588 = vld [vmem:[%s45 + $0xd0] sm:$0xff]
    %v1589 = vld [vmem:[%s45 + $0xd8] sm:$0xff]
    %v1590 = vld [vmem:[%s45 + $0xe0] sm:$0xff]
    %v1591 = vld [vmem:[%s45 + $0xe8] sm:$0xff]
    %v1592 = vld [vmem:[%s45 + $0xf0] sm:$0xff]
    %v1593 = vld [vmem:[%s45 + $0xf8] sm:$0xff]
    %v1594 = vld [vmem:[%s45 + $0x100] sm:$0xff]
    %v1595 = vld [vmem:[%s45 + $0x108] sm:$0xff]
    %v1596 = vld [vmem:[%s45 + $0x110] sm:$0xff]
    %v1597 = vld [vmem:[%s45 + $0x118] sm:$0xff]
    %v1598 = vld [vmem:[%s45 + $0x120] sm:$0xff]
    %v1599 = vld [vmem:[%s45 + $0x128] sm:$0xff]
    %v1600 = vld [vmem:[%s45 + $0x130] sm:$0xff]
    %v1601 = vld [vmem:[%s45 + $0x138] sm:$0xff]
    %v1602 = vld [vmem:[%s45 + $0x140] sm:$0xff]
    %v1603 = vld [vmem:[%s45 + $0x148] sm:$0xff]
    %v1604 = vld [vmem:[%s45 + $0x150] sm:$0xff]
    %v1605 = vld [vmem:[%s45 + $0x158] sm:$0xff]
    %v1606 = vld [vmem:[%s45 + $0x160] sm:$0xff]
    %v1607 = vld [vmem:[%s45 + $0x168] sm:$0xff]
    %v1608 = vld [vmem:[%s45 + $0x170] sm:$0xff]
    %v1609 = vld [vmem:[%s45 + $0x178] sm:$0xff]
    %v1610 = vld [vmem:[%s45 + $0x180] sm:$0xff]
    %v1611 = vld [vmem:[%s45 + $0x188] sm:$0xff]
    %v1612 = vld [vmem:[#allocation24] sm:$0x3]
    %v1614 = vlaneseq
    %v1615 = vshrl.u32 %v1614, 7
    %v1616 = vsub.s32 0, %v1615
    %v1617 = vrot.slane %v1612, %v1616
    %v1618 = vlaneseq
    %v1619 = vshrl.u32 %v1618, 7
    %v1620 = vsub.s32 1, %v1619
    %v1621 = vrot.slane %v1612, %v1620
    %v1625 = vsel %vm722, %v1561, 0
    %1627 = vmatprep.subr.mxu0 %v1563
    %1628 = vmatpush1.msra.mxu0 %v1562
    %1629 = vmatprep.subr.mxu0 %v1565
    %1630 = vmatpush1.msra.mxu0 %v1564
    %1631 = vmatprep.subr.mxu0 %v1567
    %1632 = vmatpush1.msra.mxu0 %v1566
    %1633 = vmatprep.subr.mxu0 %v1569
    %1634 = vmatpush1.msra.mxu0 %v1568
    %1635 = vmatprep.subr.mxu0 %v1571
    %1636 = vmatpush1.msra.mxu0 %v1570
    %1637 = vmatprep.subr.mxu0 %v1573
    %1638 = vmatpush1.msra.mxu0 %v1572
    %1639 = vmatprep.subr.mxu0 %v1575
    %1640 = vmatpush1.msra.mxu0 %v1574
    %1641 = vmatprep.subr.mxu0 %v1577
    %1642 = vmatpush1.msra.mxu0 %v1576
    %1643 = vmatprep.subr.mxu0 %v1579
    %1644 = vmatpush1.msra.mxu0 %v1578
    %1645 = vmatprep.subr.mxu0 %v1581
    %1646 = vmatpush1.msra.mxu0 %v1580
    %1647 = vmatprep.subr.mxu0 %v1583
    %1648 = vmatpush1.msra.mxu0 %v1582
    %1649 = vmatprep.subr.mxu0 %v1585
    %1650 = vmatpush1.msra.mxu0 %v1584
    %1651 = vmatprep.subr.mxu0 %v1587
    %1652 = vmatpush1.msra.mxu0 %v1586
    %1653 = vmatprep.subr.mxu0 %v1589
    %1654 = vmatpush1.msra.mxu0 %v1588
    %1655 = vmatprep.subr.mxu0 %v1591
    %1656 = vmatpush1.msra.mxu0 %v1590
    %1657 = vmatprep.subr.mxu0 %v1593
    %1658 = vmatpush1.msra.mxu0 %v1592
    %1659 = vmatprep.subr.mxu0 %v1595
    %1660 = vmatpush1.msra.mxu0 %v1594
    %1661 = vmatprep.subr.mxu0 %v1597
    %1662 = vmatpush1.msra.mxu0 %v1596
    %1663 = vmatprep.subr.mxu0 %v1599
    %1664 = vmatpush1.msra.mxu0 %v1598
    %1665 = vmatprep.subr.mxu0 %v1601
    %1666 = vmatpush1.msra.mxu0 %v1600
    %1667 = vmatprep.subr.mxu0 %v1603
    %1668 = vmatpush1.msra.mxu0 %v1602
    %1669 = vmatprep.subr.mxu0 %v1605
    %1670 = vmatpush1.msra.mxu0 %v1604
    %1671 = vmatprep.subr.mxu0 %v1607
    %1672 = vmatpush1.msra.mxu0 %v1606
    %1673 = vmatprep.subr.mxu0 %v1609
    %1674 = vmatpush1.msra.mxu0 %v1608
    %1675 = vmatprep.subr.mxu0 %v1611
    %1676 = vmatpush1.msra.mxu0 %v1610
    %1677 = vmatprep.subr.mxu0 0.0
    %1678 = vmatpush1.msra.mxu0 0.0
    %1679 = vmatprep.subr.mxu0 0.0
    %1680 = vmatpush1.msra.mxu0 0.0
    %1681 = vmatprep.subr.mxu0 0.0
    %1682 = vmatpush1.msra.mxu0 0.0
    %1683 = vmatprep.subr.mxu0 0.0
    %1684 = vmatpush1.msra.mxu0 0.0
    %1685 = vmatprep.subr.mxu0 0.0
    %1686 = vmatpush1.msra.mxu0 0.0
    %1687 = vmatprep.subr.mxu0 0.0
    %1688 = vmatpush1.msra.mxu0 0.0
    %1689 = vmatprep.subr.mxu0 0.0
    %1690 = vmatpush1.msra.mxu0 0.0
    %1691 = vmatprep.mubr.f32.mxu0 %v1625
    %1692 = vmatmul.mubr.f32.gmra.mrb[0].mxu0 %v1560
    %v1693 = vpop.f32.mrb[0].mxu0
    %v1694 = vadd.f32 %v1617, %v1693
    %v1695 = vpop.f32.mrb[0].mxu0
    %v1696 = vadd.f32 %v1621, %v1695
    %1697 = vdwg.mxu0
    %v1698 = vmax.f32 %v1694, 0.0
    %v1699 = vmax.f32 %v1696, 0.0
    %v1700 = vld [vmem:[%s49] sm:$0xff]
    %v1701 = vld [vmem:[%s49 + $0x8] sm:$0xff]
    %v1702 = vld [vmem:[%s49 + $0x10] sm:$0xff]
    %v1703 = vld [vmem:[%s49 + $0x18] sm:$0xff]
    %v1704 = vld [vmem:[%s49 + $0x20] sm:$0xff]
    %v1705 = vld [vmem:[%s49 + $0x28] sm:$0xff]
    %v1706 = vld [vmem:[%s49 + $0x30] sm:$0xff]
    %v1707 = vld [vmem:[%s49 + $0x38] sm:$0xff]
    %v1708 = vld [vmem:[%s49 + $0x40] sm:$0xff]
    %v1709 = vld [vmem:[%s49 + $0x48] sm:$0xff]
    %v1710 = vld [vmem:[%s49 + $0x50] sm:$0xff]
    %v1711 = vld [vmem:[%s49 + $0x58] sm:$0xff]
    %v1712 = vld [vmem:[%s49 + $0x60] sm:$0xff]
    %v1713 = vld [vmem:[%s49 + $0x68] sm:$0xff]
    %v1714 = vld [vmem:[%s49 + $0x70] sm:$0xff]
    %v1715 = vld [vmem:[%s49 + $0x78] sm:$0xff]
    %v1716 = vld [vmem:[%s49 + $0x80] sm:$0xff]
    %v1717 = vld [vmem:[%s49 + $0x88] sm:$0xff]
    %v1718 = vld [vmem:[%s49 + $0x90] sm:$0xff]
    %v1719 = vld [vmem:[%s49 + $0x98] sm:$0xff]
    %v1720 = vld [vmem:[%s49 + $0xa0] sm:$0xff]
    %v1721 = vld [vmem:[%s49 + $0xa8] sm:$0xff]
    %v1722 = vld [vmem:[%s49 + $0xb0] sm:$0xff]
    %v1723 = vld [vmem:[%s49 + $0xb8] sm:$0xff]
    %v1724 = vld [vmem:[%s49 + $0xc0] sm:$0xff]
    %v1725 = vld [vmem:[#allocation25] sm:$0x1]
    %v1727 = vlaneseq
    %v1728 = vshrl.u32 %v1727, 7
    %v1729 = vsub.s32 0, %v1728
    %v1730 = vrot.slane %v1725, %v1729
    %v1733 = vsel %vm722, %v1699, 0
    %1735 = vmatprep.subr.mxu0 0.0
    %1736 = vmatpush1.msra.mxu0 %v1700
    %1737 = vmatprep.subr.mxu0 0.0
    %1738 = vmatpush1.msra.mxu0 %v1701
    %1739 = vmatprep.subr.mxu0 0.0
    %1740 = vmatpush1.msra.mxu0 %v1702
    %1741 = vmatprep.subr.mxu0 0.0
    %1742 = vmatpush1.msra.mxu0 %v1703
    %1743 = vmatprep.subr.mxu0 0.0
    %1744 = vmatpush1.msra.mxu0 %v1704
    %1745 = vmatprep.subr.mxu0 0.0
    %1746 = vmatpush1.msra.mxu0 %v1705
    %1747 = vmatprep.subr.mxu0 0.0
    %1748 = vmatpush1.msra.mxu0 %v1706
    %1749 = vmatprep.subr.mxu0 0.0
    %1750 = vmatpush1.msra.mxu0 %v1707
    %1751 = vmatprep.subr.mxu0 0.0
    %1752 = vmatpush1.msra.mxu0 %v1708
    %1753 = vmatprep.subr.mxu0 0.0
    %1754 = vmatpush1.msra.mxu0 %v1709
    %1755 = vmatprep.subr.mxu0 0.0
    %1756 = vmatpush1.msra.mxu0 %v1710
    %1757 = vmatprep.subr.mxu0 0.0
    %1758 = vmatpush1.msra.mxu0 %v1711
    %1759 = vmatprep.subr.mxu0 0.0
    %1760 = vmatpush1.msra.mxu0 %v1712
    %1761 = vmatprep.subr.mxu0 0.0
    %1762 = vmatpush1.msra.mxu0 %v1713
    %1763 = vmatprep.subr.mxu0 0.0
    %1764 = vmatpush1.msra.mxu0 %v1714
    %1765 = vmatprep.subr.mxu0 0.0
    %1766 = vmatpush1.msra.mxu0 %v1715
    %1767 = vmatprep.subr.mxu0 0.0
    %1768 = vmatpush1.msra.mxu0 %v1716
    %1769 = vmatprep.subr.mxu0 0.0
    %1770 = vmatpush1.msra.mxu0 %v1717
    %1771 = vmatprep.subr.mxu0 0.0
    %1772 = vmatpush1.msra.mxu0 %v1718
    %1773 = vmatprep.subr.mxu0 0.0
    %1774 = vmatpush1.msra.mxu0 %v1719
    %1775 = vmatprep.subr.mxu0 0.0
    %1776 = vmatpush1.msra.mxu0 %v1720
    %1777 = vmatprep.subr.mxu0 0.0
    %1778 = vmatpush1.msra.mxu0 %v1721
    %1779 = vmatprep.subr.mxu0 0.0
    %1780 = vmatpush1.msra.mxu0 %v1722
    %1781 = vmatprep.subr.mxu0 0.0
    %1782 = vmatpush1.msra.mxu0 %v1723
    %1783 = vmatprep.subr.mxu0 0.0
    %1784 = vmatpush1.msra.mxu0 %v1724
    %1785 = vmatprep.subr.mxu0 0.0
    %1786 = vmatpush1.msra.mxu0 0.0
    %1787 = vmatprep.subr.mxu0 0.0
    %1788 = vmatpush1.msra.mxu0 0.0
    %1789 = vmatprep.subr.mxu0 0.0
    %1790 = vmatpush1.msra.mxu0 0.0
    %1791 = vmatprep.subr.mxu0 0.0
    %1792 = vmatpush1.msra.mxu0 0.0
    %1793 = vmatprep.subr.mxu0 0.0
    %1794 = vmatpush1.msra.mxu0 0.0
    %1795 = vmatprep.subr.mxu0 0.0
    %1796 = vmatpush1.msra.mxu0 0.0
    %1797 = vmatprep.subr.mxu0 0.0
    %1798 = vmatpush1.msra.mxu0 0.0
    %1799 = vmatprep.mubr.f32.mxu0 %v1733
    %1800 = vmatmul.mubr.f32.gmra.mrb[0].mxu0 %v1698
    %v1801 = vpop.f32.mrb[0].mxu0
    %v1802 = vadd.f32 %v1730, %v1801
    %v1803 = vpop.f32.mrb[0].mxu0
    %1804 = vdwg.mxu0
    %v1805 = vld [vmem:[#allocation27] sm:$0xff]
    %v1806 = vld [vmem:[#allocation27 + $0x8] sm:$0xff]
    %v1807 = vld [vmem:[#allocation27 + $0x10] sm:$0xf]
    %v1808 = vld [vmem:[#allocation27 + $0x18] sm:$0xf]
    %v1809 = vld [vmem:[#allocation28] sm:$0x3]
    %v1811 = vlaneseq
    %v1812 = vshrl.u32 %v1811, 7
    %v1813 = vsub.s32 0, %v1812
    %v1814 = vrot.slane %v1809, %v1813
    %v1815 = vlaneseq
    %v1816 = vshrl.u32 %v1815, 7
    %v1817 = vsub.s32 1, %v1816
    %v1818 = vrot.slane %v1809, %v1817
    %v1822 = vsel %vm1026, %v1807, 0
    %v1825 = vsel %vm1026, %v1808, 0
    %1827 = vmatprep.subr.mxu0 %v1806
    %1828 = vmatpush1.msra.mxu0 %v1805
    %1829 = vmatprep.subr.mxu0 %v1825
    %1830 = vmatpush1.msra.mxu0 %v1822
    %1831 = vmatprep.subr.mxu0 0.0
    %1832 = vmatpush1.msra.mxu0 0.0
    %1833 = vmatprep.subr.mxu0 0.0
    %1834 = vmatpush1.msra.mxu0 0.0
    %1835 = vmatprep.subr.mxu0 0.0
    %1836 = vmatpush1.msra.mxu0 0.0
    %1837 = vmatprep.subr.mxu0 0.0
    %1838 = vmatpush1.msra.mxu0 0.0
    %1839 = vmatprep.subr.mxu0 0.0
    %1840 = vmatpush1.msra.mxu0 0.0
    %1841 = vmatprep.subr.mxu0 0.0
    %1842 = vmatpush1.msra.mxu0 0.0
    %1843 = vmatprep.subr.mxu0 0.0
    %1844 = vmatpush1.msra.mxu0 0.0
    %1845 = vmatprep.subr.mxu0 0.0
    %1846 = vmatpush1.msra.mxu0 0.0
    %1847 = vmatprep.subr.mxu0 0.0
    %1848 = vmatpush1.msra.mxu0 0.0
    %1849 = vmatprep.subr.mxu0 0.0
    %1850 = vmatpush1.msra.mxu0 0.0
    %1851 = vmatprep.subr.mxu0 0.0
    %1852 = vmatpush1.msra.mxu0 0.0
    %1853 = vmatprep.subr.mxu0 0.0
    %1854 = vmatpush1.msra.mxu0 0.0
    %1855 = vmatprep.subr.mxu0 0.0
    %1856 = vmatpush1.msra.mxu0 0.0
    %1857 = vmatprep.subr.mxu0 0.0
    %1858 = vmatpush1.msra.mxu0 0.0
    %1859 = vmatprep.subr.mxu0 0.0
    %1860 = vmatpush1.msra.mxu0 0.0
    %1861 = vmatprep.subr.mxu0 0.0
    %1862 = vmatpush1.msra.mxu0 0.0
    %1863 = vmatprep.subr.mxu0 0.0
    %1864 = vmatpush1.msra.mxu0 0.0
    %1865 = vmatprep.subr.mxu0 0.0
    %1866 = vmatpush1.msra.mxu0 0.0
    %1867 = vmatprep.subr.mxu0 0.0
    %1868 = vmatpush1.msra.mxu0 0.0
    %1869 = vmatprep.subr.mxu0 0.0
    %1870 = vmatpush1.msra.mxu0 0.0
    %1871 = vmatprep.subr.mxu0 0.0
    %1872 = vmatpush1.msra.mxu0 0.0
    %1873 = vmatprep.subr.mxu0 0.0
    %1874 = vmatpush1.msra.mxu0 0.0
    %1875 = vmatprep.subr.mxu0 0.0
    %1876 = vmatpush1.msra.mxu0 0.0
    %1877 = vmatprep.subr.mxu0 0.0
    %1878 = vmatpush1.msra.mxu0 0.0
    %1879 = vmatprep.subr.mxu0 0.0
    %1880 = vmatpush1.msra.mxu0 0.0
    %1881 = vmatprep.subr.mxu0 0.0
    %1882 = vmatpush1.msra.mxu0 0.0
    %1883 = vmatprep.subr.mxu0 0.0
    %1884 = vmatpush1.msra.mxu0 0.0
    %1885 = vmatprep.subr.mxu0 0.0
    %1886 = vmatpush1.msra.mxu0 0.0
    %1887 = vmatprep.subr.mxu0 0.0
    %1888 = vmatpush1.msra.mxu0 0.0
    %1889 = vmatprep.subr.mxu0 0.0
    %1890 = vmatpush1.msra.mxu0 0.0
    %1891 = vmatprep.mubr.f32.mxu0 0.0
    %1892 = vmatmul.mubr.f32.gmra.mrb[0].mxu0 %v1024
    %v1893 = vpop.f32.mrb[0].mxu0
    %v1894 = vadd.f32 %v1814, %v1893
    %v1895 = vpop.f32.mrb[0].mxu0
    %v1896 = vadd.f32 %v1818, %v1895
    %1897 = vdwg.mxu0
    %v1898 = vmax.f32 %v1894, 0.0
    %v1899 = vmax.f32 %v1896, 0.0
    %v1900 = vld [vmem:[%s57] sm:$0xff]
    %v1901 = vld [vmem:[%s57 + $0x8] sm:$0xff]
    %v1902 = vld [vmem:[%s57 + $0x10] sm:$0xff]
    %v1903 = vld [vmem:[%s57 + $0x18] sm:$0xff]
    %v1904 = vld [vmem:[%s57 + $0x20] sm:$0xff]
    %v1905 = vld [vmem:[%s57 + $0x28] sm:$0xff]
    %v1906 = vld [vmem:[%s57 + $0x30] sm:$0xff]
    %v1907 = vld [vmem:[%s57 + $0x38] sm:$0xff]
    %v1908 = vld [vmem:[%s57 + $0x40] sm:$0xff]
    %v1909 = vld [vmem:[%s57 + $0x48] sm:$0xff]
    %v1910 = vld [vmem:[%s57 + $0x50] sm:$0xff]
    %v1911 = vld [vmem:[%s57 + $0x58] sm:$0xff]
    %v1912 = vld [vmem:[%s57 + $0x60] sm:$0xff]
    %v1913 = vld [vmem:[%s57 + $0x68] sm:$0xff]
    %v1914 = vld [vmem:[%s57 + $0x70] sm:$0xff]
    %v1915 = vld [vmem:[%s57 + $0x78] sm:$0xff]
    %v1916 = vld [vmem:[%s57 + $0x80] sm:$0xff]
    %v1917 = vld [vmem:[%s57 + $0x88] sm:$0xff]
    %v1918 = vld [vmem:[%s57 + $0x90] sm:$0xff]
    %v1919 = vld [vmem:[%s57 + $0x98] sm:$0xff]
    %v1920 = vld [vmem:[%s57 + $0xa0] sm:$0xff]
    %v1921 = vld [vmem:[%s57 + $0xa8] sm:$0xff]
    %v1922 = vld [vmem:[%s57 + $0xb0] sm:$0xff]
    %v1923 = vld [vmem:[%s57 + $0xb8] sm:$0xff]
    %v1924 = vld [vmem:[%s57 + $0xc0] sm:$0xff]
    %v1925 = vld [vmem:[%s57 + $0xc8] sm:$0xff]
    %v1926 = vld [vmem:[%s57 + $0xd0] sm:$0xff]
    %v1927 = vld [vmem:[%s57 + $0xd8] sm:$0xff]
    %v1928 = vld [vmem:[%s57 + $0xe0] sm:$0xff]
    %v1929 = vld [vmem:[%s57 + $0xe8] sm:$0xff]
    %v1930 = vld [vmem:[%s57 + $0xf0] sm:$0xff]
    %v1931 = vld [vmem:[%s57 + $0xf8] sm:$0xff]
    %v1932 = vld [vmem:[%s57 + $0x100] sm:$0xff]
    %v1933 = vld [vmem:[%s57 + $0x108] sm:$0xff]
    %v1934 = vld [vmem:[%s57 + $0x110] sm:$0xff]
    %v1935 = vld [vmem:[%s57 + $0x118] sm:$0xff]
    %v1936 = vld [vmem:[%s57 + $0x120] sm:$0xff]
    %v1937 = vld [vmem:[%s57 + $0x128] sm:$0xff]
    %v1938 = vld [vmem:[%s57 + $0x130] sm:$0xff]
    %v1939 = vld [vmem:[%s57 + $0x138] sm:$0xff]
    %v1940 = vld [vmem:[%s57 + $0x140] sm:$0xff]
    %v1941 = vld [vmem:[%s57 + $0x148] sm:$0xff]
    %v1942 = vld [vmem:[%s57 + $0x150] sm:$0xff]
    %v1943 = vld [vmem:[%s57 + $0x158] sm:$0xff]
    %v1944 = vld [vmem:[%s57 + $0x160] sm:$0xff]
    %v1945 = vld [vmem:[%s57 + $0x168] sm:$0xff]
    %v1946 = vld [vmem:[%s57 + $0x170] sm:$0xff]
    %v1947 = vld [vmem:[%s57 + $0x178] sm:$0xff]
    %v1948 = vld [vmem:[%s57 + $0x180] sm:$0xff]
    %v1949 = vld [vmem:[%s57 + $0x188] sm:$0xff]
    %v1950 = vld [vmem:[#allocation30] sm:$0x3]
    %v1952 = vlaneseq
    %v1953 = vshrl.u32 %v1952, 7
    %v1954 = vsub.s32 0, %v1953
    %v1955 = vrot.slane %v1950, %v1954
    %v1956 = vlaneseq
    %v1957 = vshrl.u32 %v1956, 7
    %v1958 = vsub.s32 1, %v1957
    %v1959 = vrot.slane %v1950, %v1958
    %v1963 = vsel %vm722, %v1899, 0
    %1965 = vmatprep.subr.mxu0 %v1901
    %1966 = vmatpush1.msra.mxu0 %v1900
    %1967 = vmatprep.subr.mxu0 %v1903
    %1968 = vmatpush1.msra.mxu0 %v1902
    %1969 = vmatprep.subr.mxu0 %v1905
    %1970 = vmatpush1.msra.mxu0 %v1904
    %1971 = vmatprep.subr.mxu0 %v1907
    %1972 = vmatpush1.msra.mxu0 %v1906
    %1973 = vmatprep.subr.mxu0 %v1909
    %1974 = vmatpush1.msra.mxu0 %v1908
    %1975 = vmatprep.subr.mxu0 %v1911
    %1976 = vmatpush1.msra.mxu0 %v1910
    %1977 = vmatprep.subr.mxu0 %v1913
    %1978 = vmatpush1.msra.mxu0 %v1912
    %1979 = vmatprep.subr.mxu0 %v1915
    %1980 = vmatpush1.msra.mxu0 %v1914
    %1981 = vmatprep.subr.mxu0 %v1917
    %1982 = vmatpush1.msra.mxu0 %v1916
    %1983 = vmatprep.subr.mxu0 %v1919
    %1984 = vmatpush1.msra.mxu0 %v1918
    %1985 = vmatprep.subr.mxu0 %v1921
    %1986 = vmatpush1.msra.mxu0 %v1920
    %1987 = vmatprep.subr.mxu0 %v1923
    %1988 = vmatpush1.msra.mxu0 %v1922
    %1989 = vmatprep.subr.mxu0 %v1925
    %1990 = vmatpush1.msra.mxu0 %v1924
    %1991 = vmatprep.subr.mxu0 %v1927
    %1992 = vmatpush1.msra.mxu0 %v1926
    %1993 = vmatprep.subr.mxu0 %v1929
    %1994 = vmatpush1.msra.mxu0 %v1928
    %1995 = vmatprep.subr.mxu0 %v1931
    %1996 = vmatpush1.msra.mxu0 %v1930
    %1997 = vmatprep.subr.mxu0 %v1933
    %1998 = vmatpush1.msra.mxu0 %v1932
    %1999 = vmatprep.subr.mxu0 %v1935
    %2000 = vmatpush1.msra.mxu0 %v1934
    %2001 = vmatprep.subr.mxu0 %v1937
    %2002 = vmatpush1.msra.mxu0 %v1936
    %2003 = vmatprep.subr.mxu0 %v1939
    %2004 = vmatpush1.msra.mxu0 %v1938
    %2005 = vmatprep.subr.mxu0 %v1941
    %2006 = vmatpush1.msra.mxu0 %v1940
    %2007 = vmatprep.subr.mxu0 %v1943
    %2008 = vmatpush1.msra.mxu0 %v1942
    %2009 = vmatprep.subr.mxu0 %v1945
    %2010 = vmatpush1.msra.mxu0 %v1944
    %2011 = vmatprep.subr.mxu0 %v1947
    %2012 = vmatpush1.msra.mxu0 %v1946
    %2013 = vmatprep.subr.mxu0 %v1949
    %2014 = vmatpush1.msra.mxu0 %v1948
    %2015 = vmatprep.subr.mxu0 0.0
    %2016 = vmatpush1.msra.mxu0 0.0
    %2017 = vmatprep.subr.mxu0 0.0
    %2018 = vmatpush1.msra.mxu0 0.0
    %2019 = vmatprep.subr.mxu0 0.0
    %2020 = vmatpush1.msra.mxu0 0.0
    %2021 = vmatprep.subr.mxu0 0.0
    %2022 = vmatpush1.msra.mxu0 0.0
    %2023 = vmatprep.subr.mxu0 0.0
    %2024 = vmatpush1.msra.mxu0 0.0
    %2025 = vmatprep.subr.mxu0 0.0
    %2026 = vmatpush1.msra.mxu0 0.0
    %2027 = vmatprep.subr.mxu0 0.0
    %2028 = vmatpush1.msra.mxu0 0.0
    %2029 = vmatprep.mubr.f32.mxu0 %v1963
    %2030 = vmatmul.mubr.f32.gmra.mrb[0].mxu0 %v1898
    %v2031 = vpop.f32.mrb[0].mxu0
    %v2032 = vadd.f32 %v1955, %v2031
    %v2033 = vpop.f32.mrb[0].mxu0
    %v2034 = vadd.f32 %v1959, %v2033
    %2035 = vdwg.mxu0
    %v2036 = vmax.f32 %v2032, 0.0
    %v2037 = vmax.f32 %v2034, 0.0
    %v2038 = vld [vmem:[%s61] sm:$0xff]
    %v2039 = vld [vmem:[%s61 + $0x8] sm:$0xff]
    %v2040 = vld [vmem:[%s61 + $0x10] sm:$0xff]
    %v2041 = vld [vmem:[%s61 + $0x18] sm:$0xff]
    %v2042 = vld [vmem:[%s61 + $0x20] sm:$0xff]
    %v2043 = vld [vmem:[%s61 + $0x28] sm:$0xff]
    %v2044 = vld [vmem:[%s61 + $0x30] sm:$0xff]
    %v2045 = vld [vmem:[%s61 + $0x38] sm:$0xff]
    %v2046 = vld [vmem:[%s61 + $0x40] sm:$0xff]
    %v2047 = vld [vmem:[%s61 + $0x48] sm:$0xff]
    %v2048 = vld [vmem:[%s61 + $0x50] sm:$0xff]
    %v2049 = vld [vmem:[%s61 + $0x58] sm:$0xff]
    %v2050 = vld [vmem:[%s61 + $0x60] sm:$0xff]
    %v2051 = vld [vmem:[%s61 + $0x68] sm:$0xff]
    %v2052 = vld [vmem:[%s61 + $0x70] sm:$0xff]
    %v2053 = vld [vmem:[%s61 + $0x78] sm:$0xff]
    %v2054 = vld [vmem:[%s61 + $0x80] sm:$0xff]
    %v2055 = vld [vmem:[%s61 + $0x88] sm:$0xff]
    %v2056 = vld [vmem:[%s61 + $0x90] sm:$0xff]
    %v2057 = vld [vmem:[%s61 + $0x98] sm:$0xff]
    %v2058 = vld [vmem:[%s61 + $0xa0] sm:$0xff]
    %v2059 = vld [vmem:[%s61 + $0xa8] sm:$0xff]
    %v2060 = vld [vmem:[%s61 + $0xb0] sm:$0xff]
    %v2061 = vld [vmem:[%s61 + $0xb8] sm:$0xff]
    %v2062 = vld [vmem:[%s61 + $0xc0] sm:$0xff]
    %v2063 = vld [vmem:[#allocation31] sm:$0x1]
    %v2065 = vlaneseq
    %v2066 = vshrl.u32 %v2065, 7
    %v2067 = vsub.s32 0, %v2066
    %v2068 = vrot.slane %v2063, %v2067
    %v2071 = vsel %vm722, %v2037, 0
    %2073 = vmatprep.subr.mxu0 0.0
    %2074 = vmatpush1.msra.mxu0 %v2038
    %2075 = vmatprep.subr.mxu0 0.0
    %2076 = vmatpush1.msra.mxu0 %v2039
    %2077 = vmatprep.subr.mxu0 0.0
    %2078 = vmatpush1.msra.mxu0 %v2040
    %2079 = vmatprep.subr.mxu0 0.0
    %2080 = vmatpush1.msra.mxu0 %v2041
    %2081 = vmatprep.subr.mxu0 0.0
    %2082 = vmatpush1.msra.mxu0 %v2042
    %2083 = vmatprep.subr.mxu0 0.0
    %2084 = vmatpush1.msra.mxu0 %v2043
    %2085 = vmatprep.subr.mxu0 0.0
    %2086 = vmatpush1.msra.mxu0 %v2044
    %2087 = vmatprep.subr.mxu0 0.0
    %2088 = vmatpush1.msra.mxu0 %v2045
    %2089 = vmatprep.subr.mxu0 0.0
    %2090 = vmatpush1.msra.mxu0 %v2046
    %2091 = vmatprep.subr.mxu0 0.0
    %2092 = vmatpush1.msra.mxu0 %v2047
    %2093 = vmatprep.subr.mxu0 0.0
    %2094 = vmatpush1.msra.mxu0 %v2048
    %2095 = vmatprep.subr.mxu0 0.0
    %2096 = vmatpush1.msra.mxu0 %v2049
    %2097 = vmatprep.subr.mxu0 0.0
    %2098 = vmatpush1.msra.mxu0 %v2050
    %2099 = vmatprep.subr.mxu0 0.0
    %2100 = vmatpush1.msra.mxu0 %v2051
    %2101 = vmatprep.subr.mxu0 0.0
    %2102 = vmatpush1.msra.mxu0 %v2052
    %2103 = vmatprep.subr.mxu0 0.0
    %2104 = vmatpush1.msra.mxu0 %v2053
    %2105 = vmatprep.subr.mxu0 0.0
    %2106 = vmatpush1.msra.mxu0 %v2054
    %2107 = vmatprep.subr.mxu0 0.0
    %2108 = vmatpush1.msra.mxu0 %v2055
    %2109 = vmatprep.subr.mxu0 0.0
    %2110 = vmatpush1.msra.mxu0 %v2056
    %2111 = vmatprep.subr.mxu0 0.0
    %2112 = vmatpush1.msra.mxu0 %v2057
    %2113 = vmatprep.subr.mxu0 0.0
    %2114 = vmatpush1.msra.mxu0 %v2058
    %2115 = vmatprep.subr.mxu0 0.0
    %2116 = vmatpush1.msra.mxu0 %v2059
    %2117 = vmatprep.subr.mxu0 0.0
    %2118 = vmatpush1.msra.mxu0 %v2060
    %2119 = vmatprep.subr.mxu0 0.0
    %2120 = vmatpush1.msra.mxu0 %v2061
    %2121 = vmatprep.subr.mxu0 0.0
    %2122 = vmatpush1.msra.mxu0 %v2062
    %2123 = vmatprep.subr.mxu0 0.0
    %2124 = vmatpush1.msra.mxu0 0.0
    %2125 = vmatprep.subr.mxu0 0.0
    %2126 = vmatpush1.msra.mxu0 0.0
    %2127 = vmatprep.subr.mxu0 0.0
    %2128 = vmatpush1.msra.mxu0 0.0
    %2129 = vmatprep.subr.mxu0 0.0
    %2130 = vmatpush1.msra.mxu0 0.0
    %2131 = vmatprep.subr.mxu0 0.0
    %2132 = vmatpush1.msra.mxu0 0.0
    %2133 = vmatprep.subr.mxu0 0.0
    %2134 = vmatpush1.msra.mxu0 0.0
    %2135 = vmatprep.subr.mxu0 0.0
    %2136 = vmatpush1.msra.mxu0 0.0
    %2137 = vmatprep.mubr.f32.mxu0 %v2071
    %2138 = vmatmul.mubr.f32.gmra.mrb[0].mxu0 %v2036
    %v2139 = vpop.f32.mrb[0].mxu0
    %v2140 = vadd.f32 %v2068, %v2139
    %v2141 = vpop.f32.mrb[0].mxu0
    %2142 = vdwg.mxu0
    %v2143 = vld [vmem:[#allocation33] sm:$0xff]
    %v2144 = vld [vmem:[#allocation33 + $0x8] sm:$0xff]
    %v2145 = vld [vmem:[#allocation33 + $0x10] sm:$0xff]
    %v2146 = vld [vmem:[#allocation33 + $0x18] sm:$0xff]
    %v2147 = vld [vmem:[#allocation33 + $0x20] sm:$0xff]
    %v2148 = vld [vmem:[#allocation33 + $0x28] sm:$0xff]
    %v2149 = vld [vmem:[#allocation33 + $0x30] sm:$0xff]
    %v2150 = vld [vmem:[#allocation33 + $0x38] sm:$0xff]
    %v2151 = vld [vmem:[#allocation33 + $0x40] sm:$0xff]
    %v2152 = vld [vmem:[#allocation33 + $0x48] sm:$0xff]
    %v2153 = vld [vmem:[#allocation33 + $0x50] sm:$0xff]
    %v2154 = vld [vmem:[#allocation33 + $0x58] sm:$0xff]
    %v2155 = vld [vmem:[#allocation33 + $0x60] sm:$0x3]
    %v2156 = vld [vmem:[#allocation33 + $0x68] sm:$0x3]
    %v2157 = vld [vmem:[#allocation34] sm:$0xff]
    %v2158 = vld [vmem:[#allocation34 + $0x8] sm:$0xff]
    %v2159 = vld [vmem:[#allocation34 + $0x10] sm:$0xff]
    %v2160 = vld [vmem:[#allocation34 + $0x18] sm:$0xff]
    %v2161 = vld [vmem:[#allocation34 + $0x20] sm:$0xff]
    %v2162 = vld [vmem:[#allocation34 + $0x28] sm:$0xff]
    %v2163 = vld [vmem:[#allocation34 + $0x30] sm:$0xff]
    %v2164 = vld [vmem:[#allocation34 + $0x38] sm:$0xff]
    %v2165 = vld [vmem:[#allocation34 + $0x40] sm:$0xff]
    %v2166 = vld [vmem:[#allocation34 + $0x48] sm:$0xff]
    %v2167 = vld [vmem:[#allocation34 + $0x50] sm:$0xff]
    %v2168 = vld [vmem:[#allocation34 + $0x58] sm:$0xff]
    %v2169 = vld [vmem:[#allocation34 + $0x60] sm:$0x3]
    %v2170 = vld [vmem:[#allocation34 + $0x68] sm:$0x3]
    %vm2171 = vcmask 408576
    %v2173 = vsel %vm2171, %v2140, 0
    %vm2175 = vcmask 1041408
    %v2177 = vsel %vm2175, %v2169, 0
    %v2180 = vsel %vm2175, %v2170, 0
    %2182 = vmatprep.subr.mxu0 %v2158
    %2183 = vmatpush1.msra.mxu0 %v2157
    %2184 = vmatprep.subr.mxu0 %v2160
    %2185 = vmatpush1.msra.mxu0 %v2159
    %2186 = vmatprep.subr.mxu0 %v2162
    %2187 = vmatpush1.msra.mxu0 %v2161
    %2188 = vmatprep.subr.mxu0 %v2164
    %2189 = vmatpush1.msra.mxu0 %v2163
    %2190 = vmatprep.subr.mxu0 %v2166
    %2191 = vmatpush1.msra.mxu0 %v2165
    %2192 = vmatprep.subr.mxu0 %v2168
    %2193 = vmatpush1.msra.mxu0 %v2167
    %2194 = vmatprep.subr.mxu0 %v2180
    %2195 = vmatpush1.msra.mxu0 %v2177
    %2196 = vmatprep.subr.mxu0 0.0
    %2197 = vmatpush1.msra.mxu0 0.0
    %2198 = vmatprep.subr.mxu0 0.0
    %2199 = vmatpush1.msra.mxu0 0.0
    %2200 = vmatprep.subr.mxu0 0.0
    %2201 = vmatpush1.msra.mxu0 0.0
    %2202 = vmatprep.subr.mxu0 0.0
    %2203 = vmatpush1.msra.mxu0 0.0
    %2204 = vmatprep.subr.mxu0 0.0
    %2205 = vmatpush1.msra.mxu0 0.0
    %2206 = vmatprep.subr.mxu0 0.0
    %2207 = vmatpush1.msra.mxu0 0.0
    %2208 = vmatprep.subr.mxu0 0.0
    %2209 = vmatpush1.msra.mxu0 0.0
    %2210 = vmatprep.subr.mxu0 0.0
    %2211 = vmatpush1.msra.mxu0 0.0
    %2212 = vmatprep.subr.mxu0 0.0
    %2213 = vmatpush1.msra.mxu0 0.0
    %2214 = vmatprep.subr.mxu0 0.0
    %2215 = vmatpush1.msra.mxu0 0.0
    %2216 = vmatprep.subr.mxu0 0.0
    %2217 = vmatpush1.msra.mxu0 0.0
    %2218 = vmatprep.subr.mxu0 0.0
    %2219 = vmatpush1.msra.mxu0 0.0
    %2220 = vmatprep.subr.mxu0 0.0
    %2221 = vmatpush1.msra.mxu0 0.0
    %2222 = vmatprep.subr.mxu0 0.0
    %2223 = vmatpush1.msra.mxu0 0.0
    %2224 = vmatprep.subr.mxu0 0.0
    %2225 = vmatpush1.msra.mxu0 0.0
    %2226 = vmatprep.subr.mxu0 0.0
    %2227 = vmatpush1.msra.mxu0 0.0
    %2228 = vmatprep.subr.mxu0 0.0
    %2229 = vmatpush1.msra.mxu0 0.0
    %2230 = vmatprep.subr.mxu0 0.0
    %2231 = vmatpush1.msra.mxu0 0.0
    %2232 = vmatprep.subr.mxu0 0.0
    %2233 = vmatpush1.msra.mxu0 0.0
    %2234 = vmatprep.subr.mxu0 0.0
    %2235 = vmatpush1.msra.mxu0 0.0
    %2236 = vmatprep.subr.mxu0 0.0
    %2237 = vmatpush1.msra.mxu0 0.0
    %2238 = vmatprep.subr.mxu0 0.0
    %2239 = vmatpush1.msra.mxu0 0.0
    %2240 = vmatprep.subr.mxu0 0.0
    %2241 = vmatpush1.msra.mxu0 0.0
    %2242 = vmatprep.subr.mxu0 0.0
    %2243 = vmatpush1.msra.mxu0 0.0
    %2244 = vmatprep.subr.mxu0 0.0
    %2245 = vmatpush1.msra.mxu0 0.0
    %2246 = vmatprep.mubr.f32.mxu0 0.0
    %2247 = vmatmul.mubr.f32.gmra.mrb[0].mxu0 %v2173
    %v2248 = vpop.f32.mrb[0].mxu0
    %v2249 = vadd.f32 0.0, %v2248
    %v2250 = vpop.f32.mrb[0].mxu0
    %v2251 = vadd.f32 0.0, %v2250
    %2252 = vdwg.mxu0
    %v2254 = vsel %vm2171, %v1802, 0
    %v2257 = vsel %vm2175, %v2155, 0
    %v2260 = vsel %vm2175, %v2156, 0
    %2262 = vmatprep.subr.mxu0 %v2144
    %2263 = vmatpush1.msra.mxu0 %v2143
    %2264 = vmatprep.subr.mxu0 %v2146
    %2265 = vmatpush1.msra.mxu0 %v2145
    %2266 = vmatprep.subr.mxu0 %v2148
    %2267 = vmatpush1.msra.mxu0 %v2147
    %2268 = vmatprep.subr.mxu0 %v2150
    %2269 = vmatpush1.msra.mxu0 %v2149
    %2270 = vmatprep.subr.mxu0 %v2152
    %2271 = vmatpush1.msra.mxu0 %v2151
    %2272 = vmatprep.subr.mxu0 %v2154
    %2273 = vmatpush1.msra.mxu0 %v2153
    %2274 = vmatprep.subr.mxu0 %v2260
    %2275 = vmatpush1.msra.mxu0 %v2257
    %2276 = vmatprep.subr.mxu0 0.0
    %2277 = vmatpush1.msra.mxu0 0.0
    %2278 = vmatprep.subr.mxu0 0.0
    %2279 = vmatpush1.msra.mxu0 0.0
    %2280 = vmatprep.subr.mxu0 0.0
    %2281 = vmatpush1.msra.mxu0 0.0
    %2282 = vmatprep.subr.mxu0 0.0
    %2283 = vmatpush1.msra.mxu0 0.0
    %2284 = vmatprep.subr.mxu0 0.0
    %2285 = vmatpush1.msra.mxu0 0.0
    %2286 = vmatprep.subr.mxu0 0.0
    %2287 = vmatpush1.msra.mxu0 0.0
    %2288 = vmatprep.subr.mxu0 0.0
    %2289 = vmatpush1.msra.mxu0 0.0
    %2290 = vmatprep.subr.mxu0 0.0
    %2291 = vmatpush1.msra.mxu0 0.0
    %2292 = vmatprep.subr.mxu0 0.0
    %2293 = vmatpush1.msra.mxu0 0.0
    %2294 = vmatprep.subr.mxu0 0.0
    %2295 = vmatpush1.msra.mxu0 0.0
    %2296 = vmatprep.subr.mxu0 0.0
    %2297 = vmatpush1.msra.mxu0 0.0
    %2298 = vmatprep.subr.mxu0 0.0
    %2299 = vmatpush1.msra.mxu0 0.0
    %2300 = vmatprep.subr.mxu0 0.0
    %2301 = vmatpush1.msra.mxu0 0.0
    %2302 = vmatprep.subr.mxu0 0.0
    %2303 = vmatpush1.msra.mxu0 0.0
    %2304 = vmatprep.subr.mxu0 0.0
    %2305 = vmatpush1.msra.mxu0 0.0
    %2306 = vmatprep.subr.mxu0 0.0
    %2307 = vmatpush1.msra.mxu0 0.0
    %2308 = vmatprep.subr.mxu0 0.0
    %2309 = vmatpush1.msra.mxu0 0.0
    %2310 = vmatprep.subr.mxu0 0.0
    %2311 = vmatpush1.msra.mxu0 0.0
    %2312 = vmatprep.subr.mxu0 0.0
    %2313 = vmatpush1.msra.mxu0 0.0
    %2314 = vmatprep.subr.mxu0 0.0
    %2315 = vmatpush1.msra.mxu0 0.0
    %2316 = vmatprep.subr.mxu0 0.0
    %2317 = vmatpush1.msra.mxu0 0.0
    %2318 = vmatprep.subr.mxu0 0.0
    %2319 = vmatpush1.msra.mxu0 0.0
    %2320 = vmatprep.subr.mxu0 0.0
    %2321 = vmatpush1.msra.mxu0 0.0
    %2322 = vmatprep.subr.mxu0 0.0
    %2323 = vmatpush1.msra.mxu0 0.0
    %2324 = vmatprep.subr.mxu0 0.0
    %2325 = vmatpush1.msra.mxu0 0.0
    %2326 = vmatprep.mubr.f32.mxu0 0.0
    %2327 = vmatmul.mubr.f32.gmra.mrb[0].mxu0 %v2254
    %v2328 = vpop.f32.mrb[0].mxu0
    %v2329 = vadd.f32 %v2249, %v2328
    %v2330 = vpop.f32.mrb[0].mxu0
    %v2331 = vadd.f32 %v2251, %v2330
    %2332 = vdwg.mxu0
    %v2333 = vld [vmem:[#allocation36] sm:$0x3]
    %v2335 = vlaneseq
    %v2336 = vshrl.u32 %v2335, 7
    %v2337 = vsub.s32 0, %v2336
    %v2338 = vrot.slane %v2333, %v2337
    %v2339 = vlaneseq
    %v2340 = vshrl.u32 %v2339, 7
    %v2341 = vsub.s32 1, %v2340
    %v2342 = vrot.slane %v2333, %v2341
    %v2345 = vadd.f32 %v2329, %v2338
    %v2346 = vadd.f32 %v2331, %v2342
    %v2347 = vld [vmem:[#allocation4] sm:$0xf]
    %v2348 = vmul.f32 %v2347, %v1472
    %v2349 = vadd.f32 %v1463, %v2348
    %v2350 = vmul.f32 %v2347, %v2347
    %v2351 = vadd.f32 %v1465, %v2350
    %v2352 = vadd.f32 %v2351, 1.837877
    %vm2353 = vcmask 60416
    %v2354 = vsel %vm2353, %v2352, 0.0
    %2355 = vadd.xlane.f32.xlu0 %v2354
    %v2356 = vpop.xlane.xlu0 %2355
    %v2357 = vmul.f32 %v2356, -0.5
    %v2358 = vmul.f32 %v2349, %v2349
    %v2359 = vadd.f32 %v2358, 1.837877
    %v2360 = vsel %vm2353, %v2359, 0.0
    %2361 = vadd.xlane.f32.xlu0 %v2360
    %v2362 = vpop.xlane.xlu0 %2361
    %v2363 = vmul.f32 %v2362, -0.5
    %v2364 = vld [vmem:[%s69] sm:$0xff]
    %v2365 = vld [vmem:[%s69 + $0x8] sm:$0xff]
    %vm2366 = vcmask 64512
    %v2368 = vsel %vm2366, %v2349, 0
    %2370 = vmatprep.subr.mxu0 %v2365
    %2371 = vmatpush1.msra.mxu0 %v2364
    %2372 = vmatprep.subr.mxu0 0.0
    %2373 = vmatpush1.msra.mxu0 0.0
    %2374 = vmatprep.subr.mxu0 0.0
    %2375 = vmatpush1.msra.mxu0 0.0
    %2376 = vmatprep.subr.mxu0 0.0
    %2377 = vmatpush1.msra.mxu0 0.0
    %2378 = vmatprep.subr.mxu0 0.0
    %2379 = vmatpush1.msra.mxu0 0.0
    %2380 = vmatprep.subr.mxu0 0.0
    %2381 = vmatpush1.msra.mxu0 0.0
    %2382 = vmatprep.subr.mxu0 0.0
    %2383 = vmatpush1.msra.mxu0 0.0
    %2384 = vmatprep.subr.mxu0 0.0
    %2385 = vmatpush1.msra.mxu0 0.0
    %2386 = vmatprep.subr.mxu0 0.0
    %2387 = vmatpush1.msra.mxu0 0.0
    %2388 = vmatprep.subr.mxu0 0.0
    %2389 = vmatpush1.msra.mxu0 0.0
    %2390 = vmatprep.subr.mxu0 0.0
    %2391 = vmatpush1.msra.mxu0 0.0
    %2392 = vmatprep.subr.mxu0 0.0
    %2393 = vmatpush1.msra.mxu0 0.0
    %2394 = vmatprep.subr.mxu0 0.0
    %2395 = vmatpush1.msra.mxu0 0.0
    %2396 = vmatprep.subr.mxu0 0.0
    %2397 = vmatpush1.msra.mxu0 0.0
    %2398 = vmatprep.subr.mxu0 0.0
    %2399 = vmatpush1.msra.mxu0 0.0
    %2400 = vmatprep.subr.mxu0 0.0
    %2401 = vmatpush1.msra.mxu0 0.0
    %2402 = vmatprep.subr.mxu0 0.0
    %2403 = vmatpush1.msra.mxu0 0.0
    %2404 = vmatprep.subr.mxu0 0.0
    %2405 = vmatpush1.msra.mxu0 0.0
    %2406 = vmatprep.subr.mxu0 0.0
    %2407 = vmatpush1.msra.mxu0 0.0
    %2408 = vmatprep.subr.mxu0 0.0
    %2409 = vmatpush1.msra.mxu0 0.0
    %2410 = vmatprep.subr.mxu0 0.0
    %2411 = vmatpush1.msra.mxu0 0.0
    %2412 = vmatprep.subr.mxu0 0.0
    %2413 = vmatpush1.msra.mxu0 0.0
    %2414 = vmatprep.subr.mxu0 0.0
    %2415 = vmatpush1.msra.mxu0 0.0
    %2416 = vmatprep.subr.mxu0 0.0
    %2417 = vmatpush1.msra.mxu0 0.0
    %2418 = vmatprep.subr.mxu0 0.0
    %2419 = vmatpush1.msra.mxu0 0.0
    %2420 = vmatprep.subr.mxu0 0.0
    %2421 = vmatpush1.msra.mxu0 0.0
    %2422 = vmatprep.subr.mxu0 0.0
    %2423 = vmatpush1.msra.mxu0 0.0
    %2424 = vmatprep.subr.mxu0 0.0
    %2425 = vmatpush1.msra.mxu0 0.0
    %2426 = vmatprep.subr.mxu0 0.0
    %2427 = vmatpush1.msra.mxu0 0.0
    %2428 = vmatprep.subr.mxu0 0.0
    %2429 = vmatpush1.msra.mxu0 0.0
    %2430 = vmatprep.subr.mxu0 0.0
    %2431 = vmatpush1.msra.mxu0 0.0
    %2432 = vmatprep.subr.mxu0 0.0
    %2433 = vmatpush1.msra.mxu0 0.0
    %2434 = vmatprep.mubr.f32.mxu0 0.0
    %2435 = vmatmul.mubr.f32.gmra.mrb[0].mxu0 %v2368
    %v2436 = vpop.f32.mrb[0].mxu0
    %v2437 = vadd.f32 0.0, %v2436
    %v2438 = vpop.f32.mrb[0].mxu0
    %v2439 = vadd.f32 0.0, %v2438
    %2440 = vdwg.mxu0
    %v2441 = vadd.f32 %v2345, %v2437
    %v2442 = vadd.f32 %v2346, %v2439
    %v2443 = vmax.f32 %v2441, 0.0
    %v2444 = vmax.f32 %v2442, 0.0
    %v2445 = vld [vmem:[%s73] sm:$0xff]
    %v2446 = vld [vmem:[%s73 + $0x8] sm:$0xff]
    %v2447 = vld [vmem:[%s73 + $0x10] sm:$0xff]
    %v2448 = vld [vmem:[%s73 + $0x18] sm:$0xff]
    %v2449 = vld [vmem:[%s73 + $0x20] sm:$0xff]
    %v2450 = vld [vmem:[%s73 + $0x28] sm:$0xff]
    %v2451 = vld [vmem:[%s73 + $0x30] sm:$0xff]
    %v2452 = vld [vmem:[%s73 + $0x38] sm:$0xff]
    %v2453 = vld [vmem:[%s73 + $0x40] sm:$0xff]
    %v2454 = vld [vmem:[%s73 + $0x48] sm:$0xff]
    %v2455 = vld [vmem:[%s73 + $0x50] sm:$0xff]
    %v2456 = vld [vmem:[%s73 + $0x58] sm:$0xff]
    %v2457 = vld [vmem:[%s73 + $0x60] sm:$0xff]
    %v2458 = vld [vmem:[%s73 + $0x68] sm:$0xff]
    %v2459 = vld [vmem:[%s73 + $0x70] sm:$0xff]
    %v2460 = vld [vmem:[%s73 + $0x78] sm:$0xff]
    %v2461 = vld [vmem:[%s73 + $0x80] sm:$0xff]
    %v2462 = vld [vmem:[%s73 + $0x88] sm:$0xff]
    %v2463 = vld [vmem:[%s73 + $0x90] sm:$0xff]
    %v2464 = vld [vmem:[%s73 + $0x98] sm:$0xff]
    %v2465 = vld [vmem:[%s73 + $0xa0] sm:$0xff]
    %v2466 = vld [vmem:[%s73 + $0xa8] sm:$0xff]
    %v2467 = vld [vmem:[%s73 + $0xb0] sm:$0xff]
    %v2468 = vld [vmem:[%s73 + $0xb8] sm:$0xff]
    %v2469 = vld [vmem:[%s73 + $0xc0] sm:$0xff]
    %v2470 = vld [vmem:[%s73 + $0xc8] sm:$0xff]
    %v2471 = vld [vmem:[%s73 + $0xd0] sm:$0xff]
    %v2472 = vld [vmem:[%s73 + $0xd8] sm:$0xff]
    %v2473 = vld [vmem:[%s73 + $0xe0] sm:$0xff]
    %v2474 = vld [vmem:[%s73 + $0xe8] sm:$0xff]
    %v2475 = vld [vmem:[%s73 + $0xf0] sm:$0xff]
    %v2476 = vld [vmem:[%s73 + $0xf8] sm:$0xff]
    %v2477 = vld [vmem:[%s73 + $0x100] sm:$0xff]
    %v2478 = vld [vmem:[%s73 + $0x108] sm:$0xff]
    %v2479 = vld [vmem:[%s73 + $0x110] sm:$0xff]
    %v2480 = vld [vmem:[%s73 + $0x118] sm:$0xff]
    %v2481 = vld [vmem:[%s73 + $0x120] sm:$0xff]
    %v2482 = vld [vmem:[%s73 + $0x128] sm:$0xff]
    %v2483 = vld [vmem:[%s73 + $0x130] sm:$0xff]
    %v2484 = vld [vmem:[%s73 + $0x138] sm:$0xff]
    %v2485 = vld [vmem:[%s73 + $0x140] sm:$0xff]
    %v2486 = vld [vmem:[%s73 + $0x148] sm:$0xff]
    %v2487 = vld [vmem:[%s73 + $0x150] sm:$0xff]
    %v2488 = vld [vmem:[%s73 + $0x158] sm:$0xff]
    %v2489 = vld [vmem:[%s73 + $0x160] sm:$0xff]
    %v2490 = vld [vmem:[%s73 + $0x168] sm:$0xff]
    %v2491 = vld [vmem:[%s73 + $0x170] sm:$0xff]
    %v2492 = vld [vmem:[%s73 + $0x178] sm:$0xff]
    %v2493 = vld [vmem:[%s73 + $0x180] sm:$0xff]
    %v2494 = vld [vmem:[%s73 + $0x188] sm:$0xff]
    %v2495 = vld [vmem:[#allocation37] sm:$0x3]
    %v2497 = vlaneseq
    %v2498 = vshrl.u32 %v2497, 7
    %v2499 = vsub.s32 0, %v2498
    %v2500 = vrot.slane %v2495, %v2499
    %v2501 = vlaneseq
    %v2502 = vshrl.u32 %v2501, 7
    %v2503 = vsub.s32 1, %v2502
    %v2504 = vrot.slane %v2495, %v2503
    %v2508 = vsel %vm722, %v2444, 0
    %2510 = vmatprep.subr.mxu0 %v2446
    %2511 = vmatpush1.msra.mxu0 %v2445
    %2512 = vmatprep.subr.mxu0 %v2448
    %2513 = vmatpush1.msra.mxu0 %v2447
    %2514 = vmatprep.subr.mxu0 %v2450
    %2515 = vmatpush1.msra.mxu0 %v2449
    %2516 = vmatprep.subr.mxu0 %v2452
    %2517 = vmatpush1.msra.mxu0 %v2451
    %2518 = vmatprep.subr.mxu0 %v2454
    %2519 = vmatpush1.msra.mxu0 %v2453
    %2520 = vmatprep.subr.mxu0 %v2456
    %2521 = vmatpush1.msra.mxu0 %v2455
    %2522 = vmatprep.subr.mxu0 %v2458
    %2523 = vmatpush1.msra.mxu0 %v2457
    %2524 = vmatprep.subr.mxu0 %v2460
    %2525 = vmatpush1.msra.mxu0 %v2459
    %2526 = vmatprep.subr.mxu0 %v2462
    %2527 = vmatpush1.msra.mxu0 %v2461
    %2528 = vmatprep.subr.mxu0 %v2464
    %2529 = vmatpush1.msra.mxu0 %v2463
    %2530 = vmatprep.subr.mxu0 %v2466
    %2531 = vmatpush1.msra.mxu0 %v2465
    %2532 = vmatprep.subr.mxu0 %v2468
    %2533 = vmatpush1.msra.mxu0 %v2467
    %2534 = vmatprep.subr.mxu0 %v2470
    %2535 = vmatpush1.msra.mxu0 %v2469
    %2536 = vmatprep.subr.mxu0 %v2472
    %2537 = vmatpush1.msra.mxu0 %v2471
    %2538 = vmatprep.subr.mxu0 %v2474
    %2539 = vmatpush1.msra.mxu0 %v2473
    %2540 = vmatprep.subr.mxu0 %v2476
    %2541 = vmatpush1.msra.mxu0 %v2475
    %2542 = vmatprep.subr.mxu0 %v2478
    %2543 = vmatpush1.msra.mxu0 %v2477
    %2544 = vmatprep.subr.mxu0 %v2480
    %2545 = vmatpush1.msra.mxu0 %v2479
    %2546 = vmatprep.subr.mxu0 %v2482
    %2547 = vmatpush1.msra.mxu0 %v2481
    %2548 = vmatprep.subr.mxu0 %v2484
    %2549 = vmatpush1.msra.mxu0 %v2483
    %2550 = vmatprep.subr.mxu0 %v2486
    %2551 = vmatpush1.msra.mxu0 %v2485
    %2552 = vmatprep.subr.mxu0 %v2488
    %2553 = vmatpush1.msra.mxu0 %v2487
    %2554 = vmatprep.subr.mxu0 %v2490
    %2555 = vmatpush1.msra.mxu0 %v2489
    %2556 = vmatprep.subr.mxu0 %v2492
    %2557 = vmatpush1.msra.mxu0 %v2491
    %2558 = vmatprep.subr.mxu0 %v2494
    %2559 = vmatpush1.msra.mxu0 %v2493
    %2560 = vmatprep.subr.mxu0 0.0
    %2561 = vmatpush1.msra.mxu0 0.0
    %2562 = vmatprep.subr.mxu0 0.0
    %2563 = vmatpush1.msra.mxu0 0.0
    %2564 = vmatprep.subr.mxu0 0.0
    %2565 = vmatpush1.msra.mxu0 0.0
    %2566 = vmatprep.subr.mxu0 0.0
    %2567 = vmatpush1.msra.mxu0 0.0
    %2568 = vmatprep.subr.mxu0 0.0
    %2569 = vmatpush1.msra.mxu0 0.0
    %2570 = vmatprep.subr.mxu0 0.0
    %2571 = vmatpush1.msra.mxu0 0.0
    %2572 = vmatprep.subr.mxu0 0.0
    %2573 = vmatpush1.msra.mxu0 0.0
    %2574 = vmatprep.mubr.f32.mxu0 %v2508
    %2575 = vmatmul.mubr.f32.gmra.mrb[0].mxu0 %v2443
    %v2576 = vpop.f32.mrb[0].mxu0
    %v2577 = vadd.f32 %v2500, %v2576
    %v2578 = vpop.f32.mrb[0].mxu0
    %v2579 = vadd.f32 %v2504, %v2578
    %2580 = vdwg.mxu0
    %v2581 = vmax.f32 %v2577, 0.0
    %v2582 = vmax.f32 %v2579, 0.0
    %v2583 = vld [vmem:[%s77] sm:$0xff]
    %v2584 = vld [vmem:[%s77 + $0x8] sm:$0xff]
    %v2585 = vld [vmem:[%s77 + $0x10] sm:$0xff]
    %v2586 = vld [vmem:[%s77 + $0x18] sm:$0xff]
    %v2587 = vld [vmem:[%s77 + $0x20] sm:$0xff]
    %v2588 = vld [vmem:[%s77 + $0x28] sm:$0xff]
    %v2589 = vld [vmem:[%s77 + $0x30] sm:$0xff]
    %v2590 = vld [vmem:[%s77 + $0x38] sm:$0xff]
    %v2591 = vld [vmem:[%s77 + $0x40] sm:$0xff]
    %v2592 = vld [vmem:[%s77 + $0x48] sm:$0xff]
    %v2593 = vld [vmem:[%s77 + $0x50] sm:$0xff]
    %v2594 = vld [vmem:[%s77 + $0x58] sm:$0xff]
    %v2595 = vld [vmem:[%s77 + $0x60] sm:$0xff]
    %v2596 = vld [vmem:[%s77 + $0x68] sm:$0xff]
    %v2597 = vld [vmem:[%s77 + $0x70] sm:$0xff]
    %v2598 = vld [vmem:[%s77 + $0x78] sm:$0xff]
    %v2599 = vld [vmem:[%s77 + $0x80] sm:$0xff]
    %v2600 = vld [vmem:[%s77 + $0x88] sm:$0xff]
    %v2601 = vld [vmem:[%s77 + $0x90] sm:$0xff]
    %v2602 = vld [vmem:[%s77 + $0x98] sm:$0xff]
    %v2603 = vld [vmem:[%s77 + $0xa0] sm:$0xff]
    %v2604 = vld [vmem:[%s77 + $0xa8] sm:$0xff]
    %v2605 = vld [vmem:[%s77 + $0xb0] sm:$0xff]
    %v2606 = vld [vmem:[%s77 + $0xb8] sm:$0xff]
    %v2607 = vld [vmem:[%s77 + $0xc0] sm:$0xff]
    %v2608 = vld [vmem:[#allocation39] sm:$0x1]
    %v2610 = vlaneseq
    %v2611 = vshrl.u32 %v2610, 7
    %v2612 = vsub.s32 0, %v2611
    %v2613 = vrot.slane %v2608, %v2612
    %v2616 = vsel %vm722, %v2582, 0
    %2618 = vmatprep.subr.mxu0 0.0
    %2619 = vmatpush1.msra.mxu0 %v2583
    %2620 = vmatprep.subr.mxu0 0.0
    %2621 = vmatpush1.msra.mxu0 %v2584
    %2622 = vmatprep.subr.mxu0 0.0
    %2623 = vmatpush1.msra.mxu0 %v2585
    %2624 = vmatprep.subr.mxu0 0.0
    %2625 = vmatpush1.msra.mxu0 %v2586
    %2626 = vmatprep.subr.mxu0 0.0
    %2627 = vmatpush1.msra.mxu0 %v2587
    %2628 = vmatprep.subr.mxu0 0.0
    %2629 = vmatpush1.msra.mxu0 %v2588
    %2630 = vmatprep.subr.mxu0 0.0
    %2631 = vmatpush1.msra.mxu0 %v2589
    %2632 = vmatprep.subr.mxu0 0.0
    %2633 = vmatpush1.msra.mxu0 %v2590
    %2634 = vmatprep.subr.mxu0 0.0
    %2635 = vmatpush1.msra.mxu0 %v2591
    %2636 = vmatprep.subr.mxu0 0.0
    %2637 = vmatpush1.msra.mxu0 %v2592
    %2638 = vmatprep.subr.mxu0 0.0
    %2639 = vmatpush1.msra.mxu0 %v2593
    %2640 = vmatprep.subr.mxu0 0.0
    %2641 = vmatpush1.msra.mxu0 %v2594
    %2642 = vmatprep.subr.mxu0 0.0
    %2643 = vmatpush1.msra.mxu0 %v2595
    %2644 = vmatprep.subr.mxu0 0.0
    %2645 = vmatpush1.msra.mxu0 %v2596
    %2646 = vmatprep.subr.mxu0 0.0
    %2647 = vmatpush1.msra.mxu0 %v2597
    %2648 = vmatprep.subr.mxu0 0.0
    %2649 = vmatpush1.msra.mxu0 %v2598
    %2650 = vmatprep.subr.mxu0 0.0
    %2651 = vmatpush1.msra.mxu0 %v2599
    %2652 = vmatprep.subr.mxu0 0.0
    %2653 = vmatpush1.msra.mxu0 %v2600
    %2654 = vmatprep.subr.mxu0 0.0
    %2655 = vmatpush1.msra.mxu0 %v2601
    %2656 = vmatprep.subr.mxu0 0.0
    %2657 = vmatpush1.msra.mxu0 %v2602
    %2658 = vmatprep.subr.mxu0 0.0
    %2659 = vmatpush1.msra.mxu0 %v2603
    %2660 = vmatprep.subr.mxu0 0.0
    %2661 = vmatpush1.msra.mxu0 %v2604
    %2662 = vmatprep.subr.mxu0 0.0
    %2663 = vmatpush1.msra.mxu0 %v2605
    %2664 = vmatprep.subr.mxu0 0.0
    %2665 = vmatpush1.msra.mxu0 %v2606
    %2666 = vmatprep.subr.mxu0 0.0
    %2667 = vmatpush1.msra.mxu0 %v2607
    %2668 = vmatprep.subr.mxu0 0.0
    %2669 = vmatpush1.msra.mxu0 0.0
    %2670 = vmatprep.subr.mxu0 0.0
    %2671 = vmatpush1.msra.mxu0 0.0
    %2672 = vmatprep.subr.mxu0 0.0
    %2673 = vmatpush1.msra.mxu0 0.0
    %2674 = vmatprep.subr.mxu0 0.0
    %2675 = vmatpush1.msra.mxu0 0.0
    %2676 = vmatprep.subr.mxu0 0.0
    %2677 = vmatpush1.msra.mxu0 0.0
    %2678 = vmatprep.subr.mxu0 0.0
    %2679 = vmatpush1.msra.mxu0 0.0
    %2680 = vmatprep.subr.mxu0 0.0
    %2681 = vmatpush1.msra.mxu0 0.0
    %2682 = vmatprep.mubr.f32.mxu0 %v2616
    %2683 = vmatmul.mubr.f32.gmra.mrb[0].mxu0 %v2581
    %v2684 = vpop.f32.mrb[0].mxu0
    %v2685 = vadd.f32 %v2613, %v2684
    %v2686 = vpop.f32.mrb[0].mxu0
    %2687 = vdwg.mxu0
    %v2688 = vld [vmem:[%s81] sm:$0xff]
    %v2689 = vld [vmem:[%s81 + $0x8] sm:$0xff]
    %v2690 = vld [vmem:[%s81 + $0x10] sm:$0xff]
    %v2691 = vld [vmem:[%s81 + $0x18] sm:$0xff]
    %v2692 = vld [vmem:[%s81 + $0x20] sm:$0xff]
    %v2693 = vld [vmem:[%s81 + $0x28] sm:$0xff]
    %v2694 = vld [vmem:[%s81 + $0x30] sm:$0xff]
    %v2695 = vld [vmem:[%s81 + $0x38] sm:$0xff]
    %v2696 = vld [vmem:[%s81 + $0x40] sm:$0xff]
    %v2697 = vld [vmem:[%s81 + $0x48] sm:$0xff]
    %v2698 = vld [vmem:[%s81 + $0x50] sm:$0xff]
    %v2699 = vld [vmem:[%s81 + $0x58] sm:$0xff]
    %v2700 = vld [vmem:[%s81 + $0x60] sm:$0xff]
    %v2701 = vld [vmem:[%s81 + $0x68] sm:$0xff]
    %v2702 = vld [vmem:[%s81 + $0x70] sm:$0xff]
    %v2703 = vld [vmem:[%s81 + $0x78] sm:$0xff]
    %v2704 = vld [vmem:[%s81 + $0x80] sm:$0xff]
    %v2705 = vld [vmem:[%s81 + $0x88] sm:$0xff]
    %v2706 = vld [vmem:[%s81 + $0x90] sm:$0xff]
    %v2707 = vld [vmem:[%s81 + $0x98] sm:$0xff]
    %v2708 = vld [vmem:[%s81 + $0xa0] sm:$0xff]
    %v2709 = vld [vmem:[%s81 + $0xa8] sm:$0xff]
    %v2710 = vld [vmem:[%s81 + $0xb0] sm:$0xff]
    %v2711 = vld [vmem:[%s81 + $0xb8] sm:$0xff]
    %v2712 = vld [vmem:[%s81 + $0xc0] sm:$0xff]
    %v2713 = vld [vmem:[#allocation40] sm:$0x1]
    %v2715 = vlaneseq
    %v2716 = vshrl.u32 %v2715, 7
    %v2717 = vsub.s32 0, %v2716
    %v2718 = vrot.slane %v2713, %v2717
    %2720 = vmatprep.subr.mxu0 0.0
    %2721 = vmatpush1.msra.mxu0 %v2688
    %2722 = vmatprep.subr.mxu0 0.0
    %2723 = vmatpush1.msra.mxu0 %v2689
    %2724 = vmatprep.subr.mxu0 0.0
    %2725 = vmatpush1.msra.mxu0 %v2690
    %2726 = vmatprep.subr.mxu0 0.0
    %2727 = vmatpush1.msra.mxu0 %v2691
    %2728 = vmatprep.subr.mxu0 0.0
    %2729 = vmatpush1.msra.mxu0 %v2692
    %2730 = vmatprep.subr.mxu0 0.0
    %2731 = vmatpush1.msra.mxu0 %v2693
    %2732 = vmatprep.subr.mxu0 0.0
    %2733 = vmatpush1.msra.mxu0 %v2694
    %2734 = vmatprep.subr.mxu0 0.0
    %2735 = vmatpush1.msra.mxu0 %v2695
    %2736 = vmatprep.subr.mxu0 0.0
    %2737 = vmatpush1.msra.mxu0 %v2696
    %2738 = vmatprep.subr.mxu0 0.0
    %2739 = vmatpush1.msra.mxu0 %v2697
    %2740 = vmatprep.subr.mxu0 0.0
    %2741 = vmatpush1.msra.mxu0 %v2698
    %2742 = vmatprep.subr.mxu0 0.0
    %2743 = vmatpush1.msra.mxu0 %v2699
    %2744 = vmatprep.subr.mxu0 0.0
    %2745 = vmatpush1.msra.mxu0 %v2700
    %2746 = vmatprep.subr.mxu0 0.0
    %2747 = vmatpush1.msra.mxu0 %v2701
    %2748 = vmatprep.subr.mxu0 0.0
    %2749 = vmatpush1.msra.mxu0 %v2702
    %2750 = vmatprep.subr.mxu0 0.0
    %2751 = vmatpush1.msra.mxu0 %v2703
    %2752 = vmatprep.subr.mxu0 0.0
    %2753 = vmatpush1.msra.mxu0 %v2704
    %2754 = vmatprep.subr.mxu0 0.0
    %2755 = vmatpush1.msra.mxu0 %v2705
    %2756 = vmatprep.subr.mxu0 0.0
    %2757 = vmatpush1.msra.mxu0 %v2706
    %2758 = vmatprep.subr.mxu0 0.0
    %2759 = vmatpush1.msra.mxu0 %v2707
    %2760 = vmatprep.subr.mxu0 0.0
    %2761 = vmatpush1.msra.mxu0 %v2708
    %2762 = vmatprep.subr.mxu0 0.0
    %2763 = vmatpush1.msra.mxu0 %v2709
    %2764 = vmatprep.subr.mxu0 0.0
    %2765 = vmatpush1.msra.mxu0 %v2710
    %2766 = vmatprep.subr.mxu0 0.0
    %2767 = vmatpush1.msra.mxu0 %v2711
    %2768 = vmatprep.subr.mxu0 0.0
    %2769 = vmatpush1.msra.mxu0 %v2712
    %2770 = vmatprep.subr.mxu0 0.0
    %2771 = vmatpush1.msra.mxu0 0.0
    %2772 = vmatprep.subr.mxu0 0.0
    %2773 = vmatpush1.msra.mxu0 0.0
    %2774 = vmatprep.subr.mxu0 0.0
    %2775 = vmatpush1.msra.mxu0 0.0
    %2776 = vmatprep.subr.mxu0 0.0
    %2777 = vmatpush1.msra.mxu0 0.0
    %2778 = vmatprep.subr.mxu0 0.0
    %2779 = vmatpush1.msra.mxu0 0.0
    %2780 = vmatprep.subr.mxu0 0.0
    %2781 = vmatpush1.msra.mxu0 0.0
    %2782 = vmatprep.subr.mxu0 0.0
    %2783 = vmatpush1.msra.mxu0 0.0
    %2784 = vmatprep.mubr.f32.mxu0 %v2616
    %2785 = vmatmul.mubr.f32.gmra.mrb[0].mxu0 %v2581
    %v2786 = vpop.f32.mrb[0].mxu0
    %v2787 = vadd.f32 %v2718, %v2786
    %v2788 = vpop.f32.mrb[0].mxu0
    %2789 = vdwg.mxu0
    %v2790 = vmul.f32 %v2787, 0.5
    %v2791 = vmul.f32 %v2790, 1.442695
    %v2792 = vpow.pop %v2791
    %v2793 = vld [vmem:[%s85] sm:$0xff]
    %v2794 = vld [vmem:[%s85 + $0x8] sm:$0xff]
    %v2795 = vld [vmem:[%s87] sm:$0x3]
    %v2797 = vlaneseq
    %v2798 = vshrl.u32 %v2797, 7
    %v2799 = vsub.s32 0, %v2798
    %v2800 = vrot.slane %v2795, %v2799
    %v2801 = vlaneseq
    %v2802 = vshrl.u32 %v2801, 7
    %v2803 = vsub.s32 1, %v2802
    %v2804 = vrot.slane %v2795, %v2803
    %2807 = vmatprep.subr.mxu0 %v2794
    %2808 = vmatpush1.msra.mxu0 %v2793
    %2809 = vmatprep.subr.mxu0 0.0
    %2810 = vmatpush1.msra.mxu0 0.0
    %2811 = vmatprep.subr.mxu0 0.0
    %2812 = vmatpush1.msra.mxu0 0.0
    %2813 = vmatprep.subr.mxu0 0.0
    %2814 = vmatpush1.msra.mxu0 0.0
    %2815 = vmatprep.subr.mxu0 0.0
    %2816 = vmatpush1.msra.mxu0 0.0
    %2817 = vmatprep.subr.mxu0 0.0
    %2818 = vmatpush1.msra.mxu0 0.0
    %2819 = vmatprep.subr.mxu0 0.0
    %2820 = vmatpush1.msra.mxu0 0.0
    %2821 = vmatprep.subr.mxu0 0.0
    %2822 = vmatpush1.msra.mxu0 0.0
    %2823 = vmatprep.subr.mxu0 0.0
    %2824 = vmatpush1.msra.mxu0 0.0
    %2825 = vmatprep.subr.mxu0 0.0
    %2826 = vmatpush1.msra.mxu0 0.0
    %2827 = vmatprep.subr.mxu0 0.0
    %2828 = vmatpush1.msra.mxu0 0.0
    %2829 = vmatprep.subr.mxu0 0.0
    %2830 = vmatpush1.msra.mxu0 0.0
    %2831 = vmatprep.subr.mxu0 0.0
    %2832 = vmatpush1.msra.mxu0 0.0
    %2833 = vmatprep.subr.mxu0 0.0
    %2834 = vmatpush1.msra.mxu0 0.0
    %2835 = vmatprep.subr.mxu0 0.0
    %2836 = vmatpush1.msra.mxu0 0.0
    %2837 = vmatprep.subr.mxu0 0.0
    %2838 = vmatpush1.msra.mxu0 0.0
    %2839 = vmatprep.subr.mxu0 0.0
    %2840 = vmatpush1.msra.mxu0 0.0
    %2841 = vmatprep.subr.mxu0 0.0
    %2842 = vmatpush1.msra.mxu0 0.0
    %2843 = vmatprep.subr.mxu0 0.0
    %2844 = vmatpush1.msra.mxu0 0.0
    %2845 = vmatprep.subr.mxu0 0.0
    %2846 = vmatpush1.msra.mxu0 0.0
    %2847 = vmatprep.subr.mxu0 0.0
    %2848 = vmatpush1.msra.mxu0 0.0
    %2849 = vmatprep.subr.mxu0 0.0
    %2850 = vmatpush1.msra.mxu0 0.0
    %2851 = vmatprep.subr.mxu0 0.0
    %2852 = vmatpush1.msra.mxu0 0.0
    %2853 = vmatprep.subr.mxu0 0.0
    %2854 = vmatpush1.msra.mxu0 0.0
    %2855 = vmatprep.subr.mxu0 0.0
    %2856 = vmatpush1.msra.mxu0 0.0
    %2857 = vmatprep.subr.mxu0 0.0
    %2858 = vmatpush1.msra.mxu0 0.0
    %2859 = vmatprep.subr.mxu0 0.0
    %2860 = vmatpush1.msra.mxu0 0.0
    %2861 = vmatprep.subr.mxu0 0.0
    %2862 = vmatpush1.msra.mxu0 0.0
    %2863 = vmatprep.subr.mxu0 0.0
    %2864 = vmatpush1.msra.mxu0 0.0
    %2865 = vmatprep.subr.mxu0 0.0
    %2866 = vmatpush1.msra.mxu0 0.0
    %2867 = vmatprep.subr.mxu0 0.0
    %2868 = vmatpush1.msra.mxu0 0.0
    %2869 = vmatprep.subr.mxu0 0.0
    %2870 = vmatpush1.msra.mxu0 0.0
    %2871 = vmatprep.mubr.f32.mxu0 0.0
    %2872 = vmatmul.mubr.f32.gmra.mrb[0].mxu0 %v2368
    %v2873 = vpop.f32.mrb[0].mxu0
    %v2874 = vadd.f32 %v2800, %v2873
    %v2875 = vpop.f32.mrb[0].mxu0
    %v2876 = vadd.f32 %v2804, %v2875
    %2877 = vdwg.mxu0
    %v2878 = vmax.f32 %v2874, 0.0
    %v2879 = vmax.f32 %v2876, 0.0
    %v2880 = vld [vmem:[%s89] sm:$0xff]
    %v2881 = vld [vmem:[%s89 + $0x8] sm:$0xff]
    %v2882 = vld [vmem:[%s89 + $0x10] sm:$0xff]
    %v2883 = vld [vmem:[%s89 + $0x18] sm:$0xff]
    %v2884 = vld [vmem:[%s89 + $0x20] sm:$0xff]
    %v2885 = vld [vmem:[%s89 + $0x28] sm:$0xff]
    %v2886 = vld [vmem:[%s89 + $0x30] sm:$0xff]
    %v2887 = vld [vmem:[%s89 + $0x38] sm:$0xff]
    %v2888 = vld [vmem:[%s89 + $0x40] sm:$0xff]
    %v2889 = vld [vmem:[%s89 + $0x48] sm:$0xff]
    %v2890 = vld [vmem:[%s89 + $0x50] sm:$0xff]
    %v2891 = vld [vmem:[%s89 + $0x58] sm:$0xff]
    %v2892 = vld [vmem:[%s89 + $0x60] sm:$0xff]
    %v2893 = vld [vmem:[%s89 + $0x68] sm:$0xff]
    %v2894 = vld [vmem:[%s89 + $0x70] sm:$0xff]
    %v2895 = vld [vmem:[%s89 + $0x78] sm:$0xff]
    %v2896 = vld [vmem:[%s89 + $0x80] sm:$0xff]
    %v2897 = vld [vmem:[%s89 + $0x88] sm:$0xff]
    %v2898 = vld [vmem:[%s89 + $0x90] sm:$0xff]
    %v2899 = vld [vmem:[%s89 + $0x98] sm:$0xff]
    %v2900 = vld [vmem:[%s89 + $0xa0] sm:$0xff]
    %v2901 = vld [vmem:[%s89 + $0xa8] sm:$0xff]
    %v2902 = vld [vmem:[%s89 + $0xb0] sm:$0xff]
    %v2903 = vld [vmem:[%s89 + $0xb8] sm:$0xff]
    %v2904 = vld [vmem:[%s89 + $0xc0] sm:$0xff]
    %v2905 = vld [vmem:[%s89 + $0xc8] sm:$0xff]
    %v2906 = vld [vmem:[%s89 + $0xd0] sm:$0xff]
    %v2907 = vld [vmem:[%s89 + $0xd8] sm:$0xff]
    %v2908 = vld [vmem:[%s89 + $0xe0] sm:$0xff]
    %v2909 = vld [vmem:[%s89 + $0xe8] sm:$0xff]
    %v2910 = vld [vmem:[%s89 + $0xf0] sm:$0xff]
    %v2911 = vld [vmem:[%s89 + $0xf8] sm:$0xff]
    %v2912 = vld [vmem:[%s89 + $0x100] sm:$0xff]
    %v2913 = vld [vmem:[%s89 + $0x108] sm:$0xff]
    %v2914 = vld [vmem:[%s89 + $0x110] sm:$0xff]
    %v2915 = vld [vmem:[%s89 + $0x118] sm:$0xff]
    %v2916 = vld [vmem:[%s89 + $0x120] sm:$0xff]
    %v2917 = vld [vmem:[%s89 + $0x128] sm:$0xff]
    %v2918 = vld [vmem:[%s89 + $0x130] sm:$0xff]
    %v2919 = vld [vmem:[%s89 + $0x138] sm:$0xff]
    %v2920 = vld [vmem:[%s89 + $0x140] sm:$0xff]
    %v2921 = vld [vmem:[%s89 + $0x148] sm:$0xff]
    %v2922 = vld [vmem:[%s89 + $0x150] sm:$0xff]
    %v2923 = vld [vmem:[%s89 + $0x158] sm:$0xff]
    %v2924 = vld [vmem:[%s89 + $0x160] sm:$0xff]
    %v2925 = vld [vmem:[%s89 + $0x168] sm:$0xff]
    %v2926 = vld [vmem:[%s89 + $0x170] sm:$0xff]
    %v2927 = vld [vmem:[%s89 + $0x178] sm:$0xff]
    %v2928 = vld [vmem:[%s89 + $0x180] sm:$0xff]
    %v2929 = vld [vmem:[%s89 + $0x188] sm:$0xff]
    %v2930 = vld [vmem:[%s91] sm:$0x3]
    %v2932 = vlaneseq
    %v2933 = vshrl.u32 %v2932, 7
    %v2934 = vsub.s32 0, %v2933
    %v2935 = vrot.slane %v2930, %v2934
    %v2936 = vlaneseq
    %v2937 = vshrl.u32 %v2936, 7
    %v2938 = vsub.s32 1, %v2937
    %v2939 = vrot.slane %v2930, %v2938
    %v2943 = vsel %vm722, %v2879, 0
    %2945 = vmatprep.subr.mxu0 %v2881
    %2946 = vmatpush1.msra.mxu0 %v2880
    %2947 = vmatprep.subr.mxu0 %v2883
    %2948 = vmatpush1.msra.mxu0 %v2882
    %2949 = vmatprep.subr.mxu0 %v2885
    %2950 = vmatpush1.msra.mxu0 %v2884
    %2951 = vmatprep.subr.mxu0 %v2887
    %2952 = vmatpush1.msra.mxu0 %v2886
    %2953 = vmatprep.subr.mxu0 %v2889
    %2954 = vmatpush1.msra.mxu0 %v2888
    %2955 = vmatprep.subr.mxu0 %v2891
    %2956 = vmatpush1.msra.mxu0 %v2890
    %2957 = vmatprep.subr.mxu0 %v2893
    %2958 = vmatpush1.msra.mxu0 %v2892
    %2959 = vmatprep.subr.mxu0 %v2895
    %2960 = vmatpush1.msra.mxu0 %v2894
    %2961 = vmatprep.subr.mxu0 %v2897
    %2962 = vmatpush1.msra.mxu0 %v2896
    %2963 = vmatprep.subr.mxu0 %v2899
    %2964 = vmatpush1.msra.mxu0 %v2898
    %2965 = vmatprep.subr.mxu0 %v2901
    %2966 = vmatpush1.msra.mxu0 %v2900
    %2967 = vmatprep.subr.mxu0 %v2903
    %2968 = vmatpush1.msra.mxu0 %v2902
    %2969 = vmatprep.subr.mxu0 %v2905
    %2970 = vmatpush1.msra.mxu0 %v2904
    %2971 = vmatprep.subr.mxu0 %v2907
    %2972 = vmatpush1.msra.mxu0 %v2906
    %2973 = vmatprep.subr.mxu0 %v2909
    %2974 = vmatpush1.msra.mxu0 %v2908
    %2975 = vmatprep.subr.mxu0 %v2911
    %2976 = vmatpush1.msra.mxu0 %v2910
    %2977 = vmatprep.subr.mxu0 %v2913
    %2978 = vmatpush1.msra.mxu0 %v2912
    %2979 = vmatprep.subr.mxu0 %v2915
    %2980 = vmatpush1.msra.mxu0 %v2914
    %2981 = vmatprep.subr.mxu0 %v2917
    %2982 = vmatpush1.msra.mxu0 %v2916
    %2983 = vmatprep.subr.mxu0 %v2919
    %2984 = vmatpush1.msra.mxu0 %v2918
    %2985 = vmatprep.subr.mxu0 %v2921
    %2986 = vmatpush1.msra.mxu0 %v2920
    %2987 = vmatprep.subr.mxu0 %v2923
    %2988 = vmatpush1.msra.mxu0 %v2922
    %2989 = vmatprep.subr.mxu0 %v2925
    %2990 = vmatpush1.msra.mxu0 %v2924
    %2991 = vmatprep.subr.mxu0 %v2927
    %2992 = vmatpush1.msra.mxu0 %v2926
    %2993 = vmatprep.subr.mxu0 %v2929
    %2994 = vmatpush1.msra.mxu0 %v2928
    %2995 = vmatprep.subr.mxu0 0.0
    %2996 = vmatpush1.msra.mxu0 0.0
    %2997 = vmatprep.subr.mxu0 0.0
    %2998 = vmatpush1.msra.mxu0 0.0
    %2999 = vmatprep.subr.mxu0 0.0
    %3000 = vmatpush1.msra.mxu0 0.0
    %3001 = vmatprep.subr.mxu0 0.0
    %3002 = vmatpush1.msra.mxu0 0.0
    %3003 = vmatprep.subr.mxu0 0.0
    %3004 = vmatpush1.msra.mxu0 0.0
    %3005 = vmatprep.subr.mxu0 0.0
    %3006 = vmatpush1.msra.mxu0 0.0
    %3007 = vmatprep.subr.mxu0 0.0
    %3008 = vmatpush1.msra.mxu0 0.0
    %3009 = vmatprep.mubr.f32.mxu0 %v2943
    %3010 = vmatmul.mubr.f32.gmra.mrb[0].mxu0 %v2878
    %v3011 = vpop.f32.mrb[0].mxu0
    %v3012 = vadd.f32 %v2935, %v3011
    %v3013 = vpop.f32.mrb[0].mxu0
    %v3014 = vadd.f32 %v2939, %v3013
    %3015 = vdwg.mxu0
    %v3016 = vmax.f32 %v3012, 0.0
    %v3017 = vmax.f32 %v3014, 0.0
    %v3018 = vld [vmem:[%s93] sm:$0xff]
    %v3019 = vld [vmem:[%s93 + $0x8] sm:$0xff]
    %v3020 = vld [vmem:[%s93 + $0x10] sm:$0xff]
    %v3021 = vld [vmem:[%s93 + $0x18] sm:$0xff]
    %v3022 = vld [vmem:[%s93 + $0x20] sm:$0xff]
    %v3023 = vld [vmem:[%s93 + $0x28] sm:$0xff]
    %v3024 = vld [vmem:[%s93 + $0x30] sm:$0xff]
    %v3025 = vld [vmem:[%s93 + $0x38] sm:$0xff]
    %v3026 = vld [vmem:[%s93 + $0x40] sm:$0xff]
    %v3027 = vld [vmem:[%s93 + $0x48] sm:$0xff]
    %v3028 = vld [vmem:[%s93 + $0x50] sm:$0xff]
    %v3029 = vld [vmem:[%s93 + $0x58] sm:$0xff]
    %v3030 = vld [vmem:[%s93 + $0x60] sm:$0xff]
    %v3031 = vld [vmem:[%s93 + $0x68] sm:$0xff]
    %v3032 = vld [vmem:[%s93 + $0x70] sm:$0xff]
    %v3033 = vld [vmem:[%s93 + $0x78] sm:$0xff]
    %v3034 = vld [vmem:[%s93 + $0x80] sm:$0xff]
    %v3035 = vld [vmem:[%s93 + $0x88] sm:$0xff]
    %v3036 = vld [vmem:[%s93 + $0x90] sm:$0xff]
    %v3037 = vld [vmem:[%s93 + $0x98] sm:$0xff]
    %v3038 = vld [vmem:[%s93 + $0xa0] sm:$0xff]
    %v3039 = vld [vmem:[%s93 + $0xa8] sm:$0xff]
    %v3040 = vld [vmem:[%s93 + $0xb0] sm:$0xff]
    %v3041 = vld [vmem:[%s93 + $0xb8] sm:$0xff]
    %v3042 = vld [vmem:[%s93 + $0xc0] sm:$0xff]
    %v3043 = vld [vmem:[%s95] sm:$0x1]
    %v3045 = vlaneseq
    %v3046 = vshrl.u32 %v3045, 7
    %v3047 = vsub.s32 0, %v3046
    %v3048 = vrot.slane %v3043, %v3047
    %v3051 = vsel %vm722, %v3017, 0
    %3053 = vmatprep.subr.mxu0 0.0
    %3054 = vmatpush1.msra.mxu0 %v3018
    %3055 = vmatprep.subr.mxu0 0.0
    %3056 = vmatpush1.msra.mxu0 %v3019
    %3057 = vmatprep.subr.mxu0 0.0
    %3058 = vmatpush1.msra.mxu0 %v3020
    %3059 = vmatprep.subr.mxu0 0.0
    %3060 = vmatpush1.msra.mxu0 %v3021
    %3061 = vmatprep.subr.mxu0 0.0
    %3062 = vmatpush1.msra.mxu0 %v3022
    %3063 = vmatprep.subr.mxu0 0.0
    %3064 = vmatpush1.msra.mxu0 %v3023
    %3065 = vmatprep.subr.mxu0 0.0
    %3066 = vmatpush1.msra.mxu0 %v3024
    %3067 = vmatprep.subr.mxu0 0.0
    %3068 = vmatpush1.msra.mxu0 %v3025
    %3069 = vmatprep.subr.mxu0 0.0
    %3070 = vmatpush1.msra.mxu0 %v3026
    %3071 = vmatprep.subr.mxu0 0.0
    %3072 = vmatpush1.msra.mxu0 %v3027
    %3073 = vmatprep.subr.mxu0 0.0
    %3074 = vmatpush1.msra.mxu0 %v3028
    %3075 = vmatprep.subr.mxu0 0.0
    %3076 = vmatpush1.msra.mxu0 %v3029
    %3077 = vmatprep.subr.mxu0 0.0
    %3078 = vmatpush1.msra.mxu0 %v3030
    %3079 = vmatprep.subr.mxu0 0.0
    %3080 = vmatpush1.msra.mxu0 %v3031
    %3081 = vmatprep.subr.mxu0 0.0
    %3082 = vmatpush1.msra.mxu0 %v3032
    %3083 = vmatprep.subr.mxu0 0.0
    %3084 = vmatpush1.msra.mxu0 %v3033
    %3085 = vmatprep.subr.mxu0 0.0
    %3086 = vmatpush1.msra.mxu0 %v3034
    %3087 = vmatprep.subr.mxu0 0.0
    %3088 = vmatpush1.msra.mxu0 %v3035
    %3089 = vmatprep.subr.mxu0 0.0
    %3090 = vmatpush1.msra.mxu0 %v3036
    %3091 = vmatprep.subr.mxu0 0.0
    %3092 = vmatpush1.msra.mxu0 %v3037
    %3093 = vmatprep.subr.mxu0 0.0
    %3094 = vmatpush1.msra.mxu0 %v3038
    %3095 = vmatprep.subr.mxu0 0.0
    %3096 = vmatpush1.msra.mxu0 %v3039
    %3097 = vmatprep.subr.mxu0 0.0
    %3098 = vmatpush1.msra.mxu0 %v3040
    %3099 = vmatprep.subr.mxu0 0.0
    %3100 = vmatpush1.msra.mxu0 %v3041
    %3101 = vmatprep.subr.mxu0 0.0
    %3102 = vmatpush1.msra.mxu0 %v3042
    %3103 = vmatprep.subr.mxu0 0.0
    %3104 = vmatpush1.msra.mxu0 0.0
    %3105 = vmatprep.subr.mxu0 0.0
    %3106 = vmatpush1.msra.mxu0 0.0
    %3107 = vmatprep.subr.mxu0 0.0
    %3108 = vmatpush1.msra.mxu0 0.0
    %3109 = vmatprep.subr.mxu0 0.0
    %3110 = vmatpush1.msra.mxu0 0.0
    %3111 = vmatprep.subr.mxu0 0.0
    %3112 = vmatpush1.msra.mxu0 0.0
    %3113 = vmatprep.subr.mxu0 0.0
    %3114 = vmatpush1.msra.mxu0 0.0
    %3115 = vmatprep.subr.mxu0 0.0
    %3116 = vmatpush1.msra.mxu0 0.0
    %3117 = vmatprep.mubr.f32.mxu0 %v3051
    %3118 = vmatmul.mubr.f32.gmra.mrb[0].mxu0 %v3016
    %v3119 = vpop.f32.mrb[0].mxu0
    %v3120 = vadd.f32 %v3048, %v3119
    %v3121 = vpop.f32.mrb[0].mxu0
    %3122 = vdwg.mxu0
    %v3123 = vmax.f32 %v3120, 0.0
    %v3124 = vand.u32 2147483647, %v3120
    %v3125 = vsub.f32 0.0, %v3124
    %v3126 = vmul.f32 %v3125, 1.442695
    %v3127 = vpow.pop %v3126
    %v3128 = vadd.f32 %v3127, 1.0
    %v3129 = vlog2.pop %v3128
    %v3130 = vmul.f32 %v3129, 0.6931472
    %v3131 = vmul.f32 -0.5, %v3127
    %v3132 = vadd.f32 %v3131, 1.0
    %v3133 = vmul.f32 %v3132, %v3127
    %v3134 = vand.u32 2147483647, %v3127
    %vm3135 = vcmp.lt.f32.partialorder %v3134, 0.0004427343
    %v3136 = vsel %vm3135, %v3133, %v3130
    %v3137 = vadd.f32 %v3123, %v3136
    %v3138 = vmul.f32 %v566, %v3120
    %v3139 = vsub.f32 %v3138, %v3137
    %vm3140 = vcmask 93184
    %v3141 = vsel %vm3140, %v3139, 0.0
    %3142 = vadd.xlane.f32.xlu0 %v3141
    %v3143 = vpop.xlane.xlu0 %3142
    %v3144 = vld [vmem:[#allocation42] sm:$0xff]
    %v3145 = vld [vmem:[#allocation42 + $0x8] sm:$0xff]
    %v3146 = vld [vmem:[%s101] sm:$0x3]
    %v3148 = vlaneseq
    %v3149 = vshrl.u32 %v3148, 7
    %v3150 = vsub.s32 0, %v3149
    %v3151 = vrot.slane %v3146, %v3150
    %v3152 = vlaneseq
    %v3153 = vshrl.u32 %v3152, 7
    %v3154 = vsub.s32 1, %v3153
    %v3155 = vrot.slane %v3146, %v3154
    %3158 = vmatprep.subr.mxu0 %v3145
    %3159 = vmatpush1.msra.mxu0 %v3144
    %3160 = vmatprep.subr.mxu0 0.0
    %3161 = vmatpush1.msra.mxu0 0.0
    %3162 = vmatprep.subr.mxu0 0.0
    %3163 = vmatpush1.msra.mxu0 0.0
    %3164 = vmatprep.subr.mxu0 0.0
    %3165 = vmatpush1.msra.mxu0 0.0
    %3166 = vmatprep.subr.mxu0 0.0
    %3167 = vmatpush1.msra.mxu0 0.0
    %3168 = vmatprep.subr.mxu0 0.0
    %3169 = vmatpush1.msra.mxu0 0.0
    %3170 = vmatprep.subr.mxu0 0.0
    %3171 = vmatpush1.msra.mxu0 0.0
    %3172 = vmatprep.subr.mxu0 0.0
    %3173 = vmatpush1.msra.mxu0 0.0
    %3174 = vmatprep.subr.mxu0 0.0
    %3175 = vmatpush1.msra.mxu0 0.0
    %3176 = vmatprep.subr.mxu0 0.0
    %3177 = vmatpush1.msra.mxu0 0.0
    %3178 = vmatprep.subr.mxu0 0.0
    %3179 = vmatpush1.msra.mxu0 0.0
    %3180 = vmatprep.subr.mxu0 0.0
    %3181 = vmatpush1.msra.mxu0 0.0
    %3182 = vmatprep.subr.mxu0 0.0
    %3183 = vmatpush1.msra.mxu0 0.0
    %3184 = vmatprep.subr.mxu0 0.0
    %3185 = vmatpush1.msra.mxu0 0.0
    %3186 = vmatprep.subr.mxu0 0.0
    %3187 = vmatpush1.msra.mxu0 0.0
    %3188 = vmatprep.subr.mxu0 0.0
    %3189 = vmatpush1.msra.mxu0 0.0
    %3190 = vmatprep.subr.mxu0 0.0
    %3191 = vmatpush1.msra.mxu0 0.0
    %3192 = vmatprep.subr.mxu0 0.0
    %3193 = vmatpush1.msra.mxu0 0.0
    %3194 = vmatprep.subr.mxu0 0.0
    %3195 = vmatpush1.msra.mxu0 0.0
    %3196 = vmatprep.subr.mxu0 0.0
    %3197 = vmatpush1.msra.mxu0 0.0
    %3198 = vmatprep.subr.mxu0 0.0
    %3199 = vmatpush1.msra.mxu0 0.0
    %3200 = vmatprep.subr.mxu0 0.0
    %3201 = vmatpush1.msra.mxu0 0.0
    %3202 = vmatprep.subr.mxu0 0.0
    %3203 = vmatpush1.msra.mxu0 0.0
    %3204 = vmatprep.subr.mxu0 0.0
    %3205 = vmatpush1.msra.mxu0 0.0
    %3206 = vmatprep.subr.mxu0 0.0
    %3207 = vmatpush1.msra.mxu0 0.0
    %3208 = vmatprep.subr.mxu0 0.0
    %3209 = vmatpush1.msra.mxu0 0.0
    %3210 = vmatprep.subr.mxu0 0.0
    %3211 = vmatpush1.msra.mxu0 0.0
    %3212 = vmatprep.subr.mxu0 0.0
    %3213 = vmatpush1.msra.mxu0 0.0
    %3214 = vmatprep.subr.mxu0 0.0
    %3215 = vmatpush1.msra.mxu0 0.0
    %3216 = vmatprep.subr.mxu0 0.0
    %3217 = vmatpush1.msra.mxu0 0.0
    %3218 = vmatprep.subr.mxu0 0.0
    %3219 = vmatpush1.msra.mxu0 0.0
    %3220 = vmatprep.subr.mxu0 0.0
    %3221 = vmatpush1.msra.mxu0 0.0
    %3222 = vmatprep.mubr.f32.mxu0 0.0
    %3223 = vmatmul.mubr.f32.gmra.mrb[0].mxu0 %v2368
    %v3224 = vpop.f32.mrb[0].mxu0
    %v3225 = vadd.f32 %v3151, %v3224
    %v3226 = vpop.f32.mrb[0].mxu0
    %v3227 = vadd.f32 %v3155, %v3226
    %3228 = vdwg.mxu0
    %v3229 = vadd.f32 %v3143, %v2363
    %v3230 = vld [vmem:[#allocation6] sm:$0xf]
    %v3231 = vmul.f32 %v3230, %v2792
    %v3232 = vadd.f32 %v2685, %v3231
    %v3233 = vmul.f32 %v3230, %v3230
    %v3234 = vadd.f32 %v2787, %v3233
    %v3235 = vadd.f32 %v3234, 1.837877
    %vm3236 = vcmask 44032
    %v3237 = vsel %vm3236, %v3235, 0.0
    %3238 = vadd.xlane.f32.xlu0 %v3237
    %v3239 = vpop.xlane.xlu0 %3238
    %v3240 = vmul.f32 %v3239, -0.5
    %v3241 = vmul.f32 %v3232, %v3232
    %v3242 = vadd.f32 %v3241, 1.837877
    %v3243 = vsel %vm3236, %v3242, 0.0
    %3244 = vadd.xlane.f32.xlu0 %v3243
    %v3245 = vpop.xlane.xlu0 %3244
    %v3246 = vmul.f32 %v3245, -0.5
    %v3247 = vld [vmem:[%s99] sm:$0x3f]
    %v3248 = vld [vmem:[%s99 + $0x8] sm:$0x3f]
    %vm3249 = vcmask 48128
    %v3251 = vsel %vm3249, %v3232, 0
    %vm3253 = vcmask 1045504
    %v3255 = vsel %vm3253, %v3247, 0
    %v3258 = vsel %vm3253, %v3248, 0
    %3260 = vmatprep.subr.mxu0 %v3258
    %3261 = vmatpush1.msra.mxu0 %v3255
    %3262 = vmatprep.subr.mxu0 0.0
    %3263 = vmatpush1.msra.mxu0 0.0
    %3264 = vmatprep.subr.mxu0 0.0
    %3265 = vmatpush1.msra.mxu0 0.0
    %3266 = vmatprep.subr.mxu0 0.0
    %3267 = vmatpush1.msra.mxu0 0.0
    %3268 = vmatprep.subr.mxu0 0.0
    %3269 = vmatpush1.msra.mxu0 0.0
    %3270 = vmatprep.subr.mxu0 0.0
    %3271 = vmatpush1.msra.mxu0 0.0
    %3272 = vmatprep.subr.mxu0 0.0
    %3273 = vmatpush1.msra.mxu0 0.0
    %3274 = vmatprep.subr.mxu0 0.0
    %3275 = vmatpush1.msra.mxu0 0.0
    %3276 = vmatprep.subr.mxu0 0.0
    %3277 = vmatpush1.msra.mxu0 0.0
    %3278 = vmatprep.subr.mxu0 0.0
    %3279 = vmatpush1.msra.mxu0 0.0
    %3280 = vmatprep.subr.mxu0 0.0
    %3281 = vmatpush1.msra.mxu0 0.0
    %3282 = vmatprep.subr.mxu0 0.0
    %3283 = vmatpush1.msra.mxu0 0.0
    %3284 = vmatprep.subr.mxu0 0.0
    %3285 = vmatpush1.msra.mxu0 0.0
    %3286 = vmatprep.subr.mxu0 0.0
    %3287 = vmatpush1.msra.mxu0 0.0
    %3288 = vmatprep.subr.mxu0 0.0
    %3289 = vmatpush1.msra.mxu0 0.0
    %3290 = vmatprep.subr.mxu0 0.0
    %3291 = vmatpush1.msra.mxu0 0.0
    %3292 = vmatprep.subr.mxu0 0.0
    %3293 = vmatpush1.msra.mxu0 0.0
    %3294 = vmatprep.subr.mxu0 0.0
    %3295 = vmatpush1.msra.mxu0 0.0
    %3296 = vmatprep.subr.mxu0 0.0
    %3297 = vmatpush1.msra.mxu0 0.0
    %3298 = vmatprep.subr.mxu0 0.0
    %3299 = vmatpush1.msra.mxu0 0.0
    %3300 = vmatprep.subr.mxu0 0.0
    %3301 = vmatpush1.msra.mxu0 0.0
    %3302 = vmatprep.subr.mxu0 0.0
    %3303 = vmatpush1.msra.mxu0 0.0
    %3304 = vmatprep.subr.mxu0 0.0
    %3305 = vmatpush1.msra.mxu0 0.0
    %3306 = vmatprep.subr.mxu0 0.0
    %3307 = vmatpush1.msra.mxu0 0.0
    %3308 = vmatprep.subr.mxu0 0.0
    %3309 = vmatpush1.msra.mxu0 0.0
    %3310 = vmatprep.subr.mxu0 0.0
    %3311 = vmatpush1.msra.mxu0 0.0
    %3312 = vmatprep.subr.mxu0 0.0
    %3313 = vmatpush1.msra.mxu0 0.0
    %3314 = vmatprep.subr.mxu0 0.0
    %3315 = vmatpush1.msra.mxu0 0.0
    %3316 = vmatprep.subr.mxu0 0.0
    %3317 = vmatpush1.msra.mxu0 0.0
    %3318 = vmatprep.subr.mxu0 0.0
    %3319 = vmatpush1.msra.mxu0 0.0
    %3320 = vmatprep.subr.mxu0 0.0
    %3321 = vmatpush1.msra.mxu0 0.0
    %3322 = vmatprep.subr.mxu0 0.0
    %3323 = vmatpush1.msra.mxu0 0.0
    %3324 = vmatprep.mubr.f32.mxu0 0.0
    %3325 = vmatmul.mubr.f32.gmra.mrb[0].mxu0 %v3251
    %v3326 = vpop.f32.mrb[0].mxu0
    %v3327 = vadd.f32 0.0, %v3326
    %v3328 = vpop.f32.mrb[0].mxu0
    %v3329 = vadd.f32 0.0, %v3328
    %3330 = vdwg.mxu0
    %v3331 = vadd.f32 %v3225, %v3327
    %v3332 = vadd.f32 %v3227, %v3329
    %v3333 = vmax.f32 %v3331, 0.0
    %v3334 = vmax.f32 %v3332, 0.0
    %v3335 = vld [vmem:[#allocation43] sm:$0xff]
    %v3336 = vld [vmem:[#allocation43 + $0x8] sm:$0xff]
    %v3337 = vld [vmem:[#allocation43 + $0x10] sm:$0xff]
    %v3338 = vld [vmem:[#allocation43 + $0x18] sm:$0xff]
    %v3339 = vld [vmem:[#allocation43 + $0x20] sm:$0xff]
    %v3340 = vld [vmem:[#allocation43 + $0x28] sm:$0xff]
    %v3341 = vld [vmem:[#allocation43 + $0x30] sm:$0xff]
    %v3342 = vld [vmem:[#allocation43 + $0x38] sm:$0xff]
    %v3343 = vld [vmem:[#allocation43 + $0x40] sm:$0xff]
    %v3344 = vld [vmem:[#allocation43 + $0x48] sm:$0xff]
    %v3345 = vld [vmem:[#allocation43 + $0x50] sm:$0xff]
    %v3346 = vld [vmem:[#allocation43 + $0x58] sm:$0xff]
    %v3347 = vld [vmem:[#allocation43 + $0x60] sm:$0xff]
    %v3348 = vld [vmem:[#allocation43 + $0x68] sm:$0xff]
    %v3349 = vld [vmem:[#allocation43 + $0x70] sm:$0xff]
    %v3350 = vld [vmem:[#allocation43 + $0x78] sm:$0xff]
    %v3351 = vld [vmem:[#allocation43 + $0x80] sm:$0xff]
    %v3352 = vld [vmem:[#allocation43 + $0x88] sm:$0xff]
    %v3353 = vld [vmem:[#allocation43 + $0x90] sm:$0xff]
    %v3354 = vld [vmem:[#allocation43 + $0x98] sm:$0xff]
    %v3355 = vld [vmem:[#allocation43 + $0xa0] sm:$0xff]
    %v3356 = vld [vmem:[#allocation43 + $0xa8] sm:$0xff]
    %v3357 = vld [vmem:[#allocation43 + $0xb0] sm:$0xff]
    %v3358 = vld [vmem:[#allocation43 + $0xb8] sm:$0xff]
    %v3359 = vld [vmem:[#allocation43 + $0xc0] sm:$0xff]
    %v3360 = vld [vmem:[#allocation43 + $0xc8] sm:$0xff]
    %v3361 = vld [vmem:[#allocation43 + $0xd0] sm:$0xff]
    %v3362 = vld [vmem:[#allocation43 + $0xd8] sm:$0xff]
    %v3363 = vld [vmem:[#allocation43 + $0xe0] sm:$0xff]
    %v3364 = vld [vmem:[#allocation43 + $0xe8] sm:$0xff]
    %v3365 = vld [vmem:[#allocation43 + $0xf0] sm:$0xff]
    %v3366 = vld [vmem:[#allocation43 + $0xf8] sm:$0xff]
    %v3367 = vld [vmem:[#allocation43 + $0x100] sm:$0xff]
    %v3368 = vld [vmem:[#allocation43 + $0x108] sm:$0xff]
    %v3369 = vld [vmem:[#allocation43 + $0x110] sm:$0xff]
    %v3370 = vld [vmem:[#allocation43 + $0x118] sm:$0xff]
    %v3371 = vld [vmem:[#allocation43 + $0x120] sm:$0xff]
    %v3372 = vld [vmem:[#allocation43 + $0x128] sm:$0xff]
    %v3373 = vld [vmem:[#allocation43 + $0x130] sm:$0xff]
    %v3374 = vld [vmem:[#allocation43 + $0x138] sm:$0xff]
    %v3375 = vld [vmem:[#allocation43 + $0x140] sm:$0xff]
    %v3376 = vld [vmem:[#allocation43 + $0x148] sm:$0xff]
    %v3377 = vld [vmem:[#allocation43 + $0x150] sm:$0xff]
    %v3378 = vld [vmem:[#allocation43 + $0x158] sm:$0xff]
    %v3379 = vld [vmem:[#allocation43 + $0x160] sm:$0xff]
    %v3380 = vld [vmem:[#allocation43 + $0x168] sm:$0xff]
    %v3381 = vld [vmem:[#allocation43 + $0x170] sm:$0xff]
    %v3382 = vld [vmem:[#allocation43 + $0x178] sm:$0xff]
    %v3383 = vld [vmem:[#allocation43 + $0x180] sm:$0xff]
    %v3384 = vld [vmem:[#allocation43 + $0x188] sm:$0xff]
    %v3385 = vld [vmem:[%s105] sm:$0x3]
    %v3387 = vlaneseq
    %v3388 = vshrl.u32 %v3387, 7
    %v3389 = vsub.s32 0, %v3388
    %v3390 = vrot.slane %v3385, %v3389
    %v3391 = vlaneseq
    %v3392 = vshrl.u32 %v3391, 7
    %v3393 = vsub.s32 1, %v3392
    %v3394 = vrot.slane %v3385, %v3393
    %v3398 = vsel %vm722, %v3334, 0
    %3400 = vmatprep.subr.mxu0 %v3336
    %3401 = vmatpush1.msra.mxu0 %v3335
    %3402 = vmatprep.subr.mxu0 %v3338
    %3403 = vmatpush1.msra.mxu0 %v3337
    %3404 = vmatprep.subr.mxu0 %v3340
    %3405 = vmatpush1.msra.mxu0 %v3339
    %3406 = vmatprep.subr.mxu0 %v3342
    %3407 = vmatpush1.msra.mxu0 %v3341
    %3408 = vmatprep.subr.mxu0 %v3344
    %3409 = vmatpush1.msra.mxu0 %v3343
    %3410 = vmatprep.subr.mxu0 %v3346
    %3411 = vmatpush1.msra.mxu0 %v3345
    %3412 = vmatprep.subr.mxu0 %v3348
    %3413 = vmatpush1.msra.mxu0 %v3347
    %3414 = vmatprep.subr.mxu0 %v3350
    %3415 = vmatpush1.msra.mxu0 %v3349
    %3416 = vmatprep.subr.mxu0 %v3352
    %3417 = vmatpush1.msra.mxu0 %v3351
    %3418 = vmatprep.subr.mxu0 %v3354
    %3419 = vmatpush1.msra.mxu0 %v3353
    %3420 = vmatprep.subr.mxu0 %v3356
    %3421 = vmatpush1.msra.mxu0 %v3355
    %3422 = vmatprep.subr.mxu0 %v3358
    %3423 = vmatpush1.msra.mxu0 %v3357
    %3424 = vmatprep.subr.mxu0 %v3360
    %3425 = vmatpush1.msra.mxu0 %v3359
    %3426 = vmatprep.subr.mxu0 %v3362
    %3427 = vmatpush1.msra.mxu0 %v3361
    %3428 = vmatprep.subr.mxu0 %v3364
    %3429 = vmatpush1.msra.mxu0 %v3363
    %3430 = vmatprep.subr.mxu0 %v3366
    %3431 = vmatpush1.msra.mxu0 %v3365
    %3432 = vmatprep.subr.mxu0 %v3368
    %3433 = vmatpush1.msra.mxu0 %v3367
    %3434 = vmatprep.subr.mxu0 %v3370
    %3435 = vmatpush1.msra.mxu0 %v3369
    %3436 = vmatprep.subr.mxu0 %v3372
    %3437 = vmatpush1.msra.mxu0 %v3371
    %3438 = vmatprep.subr.mxu0 %v3374
    %3439 = vmatpush1.msra.mxu0 %v3373
    %3440 = vmatprep.subr.mxu0 %v3376
    %3441 = vmatpush1.msra.mxu0 %v3375
    %3442 = vmatprep.subr.mxu0 %v3378
    %3443 = vmatpush1.msra.mxu0 %v3377
    %3444 = vmatprep.subr.mxu0 %v3380
    %3445 = vmatpush1.msra.mxu0 %v3379
    %3446 = vmatprep.subr.mxu0 %v3382
    %3447 = vmatpush1.msra.mxu0 %v3381
    %3448 = vmatprep.subr.mxu0 %v3384
    %3449 = vmatpush1.msra.mxu0 %v3383
    %3450 = vmatprep.subr.mxu0 0.0
    %3451 = vmatpush1.msra.mxu0 0.0
    %3452 = vmatprep.subr.mxu0 0.0
    %3453 = vmatpush1.msra.mxu0 0.0
    %3454 = vmatprep.subr.mxu0 0.0
    %3455 = vmatpush1.msra.mxu0 0.0
    %3456 = vmatprep.subr.mxu0 0.0
    %3457 = vmatpush1.msra.mxu0 0.0
    %3458 = vmatprep.subr.mxu0 0.0
    %3459 = vmatpush1.msra.mxu0 0.0
    %3460 = vmatprep.subr.mxu0 0.0
    %3461 = vmatpush1.msra.mxu0 0.0
    %3462 = vmatprep.subr.mxu0 0.0
    %3463 = vmatpush1.msra.mxu0 0.0
    %3464 = vmatprep.mubr.f32.mxu0 %v3398
    %3465 = vmatmul.mubr.f32.gmra.mrb[0].mxu0 %v3333
    %v3466 = vpop.f32.mrb[0].mxu0
    %v3467 = vadd.f32 %v3390, %v3466
    %v3468 = vpop.f32.mrb[0].mxu0
    %v3469 = vadd.f32 %v3394, %v3468
    %3470 = vdwg.mxu0
    %v3471 = vmax.f32 %v3467, 0.0
    %v3472 = vmax.f32 %v3469, 0.0
    %v3473 = vld [vmem:[%s107] sm:$0xff]
    %v3474 = vld [vmem:[%s107 + $0x8] sm:$0xff]
    %v3475 = vld [vmem:[%s107 + $0x10] sm:$0xff]
    %v3476 = vld [vmem:[%s107 + $0x18] sm:$0xff]
    %v3477 = vld [vmem:[%s107 + $0x20] sm:$0xff]
    %v3478 = vld [vmem:[%s107 + $0x28] sm:$0xff]
    %v3479 = vld [vmem:[%s107 + $0x30] sm:$0xff]
    %v3480 = vld [vmem:[%s107 + $0x38] sm:$0xff]
    %v3481 = vld [vmem:[%s107 + $0x40] sm:$0xff]
    %v3482 = vld [vmem:[%s107 + $0x48] sm:$0xff]
    %v3483 = vld [vmem:[%s107 + $0x50] sm:$0xff]
    %v3484 = vld [vmem:[%s107 + $0x58] sm:$0xff]
    %v3485 = vld [vmem:[%s107 + $0x60] sm:$0xff]
    %v3486 = vld [vmem:[%s107 + $0x68] sm:$0xff]
    %v3487 = vld [vmem:[%s107 + $0x70] sm:$0xff]
    %v3488 = vld [vmem:[%s107 + $0x78] sm:$0xff]
    %v3489 = vld [vmem:[%s107 + $0x80] sm:$0xff]
    %v3490 = vld [vmem:[%s107 + $0x88] sm:$0xff]
    %v3491 = vld [vmem:[%s107 + $0x90] sm:$0xff]
    %v3492 = vld [vmem:[%s107 + $0x98] sm:$0xff]
    %v3493 = vld [vmem:[%s107 + $0xa0] sm:$0xff]
    %v3494 = vld [vmem:[%s107 + $0xa8] sm:$0xff]
    %v3495 = vld [vmem:[%s107 + $0xb0] sm:$0xff]
    %v3496 = vld [vmem:[%s107 + $0xb8] sm:$0xff]
    %v3497 = vld [vmem:[%s107 + $0xc0] sm:$0xff]
    %v3498 = vld [vmem:[%s109] sm:$0x1]
    %v3500 = vlaneseq
    %v3501 = vshrl.u32 %v3500, 7
    %v3502 = vsub.s32 0, %v3501
    %v3503 = vrot.slane %v3498, %v3502
    %v3506 = vsel %vm722, %v3472, 0
    %3508 = vmatprep.subr.mxu0 0.0
    %3509 = vmatpush1.msra.mxu0 %v3473
    %3510 = vmatprep.subr.mxu0 0.0
    %3511 = vmatpush1.msra.mxu0 %v3474
    %3512 = vmatprep.subr.mxu0 0.0
    %3513 = vmatpush1.msra.mxu0 %v3475
    %3514 = vmatprep.subr.mxu0 0.0
    %3515 = vmatpush1.msra.mxu0 %v3476
    %3516 = vmatprep.subr.mxu0 0.0
    %3517 = vmatpush1.msra.mxu0 %v3477
    %3518 = vmatprep.subr.mxu0 0.0
    %3519 = vmatpush1.msra.mxu0 %v3478
    %3520 = vmatprep.subr.mxu0 0.0
    %3521 = vmatpush1.msra.mxu0 %v3479
    %3522 = vmatprep.subr.mxu0 0.0
    %3523 = vmatpush1.msra.mxu0 %v3480
    %3524 = vmatprep.subr.mxu0 0.0
    %3525 = vmatpush1.msra.mxu0 %v3481
    %3526 = vmatprep.subr.mxu0 0.0
    %3527 = vmatpush1.msra.mxu0 %v3482
    %3528 = vmatprep.subr.mxu0 0.0
    %3529 = vmatpush1.msra.mxu0 %v3483
    %3530 = vmatprep.subr.mxu0 0.0
    %3531 = vmatpush1.msra.mxu0 %v3484
    %3532 = vmatprep.subr.mxu0 0.0
    %3533 = vmatpush1.msra.mxu0 %v3485
    %3534 = vmatprep.subr.mxu0 0.0
    %3535 = vmatpush1.msra.mxu0 %v3486
    %3536 = vmatprep.subr.mxu0 0.0
    %3537 = vmatpush1.msra.mxu0 %v3487
    %3538 = vmatprep.subr.mxu0 0.0
    %3539 = vmatpush1.msra.mxu0 %v3488
    %3540 = vmatprep.subr.mxu0 0.0
    %3541 = vmatpush1.msra.mxu0 %v3489
    %3542 = vmatprep.subr.mxu0 0.0
    %3543 = vmatpush1.msra.mxu0 %v3490
    %3544 = vmatprep.subr.mxu0 0.0
    %3545 = vmatpush1.msra.mxu0 %v3491
    %3546 = vmatprep.subr.mxu0 0.0
    %3547 = vmatpush1.msra.mxu0 %v3492
    %3548 = vmatprep.subr.mxu0 0.0
    %3549 = vmatpush1.msra.mxu0 %v3493
    %3550 = vmatprep.subr.mxu0 0.0
    %3551 = vmatpush1.msra.mxu0 %v3494
    %3552 = vmatprep.subr.mxu0 0.0
    %3553 = vmatpush1.msra.mxu0 %v3495
    %3554 = vmatprep.subr.mxu0 0.0
    %3555 = vmatpush1.msra.mxu0 %v3496
    %3556 = vmatprep.subr.mxu0 0.0
    %3557 = vmatpush1.msra.mxu0 %v3497
    %3558 = vmatprep.subr.mxu0 0.0
    %3559 = vmatpush1.msra.mxu0 0.0
    %3560 = vmatprep.subr.mxu0 0.0
    %3561 = vmatpush1.msra.mxu0 0.0
    %3562 = vmatprep.subr.mxu0 0.0
    %3563 = vmatpush1.msra.mxu0 0.0
    %3564 = vmatprep.subr.mxu0 0.0
    %3565 = vmatpush1.msra.mxu0 0.0
    %3566 = vmatprep.subr.mxu0 0.0
    %3567 = vmatpush1.msra.mxu0 0.0
    %3568 = vmatprep.subr.mxu0 0.0
    %3569 = vmatpush1.msra.mxu0 0.0
    %3570 = vmatprep.subr.mxu0 0.0
    %3571 = vmatpush1.msra.mxu0 0.0
    %3572 = vmatprep.mubr.f32.mxu0 %v3506
    %3573 = vmatmul.mubr.f32.gmra.mrb[0].mxu0 %v3471
    %v3574 = vpop.f32.mrb[0].mxu0
    %v3575 = vadd.f32 %v3503, %v3574
    %v3576 = vpop.f32.mrb[0].mxu0
    %3577 = vdwg.mxu0
    %v3578 = vmax.f32 %v3575, 0.0
    %v3579 = vand.u32 2147483647, %v3575
    %v3580 = vsub.f32 0.0, %v3579
    %v3581 = vmul.f32 %v3580, 1.442695
    %v3582 = vpow.pop %v3581
    %v3583 = vadd.f32 %v3582, 1.0
    %v3584 = vlog2.pop %v3583
    %v3585 = vmul.f32 %v3584, 0.6931472
    %v3586 = vmul.f32 -0.5, %v3582
    %v3587 = vadd.f32 %v3586, 1.0
    %v3588 = vmul.f32 %v3587, %v3582
    %v3589 = vand.u32 2147483647, %v3582
    %vm3590 = vcmp.lt.f32.partialorder %v3589, 0.0004427343
    %v3591 = vsel %vm3590, %v3588, %v3585
    %v3592 = vadd.f32 %v3578, %v3591
    %v3593 = vmul.f32 %v565, %v3575
    %v3594 = vsub.f32 %v3593, %v3592
    %vm3595 = vcmask 125952
    %v3596 = vsel %vm3595, %v3594, 0.0
    %3597 = vadd.xlane.f32.xlu0 %v3596
    %v3598 = vpop.xlane.xlu0 %3597
    %v3599 = vadd.f32 %v3598, %v3229
    %v3600 = vadd.f32 %v3599, %v3246
    %v3601 = vsub.f32 %v3600, %v3240
    %s3602 = scalar_lea.vmem [#allocation6], 4
    %v3603 = vld [vmem:[%s3602] sm:$0xf]
    %v3604 = vmul.f32 %v3603, %v2792
    %v3605 = vadd.f32 %v2685, %v3604
    %v3606 = vmul.f32 %v3603, %v3603
    %v3607 = vadd.f32 %v2787, %v3606
    %v3608 = vadd.f32 %v3607, 1.837877
    %v3609 = vsel %vm3236, %v3608, 0.0
    %3610 = vadd.xlane.f32.xlu0 %v3609
    %v3611 = vpop.xlane.xlu0 %3610
    %v3612 = vmul.f32 %v3611, -0.5
    %v3613 = vmul.f32 %v3605, %v3605
    %v3614 = vadd.f32 %v3613, 1.837877
    %v3615 = vsel %vm3236, %v3614, 0.0
    %3616 = vadd.xlane.f32.xlu0 %v3615
    %v3617 = vpop.xlane.xlu0 %3616
    %v3618 = vmul.f32 %v3617, -0.5
    %v3620 = vsel %vm3249, %v3605, 0
    %3622 = vmatprep.subr.mxu0 %v3258
    %3623 = vmatpush1.msra.mxu0 %v3255
    %3624 = vmatprep.subr.mxu0 0.0
    %3625 = vmatpush1.msra.mxu0 0.0
    %3626 = vmatprep.subr.mxu0 0.0
    %3627 = vmatpush1.msra.mxu0 0.0
    %3628 = vmatprep.subr.mxu0 0.0
    %3629 = vmatpush1.msra.mxu0 0.0
    %3630 = vmatprep.subr.mxu0 0.0
    %3631 = vmatpush1.msra.mxu0 0.0
    %3632 = vmatprep.subr.mxu0 0.0
    %3633 = vmatpush1.msra.mxu0 0.0
    %3634 = vmatprep.subr.mxu0 0.0
    %3635 = vmatpush1.msra.mxu0 0.0
    %3636 = vmatprep.subr.mxu0 0.0
    %3637 = vmatpush1.msra.mxu0 0.0
    %3638 = vmatprep.subr.mxu0 0.0
    %3639 = vmatpush1.msra.mxu0 0.0
    %3640 = vmatprep.subr.mxu0 0.0
    %3641 = vmatpush1.msra.mxu0 0.0
    %3642 = vmatprep.subr.mxu0 0.0
    %3643 = vmatpush1.msra.mxu0 0.0
    %3644 = vmatprep.subr.mxu0 0.0
    %3645 = vmatpush1.msra.mxu0 0.0
    %3646 = vmatprep.subr.mxu0 0.0
    %3647 = vmatpush1.msra.mxu0 0.0
    %3648 = vmatprep.subr.mxu0 0.0
    %3649 = vmatpush1.msra.mxu0 0.0
    %3650 = vmatprep.subr.mxu0 0.0
    %3651 = vmatpush1.msra.mxu0 0.0
    %3652 = vmatprep.subr.mxu0 0.0
    %3653 = vmatpush1.msra.mxu0 0.0
    %3654 = vmatprep.subr.mxu0 0.0
    %3655 = vmatpush1.msra.mxu0 0.0
    %3656 = vmatprep.subr.mxu0 0.0
    %3657 = vmatpush1.msra.mxu0 0.0
    %3658 = vmatprep.subr.mxu0 0.0
    %3659 = vmatpush1.msra.mxu0 0.0
    %3660 = vmatprep.subr.mxu0 0.0
    %3661 = vmatpush1.msra.mxu0 0.0
    %3662 = vmatprep.subr.mxu0 0.0
    %3663 = vmatpush1.msra.mxu0 0.0
    %3664 = vmatprep.subr.mxu0 0.0
    %3665 = vmatpush1.msra.mxu0 0.0
    %3666 = vmatprep.subr.mxu0 0.0
    %3667 = vmatpush1.msra.mxu0 0.0
    %3668 = vmatprep.subr.mxu0 0.0
    %3669 = vmatpush1.msra.mxu0 0.0
    %3670 = vmatprep.subr.mxu0 0.0
    %3671 = vmatpush1.msra.mxu0 0.0
    %3672 = vmatprep.subr.mxu0 0.0
    %3673 = vmatpush1.msra.mxu0 0.0
    %3674 = vmatprep.subr.mxu0 0.0
    %3675 = vmatpush1.msra.mxu0 0.0
    %3676 = vmatprep.subr.mxu0 0.0
    %3677 = vmatpush1.msra.mxu0 0.0
    %3678 = vmatprep.subr.mxu0 0.0
    %3679 = vmatpush1.msra.mxu0 0.0
    %3680 = vmatprep.subr.mxu0 0.0
    %3681 = vmatpush1.msra.mxu0 0.0
    %3682 = vmatprep.subr.mxu0 0.0
    %3683 = vmatpush1.msra.mxu0 0.0
    %3684 = vmatprep.subr.mxu0 0.0
    %3685 = vmatpush1.msra.mxu0 0.0
    %3686 = vmatprep.mubr.f32.mxu0 0.0
    %3687 = vmatmul.mubr.f32.gmra.mrb[0].mxu0 %v3620
    %v3688 = vpop.f32.mrb[0].mxu0
    %v3689 = vadd.f32 0.0, %v3688
    %v3690 = vpop.f32.mrb[0].mxu0
    %v3691 = vadd.f32 0.0, %v3690
    %3692 = vdwg.mxu0
    %v3693 = vadd.f32 %v3225, %v3689
    %v3694 = vadd.f32 %v3227, %v3691
    %v3695 = vmax.f32 %v3693, 0.0
    %v3696 = vmax.f32 %v3694, 0.0
    %v3698 = vsel %vm722, %v3696, 0
    %3700 = vmatprep.subr.mxu0 %v3336
    %3701 = vmatpush1.msra.mxu0 %v3335
    %3702 = vmatprep.subr.mxu0 %v3338
    %3703 = vmatpush1.msra.mxu0 %v3337
    %3704 = vmatprep.subr.mxu0 %v3340
    %3705 = vmatpush1.msra.mxu0 %v3339
    %3706 = vmatprep.subr.mxu0 %v3342
    %3707 = vmatpush1.msra.mxu0 %v3341
    %3708 = vmatprep.subr.mxu0 %v3344
    %3709 = vmatpush1.msra.mxu0 %v3343
    %3710 = vmatprep.subr.mxu0 %v3346
    %3711 = vmatpush1.msra.mxu0 %v3345
    %3712 = vmatprep.subr.mxu0 %v3348
    %3713 = vmatpush1.msra.mxu0 %v3347
    %3714 = vmatprep.subr.mxu0 %v3350
    %3715 = vmatpush1.msra.mxu0 %v3349
    %3716 = vmatprep.subr.mxu0 %v3352
    %3717 = vmatpush1.msra.mxu0 %v3351
    %3718 = vmatprep.subr.mxu0 %v3354
    %3719 = vmatpush1.msra.mxu0 %v3353
    %3720 = vmatprep.subr.mxu0 %v3356
    %3721 = vmatpush1.msra.mxu0 %v3355
    %3722 = vmatprep.subr.mxu0 %v3358
    %3723 = vmatpush1.msra.mxu0 %v3357
    %3724 = vmatprep.subr.mxu0 %v3360
    %3725 = vmatpush1.msra.mxu0 %v3359
    %3726 = vmatprep.subr.mxu0 %v3362
    %3727 = vmatpush1.msra.mxu0 %v3361
    %3728 = vmatprep.subr.mxu0 %v3364
    %3729 = vmatpush1.msra.mxu0 %v3363
    %3730 = vmatprep.subr.mxu0 %v3366
    %3731 = vmatpush1.msra.mxu0 %v3365
    %3732 = vmatprep.subr.mxu0 %v3368
    %3733 = vmatpush1.msra.mxu0 %v3367
    %3734 = vmatprep.subr.mxu0 %v3370
    %3735 = vmatpush1.msra.mxu0 %v3369
    %3736 = vmatprep.subr.mxu0 %v3372
    %3737 = vmatpush1.msra.mxu0 %v3371
    %3738 = vmatprep.subr.mxu0 %v3374
    %3739 = vmatpush1.msra.mxu0 %v3373
    %3740 = vmatprep.subr.mxu0 %v3376
    %3741 = vmatpush1.msra.mxu0 %v3375
    %3742 = vmatprep.subr.mxu0 %v3378
    %3743 = vmatpush1.msra.mxu0 %v3377
    %3744 = vmatprep.subr.mxu0 %v3380
    %3745 = vmatpush1.msra.mxu0 %v3379
    %3746 = vmatprep.subr.mxu0 %v3382
    %3747 = vmatpush1.msra.mxu0 %v3381
    %3748 = vmatprep.subr.mxu0 %v3384
    %3749 = vmatpush1.msra.mxu0 %v3383
    %3750 = vmatprep.subr.mxu0 0.0
    %3751 = vmatpush1.msra.mxu0 0.0
    %3752 = vmatprep.subr.mxu0 0.0
    %3753 = vmatpush1.msra.mxu0 0.0
    %3754 = vmatprep.subr.mxu0 0.0
    %3755 = vmatpush1.msra.mxu0 0.0
    %3756 = vmatprep.subr.mxu0 0.0
    %3757 = vmatpush1.msra.mxu0 0.0
    %3758 = vmatprep.subr.mxu0 0.0
    %3759 = vmatpush1.msra.mxu0 0.0
    %3760 = vmatprep.subr.mxu0 0.0
    %3761 = vmatpush1.msra.mxu0 0.0
    %3762 = vmatprep.subr.mxu0 0.0
    %3763 = vmatpush1.msra.mxu0 0.0
    %3764 = vmatprep.mubr.f32.mxu0 %v3698
    %3765 = vmatmul.mubr.f32.gmra.mrb[0].mxu0 %v3695
    %v3766 = vpop.f32.mrb[0].mxu0
    %v3767 = vadd.f32 %v3390, %v3766
    %v3768 = vpop.f32.mrb[0].mxu0
    %v3769 = vadd.f32 %v3394, %v3768
    %3770 = vdwg.mxu0
    %v3771 = vmax.f32 %v3767, 0.0
    %v3772 = vmax.f32 %v3769, 0.0
    %v3774 = vsel %vm722, %v3772, 0
    %3776 = vmatprep.subr.mxu0 0.0
    %3777 = vmatpush1.msra.mxu0 %v3473
    %3778 = vmatprep.subr.mxu0 0.0
    %3779 = vmatpush1.msra.mxu0 %v3474
    %3780 = vmatprep.subr.mxu0 0.0
    %3781 = vmatpush1.msra.mxu0 %v3475
    %3782 = vmatprep.subr.mxu0 0.0
    %3783 = vmatpush1.msra.mxu0 %v3476
    %3784 = vmatprep.subr.mxu0 0.0
    %3785 = vmatpush1.msra.mxu0 %v3477
    %3786 = vmatprep.subr.mxu0 0.0
    %3787 = vmatpush1.msra.mxu0 %v3478
    %3788 = vmatprep.subr.mxu0 0.0
    %3789 = vmatpush1.msra.mxu0 %v3479
    %3790 = vmatprep.subr.mxu0 0.0
    %3791 = vmatpush1.msra.mxu0 %v3480
    %3792 = vmatprep.subr.mxu0 0.0
    %3793 = vmatpush1.msra.mxu0 %v3481
    %3794 = vmatprep.subr.mxu0 0.0
    %3795 = vmatpush1.msra.mxu0 %v3482
    %3796 = vmatprep.subr.mxu0 0.0
    %3797 = vmatpush1.msra.mxu0 %v3483
    %3798 = vmatprep.subr.mxu0 0.0
    %3799 = vmatpush1.msra.mxu0 %v3484
    %3800 = vmatprep.subr.mxu0 0.0
    %3801 = vmatpush1.msra.mxu0 %v3485
    %3802 = vmatprep.subr.mxu0 0.0
    %3803 = vmatpush1.msra.mxu0 %v3486
    %3804 = vmatprep.subr.mxu0 0.0
    %3805 = vmatpush1.msra.mxu0 %v3487
    %3806 = vmatprep.subr.mxu0 0.0
    %3807 = vmatpush1.msra.mxu0 %v3488
    %3808 = vmatprep.subr.mxu0 0.0
    %3809 = vmatpush1.msra.mxu0 %v3489
    %3810 = vmatprep.subr.mxu0 0.0
    %3811 = vmatpush1.msra.mxu0 %v3490
    %3812 = vmatprep.subr.mxu0 0.0
    %3813 = vmatpush1.msra.mxu0 %v3491
    %3814 = vmatprep.subr.mxu0 0.0
    %3815 = vmatpush1.msra.mxu0 %v3492
    %3816 = vmatprep.subr.mxu0 0.0
    %3817 = vmatpush1.msra.mxu0 %v3493
    %3818 = vmatprep.subr.mxu0 0.0
    %3819 = vmatpush1.msra.mxu0 %v3494
    %3820 = vmatprep.subr.mxu0 0.0
    %3821 = vmatpush1.msra.mxu0 %v3495
    %3822 = vmatprep.subr.mxu0 0.0
    %3823 = vmatpush1.msra.mxu0 %v3496
    %3824 = vmatprep.subr.mxu0 0.0
    %3825 = vmatpush1.msra.mxu0 %v3497
    %3826 = vmatprep.subr.mxu0 0.0
    %3827 = vmatpush1.msra.mxu0 0.0
    %3828 = vmatprep.subr.mxu0 0.0
    %3829 = vmatpush1.msra.mxu0 0.0
    %3830 = vmatprep.subr.mxu0 0.0
    %3831 = vmatpush1.msra.mxu0 0.0
    %3832 = vmatprep.subr.mxu0 0.0
    %3833 = vmatpush1.msra.mxu0 0.0
    %3834 = vmatprep.subr.mxu0 0.0
    %3835 = vmatpush1.msra.mxu0 0.0
    %3836 = vmatprep.subr.mxu0 0.0
    %3837 = vmatpush1.msra.mxu0 0.0
    %3838 = vmatprep.subr.mxu0 0.0
    %3839 = vmatpush1.msra.mxu0 0.0
    %3840 = vmatprep.mubr.f32.mxu0 %v3774
    %3841 = vmatmul.mubr.f32.gmra.mrb[0].mxu0 %v3771
    %v3842 = vpop.f32.mrb[0].mxu0
    %v3843 = vadd.f32 %v3503, %v3842
    %v3844 = vpop.f32.mrb[0].mxu0
    %3845 = vdwg.mxu0
    %v3846 = vmax.f32 %v3843, 0.0
    %v3847 = vand.u32 2147483647, %v3843
    %v3848 = vsub.f32 0.0, %v3847
    %v3849 = vmul.f32 %v3848, 1.442695
    %v3850 = vpow.pop %v3849
    %v3851 = vadd.f32 %v3850, 1.0
    %v3852 = vlog2.pop %v3851
    %v3853 = vmul.f32 %v3852, 0.6931472
    %v3854 = vmul.f32 -0.5, %v3850
    %v3855 = vadd.f32 %v3854, 1.0
    %v3856 = vmul.f32 %v3855, %v3850
    %v3857 = vand.u32 2147483647, %v3850
    %vm3858 = vcmp.lt.f32.partialorder %v3857, 0.0004427343
    %v3859 = vsel %vm3858, %v3856, %v3853
    %v3860 = vadd.f32 %v3846, %v3859
    %v3861 = vmul.f32 %v565, %v3843
    %v3862 = vsub.f32 %v3861, %v3860
    %v3863 = vsel %vm3595, %v3862, 0.0
    %3864 = vadd.xlane.f32.xlu0 %v3863
    %v3865 = vpop.xlane.xlu0 %3864
    %v3866 = vadd.f32 %v3865, %v3229
    %v3867 = vadd.f32 %v3866, %v3618
    %v3868 = vsub.f32 %v3867, %v3612
    %v3869 = vmax.f32 %v3601, %v3868
    %v3870 = vsub.f32 %v3601, %v3869
    %v3871 = vmul.f32 %v3870, 1.442695
    %v3872 = vpow.pop %v3871
    %v3873 = vsub.f32 %v3868, %v3869
    %v3874 = vmul.f32 %v3873, 1.442695
    %v3875 = vpow.pop %v3874
    %v3876 = vadd.f32 %v3872, %v3875
    %v3877 = vlog2.pop %v3876
    %v3878 = vmul.f32 %v3877, 0.6931472
    %v3879 = vadd.f32 %v3869, %v3878
    %v3880 = vsub.f32 %v3879, 0.6931472
    %v3881 = vsub.f32 %v3880, %v2357
    %v3882 = vadd.f32 %v3881, 0.0
    %s3883 = scalar_lea.vmem [#allocation4], 4
    %v3884 = vld [vmem:[%s3883] sm:$0xf]
    %v3885 = vmul.f32 %v3884, %v1472
    %v3886 = vadd.f32 %v1463, %v3885
    %v3887 = vmul.f32 %v3884, %v3884
    %v3888 = vadd.f32 %v1465, %v3887
    %v3889 = vadd.f32 %v3888, 1.837877
    %v3890 = vsel %vm2353, %v3889, 0.0
    %3891 = vadd.xlane.f32.xlu0 %v3890
    %v3892 = vpop.xlane.xlu0 %3891
    %v3893 = vmul.f32 %v3892, -0.5
    %v3894 = vmul.f32 %v3886, %v3886
    %v3895 = vadd.f32 %v3894, 1.837877
    %v3896 = vsel %vm2353, %v3895, 0.0
    %3897 = vadd.xlane.f32.xlu0 %v3896
    %v3898 = vpop.xlane.xlu0 %3897
    %v3899 = vmul.f32 %v3898, -0.5
    %v3901 = vsel %vm2366, %v3886, 0
    %3903 = vmatprep.subr.mxu0 %v2365
    %3904 = vmatpush1.msra.mxu0 %v2364
    %3905 = vmatprep.subr.mxu0 0.0
    %3906 = vmatpush1.msra.mxu0 0.0
    %3907 = vmatprep.subr.mxu0 0.0
    %3908 = vmatpush1.msra.mxu0 0.0
    %3909 = vmatprep.subr.mxu0 0.0
    %3910 = vmatpush1.msra.mxu0 0.0
    %3911 = vmatprep.subr.mxu0 0.0
    %3912 = vmatpush1.msra.mxu0 0.0
    %3913 = vmatprep.subr.mxu0 0.0
    %3914 = vmatpush1.msra.mxu0 0.0
    %3915 = vmatprep.subr.mxu0 0.0
    %3916 = vmatpush1.msra.mxu0 0.0
    %3917 = vmatprep.subr.mxu0 0.0
    %3918 = vmatpush1.msra.mxu0 0.0
    %3919 = vmatprep.subr.mxu0 0.0
    %3920 = vmatpush1.msra.mxu0 0.0
    %3921 = vmatprep.subr.mxu0 0.0
    %3922 = vmatpush1.msra.mxu0 0.0
    %3923 = vmatprep.subr.mxu0 0.0
    %3924 = vmatpush1.msra.mxu0 0.0
    %3925 = vmatprep.subr.mxu0 0.0
    %3926 = vmatpush1.msra.mxu0 0.0
    %3927 = vmatprep.subr.mxu0 0.0
    %3928 = vmatpush1.msra.mxu0 0.0
    %3929 = vmatprep.subr.mxu0 0.0
    %3930 = vmatpush1.msra.mxu0 0.0
    %3931 = vmatprep.subr.mxu0 0.0
    %3932 = vmatpush1.msra.mxu0 0.0
    %3933 = vmatprep.subr.mxu0 0.0
    %3934 = vmatpush1.msra.mxu0 0.0
    %3935 = vmatprep.subr.mxu0 0.0
    %3936 = vmatpush1.msra.mxu0 0.0
    %3937 = vmatprep.subr.mxu0 0.0
    %3938 = vmatpush1.msra.mxu0 0.0
    %3939 = vmatprep.subr.mxu0 0.0
    %3940 = vmatpush1.msra.mxu0 0.0
    %3941 = vmatprep.subr.mxu0 0.0
    %3942 = vmatpush1.msra.mxu0 0.0
    %3943 = vmatprep.subr.mxu0 0.0
    %3944 = vmatpush1.msra.mxu0 0.0
    %3945 = vmatprep.subr.mxu0 0.0
    %3946 = vmatpush1.msra.mxu0 0.0
    %3947 = vmatprep.subr.mxu0 0.0
    %3948 = vmatpush1.msra.mxu0 0.0
    %3949 = vmatprep.subr.mxu0 0.0
    %3950 = vmatpush1.msra.mxu0 0.0
    %3951 = vmatprep.subr.mxu0 0.0
    %3952 = vmatpush1.msra.mxu0 0.0
    %3953 = vmatprep.subr.mxu0 0.0
    %3954 = vmatpush1.msra.mxu0 0.0
    %3955 = vmatprep.subr.mxu0 0.0
    %3956 = vmatpush1.msra.mxu0 0.0
    %3957 = vmatprep.subr.mxu0 0.0
    %3958 = vmatpush1.msra.mxu0 0.0
    %3959 = vmatprep.subr.mxu0 0.0
    %3960 = vmatpush1.msra.mxu0 0.0
    %3961 = vmatprep.subr.mxu0 0.0
    %3962 = vmatpush1.msra.mxu0 0.0
    %3963 = vmatprep.subr.mxu0 0.0
    %3964 = vmatpush1.msra.mxu0 0.0
    %3965 = vmatprep.subr.mxu0 0.0
    %3966 = vmatpush1.msra.mxu0 0.0
    %3967 = vmatprep.mubr.f32.mxu0 0.0
    %3968 = vmatmul.mubr.f32.gmra.mrb[0].mxu0 %v3901
    %v3969 = vpop.f32.mrb[0].mxu0
    %v3970 = vadd.f32 0.0, %v3969
    %v3971 = vpop.f32.mrb[0].mxu0
    %v3972 = vadd.f32 0.0, %v3971
    %3973 = vdwg.mxu0
    %v3974 = vadd.f32 %v2345, %v3970
    %v3975 = vadd.f32 %v2346, %v3972
    %v3976 = vmax.f32 %v3974, 0.0
    %v3977 = vmax.f32 %v3975, 0.0
    %v3979 = vsel %vm722, %v3977, 0
    %3981 = vmatprep.subr.mxu0 %v2446
    %3982 = vmatpush1.msra.mxu0 %v2445
    %3983 = vmatprep.subr.mxu0 %v2448
    %3984 = vmatpush1.msra.mxu0 %v2447
    %3985 = vmatprep.subr.mxu0 %v2450
    %3986 = vmatpush1.msra.mxu0 %v2449
    %3987 = vmatprep.subr.mxu0 %v2452
    %3988 = vmatpush1.msra.mxu0 %v2451
    %3989 = vmatprep.subr.mxu0 %v2454
    %3990 = vmatpush1.msra.mxu0 %v2453
    %3991 = vmatprep.subr.mxu0 %v2456
    %3992 = vmatpush1.msra.mxu0 %v2455
    %3993 = vmatprep.subr.mxu0 %v2458
    %3994 = vmatpush1.msra.mxu0 %v2457
    %3995 = vmatprep.subr.mxu0 %v2460
    %3996 = vmatpush1.msra.mxu0 %v2459
    %3997 = vmatprep.subr.mxu0 %v2462
    %3998 = vmatpush1.msra.mxu0 %v2461
    %3999 = vmatprep.subr.mxu0 %v2464
    %4000 = vmatpush1.msra.mxu0 %v2463
    %4001 = vmatprep.subr.mxu0 %v2466
    %4002 = vmatpush1.msra.mxu0 %v2465
    %4003 = vmatprep.subr.mxu0 %v2468
    %4004 = vmatpush1.msra.mxu0 %v2467
    %4005 = vmatprep.subr.mxu0 %v2470
    %4006 = vmatpush1.msra.mxu0 %v2469
    %4007 = vmatprep.subr.mxu0 %v2472
    %4008 = vmatpush1.msra.mxu0 %v2471
    %4009 = vmatprep.subr.mxu0 %v2474
    %4010 = vmatpush1.msra.mxu0 %v2473
    %4011 = vmatprep.subr.mxu0 %v2476
    %4012 = vmatpush1.msra.mxu0 %v2475
    %4013 = vmatprep.subr.mxu0 %v2478
    %4014 = vmatpush1.msra.mxu0 %v2477
    %4015 = vmatprep.subr.mxu0 %v2480
    %4016 = vmatpush1.msra.mxu0 %v2479
    %4017 = vmatprep.subr.mxu0 %v2482
    %4018 = vmatpush1.msra.mxu0 %v2481
    %4019 = vmatprep.subr.mxu0 %v2484
    %4020 = vmatpush1.msra.mxu0 %v2483
    %4021 = vmatprep.subr.mxu0 %v2486
    %4022 = vmatpush1.msra.mxu0 %v2485
    %4023 = vmatprep.subr.mxu0 %v2488
    %4024 = vmatpush1.msra.mxu0 %v2487
    %4025 = vmatprep.subr.mxu0 %v2490
    %4026 = vmatpush1.msra.mxu0 %v2489
    %4027 = vmatprep.subr.mxu0 %v2492
    %4028 = vmatpush1.msra.mxu0 %v2491
    %4029 = vmatprep.subr.mxu0 %v2494
    %4030 = vmatpush1.msra.mxu0 %v2493
    %4031 = vmatprep.subr.mxu0 0.0
    %4032 = vmatpush1.msra.mxu0 0.0
    %4033 = vmatprep.subr.mxu0 0.0
    %4034 = vmatpush1.msra.mxu0 0.0
    %4035 = vmatprep.subr.mxu0 0.0
    %4036 = vmatpush1.msra.mxu0 0.0
    %4037 = vmatprep.subr.mxu0 0.0
    %4038 = vmatpush1.msra.mxu0 0.0
    %4039 = vmatprep.subr.mxu0 0.0
    %4040 = vmatpush1.msra.mxu0 0.0
    %4041 = vmatprep.subr.mxu0 0.0
    %4042 = vmatpush1.msra.mxu0 0.0
    %4043 = vmatprep.subr.mxu0 0.0
    %4044 = vmatpush1.msra.mxu0 0.0
    %4045 = vmatprep.mubr.f32.mxu0 %v3979
    %4046 = vmatmul.mubr.f32.gmra.mrb[0].mxu0 %v3976
    %v4047 = vpop.f32.mrb[0].mxu0
    %v4048 = vadd.f32 %v2500, %v4047
    %v4049 = vpop.f32.mrb[0].mxu0
    %v4050 = vadd.f32 %v2504, %v4049
    %4051 = vdwg.mxu0
    %v4052 = vmax.f32 %v4048, 0.0
    %v4053 = vmax.f32 %v4050, 0.0
    %v4055 = vsel %vm722, %v4053, 0
    %4057 = vmatprep.subr.mxu0 0.0
    %4058 = vmatpush1.msra.mxu0 %v2583
    %4059 = vmatprep.subr.mxu0 0.0
    %4060 = vmatpush1.msra.mxu0 %v2584
    %4061 = vmatprep.subr.mxu0 0.0
    %4062 = vmatpush1.msra.mxu0 %v2585
    %4063 = vmatprep.subr.mxu0 0.0
    %4064 = vmatpush1.msra.mxu0 %v2586
    %4065 = vmatprep.subr.mxu0 0.0
    %4066 = vmatpush1.msra.mxu0 %v2587
    %4067 = vmatprep.subr.mxu0 0.0
    %4068 = vmatpush1.msra.mxu0 %v2588
    %4069 = vmatprep.subr.mxu0 0.0
    %4070 = vmatpush1.msra.mxu0 %v2589
    %4071 = vmatprep.subr.mxu0 0.0
    %4072 = vmatpush1.msra.mxu0 %v2590
    %4073 = vmatprep.subr.mxu0 0.0
    %4074 = vmatpush1.msra.mxu0 %v2591
    %4075 = vmatprep.subr.mxu0 0.0
    %4076 = vmatpush1.msra.mxu0 %v2592
    %4077 = vmatprep.subr.mxu0 0.0
    %4078 = vmatpush1.msra.mxu0 %v2593
    %4079 = vmatprep.subr.mxu0 0.0
    %4080 = vmatpush1.msra.mxu0 %v2594
    %4081 = vmatprep.subr.mxu0 0.0
    %4082 = vmatpush1.msra.mxu0 %v2595
    %4083 = vmatprep.subr.mxu0 0.0
    %4084 = vmatpush1.msra.mxu0 %v2596
    %4085 = vmatprep.subr.mxu0 0.0
    %4086 = vmatpush1.msra.mxu0 %v2597
    %4087 = vmatprep.subr.mxu0 0.0
    %4088 = vmatpush1.msra.mxu0 %v2598
    %4089 = vmatprep.subr.mxu0 0.0
    %4090 = vmatpush1.msra.mxu0 %v2599
    %4091 = vmatprep.subr.mxu0 0.0
    %4092 = vmatpush1.msra.mxu0 %v2600
    %4093 = vmatprep.subr.mxu0 0.0
    %4094 = vmatpush1.msra.mxu0 %v2601
    %4095 = vmatprep.subr.mxu0 0.0
    %4096 = vmatpush1.msra.mxu0 %v2602
    %4097 = vmatprep.subr.mxu0 0.0
    %4098 = vmatpush1.msra.mxu0 %v2603
    %4099 = vmatprep.subr.mxu0 0.0
    %4100 = vmatpush1.msra.mxu0 %v2604
    %4101 = vmatprep.subr.mxu0 0.0
    %4102 = vmatpush1.msra.mxu0 %v2605
    %4103 = vmatprep.subr.mxu0 0.0
    %4104 = vmatpush1.msra.mxu0 %v2606
    %4105 = vmatprep.subr.mxu0 0.0
    %4106 = vmatpush1.msra.mxu0 %v2607
    %4107 = vmatprep.subr.mxu0 0.0
    %4108 = vmatpush1.msra.mxu0 0.0
    %4109 = vmatprep.subr.mxu0 0.0
    %4110 = vmatpush1.msra.mxu0 0.0
    %4111 = vmatprep.subr.mxu0 0.0
    %4112 = vmatpush1.msra.mxu0 0.0
    %4113 = vmatprep.subr.mxu0 0.0
    %4114 = vmatpush1.msra.mxu0 0.0
    %4115 = vmatprep.subr.mxu0 0.0
    %4116 = vmatpush1.msra.mxu0 0.0
    %4117 = vmatprep.subr.mxu0 0.0
    %4118 = vmatpush1.msra.mxu0 0.0
    %4119 = vmatprep.subr.mxu0 0.0
    %4120 = vmatpush1.msra.mxu0 0.0
    %4121 = vmatprep.mubr.f32.mxu0 %v4055
    %4122 = vmatmul.mubr.f32.gmra.mrb[0].mxu0 %v4052
    %v4123 = vpop.f32.mrb[0].mxu0
    %v4124 = vadd.f32 %v2613, %v4123
    %v4125 = vpop.f32.mrb[0].mxu0
    %4126 = vdwg.mxu0
    %4127 = vmatprep.subr.mxu0 0.0
    %4128 = vmatpush1.msra.mxu0 %v2688
    %4129 = vmatprep.subr.mxu0 0.0
    %4130 = vmatpush1.msra.mxu0 %v2689
    %4131 = vmatprep.subr.mxu0 0.0
    %4132 = vmatpush1.msra.mxu0 %v2690
    %4133 = vmatprep.subr.mxu0 0.0
    %4134 = vmatpush1.msra.mxu0 %v2691
    %4135 = vmatprep.subr.mxu0 0.0
    %4136 = vmatpush1.msra.mxu0 %v2692
    %4137 = vmatprep.subr.mxu0 0.0
    %4138 = vmatpush1.msra.mxu0 %v2693
    %4139 = vmatprep.subr.mxu0 0.0
    %4140 = vmatpush1.msra.mxu0 %v2694
    %4141 = vmatprep.subr.mxu0 0.0
    %4142 = vmatpush1.msra.mxu0 %v2695
    %4143 = vmatprep.subr.mxu0 0.0
    %4144 = vmatpush1.msra.mxu0 %v2696
    %4145 = vmatprep.subr.mxu0 0.0
    %4146 = vmatpush1.msra.mxu0 %v2697
    %4147 = vmatprep.subr.mxu0 0.0
    %4148 = vmatpush1.msra.mxu0 %v2698
    %4149 = vmatprep.subr.mxu0 0.0
    %4150 = vmatpush1.msra.mxu0 %v2699
    %4151 = vmatprep.subr.mxu0 0.0
    %4152 = vmatpush1.msra.mxu0 %v2700
    %4153 = vmatprep.subr.mxu0 0.0
    %4154 = vmatpush1.msra.mxu0 %v2701
    %4155 = vmatprep.subr.mxu0 0.0
    %4156 = vmatpush1.msra.mxu0 %v2702
    %4157 = vmatprep.subr.mxu0 0.0
    %4158 = vmatpush1.msra.mxu0 %v2703
    %4159 = vmatprep.subr.mxu0 0.0
    %4160 = vmatpush1.msra.mxu0 %v2704
    %4161 = vmatprep.subr.mxu0 0.0
    %4162 = vmatpush1.msra.mxu0 %v2705
    %4163 = vmatprep.subr.mxu0 0.0
    %4164 = vmatpush1.msra.mxu0 %v2706
    %4165 = vmatprep.subr.mxu0 0.0
    %4166 = vmatpush1.msra.mxu0 %v2707
    %4167 = vmatprep.subr.mxu0 0.0
    %4168 = vmatpush1.msra.mxu0 %v2708
    %4169 = vmatprep.subr.mxu0 0.0
    %4170 = vmatpush1.msra.mxu0 %v2709
    %4171 = vmatprep.subr.mxu0 0.0
    %4172 = vmatpush1.msra.mxu0 %v2710
    %4173 = vmatprep.subr.mxu0 0.0
    %4174 = vmatpush1.msra.mxu0 %v2711
    %4175 = vmatprep.subr.mxu0 0.0
    %4176 = vmatpush1.msra.mxu0 %v2712
    %4177 = vmatprep.subr.mxu0 0.0
    %4178 = vmatpush1.msra.mxu0 0.0
    %4179 = vmatprep.subr.mxu0 0.0
    %4180 = vmatpush1.msra.mxu0 0.0
    %4181 = vmatprep.subr.mxu0 0.0
    %4182 = vmatpush1.msra.mxu0 0.0
    %4183 = vmatprep.subr.mxu0 0.0
    %4184 = vmatpush1.msra.mxu0 0.0
    %4185 = vmatprep.subr.mxu0 0.0
    %4186 = vmatpush1.msra.mxu0 0.0
    %4187 = vmatprep.subr.mxu0 0.0
    %4188 = vmatpush1.msra.mxu0 0.0
    %4189 = vmatprep.subr.mxu0 0.0
    %4190 = vmatpush1.msra.mxu0 0.0
    %4191 = vmatprep.mubr.f32.mxu0 %v4055
    %4192 = vmatmul.mubr.f32.gmra.mrb[0].mxu0 %v4052
    %v4193 = vpop.f32.mrb[0].mxu0
    %v4194 = vadd.f32 %v2718, %v4193
    %v4195 = vpop.f32.mrb[0].mxu0
    %4196 = vdwg.mxu0
    %v4197 = vmul.f32 %v4194, 0.5
    %v4198 = vmul.f32 %v4197, 1.442695
    %v4199 = vpow.pop %v4198
    %4200 = vmatprep.subr.mxu0 %v2794
    %4201 = vmatpush1.msra.mxu0 %v2793
    %4202 = vmatprep.subr.mxu0 0.0
    %4203 = vmatpush1.msra.mxu0 0.0
    %4204 = vmatprep.subr.mxu0 0.0
    %4205 = vmatpush1.msra.mxu0 0.0
    %4206 = vmatprep.subr.mxu0 0.0
    %4207 = vmatpush1.msra.mxu0 0.0
    %4208 = vmatprep.subr.mxu0 0.0
    %4209 = vmatpush1.msra.mxu0 0.0
    %4210 = vmatprep.subr.mxu0 0.0
    %4211 = vmatpush1.msra.mxu0 0.0
    %4212 = vmatprep.subr.mxu0 0.0
    %4213 = vmatpush1.msra.mxu0 0.0
    %4214 = vmatprep.subr.mxu0 0.0
    %4215 = vmatpush1.msra.mxu0 0.0
    %4216 = vmatprep.subr.mxu0 0.0
    %4217 = vmatpush1.msra.mxu0 0.0
    %4218 = vmatprep.subr.mxu0 0.0
    %4219 = vmatpush1.msra.mxu0 0.0
    %4220 = vmatprep.subr.mxu0 0.0
    %4221 = vmatpush1.msra.mxu0 0.0
    %4222 = vmatprep.subr.mxu0 0.0
    %4223 = vmatpush1.msra.mxu0 0.0
    %4224 = vmatprep.subr.mxu0 0.0
    %4225 = vmatpush1.msra.mxu0 0.0
    %4226 = vmatprep.subr.mxu0 0.0
    %4227 = vmatpush1.msra.mxu0 0.0
    %4228 = vmatprep.subr.mxu0 0.0
    %4229 = vmatpush1.msra.mxu0 0.0
    %4230 = vmatprep.subr.mxu0 0.0
    %4231 = vmatpush1.msra.mxu0 0.0
    %4232 = vmatprep.subr.mxu0 0.0
    %4233 = vmatpush1.msra.mxu0 0.0
    %4234 = vmatprep.subr.mxu0 0.0
    %4235 = vmatpush1.msra.mxu0 0.0
    %4236 = vmatprep.subr.mxu0 0.0
    %4237 = vmatpush1.msra.mxu0 0.0
    %4238 = vmatprep.subr.mxu0 0.0
    %4239 = vmatpush1.msra.mxu0 0.0
    %4240 = vmatprep.subr.mxu0 0.0
    %4241 = vmatpush1.msra.mxu0 0.0
    %4242 = vmatprep.subr.mxu0 0.0
    %4243 = vmatpush1.msra.mxu0 0.0
    %4244 = vmatprep.subr.mxu0 0.0
    %4245 = vmatpush1.msra.mxu0 0.0
    %4246 = vmatprep.subr.mxu0 0.0
    %4247 = vmatpush1.msra.mxu0 0.0
    %4248 = vmatprep.subr.mxu0 0.0
    %4249 = vmatpush1.msra.mxu0 0.0
    %4250 = vmatprep.subr.mxu0 0.0
    %4251 = vmatpush1.msra.mxu0 0.0
    %4252 = vmatprep.subr.mxu0 0.0
    %4253 = vmatpush1.msra.mxu0 0.0
    %4254 = vmatprep.subr.mxu0 0.0
    %4255 = vmatpush1.msra.mxu0 0.0
    %4256 = vmatprep.subr.mxu0 0.0
    %4257 = vmatpush1.msra.mxu0 0.0
    %4258 = vmatprep.subr.mxu0 0.0
    %4259 = vmatpush1.msra.mxu0 0.0
    %4260 = vmatprep.subr.mxu0 0.0
    %4261 = vmatpush1.msra.mxu0 0.0
    %4262 = vmatprep.subr.mxu0 0.0
    %4263 = vmatpush1.msra.mxu0 0.0
    %4264 = vmatprep.mubr.f32.mxu0 0.0
    %4265 = vmatmul.mubr.f32.gmra.mrb[0].mxu0 %v3901
    %v4266 = vpop.f32.mrb[0].mxu0
    %v4267 = vadd.f32 %v2800, %v4266
    %v4268 = vpop.f32.mrb[0].mxu0
    %v4269 = vadd.f32 %v2804, %v4268
    %4270 = vdwg.mxu0
    %v4271 = vmax.f32 %v4267, 0.0
    %v4272 = vmax.f32 %v4269, 0.0
    %v4274 = vsel %vm722, %v4272, 0
    %4276 = vmatprep.subr.mxu0 %v2881
    %4277 = vmatpush1.msra.mxu0 %v2880
    %4278 = vmatprep.subr.mxu0 %v2883
    %4279 = vmatpush1.msra.mxu0 %v2882
    %4280 = vmatprep.subr.mxu0 %v2885
    %4281 = vmatpush1.msra.mxu0 %v2884
    %4282 = vmatprep.subr.mxu0 %v2887
    %4283 = vmatpush1.msra.mxu0 %v2886
    %4284 = vmatprep.subr.mxu0 %v2889
    %4285 = vmatpush1.msra.mxu0 %v2888
    %4286 = vmatprep.subr.mxu0 %v2891
    %4287 = vmatpush1.msra.mxu0 %v2890
    %4288 = vmatprep.subr.mxu0 %v2893
    %4289 = vmatpush1.msra.mxu0 %v2892
    %4290 = vmatprep.subr.mxu0 %v2895
    %4291 = vmatpush1.msra.mxu0 %v2894
    %4292 = vmatprep.subr.mxu0 %v2897
    %4293 = vmatpush1.msra.mxu0 %v2896
    %4294 = vmatprep.subr.mxu0 %v2899
    %4295 = vmatpush1.msra.mxu0 %v2898
    %4296 = vmatprep.subr.mxu0 %v2901
    %4297 = vmatpush1.msra.mxu0 %v2900
    %4298 = vmatprep.subr.mxu0 %v2903
    %4299 = vmatpush1.msra.mxu0 %v2902
    %4300 = vmatprep.subr.mxu0 %v2905
    %4301 = vmatpush1.msra.mxu0 %v2904
    %4302 = vmatprep.subr.mxu0 %v2907
    %4303 = vmatpush1.msra.mxu0 %v2906
    %4304 = vmatprep.subr.mxu0 %v2909
    %4305 = vmatpush1.msra.mxu0 %v2908
    %4306 = vmatprep.subr.mxu0 %v2911
    %4307 = vmatpush1.msra.mxu0 %v2910
    %4308 = vmatprep.subr.mxu0 %v2913
    %4309 = vmatpush1.msra.mxu0 %v2912
    %4310 = vmatprep.subr.mxu0 %v2915
    %4311 = vmatpush1.msra.mxu0 %v2914
    %4312 = vmatprep.subr.mxu0 %v2917
    %4313 = vmatpush1.msra.mxu0 %v2916
    %4314 = vmatprep.subr.mxu0 %v2919
    %4315 = vmatpush1.msra.mxu0 %v2918
    %4316 = vmatprep.subr.mxu0 %v2921
    %4317 = vmatpush1.msra.mxu0 %v2920
    %4318 = vmatprep.subr.mxu0 %v2923
    %4319 = vmatpush1.msra.mxu0 %v2922
    %4320 = vmatprep.subr.mxu0 %v2925
    %4321 = vmatpush1.msra.mxu0 %v2924
    %4322 = vmatprep.subr.mxu0 %v2927
    %4323 = vmatpush1.msra.mxu0 %v2926
    %4324 = vmatprep.subr.mxu0 %v2929
    %4325 = vmatpush1.msra.mxu0 %v2928
    %4326 = vmatprep.subr.mxu0 0.0
    %4327 = vmatpush1.msra.mxu0 0.0
    %4328 = vmatprep.subr.mxu0 0.0
    %4329 = vmatpush1.msra.mxu0 0.0
    %4330 = vmatprep.subr.mxu0 0.0
    %4331 = vmatpush1.msra.mxu0 0.0
    %4332 = vmatprep.subr.mxu0 0.0
    %4333 = vmatpush1.msra.mxu0 0.0
    %4334 = vmatprep.subr.mxu0 0.0
    %4335 = vmatpush1.msra.mxu0 0.0
    %4336 = vmatprep.subr.mxu0 0.0
    %4337 = vmatpush1.msra.mxu0 0.0
    %4338 = vmatprep.subr.mxu0 0.0
    %4339 = vmatpush1.msra.mxu0 0.0
    %4340 = vmatprep.mubr.f32.mxu0 %v4274
    %4341 = vmatmul.mubr.f32.gmra.mrb[0].mxu0 %v4271
    %v4342 = vpop.f32.mrb[0].mxu0
    %v4343 = vadd.f32 %v2935, %v4342
    %v4344 = vpop.f32.mrb[0].mxu0
    %v4345 = vadd.f32 %v2939, %v4344
    %4346 = vdwg.mxu0
    %v4347 = vmax.f32 %v4343, 0.0
    %v4348 = vmax.f32 %v4345, 0.0
    %v4350 = vsel %vm722, %v4348, 0
    %4352 = vmatprep.subr.mxu0 0.0
    %4353 = vmatpush1.msra.mxu0 %v3018
    %4354 = vmatprep.subr.mxu0 0.0
    %4355 = vmatpush1.msra.mxu0 %v3019
    %4356 = vmatprep.subr.mxu0 0.0
    %4357 = vmatpush1.msra.mxu0 %v3020
    %4358 = vmatprep.subr.mxu0 0.0
    %4359 = vmatpush1.msra.mxu0 %v3021
    %4360 = vmatprep.subr.mxu0 0.0
    %4361 = vmatpush1.msra.mxu0 %v3022
    %4362 = vmatprep.subr.mxu0 0.0
    %4363 = vmatpush1.msra.mxu0 %v3023
    %4364 = vmatprep.subr.mxu0 0.0
    %4365 = vmatpush1.msra.mxu0 %v3024
    %4366 = vmatprep.subr.mxu0 0.0
    %4367 = vmatpush1.msra.mxu0 %v3025
    %4368 = vmatprep.subr.mxu0 0.0
    %4369 = vmatpush1.msra.mxu0 %v3026
    %4370 = vmatprep.subr.mxu0 0.0
    %4371 = vmatpush1.msra.mxu0 %v3027
    %4372 = vmatprep.subr.mxu0 0.0
    %4373 = vmatpush1.msra.mxu0 %v3028
    %4374 = vmatprep.subr.mxu0 0.0
    %4375 = vmatpush1.msra.mxu0 %v3029
    %4376 = vmatprep.subr.mxu0 0.0
    %4377 = vmatpush1.msra.mxu0 %v3030
    %4378 = vmatprep.subr.mxu0 0.0
    %4379 = vmatpush1.msra.mxu0 %v3031
    %4380 = vmatprep.subr.mxu0 0.0
    %4381 = vmatpush1.msra.mxu0 %v3032
    %4382 = vmatprep.subr.mxu0 0.0
    %4383 = vmatpush1.msra.mxu0 %v3033
    %4384 = vmatprep.subr.mxu0 0.0
    %4385 = vmatpush1.msra.mxu0 %v3034
    %4386 = vmatprep.subr.mxu0 0.0
    %4387 = vmatpush1.msra.mxu0 %v3035
    %4388 = vmatprep.subr.mxu0 0.0
    %4389 = vmatpush1.msra.mxu0 %v3036
    %4390 = vmatprep.subr.mxu0 0.0
    %4391 = vmatpush1.msra.mxu0 %v3037
    %4392 = vmatprep.subr.mxu0 0.0
    %4393 = vmatpush1.msra.mxu0 %v3038
    %4394 = vmatprep.subr.mxu0 0.0
    %4395 = vmatpush1.msra.mxu0 %v3039
    %4396 = vmatprep.subr.mxu0 0.0
    %4397 = vmatpush1.msra.mxu0 %v3040
    %4398 = vmatprep.subr.mxu0 0.0
    %4399 = vmatpush1.msra.mxu0 %v3041
    %4400 = vmatprep.subr.mxu0 0.0
    %4401 = vmatpush1.msra.mxu0 %v3042
    %4402 = vmatprep.subr.mxu0 0.0
    %4403 = vmatpush1.msra.mxu0 0.0
    %4404 = vmatprep.subr.mxu0 0.0
    %4405 = vmatpush1.msra.mxu0 0.0
    %4406 = vmatprep.subr.mxu0 0.0
    %4407 = vmatpush1.msra.mxu0 0.0
    %4408 = vmatprep.subr.mxu0 0.0
    %4409 = vmatpush1.msra.mxu0 0.0
    %4410 = vmatprep.subr.mxu0 0.0
    %4411 = vmatpush1.msra.mxu0 0.0
    %4412 = vmatprep.subr.mxu0 0.0
    %4413 = vmatpush1.msra.mxu0 0.0
    %4414 = vmatprep.subr.mxu0 0.0
    %4415 = vmatpush1.msra.mxu0 0.0
    %4416 = vmatprep.mubr.f32.mxu0 %v4350
    %4417 = vmatmul.mubr.f32.gmra.mrb[0].mxu0 %v4347
    %v4418 = vpop.f32.mrb[0].mxu0
    %v4419 = vadd.f32 %v3048, %v4418
    %v4420 = vpop.f32.mrb[0].mxu0
    %4421 = vdwg.mxu0
    %v4422 = vmax.f32 %v4419, 0.0
    %v4423 = vand.u32 2147483647, %v4419
    %v4424 = vsub.f32 0.0, %v4423
    %v4425 = vmul.f32 %v4424, 1.442695
    %v4426 = vpow.pop %v4425
    %v4427 = vadd.f32 %v4426, 1.0
    %v4428 = vlog2.pop %v4427
    %v4429 = vmul.f32 %v4428, 0.6931472
    %v4430 = vmul.f32 -0.5, %v4426
    %v4431 = vadd.f32 %v4430, 1.0
    %v4432 = vmul.f32 %v4431, %v4426
    %v4433 = vand.u32 2147483647, %v4426
    %vm4434 = vcmp.lt.f32.partialorder %v4433, 0.0004427343
    %v4435 = vsel %vm4434, %v4432, %v4429
    %v4436 = vadd.f32 %v4422, %v4435
    %v4437 = vmul.f32 %v566, %v4419
    %v4438 = vsub.f32 %v4437, %v4436
    %v4439 = vsel %vm3140, %v4438, 0.0
    %4440 = vadd.xlane.f32.xlu0 %v4439
    %v4441 = vpop.xlane.xlu0 %4440
    %4442 = vmatprep.subr.mxu0 %v3145
    %4443 = vmatpush1.msra.mxu0 %v3144
    %4444 = vmatprep.subr.mxu0 0.0
    %4445 = vmatpush1.msra.mxu0 0.0
    %4446 = vmatprep.subr.mxu0 0.0
    %4447 = vmatpush1.msra.mxu0 0.0
    %4448 = vmatprep.subr.mxu0 0.0
    %4449 = vmatpush1.msra.mxu0 0.0
    %4450 = vmatprep.subr.mxu0 0.0
    %4451 = vmatpush1.msra.mxu0 0.0
    %4452 = vmatprep.subr.mxu0 0.0
    %4453 = vmatpush1.msra.mxu0 0.0
    %4454 = vmatprep.subr.mxu0 0.0
    %4455 = vmatpush1.msra.mxu0 0.0
    %4456 = vmatprep.subr.mxu0 0.0
    %4457 = vmatpush1.msra.mxu0 0.0
    %4458 = vmatprep.subr.mxu0 0.0
    %4459 = vmatpush1.msra.mxu0 0.0
    %4460 = vmatprep.subr.mxu0 0.0
    %4461 = vmatpush1.msra.mxu0 0.0
    %4462 = vmatprep.subr.mxu0 0.0
    %4463 = vmatpush1.msra.mxu0 0.0
    %4464 = vmatprep.subr.mxu0 0.0
    %4465 = vmatpush1.msra.mxu0 0.0
    %4466 = vmatprep.subr.mxu0 0.0
    %4467 = vmatpush1.msra.mxu0 0.0
    %4468 = vmatprep.subr.mxu0 0.0
    %4469 = vmatpush1.msra.mxu0 0.0
    %4470 = vmatprep.subr.mxu0 0.0
    %4471 = vmatpush1.msra.mxu0 0.0
    %4472 = vmatprep.subr.mxu0 0.0
    %4473 = vmatpush1.msra.mxu0 0.0
    %4474 = vmatprep.subr.mxu0 0.0
    %4475 = vmatpush1.msra.mxu0 0.0
    %4476 = vmatprep.subr.mxu0 0.0
    %4477 = vmatpush1.msra.mxu0 0.0
    %4478 = vmatprep.subr.mxu0 0.0
    %4479 = vmatpush1.msra.mxu0 0.0
    %4480 = vmatprep.subr.mxu0 0.0
    %4481 = vmatpush1.msra.mxu0 0.0
    %4482 = vmatprep.subr.mxu0 0.0
    %4483 = vmatpush1.msra.mxu0 0.0
    %4484 = vmatprep.subr.mxu0 0.0
    %4485 = vmatpush1.msra.mxu0 0.0
    %4486 = vmatprep.subr.mxu0 0.0
    %4487 = vmatpush1.msra.mxu0 0.0
    %4488 = vmatprep.subr.mxu0 0.0
    %4489 = vmatpush1.msra.mxu0 0.0
    %4490 = vmatprep.subr.mxu0 0.0
    %4491 = vmatpush1.msra.mxu0 0.0
    %4492 = vmatprep.subr.mxu0 0.0
    %4493 = vmatpush1.msra.mxu0 0.0
    %4494 = vmatprep.subr.mxu0 0.0
    %4495 = vmatpush1.msra.mxu0 0.0
    %4496 = vmatprep.subr.mxu0 0.0
    %4497 = vmatpush1.msra.mxu0 0.0
    %4498 = vmatprep.subr.mxu0 0.0
    %4499 = vmatpush1.msra.mxu0 0.0
    %4500 = vmatprep.subr.mxu0 0.0
    %4501 = vmatpush1.msra.mxu0 0.0
    %4502 = vmatprep.subr.mxu0 0.0
    %4503 = vmatpush1.msra.mxu0 0.0
    %4504 = vmatprep.subr.mxu0 0.0
    %4505 = vmatpush1.msra.mxu0 0.0
    %4506 = vmatprep.mubr.f32.mxu0 0.0
    %4507 = vmatmul.mubr.f32.gmra.mrb[0].mxu0 %v3901
    %v4508 = vpop.f32.mrb[0].mxu0
    %v4509 = vadd.f32 %v3151, %v4508
    %v4510 = vpop.f32.mrb[0].mxu0
    %v4511 = vadd.f32 %v3155, %v4510
    %4512 = vdwg.mxu0
    %v4513 = vadd.f32 %v4441, %v3899
    %s4514 = scalar_lea.vmem [#allocation6], 8
    %v4515 = vld [vmem:[%s4514] sm:$0xf]
    %v4516 = vmul.f32 %v4515, %v4199
    %v4517 = vadd.f32 %v4124, %v4516
    %v4518 = vmul.f32 %v4515, %v4515
    %v4519 = vadd.f32 %v4194, %v4518
    %v4520 = vadd.f32 %v4519, 1.837877
    %v4521 = vsel %vm3236, %v4520, 0.0
    %4522 = vadd.xlane.f32.xlu0 %v4521
    %v4523 = vpop.xlane.xlu0 %4522
    %v4524 = vmul.f32 %v4523, -0.5
    %v4525 = vmul.f32 %v4517, %v4517
    %v4526 = vadd.f32 %v4525, 1.837877
    %v4527 = vsel %vm3236, %v4526, 0.0
    %4528 = vadd.xlane.f32.xlu0 %v4527
    %v4529 = vpop.xlane.xlu0 %4528
    %v4530 = vmul.f32 %v4529, -0.5
    %v4532 = vsel %vm3249, %v4517, 0
    %4534 = vmatprep.subr.mxu0 %v3258
    %4535 = vmatpush1.msra.mxu0 %v3255
    %4536 = vmatprep.subr.mxu0 0.0
    %4537 = vmatpush1.msra.mxu0 0.0
    %4538 = vmatprep.subr.mxu0 0.0
    %4539 = vmatpush1.msra.mxu0 0.0
    %4540 = vmatprep.subr.mxu0 0.0
    %4541 = vmatpush1.msra.mxu0 0.0
    %4542 = vmatprep.subr.mxu0 0.0
    %4543 = vmatpush1.msra.mxu0 0.0
    %4544 = vmatprep.subr.mxu0 0.0
    %4545 = vmatpush1.msra.mxu0 0.0
    %4546 = vmatprep.subr.mxu0 0.0
    %4547 = vmatpush1.msra.mxu0 0.0
    %4548 = vmatprep.subr.mxu0 0.0
    %4549 = vmatpush1.msra.mxu0 0.0
    %4550 = vmatprep.subr.mxu0 0.0
    %4551 = vmatpush1.msra.mxu0 0.0
    %4552 = vmatprep.subr.mxu0 0.0
    %4553 = vmatpush1.msra.mxu0 0.0
    %4554 = vmatprep.subr.mxu0 0.0
    %4555 = vmatpush1.msra.mxu0 0.0
    %4556 = vmatprep.subr.mxu0 0.0
    %4557 = vmatpush1.msra.mxu0 0.0
    %4558 = vmatprep.subr.mxu0 0.0
    %4559 = vmatpush1.msra.mxu0 0.0
    %4560 = vmatprep.subr.mxu0 0.0
    %4561 = vmatpush1.msra.mxu0 0.0
    %4562 = vmatprep.subr.mxu0 0.0
    %4563 = vmatpush1.msra.mxu0 0.0
    %4564 = vmatprep.subr.mxu0 0.0
    %4565 = vmatpush1.msra.mxu0 0.0
    %4566 = vmatprep.subr.mxu0 0.0
    %4567 = vmatpush1.msra.mxu0 0.0
    %4568 = vmatprep.subr.mxu0 0.0
    %4569 = vmatpush1.msra.mxu0 0.0
    %4570 = vmatprep.subr.mxu0 0.0
    %4571 = vmatpush1.msra.mxu0 0.0
    %4572 = vmatprep.subr.mxu0 0.0
    %4573 = vmatpush1.msra.mxu0 0.0
    %4574 = vmatprep.subr.mxu0 0.0
    %4575 = vmatpush1.msra.mxu0 0.0
    %4576 = vmatprep.subr.mxu0 0.0
    %4577 = vmatpush1.msra.mxu0 0.0
    %4578 = vmatprep.subr.mxu0 0.0
    %4579 = vmatpush1.msra.mxu0 0.0
    %4580 = vmatprep.subr.mxu0 0.0
    %4581 = vmatpush1.msra.mxu0 0.0
    %4582 = vmatprep.subr.mxu0 0.0
    %4583 = vmatpush1.msra.mxu0 0.0
    %4584 = vmatprep.subr.mxu0 0.0
    %4585 = vmatpush1.msra.mxu0 0.0
    %4586 = vmatprep.subr.mxu0 0.0
    %4587 = vmatpush1.msra.mxu0 0.0
    %4588 = vmatprep.subr.mxu0 0.0
    %4589 = vmatpush1.msra.mxu0 0.0
    %4590 = vmatprep.subr.mxu0 0.0
    %4591 = vmatpush1.msra.mxu0 0.0
    %4592 = vmatprep.subr.mxu0 0.0
    %4593 = vmatpush1.msra.mxu0 0.0
    %4594 = vmatprep.subr.mxu0 0.0
    %4595 = vmatpush1.msra.mxu0 0.0
    %4596 = vmatprep.subr.mxu0 0.0
    %4597 = vmatpush1.msra.mxu0 0.0
    %4598 = vmatprep.mubr.f32.mxu0 0.0
    %4599 = vmatmul.mubr.f32.gmra.mrb[0].mxu0 %v4532
    %v4600 = vpop.f32.mrb[0].mxu0
    %v4601 = vadd.f32 0.0, %v4600
    %v4602 = vpop.f32.mrb[0].mxu0
    %v4603 = vadd.f32 0.0, %v4602
    %4604 = vdwg.mxu0
    %v4605 = vadd.f32 %v4509, %v4601
    %v4606 = vadd.f32 %v4511, %v4603
    %v4607 = vmax.f32 %v4605, 0.0
    %v4608 = vmax.f32 %v4606, 0.0
    %v4610 = vsel %vm722, %v4608, 0
    %4612 = vmatprep.subr.mxu0 %v3336
    %4613 = vmatpush1.msra.mxu0 %v3335
    %4614 = vmatprep.subr.mxu0 %v3338
    %4615 = vmatpush1.msra.mxu0 %v3337
    %4616 = vmatprep.subr.mxu0 %v3340
    %4617 = vmatpush1.msra.mxu0 %v3339
    %4618 = vmatprep.subr.mxu0 %v3342
    %4619 = vmatpush1.msra.mxu0 %v3341
    %4620 = vmatprep.subr.mxu0 %v3344
    %4621 = vmatpush1.msra.mxu0 %v3343
    %4622 = vmatprep.subr.mxu0 %v3346
    %4623 = vmatpush1.msra.mxu0 %v3345
    %4624 = vmatprep.subr.mxu0 %v3348
    %4625 = vmatpush1.msra.mxu0 %v3347
    %4626 = vmatprep.subr.mxu0 %v3350
    %4627 = vmatpush1.msra.mxu0 %v3349
    %4628 = vmatprep.subr.mxu0 %v3352
    %4629 = vmatpush1.msra.mxu0 %v3351
    %4630 = vmatprep.subr.mxu0 %v3354
    %4631 = vmatpush1.msra.mxu0 %v3353
    %4632 = vmatprep.subr.mxu0 %v3356
    %4633 = vmatpush1.msra.mxu0 %v3355
    %4634 = vmatprep.subr.mxu0 %v3358
    %4635 = vmatpush1.msra.mxu0 %v3357
    %4636 = vmatprep.subr.mxu0 %v3360
    %4637 = vmatpush1.msra.mxu0 %v3359
    %4638 = vmatprep.subr.mxu0 %v3362
    %4639 = vmatpush1.msra.mxu0 %v3361
    %4640 = vmatprep.subr.mxu0 %v3364
    %4641 = vmatpush1.msra.mxu0 %v3363
    %4642 = vmatprep.subr.mxu0 %v3366
    %4643 = vmatpush1.msra.mxu0 %v3365
    %4644 = vmatprep.subr.mxu0 %v3368
    %4645 = vmatpush1.msra.mxu0 %v3367
    %4646 = vmatprep.subr.mxu0 %v3370
    %4647 = vmatpush1.msra.mxu0 %v3369
    %4648 = vmatprep.subr.mxu0 %v3372
    %4649 = vmatpush1.msra.mxu0 %v3371
    %4650 = vmatprep.subr.mxu0 %v3374
    %4651 = vmatpush1.msra.mxu0 %v3373
    %4652 = vmatprep.subr.mxu0 %v3376
    %4653 = vmatpush1.msra.mxu0 %v3375
    %4654 = vmatprep.subr.mxu0 %v3378
    %4655 = vmatpush1.msra.mxu0 %v3377
    %4656 = vmatprep.subr.mxu0 %v3380
    %4657 = vmatpush1.msra.mxu0 %v3379
    %4658 = vmatprep.subr.mxu0 %v3382
    %4659 = vmatpush1.msra.mxu0 %v3381
    %4660 = vmatprep.subr.mxu0 %v3384
    %4661 = vmatpush1.msra.mxu0 %v3383
    %4662 = vmatprep.subr.mxu0 0.0
    %4663 = vmatpush1.msra.mxu0 0.0
    %4664 = vmatprep.subr.mxu0 0.0
    %4665 = vmatpush1.msra.mxu0 0.0
    %4666 = vmatprep.subr.mxu0 0.0
    %4667 = vmatpush1.msra.mxu0 0.0
    %4668 = vmatprep.subr.mxu0 0.0
    %4669 = vmatpush1.msra.mxu0 0.0
    %4670 = vmatprep.subr.mxu0 0.0
    %4671 = vmatpush1.msra.mxu0 0.0
    %4672 = vmatprep.subr.mxu0 0.0
    %4673 = vmatpush1.msra.mxu0 0.0
    %4674 = vmatprep.subr.mxu0 0.0
    %4675 = vmatpush1.msra.mxu0 0.0
    %4676 = vmatprep.mubr.f32.mxu0 %v4610
    %4677 = vmatmul.mubr.f32.gmra.mrb[0].mxu0 %v4607
    %v4678 = vpop.f32.mrb[0].mxu0
    %v4679 = vadd.f32 %v3390, %v4678
    %v4680 = vpop.f32.mrb[0].mxu0
    %v4681 = vadd.f32 %v3394, %v4680
    %4682 = vdwg.mxu0
    %v4683 = vmax.f32 %v4679, 0.0
    %v4684 = vmax.f32 %v4681, 0.0
    %v4686 = vsel %vm722, %v4684, 0
    %4688 = vmatprep.subr.mxu0 0.0
    %4689 = vmatpush1.msra.mxu0 %v3473
    %4690 = vmatprep.subr.mxu0 0.0
    %4691 = vmatpush1.msra.mxu0 %v3474
    %4692 = vmatprep.subr.mxu0 0.0
    %4693 = vmatpush1.msra.mxu0 %v3475
    %4694 = vmatprep.subr.mxu0 0.0
    %4695 = vmatpush1.msra.mxu0 %v3476
    %4696 = vmatprep.subr.mxu0 0.0
    %4697 = vmatpush1.msra.mxu0 %v3477
    %4698 = vmatprep.subr.mxu0 0.0
    %4699 = vmatpush1.msra.mxu0 %v3478
    %4700 = vmatprep.subr.mxu0 0.0
    %4701 = vmatpush1.msra.mxu0 %v3479
    %4702 = vmatprep.subr.mxu0 0.0
    %4703 = vmatpush1.msra.mxu0 %v3480
    %4704 = vmatprep.subr.mxu0 0.0
    %4705 = vmatpush1.msra.mxu0 %v3481
    %4706 = vmatprep.subr.mxu0 0.0
    %4707 = vmatpush1.msra.mxu0 %v3482
    %4708 = vmatprep.subr.mxu0 0.0
    %4709 = vmatpush1.msra.mxu0 %v3483
    %4710 = vmatprep.subr.mxu0 0.0
    %4711 = vmatpush1.msra.mxu0 %v3484
    %4712 = vmatprep.subr.mxu0 0.0
    %4713 = vmatpush1.msra.mxu0 %v3485
    %4714 = vmatprep.subr.mxu0 0.0
    %4715 = vmatpush1.msra.mxu0 %v3486
    %4716 = vmatprep.subr.mxu0 0.0
    %4717 = vmatpush1.msra.mxu0 %v3487
    %4718 = vmatprep.subr.mxu0 0.0
    %4719 = vmatpush1.msra.mxu0 %v3488
    %4720 = vmatprep.subr.mxu0 0.0
    %4721 = vmatpush1.msra.mxu0 %v3489
    %4722 = vmatprep.subr.mxu0 0.0
    %4723 = vmatpush1.msra.mxu0 %v3490
    %4724 = vmatprep.subr.mxu0 0.0
    %4725 = vmatpush1.msra.mxu0 %v3491
    %4726 = vmatprep.subr.mxu0 0.0
    %4727 = vmatpush1.msra.mxu0 %v3492
    %4728 = vmatprep.subr.mxu0 0.0
    %4729 = vmatpush1.msra.mxu0 %v3493
    %4730 = vmatprep.subr.mxu0 0.0
    %4731 = vmatpush1.msra.mxu0 %v3494
    %4732 = vmatprep.subr.mxu0 0.0
    %4733 = vmatpush1.msra.mxu0 %v3495
    %4734 = vmatprep.subr.mxu0 0.0
    %4735 = vmatpush1.msra.mxu0 %v3496
    %4736 = vmatprep.subr.mxu0 0.0
    %4737 = vmatpush1.msra.mxu0 %v3497
    %4738 = vmatprep.subr.mxu0 0.0
    %4739 = vmatpush1.msra.mxu0 0.0
    %4740 = vmatprep.subr.mxu0 0.0
    %4741 = vmatpush1.msra.mxu0 0.0
    %4742 = vmatprep.subr.mxu0 0.0
    %4743 = vmatpush1.msra.mxu0 0.0
    %4744 = vmatprep.subr.mxu0 0.0
    %4745 = vmatpush1.msra.mxu0 0.0
    %4746 = vmatprep.subr.mxu0 0.0
    %4747 = vmatpush1.msra.mxu0 0.0
    %4748 = vmatprep.subr.mxu0 0.0
    %4749 = vmatpush1.msra.mxu0 0.0
    %4750 = vmatprep.subr.mxu0 0.0
    %4751 = vmatpush1.msra.mxu0 0.0
    %4752 = vmatprep.mubr.f32.mxu0 %v4686
    %4753 = vmatmul.mubr.f32.gmra.mrb[0].mxu0 %v4683
    %v4754 = vpop.f32.mrb[0].mxu0
    %v4755 = vadd.f32 %v3503, %v4754
    %v4756 = vpop.f32.mrb[0].mxu0
    %4757 = vdwg.mxu0
    %v4758 = vmax.f32 %v4755, 0.0
    %v4759 = vand.u32 2147483647, %v4755
    %v4760 = vsub.f32 0.0, %v4759
    %v4761 = vmul.f32 %v4760, 1.442695
    %v4762 = vpow.pop %v4761
    %v4763 = vadd.f32 %v4762, 1.0
    %v4764 = vlog2.pop %v4763
    %v4765 = vmul.f32 %v4764, 0.6931472
    %v4766 = vmul.f32 -0.5, %v4762
    %v4767 = vadd.f32 %v4766, 1.0
    %v4768 = vmul.f32 %v4767, %v4762
    %v4769 = vand.u32 2147483647, %v4762
    %vm4770 = vcmp.lt.f32.partialorder %v4769, 0.0004427343
    %v4771 = vsel %vm4770, %v4768, %v4765
    %v4772 = vadd.f32 %v4758, %v4771
    %v4773 = vmul.f32 %v565, %v4755
    %v4774 = vsub.f32 %v4773, %v4772
    %v4775 = vsel %vm3595, %v4774, 0.0
    %4776 = vadd.xlane.f32.xlu0 %v4775
    %v4777 = vpop.xlane.xlu0 %4776
    %v4778 = vadd.f32 %v4777, %v4513
    %v4779 = vadd.f32 %v4778, %v4530
    %v4780 = vsub.f32 %v4779, %v4524
    %s4781 = scalar_lea.vmem [#allocation6], 12
    %v4782 = vld [vmem:[%s4781] sm:$0xf]
    %v4783 = vmul.f32 %v4782, %v4199
    %v4784 = vadd.f32 %v4124, %v4783
    %v4785 = vmul.f32 %v4782, %v4782
    %v4786 = vadd.f32 %v4194, %v4785
    %v4787 = vadd.f32 %v4786, 1.837877
    %v4788 = vsel %vm3236, %v4787, 0.0
    %4789 = vadd.xlane.f32.xlu0 %v4788
    %v4790 = vpop.xlane.xlu0 %4789
    %v4791 = vmul.f32 %v4790, -0.5
    %v4792 = vmul.f32 %v4784, %v4784
    %v4793 = vadd.f32 %v4792, 1.837877
    %v4794 = vsel %vm3236, %v4793, 0.0
    %4795 = vadd.xlane.f32.xlu0 %v4794
    %v4796 = vpop.xlane.xlu0 %4795
    %v4797 = vmul.f32 %v4796, -0.5
    %v4799 = vsel %vm3249, %v4784, 0
    %4801 = vmatprep.subr.mxu0 %v3258
    %4802 = vmatpush1.msra.mxu0 %v3255
    %4803 = vmatprep.subr.mxu0 0.0
    %4804 = vmatpush1.msra.mxu0 0.0
    %4805 = vmatprep.subr.mxu0 0.0
    %4806 = vmatpush1.msra.mxu0 0.0
    %4807 = vmatprep.subr.mxu0 0.0
    %4808 = vmatpush1.msra.mxu0 0.0
    %4809 = vmatprep.subr.mxu0 0.0
    %4810 = vmatpush1.msra.mxu0 0.0
    %4811 = vmatprep.subr.mxu0 0.0
    %4812 = vmatpush1.msra.mxu0 0.0
    %4813 = vmatprep.subr.mxu0 0.0
    %4814 = vmatpush1.msra.mxu0 0.0
    %4815 = vmatprep.subr.mxu0 0.0
    %4816 = vmatpush1.msra.mxu0 0.0
    %4817 = vmatprep.subr.mxu0 0.0
    %4818 = vmatpush1.msra.mxu0 0.0
    %4819 = vmatprep.subr.mxu0 0.0
    %4820 = vmatpush1.msra.mxu0 0.0
    %4821 = vmatprep.subr.mxu0 0.0
    %4822 = vmatpush1.msra.mxu0 0.0
    %4823 = vmatprep.subr.mxu0 0.0
    %4824 = vmatpush1.msra.mxu0 0.0
    %4825 = vmatprep.subr.mxu0 0.0
    %4826 = vmatpush1.msra.mxu0 0.0
    %4827 = vmatprep.subr.mxu0 0.0
    %4828 = vmatpush1.msra.mxu0 0.0
    %4829 = vmatprep.subr.mxu0 0.0
    %4830 = vmatpush1.msra.mxu0 0.0
    %4831 = vmatprep.subr.mxu0 0.0
    %4832 = vmatpush1.msra.mxu0 0.0
    %4833 = vmatprep.subr.mxu0 0.0
    %4834 = vmatpush1.msra.mxu0 0.0
    %4835 = vmatprep.subr.mxu0 0.0
    %4836 = vmatpush1.msra.mxu0 0.0
    %4837 = vmatprep.subr.mxu0 0.0
    %4838 = vmatpush1.msra.mxu0 0.0
    %4839 = vmatprep.subr.mxu0 0.0
    %4840 = vmatpush1.msra.mxu0 0.0
    %4841 = vmatprep.subr.mxu0 0.0
    %4842 = vmatpush1.msra.mxu0 0.0
    %4843 = vmatprep.subr.mxu0 0.0
    %4844 = vmatpush1.msra.mxu0 0.0
    %4845 = vmatprep.subr.mxu0 0.0
    %4846 = vmatpush1.msra.mxu0 0.0
    %4847 = vmatprep.subr.mxu0 0.0
    %4848 = vmatpush1.msra.mxu0 0.0
    %4849 = vmatprep.subr.mxu0 0.0
    %4850 = vmatpush1.msra.mxu0 0.0
    %4851 = vmatprep.subr.mxu0 0.0
    %4852 = vmatpush1.msra.mxu0 0.0
    %4853 = vmatprep.subr.mxu0 0.0
    %4854 = vmatpush1.msra.mxu0 0.0
    %4855 = vmatprep.subr.mxu0 0.0
    %4856 = vmatpush1.msra.mxu0 0.0
    %4857 = vmatprep.subr.mxu0 0.0
    %4858 = vmatpush1.msra.mxu0 0.0
    %4859 = vmatprep.subr.mxu0 0.0
    %4860 = vmatpush1.msra.mxu0 0.0
    %4861 = vmatprep.subr.mxu0 0.0
    %4862 = vmatpush1.msra.mxu0 0.0
    %4863 = vmatprep.subr.mxu0 0.0
    %4864 = vmatpush1.msra.mxu0 0.0
    %4865 = vmatprep.mubr.f32.mxu0 0.0
    %4866 = vmatmul.mubr.f32.gmra.mrb[0].mxu0 %v4799
    %v4867 = vpop.f32.mrb[0].mxu0
    %v4868 = vadd.f32 0.0, %v4867
    %v4869 = vpop.f32.mrb[0].mxu0
    %v4870 = vadd.f32 0.0, %v4869
    %4871 = vdwg.mxu0
    %v4872 = vadd.f32 %v4509, %v4868
    %v4873 = vadd.f32 %v4511, %v4870
    %v4874 = vmax.f32 %v4872, 0.0
    %v4875 = vmax.f32 %v4873, 0.0
    %v4877 = vsel %vm722, %v4875, 0
    %4879 = vmatprep.subr.mxu0 %v3336
    %4880 = vmatpush1.msra.mxu0 %v3335
    %4881 = vmatprep.subr.mxu0 %v3338
    %4882 = vmatpush1.msra.mxu0 %v3337
    %4883 = vmatprep.subr.mxu0 %v3340
    %4884 = vmatpush1.msra.mxu0 %v3339
    %4885 = vmatprep.subr.mxu0 %v3342
    %4886 = vmatpush1.msra.mxu0 %v3341
    %4887 = vmatprep.subr.mxu0 %v3344
    %4888 = vmatpush1.msra.mxu0 %v3343
    %4889 = vmatprep.subr.mxu0 %v3346
    %4890 = vmatpush1.msra.mxu0 %v3345
    %4891 = vmatprep.subr.mxu0 %v3348
    %4892 = vmatpush1.msra.mxu0 %v3347
    %4893 = vmatprep.subr.mxu0 %v3350
    %4894 = vmatpush1.msra.mxu0 %v3349
    %4895 = vmatprep.subr.mxu0 %v3352
    %4896 = vmatpush1.msra.mxu0 %v3351
    %4897 = vmatprep.subr.mxu0 %v3354
    %4898 = vmatpush1.msra.mxu0 %v3353
    %4899 = vmatprep.subr.mxu0 %v3356
    %4900 = vmatpush1.msra.mxu0 %v3355
    %4901 = vmatprep.subr.mxu0 %v3358
    %4902 = vmatpush1.msra.mxu0 %v3357
    %4903 = vmatprep.subr.mxu0 %v3360
    %4904 = vmatpush1.msra.mxu0 %v3359
    %4905 = vmatprep.subr.mxu0 %v3362
    %4906 = vmatpush1.msra.mxu0 %v3361
    %4907 = vmatprep.subr.mxu0 %v3364
    %4908 = vmatpush1.msra.mxu0 %v3363
    %4909 = vmatprep.subr.mxu0 %v3366
    %4910 = vmatpush1.msra.mxu0 %v3365
    %4911 = vmatprep.subr.mxu0 %v3368
    %4912 = vmatpush1.msra.mxu0 %v3367
    %4913 = vmatprep.subr.mxu0 %v3370
    %4914 = vmatpush1.msra.mxu0 %v3369
    %4915 = vmatprep.subr.mxu0 %v3372
    %4916 = vmatpush1.msra.mxu0 %v3371
    %4917 = vmatprep.subr.mxu0 %v3374
    %4918 = vmatpush1.msra.mxu0 %v3373
    %4919 = vmatprep.subr.mxu0 %v3376
    %4920 = vmatpush1.msra.mxu0 %v3375
    %4921 = vmatprep.subr.mxu0 %v3378
    %4922 = vmatpush1.msra.mxu0 %v3377
    %4923 = vmatprep.subr.mxu0 %v3380
    %4924 = vmatpush1.msra.mxu0 %v3379
    %4925 = vmatprep.subr.mxu0 %v3382
    %4926 = vmatpush1.msra.mxu0 %v3381
    %4927 = vmatprep.subr.mxu0 %v3384
    %4928 = vmatpush1.msra.mxu0 %v3383
    %4929 = vmatprep.subr.mxu0 0.0
    %4930 = vmatpush1.msra.mxu0 0.0
    %4931 = vmatprep.subr.mxu0 0.0
    %4932 = vmatpush1.msra.mxu0 0.0
    %4933 = vmatprep.subr.mxu0 0.0
    %4934 = vmatpush1.msra.mxu0 0.0
    %4935 = vmatprep.subr.mxu0 0.0
    %4936 = vmatpush1.msra.mxu0 0.0
    %4937 = vmatprep.subr.mxu0 0.0
    %4938 = vmatpush1.msra.mxu0 0.0
    %4939 = vmatprep.subr.mxu0 0.0
    %4940 = vmatpush1.msra.mxu0 0.0
    %4941 = vmatprep.subr.mxu0 0.0
    %4942 = vmatpush1.msra.mxu0 0.0
    %4943 = vmatprep.mubr.f32.mxu0 %v4877
    %4944 = vmatmul.mubr.f32.gmra.mrb[0].mxu0 %v4874
    %v4945 = vpop.f32.mrb[0].mxu0
    %v4946 = vadd.f32 %v3390, %v4945
    %v4947 = vpop.f32.mrb[0].mxu0
    %v4948 = vadd.f32 %v3394, %v4947
    %4949 = vdwg.mxu0
    %v4950 = vmax.f32 %v4946, 0.0
    %v4951 = vmax.f32 %v4948, 0.0
    %v4953 = vsel %vm722, %v4951, 0
    %4955 = vmatprep.subr.mxu0 0.0
    %4956 = vmatpush1.msra.mxu0 %v3473
    %4957 = vmatprep.subr.mxu0 0.0
    %4958 = vmatpush1.msra.mxu0 %v3474
    %4959 = vmatprep.subr.mxu0 0.0
    %4960 = vmatpush1.msra.mxu0 %v3475
    %4961 = vmatprep.subr.mxu0 0.0
    %4962 = vmatpush1.msra.mxu0 %v3476
    %4963 = vmatprep.subr.mxu0 0.0
    %4964 = vmatpush1.msra.mxu0 %v3477
    %4965 = vmatprep.subr.mxu0 0.0
    %4966 = vmatpush1.msra.mxu0 %v3478
    %4967 = vmatprep.subr.mxu0 0.0
    %4968 = vmatpush1.msra.mxu0 %v3479
    %4969 = vmatprep.subr.mxu0 0.0
    %4970 = vmatpush1.msra.mxu0 %v3480
    %4971 = vmatprep.subr.mxu0 0.0
    %4972 = vmatpush1.msra.mxu0 %v3481
    %4973 = vmatprep.subr.mxu0 0.0
    %4974 = vmatpush1.msra.mxu0 %v3482
    %4975 = vmatprep.subr.mxu0 0.0
    %4976 = vmatpush1.msra.mxu0 %v3483
    %4977 = vmatprep.subr.mxu0 0.0
    %4978 = vmatpush1.msra.mxu0 %v3484
    %4979 = vmatprep.subr.mxu0 0.0
    %4980 = vmatpush1.msra.mxu0 %v3485
    %4981 = vmatprep.subr.mxu0 0.0
    %4982 = vmatpush1.msra.mxu0 %v3486
    %4983 = vmatprep.subr.mxu0 0.0
    %4984 = vmatpush1.msra.mxu0 %v3487
    %4985 = vmatprep.subr.mxu0 0.0
    %4986 = vmatpush1.msra.mxu0 %v3488
    %4987 = vmatprep.subr.mxu0 0.0
    %4988 = vmatpush1.msra.mxu0 %v3489
    %4989 = vmatprep.subr.mxu0 0.0
    %4990 = vmatpush1.msra.mxu0 %v3490
    %4991 = vmatprep.subr.mxu0 0.0
    %4992 = vmatpush1.msra.mxu0 %v3491
    %4993 = vmatprep.subr.mxu0 0.0
    %4994 = vmatpush1.msra.mxu0 %v3492
    %4995 = vmatprep.subr.mxu0 0.0
    %4996 = vmatpush1.msra.mxu0 %v3493
    %4997 = vmatprep.subr.mxu0 0.0
    %4998 = vmatpush1.msra.mxu0 %v3494
    %4999 = vmatprep.subr.mxu0 0.0
    %5000 = vmatpush1.msra.mxu0 %v3495
    %5001 = vmatprep.subr.mxu0 0.0
    %5002 = vmatpush1.msra.mxu0 %v3496
    %5003 = vmatprep.subr.mxu0 0.0
    %5004 = vmatpush1.msra.mxu0 %v3497
    %5005 = vmatprep.subr.mxu0 0.0
    %5006 = vmatpush1.msra.mxu0 0.0
    %5007 = vmatprep.subr.mxu0 0.0
    %5008 = vmatpush1.msra.mxu0 0.0
    %5009 = vmatprep.subr.mxu0 0.0
    %5010 = vmatpush1.msra.mxu0 0.0
    %5011 = vmatprep.subr.mxu0 0.0
    %5012 = vmatpush1.msra.mxu0 0.0
    %5013 = vmatprep.subr.mxu0 0.0
    %5014 = vmatpush1.msra.mxu0 0.0
    %5015 = vmatprep.subr.mxu0 0.0
    %5016 = vmatpush1.msra.mxu0 0.0
    %5017 = vmatprep.subr.mxu0 0.0
    %5018 = vmatpush1.msra.mxu0 0.0
    %5019 = vmatprep.mubr.f32.mxu0 %v4953
    %5020 = vmatmul.mubr.f32.gmra.mrb[0].mxu0 %v4950
    %v5021 = vpop.f32.mrb[0].mxu0
    %v5022 = vadd.f32 %v3503, %v5021
    %v5023 = vpop.f32.mrb[0].mxu0
    %5024 = vdwg.mxu0
    %v5025 = vmax.f32 %v5022, 0.0
    %v5026 = vand.u32 2147483647, %v5022
    %v5027 = vsub.f32 0.0, %v5026
    %v5028 = vmul.f32 %v5027, 1.442695
    %v5029 = vpow.pop %v5028
    %v5030 = vadd.f32 %v5029, 1.0
    %v5031 = vlog2.pop %v5030
    %v5032 = vmul.f32 %v5031, 0.6931472
    %v5033 = vmul.f32 -0.5, %v5029
    %v5034 = vadd.f32 %v5033, 1.0
    %v5035 = vmul.f32 %v5034, %v5029
    %v5036 = vand.u32 2147483647, %v5029
    %vm5037 = vcmp.lt.f32.partialorder %v5036, 0.0004427343
    %v5038 = vsel %vm5037, %v5035, %v5032
    %v5039 = vadd.f32 %v5025, %v5038
    %v5040 = vmul.f32 %v565, %v5022
    %v5041 = vsub.f32 %v5040, %v5039
    %v5042 = vsel %vm3595, %v5041, 0.0
    %5043 = vadd.xlane.f32.xlu0 %v5042
    %v5044 = vpop.xlane.xlu0 %5043
    %v5045 = vadd.f32 %v5044, %v4513
    %v5046 = vadd.f32 %v5045, %v4797
    %v5047 = vsub.f32 %v5046, %v4791
    %v5048 = vmax.f32 %v4780, %v5047
    %v5049 = vsub.f32 %v4780, %v5048
    %v5050 = vmul.f32 %v5049, 1.442695
    %v5051 = vpow.pop %v5050
    %v5052 = vsub.f32 %v5047, %v5048
    %v5053 = vmul.f32 %v5052, 1.442695
    %v5054 = vpow.pop %v5053
    %v5055 = vadd.f32 %v5051, %v5054
    %v5056 = vlog2.pop %v5055
    %v5057 = vmul.f32 %v5056, 0.6931472
    %v5058 = vadd.f32 %v5048, %v5057
    %v5059 = vsub.f32 %v5058, 0.6931472
    %v5060 = vsub.f32 %v5059, %v3893
    %v5061 = vadd.f32 %v3882, %v5060
    %v5062 = vmul.f32 %v5061, 0.5
    %vm5063 = vcmask 3072
    %5064 = vst.msk [vmem:[%s111] sm:$0xf] %vm5063, %v5062
    // Predicated region
    $region334: #{tpu_custom_call.1} parent=1 // pred_check
      _
    $region335: #{tpu_custom_call.1} parent=1 // pred_check_branch
      %5066 = sbr.rel (0) target = $region337
    $region336: #{tpu_custom_call.1} parent=1 // pred_region
      _
    $region337: #{tpu_custom_call.1} parent=1 // pred_fallthru
      _
    // Predicated region
    $region338: #{tpu_custom_call.1} parent=1 // pred_check
      _
    $region339: #{tpu_custom_call.1} parent=1 // pred_check_branch
      %5068 = sbr.rel (0) target = $region341
    $region340: #{tpu_custom_call.1} parent=1 // pred_region
      _
    $region341: #{tpu_custom_call.1} parent=1 // pred_fallthru
      _
    %5069 = vsyncpa [#allocation3], 1
    %5070 = vsyncpa [#allocation5], 1
    %5071 = vsyncpa [#allocation8], 1
    %5072 = vsyncpa [#allocation11], 1
    %5073 = vsyncpa [#allocation14], 1
    %5074 = vsyncpa [#allocation17], 1
    %5075 = vsyncpa [#allocation20], 1
    %5076 = vsyncpa [#allocation23], 1
    %5077 = vsyncpa [#allocation26], 1
    %5078 = vsyncpa [#allocation29], 1
    %5079 = vsyncpa [#allocation32], 1
    %5080 = vsyncpa [#allocation35], 1
    %5081 = vsyncpa [#allocation38], 1
    %5082 = vsyncpa [#allocation41], 1
    %5083 = vsyncpa [#allocation44], 1

</llo_original>
